<compile_context>
chip_gen: v6e
topology: v6e:2x2x1
jax: 0.10.0
libtpu: 0.0.40
codegen_flags: <defaults>
</compile_context>

<pallas_src>
import math

import jax
import jax.numpy as jnp
from jax import lax
from jax.experimental import pallas as pl
from jax.experimental.pallas import tpu as pltpu

# ---------------- small, synthetic hyper-parameters ----------------
VOCAB      = 50
MAX_POS    = 32
HIDDEN     = 64              # bert_config.hidden_size
N_HEADS    = 2
HEAD_DIM   = HIDDEN // N_HEADS
INTER      = 4 * HIDDEN
N_LAYERS   = 2
LSTM_HID   = 128             # self.lstm_hiden = 128 (hard-coded in the module)
NUM_LABELS = 9               # args.num_labels
MAX_SEQ    = 8               # args.max_seq_len
BATCH      = 2
LN_EPS     = 1e-12


def _layer_norm(h, g, b):
    mu = jnp.mean(h, axis=-1, keepdims=True)
    var = jnp.mean((h - mu) ** 2, axis=-1, keepdims=True)
    return (h - mu) * lax.rsqrt(var + LN_EPS) * g + b


# ============================ fused whole-model kernel ============================
# All (B*S, ...) activations use TIME-MAJOR row order: row (t * B + b).

def _model_kernel(emb_ref, bias_ref, mask_ref,
                  eg_ref, eb_ref,
                  qkvw_ref, qkvb_ref, ow_ref, ob_ref, g1_ref, b1_ref,
                  iw_ref, ib_ref, fow_ref, fob_ref, g2_ref, b2_ref,
                  wihf_ref, whhf_ref, bf_ref, wihb_ref, whhb_ref, bb_ref,
                  linw_ref, linb_ref, trans_ref, start_ref, end_ref,
                  tags_ref, emis_ref,
                  lstm_s, xf_s, xb_s):
    B, S = tags_ref.shape
    H, dH, nH = HIDDEN, HEAD_DIM, N_HEADS
    L = NUM_LABELS
    hid = LSTM_HID
    scale = 1.0 / math.sqrt(dH)

    # ---------------- BERT encoder: embedding LN + N_LAYERS transformer layers ----------------
    x2 = _layer_norm(emb_ref[...], eg_ref[...], eb_ref[...])          # (B*S, H) f32, time-major
    bias2d = bias_ref[...]                                            # (B*S, B*S) additive mask

    for ly in range(N_LAYERS):
        # fused Q/K/V projection: one (B*S, H) @ (H, 3H) matmul (bf16 in, f32 acc)
        qkv = jnp.dot(x2.astype(jnp.bfloat16), qkvw_ref[ly],
                      preferred_element_type=jnp.float32) + qkvb_ref[ly]       # (B*S, 3H) f32
        qkv_bf = qkv.astype(jnp.bfloat16)

        # attention per head, all batches at once; cross-batch / padded keys masked via bias2d
        ctx_heads = []
        for h in range(nH):
            qh = qkv_bf[:, h * dH:(h + 1) * dH]                        # (B*S, dH) bf16
            kh = qkv_bf[:, H + h * dH:H + (h + 1) * dH]
            vh = qkv_bf[:, 2 * H + h * dH:2 * H + (h + 1) * dH]
            # QK^T with the transpose folded into the contraction (no kh.T materialized)
            s = lax.dot_general(qh, kh, (((1,), (1,)), ((), ())),
                                preferred_element_type=jnp.float32) * scale + bias2d
            s = s - jnp.max(s, axis=-1, keepdims=True)
            p = jnp.exp(s)
            p = p * pl.reciprocal(jnp.sum(p, axis=-1, keepdims=True), approx=True)
            ctx_heads.append(jnp.dot(p.astype(jnp.bfloat16), vh,
                                     preferred_element_type=jnp.float32))      # (B*S, dH) f32
        ctx = jnp.concatenate(ctx_heads, axis=-1)                       # (B*S, H) f32, in vregs

        # single output projection for all heads/batches, fused residual + LN
        attn = jnp.dot(ctx.astype(jnp.bfloat16), ow_ref[ly],
                       preferred_element_type=jnp.float32) + ob_ref[ly]
        x2 = _layer_norm(attn + x2, g1_ref[ly], b1_ref[ly])

        inter = jax.nn.gelu(jnp.dot(x2.astype(jnp.bfloat16), iw_ref[ly],
                                    preferred_element_type=jnp.float32) + ib_ref[ly])
        ffn = jnp.dot(inter.astype(jnp.bfloat16), fow_ref[ly],
                      preferred_element_type=jnp.float32) + fob_ref[ly]
        x2 = _layer_norm(ffn + x2, g2_ref[ly], b2_ref[ly])

    # ---------------- BiLSTM: hoisted input projections + batched, unrolled recurrence ----------------
    # PyTorch LSTM dropout=0.1 is a no-op for a single-layer LSTM (eval), so omitted.
    x2_bf = x2.astype(jnp.bfloat16)
    xf_s[...] = jnp.dot(x2_bf, wihf_ref[...], preferred_element_type=jnp.float32) + bf_ref[...]
    xb_s[...] = jnp.dot(x2_bf, wihb_ref[...], preferred_element_type=jnp.float32) + bb_ref[...]

    hf = jnp.zeros((B, hid), jnp.float32)
    cf = jnp.zeros((B, hid), jnp.float32)
    hb = jnp.zeros((B, hid), jnp.float32)
    cb = jnp.zeros((B, hid), jnp.float32)
    for t in range(S):
        # ---- forward direction at time t (all batches at once) ----
        g = xf_s[t * B:(t + 1) * B, :] + jnp.dot(
            hf.astype(jnp.bfloat16), whhf_ref[...], preferred_element_type=jnp.float32)
        i_g = jax.nn.sigmoid(g[:, 0 * hid:1 * hid])
        f_g = jax.nn.sigmoid(g[:, 1 * hid:2 * hid])
        g_g = jnp.tanh(g[:, 2 * hid:3 * hid])
        o_g = jax.nn.sigmoid(g[:, 3 * hid:4 * hid])
        cf = f_g * cf + i_g * g_g
        hf = o_g * jnp.tanh(cf)
        lstm_s[t * B:(t + 1) * B, 0:hid] = hf

        # ---- backward direction at time S-1-t (all batches at once) ----
        tb = S - 1 - t
        gb = xb_s[tb * B:(tb + 1) * B, :] + jnp.dot(
            hb.astype(jnp.bfloat16), whhb_ref[...], preferred_element_type=jnp.float32)
        i_b = jax.nn.sigmoid(gb[:, 0 * hid:1 * hid])
        f_b = jax.nn.sigmoid(gb[:, 1 * hid:2 * hid])
        g_b = jnp.tanh(gb[:, 2 * hid:3 * hid])
        o_b = jax.nn.sigmoid(gb[:, 3 * hid:4 * hid])
        cb = f_b * cb + i_b * g_b
        hb = o_b * jnp.tanh(cb)
        lstm_s[tb * B:(tb + 1) * B, hid:2 * hid] = hb

    # ---------------- emission linear (bf16 in, f32 acc) + CRF Viterbi decode (unrolled) ----------------
    emis_all = jnp.dot(lstm_s[...].astype(jnp.bfloat16), linw_ref[...],
                       preferred_element_type=jnp.float32) + linb_ref[...]     # (B*S, L) time-major
    emis_ref[...] = emis_all

    lane = lax.broadcasted_iota(jnp.int32, (1, L), 1)
    rows_io = lax.broadcasted_iota(jnp.int32, (L, L), 0)
    trans = trans_ref[...]

    for b in range(B):
        # forward Viterbi DP (kept in vregs; no VMEM history buffer)
        score = start_ref[...] + emis_all[b:b + 1, :]                  # (1, L) prev-tag axis
        hist = []
        for t in range(1, S):
            e_t = emis_all[t * B + b:t * B + b + 1, :]                 # (1, L)
            mat = score.T + trans + e_t                                # (L, L): [prev, next]
            mx = jnp.max(mat, axis=0, keepdims=True)                   # (1, L)
            idx = jnp.min(jnp.where(mat == mx, rows_io, L),
                          axis=0, keepdims=True).astype(jnp.int32)     # first-max tie-break
            hist.append(idx)
            valid = mask_ref[b, t] > 0
            score = jnp.where(valid, mx, score)

        final = score + end_ref[...]
        fmax = jnp.max(final)
        cur = jnp.min(jnp.where(final == fmax, lane, L)).astype(jnp.int32)

        # backtracking (right-padded masks: pad positions -> tag 0, state held through them)
        for t in range(S - 1, 0, -1):
            valid = mask_ref[b, t] > 0
            tags_ref[b, t] = jnp.where(valid, cur, 0).astype(jnp.int32)
            row = hist[t - 1]
            prev = jnp.sum(jnp.where(lane == cur, row, 0)).astype(jnp.int32)
            cur = jnp.where(valid, prev, cur)
        tags_ref[b, 0] = cur


# ============================ wrapper ============================

def forward(params, input_ids, attention_mask):
    B, S = input_ids.shape

    # embedding gather + sum stays in XLA (cheap glue); everything else is one kernel.
    emb = (params["word_emb"][input_ids]
           + params["pos_emb"][:S][None, :, :]
           + params["type_emb"][0][None, None, :])                               # (B, S, H)
    # time-major row order (t, b) for the fused kernel
    emb_tm = jnp.transpose(emb, (1, 0, 2)).reshape(S * B, HIDDEN).astype(jnp.float32)

    # (B*S, B*S) additive attention bias: 0 iff same-batch AND key not padded, else -1e4
    bidx = jnp.tile(jnp.arange(B, dtype=jnp.int32), S)                            # batch id per row
    key_ok = jnp.transpose(attention_mask.astype(jnp.int32)).reshape(-1)          # (S*B,) time-major
    bias2d = jnp.where((bidx[:, None] == bidx[None, :]) & (key_ok[None, :] > 0),
                       0.0, -10000.0).astype(jnp.float32)
    mask_i = attention_mask.astype(jnp.int32)

    vm = pl.BlockSpec(memory_space=pltpu.MemorySpace.VMEM)
    sm = pl.BlockSpec(memory_space=pltpu.MemorySpace.SMEM)

    tags, emis_tm = pl.pallas_call(
        _model_kernel,
        out_shape=(jax.ShapeDtypeStruct((B, S), jnp.int32),
                   jax.ShapeDtypeStruct((S * B, NUM_LABELS), jnp.float32)),
        in_specs=[vm, vm, sm] + [vm] * 25,
        out_specs=(sm, vm),
        scratch_shapes=[
            pltpu.VMEM((S * B, 2 * LSTM_HID), jnp.float32),    # BiLSTM outputs (time-major)
            pltpu.VMEM((S * B, 4 * LSTM_HID), jnp.float32),    # hoisted fwd input projection
            pltpu.VMEM((S * B, 4 * LSTM_HID), jnp.float32),    # hoisted bwd input projection
        ],
    )(emb_tm, bias2d, mask_i,
      params["emb_ln_g"], params["emb_ln_b"],
      params["qkv_w"], params["qkv_b"], params["o_w"], params["o_b"],
      params["ln1_g"], params["ln1_b"],
      params["i_w"], params["i_b"], params["fo_w"], params["fo_b"],
      params["ln2_g"], params["ln2_b"],
      params["wih_f"], params["whh_f"], params["b_f"],
      params["wih_b"], params["whh_b"], params["b_b"],
      params["lin_w"], params["lin_b"],
      params["crf_trans"], params["crf_start"], params["crf_end"])

    # back to batch-major (B, S, L) for the emissions
    emis = emis_tm.reshape(S, B, NUM_LABELS).transpose(1, 0, 2)

    # TODO(synk): CRF negative-log-likelihood loss (only computed when labels are given) not implemented.
    return tags, emis


# ============================ deterministic init ============================

def init_params(key):
    keys = iter(jax.random.split(key, 64))
    bf16 = jnp.bfloat16

    def w(shape, scale=0.05, dtype=jnp.float32):
        return (jax.random.normal(next(keys), shape, jnp.float32) * scale).astype(dtype)

    params = {
        "word_emb": w((VOCAB, HIDDEN)),
        "pos_emb": w((MAX_POS, HIDDEN)),
        "type_emb": w((2, HIDDEN)),
        "emb_ln_g": jnp.ones((1, HIDDEN), jnp.float32),
        "emb_ln_b": jnp.zeros((1, HIDDEN), jnp.float32),
        # per-layer encoder weights stacked on a leading layer axis; MXU operands in bf16
        "qkv_w": w((N_LAYERS, HIDDEN, 3 * HIDDEN), dtype=bf16),
        "qkv_b": w((N_LAYERS, 1, 3 * HIDDEN)),
        "o_w":   w((N_LAYERS, HIDDEN, HIDDEN), dtype=bf16),
        "o_b":   w((N_LAYERS, 1, HIDDEN)),
        "ln1_g": jnp.ones((N_LAYERS, 1, HIDDEN), jnp.float32),
        "ln1_b": jnp.zeros((N_LAYERS, 1, HIDDEN), jnp.float32),
        "i_w":   w((N_LAYERS, HIDDEN, INTER), dtype=bf16),
        "i_b":   w((N_LAYERS, 1, INTER)),
        "fo_w":  w((N_LAYERS, INTER, HIDDEN), dtype=bf16),
        "fo_b":  w((N_LAYERS, 1, HIDDEN)),
        "ln2_g": jnp.ones((N_LAYERS, 1, HIDDEN), jnp.float32),
        "ln2_b": jnp.zeros((N_LAYERS, 1, HIDDEN), jnp.float32),
        # BiLSTM
        "wih_f": w((HIDDEN, 4 * LSTM_HID), dtype=bf16),
        "whh_f": w((LSTM_HID, 4 * LSTM_HID), dtype=bf16),
        "b_f":   w((1, 4 * LSTM_HID)),
        "wih_b": w((HIDDEN, 4 * LSTM_HID), dtype=bf16),
        "whh_b": w((LSTM_HID, 4 * LSTM_HID), dtype=bf16),
        "b_b":   w((1, 4 * LSTM_HID)),
        # emission linear in bf16 (f32 accumulate); CRF kept in f32 (decode precision; tiny)
        "lin_w": w((2 * LSTM_HID, NUM_LABELS), dtype=bf16),
        "lin_b": w((1, NUM_LABELS)),
        "crf_trans": w((NUM_LABELS, NUM_LABELS), 0.1),
        "crf_start": w((1, NUM_LABELS), 0.1),
        "crf_end":   w((1, NUM_LABELS), 0.1),
    }
    return params


# ============================ main ============================

if __name__ == "__main__":
    key = jax.random.PRNGKey(0)
    pkey, ikey = jax.random.split(key)
    params = init_params(pkey)

    input_ids = jax.random.randint(ikey, (BATCH, MAX_SEQ), 0, VOCAB, dtype=jnp.int32)
    # batch 0: full length; batch 1: length 6 with 2 padded positions
    attention_mask = jnp.array([[1] * MAX_SEQ, [1] * 6 + [0] * 2], dtype=jnp.int32)

    fwd = jax.jit(forward)
    logits, emissions = fwd(params, input_ids, attention_mask)
    jax.block_until_ready(logits)
    jax.block_until_ready(emissions)

    assert logits.shape == (BATCH, MAX_SEQ) and logits.dtype == jnp.int32
    assert emissions.shape == (BATCH, MAX_SEQ, NUM_LABELS)
    print("KERNEL_OK")
</pallas_src>

<mosaic_0001>
module attributes {stable_mosaic.version = 11 : i64} {
  func.func @_model_kernel(%arg0: memref<16x64xf32, #tpu.memory_space<vmem>>, %arg1: memref<16x16xf32, #tpu.memory_space<vmem>>, %arg2: memref<2x8xi32, #tpu.memory_space<smem>>, %arg3: memref<1x64xf32, #tpu.memory_space<vmem>>, %arg4: memref<1x64xf32, #tpu.memory_space<vmem>>, %arg5: memref<2x64x192xbf16, #tpu.memory_space<vmem>>, %arg6: memref<2x1x192xf32, #tpu.memory_space<vmem>>, %arg7: memref<2x64x64xbf16, #tpu.memory_space<vmem>>, %arg8: memref<2x1x64xf32, #tpu.memory_space<vmem>>, %arg9: memref<2x1x64xf32, #tpu.memory_space<vmem>>, %arg10: memref<2x1x64xf32, #tpu.memory_space<vmem>>, %arg11: memref<2x64x256xbf16, #tpu.memory_space<vmem>>, %arg12: memref<2x1x256xf32, #tpu.memory_space<vmem>>, %arg13: memref<2x256x64xbf16, #tpu.memory_space<vmem>>, %arg14: memref<2x1x64xf32, #tpu.memory_space<vmem>>, %arg15: memref<2x1x64xf32, #tpu.memory_space<vmem>>, %arg16: memref<2x1x64xf32, #tpu.memory_space<vmem>>, %arg17: memref<64x512xbf16, #tpu.memory_space<vmem>>, %arg18: memref<128x512xbf16, #tpu.memory_space<vmem>>, %arg19: memref<1x512xf32, #tpu.memory_space<vmem>>, %arg20: memref<64x512xbf16, #tpu.memory_space<vmem>>, %arg21: memref<128x512xbf16, #tpu.memory_space<vmem>>, %arg22: memref<1x512xf32, #tpu.memory_space<vmem>>, %arg23: memref<256x9xbf16, #tpu.memory_space<vmem>>, %arg24: memref<1x9xf32, #tpu.memory_space<vmem>>, %arg25: memref<9x9xf32, #tpu.memory_space<vmem>>, %arg26: memref<1x9xf32, #tpu.memory_space<vmem>>, %arg27: memref<1x9xf32, #tpu.memory_space<vmem>>, %arg28: memref<2x8xi32, #tpu.memory_space<smem>>, %arg29: memref<16x9xf32, #tpu.memory_space<vmem>>, %arg30: memref<16x256xf32, #tpu.memory_space<vmem>>, %arg31: memref<16x512xf32, #tpu.memory_space<vmem>>, %arg32: memref<16x512xf32, #tpu.memory_space<vmem>>) attributes {dimension_semantics = [], scalar_prefetch = 0 : i64, scratch_operands = 3 : i64, tpu.core_type = #tpu.core_type<tc>} {
    %c0 = arith.constant 0 : index
    %c0_0 = arith.constant 0 : index
    %0 = vector.load %arg0[%c0, %c0_0] : memref<16x64xf32, #tpu.memory_space<vmem>>, vector<16x64xf32>
    %c0_1 = arith.constant 0 : index
    %c0_2 = arith.constant 0 : index
    %1 = vector.load %arg3[%c0_1, %c0_2] : memref<1x64xf32, #tpu.memory_space<vmem>>, vector<1x64xf32>
    %c0_3 = arith.constant 0 : index
    %c0_4 = arith.constant 0 : index
    %2 = vector.load %arg4[%c0_3, %c0_4] : memref<1x64xf32, #tpu.memory_space<vmem>>, vector<1x64xf32>
    %cst = arith.constant dense<0.000000e+00> : vector<16xf32>
    %3 = vector.multi_reduction <add>, %0, %cst [1] : vector<16x64xf32> to vector<16xf32>
    %4 = vector.shape_cast %3 : vector<16xf32> to vector<16x1xf32>
    %cst_5 = arith.constant 6.400000e+01 : f32
    %5 = vector.broadcast %cst_5 : f32 to vector<16x1xf32>
    %6 = arith.divf %4, %5 : vector<16x1xf32>
    %7 = vector.broadcast %6 : vector<16x1xf32> to vector<16x64xf32>
    %8 = arith.subf %0, %7 : vector<16x64xf32>
    %9 = arith.mulf %8, %8 : vector<16x64xf32>
    %cst_6 = arith.constant dense<0.000000e+00> : vector<16xf32>
    %10 = vector.multi_reduction <add>, %9, %cst_6 [1] : vector<16x64xf32> to vector<16xf32>
    %11 = vector.shape_cast %10 : vector<16xf32> to vector<16x1xf32>
    %cst_7 = arith.constant 6.400000e+01 : f32
    %12 = vector.broadcast %cst_7 : f32 to vector<16x1xf32>
    %13 = arith.divf %11, %12 : vector<16x1xf32>
    %14 = vector.broadcast %6 : vector<16x1xf32> to vector<16x64xf32>
    %15 = arith.subf %0, %14 : vector<16x64xf32>
    %cst_8 = arith.constant 9.99999996E-13 : f32
    %16 = vector.broadcast %cst_8 : f32 to vector<16x1xf32>
    %17 = arith.addf %13, %16 : vector<16x1xf32>
    %18 = math.rsqrt %17 : vector<16x1xf32>
    %19 = vector.broadcast %18 : vector<16x1xf32> to vector<16x64xf32>
    %20 = arith.mulf %15, %19 : vector<16x64xf32>
    %21 = vector.broadcast %1 : vector<1x64xf32> to vector<16x64xf32>
    %22 = arith.mulf %20, %21 : vector<16x64xf32>
    %23 = vector.broadcast %2 : vector<1x64xf32> to vector<16x64xf32>
    %24 = arith.addf %22, %23 : vector<16x64xf32>
    %c0_9 = arith.constant 0 : index
    %c0_10 = arith.constant 0 : index
    %25 = vector.load %arg1[%c0_9, %c0_10] : memref<16x16xf32, #tpu.memory_space<vmem>>, vector<16x16xf32>
    %26 = arith.truncf %24 : vector<16x64xf32> to vector<16x64xbf16>
    %c0_11 = arith.constant 0 : index
    %c0_12 = arith.constant 0 : index
    %c0_13 = arith.constant 0 : index
    %27 = vector.load %arg5[%c0_11, %c0_12, %c0_13] : memref<2x64x192xbf16, #tpu.memory_space<vmem>>, vector<1x64x192xbf16>
    %28 = vector.shape_cast %27 : vector<1x64x192xbf16> to vector<64x192xbf16>
    %cst_14 = arith.constant dense<0.000000e+00> : vector<16x192xf32>
    %29 = tpu.matmul %26, %28, %cst_14 {dimension_numbers = #tpu.dot_dimension_numbers<[1], [0], [0], [1], [0, 0, 1, 1], [], []>} : vector<16x64xbf16>, vector<64x192xbf16>, vector<16x192xf32> -> vector<16x192xf32>
    %c0_15 = arith.constant 0 : index
    %c0_16 = arith.constant 0 : index
    %c0_17 = arith.constant 0 : index
    %30 = vector.load %arg6[%c0_15, %c0_16, %c0_17] : memref<2x1x192xf32, #tpu.memory_space<vmem>>, vector<1x1x192xf32>
    %31 = vector.shape_cast %30 : vector<1x1x192xf32> to vector<1x192xf32>
    %32 = vector.broadcast %31 : vector<1x192xf32> to vector<16x192xf32>
    %33 = arith.addf %29, %32 : vector<16x192xf32>
    %34 = arith.truncf %33 : vector<16x192xf32> to vector<16x192xbf16>
    %35 = vector.extract_strided_slice %34 {offsets = [0, 0], sizes = [16, 32], strides = [1, 1]} : vector<16x192xbf16> to vector<16x32xbf16>
    %36 = vector.extract_strided_slice %34 {offsets = [0, 64], sizes = [16, 32], strides = [1, 1]} : vector<16x192xbf16> to vector<16x32xbf16>
    %37 = vector.extract_strided_slice %34 {offsets = [0, 128], sizes = [16, 32], strides = [1, 1]} : vector<16x192xbf16> to vector<16x32xbf16>
    %cst_18 = arith.constant dense<0.000000e+00> : vector<16x16xf32>
    %38 = tpu.matmul %35, %36, %cst_18 {dimension_numbers = #tpu.dot_dimension_numbers<[1], [1], [0], [0], [0, 0, 1, 0], [], []>} : vector<16x32xbf16>, vector<16x32xbf16>, vector<16x16xf32> -> vector<16x16xf32>
    %cst_19 = arith.constant 0.176776692 : f32
    %39 = vector.broadcast %cst_19 : f32 to vector<16x16xf32>
    %40 = arith.mulf %38, %39 : vector<16x16xf32>
    %41 = arith.addf %40, %25 : vector<16x16xf32>
    %cst_20 = arith.constant dense<0xFF800000> : vector<16xf32>
    %42 = vector.multi_reduction <maximumf>, %41, %cst_20 [1] : vector<16x16xf32> to vector<16xf32>
    %43 = vector.shape_cast %42 : vector<16xf32> to vector<16x1xf32>
    %44 = vector.broadcast %43 : vector<16x1xf32> to vector<16x16xf32>
    %45 = arith.subf %41, %44 : vector<16x16xf32>
    %46 = math.exp %45 : vector<16x16xf32>
    %cst_21 = arith.constant dense<0.000000e+00> : vector<16xf32>
    %47 = vector.multi_reduction <add>, %46, %cst_21 [1] : vector<16x16xf32> to vector<16xf32>
    %48 = vector.shape_cast %47 : vector<16xf32> to vector<16x1xf32>
    %49 = tpu.reciprocal %48 {approx = true} : vector<16x1xf32> -> vector<16x1xf32>
    %50 = vector.broadcast %49 : vector<16x1xf32> to vector<16x16xf32>
    %51 = arith.mulf %46, %50 : vector<16x16xf32>
    %52 = arith.truncf %51 : vector<16x16xf32> to vector<16x16xbf16>
    %cst_22 = arith.constant dense<0.000000e+00> : vector<16x32xf32>
    %53 = tpu.matmul %52, %37, %cst_22 {dimension_numbers = #tpu.dot_dimension_numbers<[1], [0], [0], [1], [0, 0, 1, 1], [], []>} : vector<16x16xbf16>, vector<16x32xbf16>, vector<16x32xf32> -> vector<16x32xf32>
    %54 = vector.extract_strided_slice %34 {offsets = [0, 32], sizes = [16, 32], strides = [1, 1]} : vector<16x192xbf16> to vector<16x32xbf16>
    %55 = vector.extract_strided_slice %34 {offsets = [0, 96], sizes = [16, 32], strides = [1, 1]} : vector<16x192xbf16> to vector<16x32xbf16>
    %56 = vector.extract_strided_slice %34 {offsets = [0, 160], sizes = [16, 32], strides = [1, 1]} : vector<16x192xbf16> to vector<16x32xbf16>
    %cst_23 = arith.constant dense<0.000000e+00> : vector<16x16xf32>
    %57 = tpu.matmul %54, %55, %cst_23 {dimension_numbers = #tpu.dot_dimension_numbers<[1], [1], [0], [0], [0, 0, 1, 0], [], []>} : vector<16x32xbf16>, vector<16x32xbf16>, vector<16x16xf32> -> vector<16x16xf32>
    %cst_24 = arith.constant 0.176776692 : f32
    %58 = vector.broadcast %cst_24 : f32 to vector<16x16xf32>
    %59 = arith.mulf %57, %58 : vector<16x16xf32>
    %60 = arith.addf %59, %25 : vector<16x16xf32>
    %cst_25 = arith.constant dense<0xFF800000> : vector<16xf32>
    %61 = vector.multi_reduction <maximumf>, %60, %cst_25 [1] : vector<16x16xf32> to vector<16xf32>
    %62 = vector.shape_cast %61 : vector<16xf32> to vector<16x1xf32>
    %63 = vector.broadcast %62 : vector<16x1xf32> to vector<16x16xf32>
    %64 = arith.subf %60, %63 : vector<16x16xf32>
    %65 = math.exp %64 : vector<16x16xf32>
    %cst_26 = arith.constant dense<0.000000e+00> : vector<16xf32>
    %66 = vector.multi_reduction <add>, %65, %cst_26 [1] : vector<16x16xf32> to vector<16xf32>
    %67 = vector.shape_cast %66 : vector<16xf32> to vector<16x1xf32>
    %68 = tpu.reciprocal %67 {approx = true} : vector<16x1xf32> -> vector<16x1xf32>
    %69 = vector.broadcast %68 : vector<16x1xf32> to vector<16x16xf32>
    %70 = arith.mulf %65, %69 : vector<16x16xf32>
    %71 = arith.truncf %70 : vector<16x16xf32> to vector<16x16xbf16>
    %cst_27 = arith.constant dense<0.000000e+00> : vector<16x32xf32>
    %72 = tpu.matmul %71, %56, %cst_27 {dimension_numbers = #tpu.dot_dimension_numbers<[1], [0], [0], [1], [0, 0, 1, 1], [], []>} : vector<16x16xbf16>, vector<16x32xbf16>, vector<16x32xf32> -> vector<16x32xf32>
    %73 = tpu.concatenate %53, %72 in 1 : vector<16x32xf32>, vector<16x32xf32> -> vector<16x64xf32>
    %74 = arith.truncf %73 : vector<16x64xf32> to vector<16x64xbf16>
    %c0_28 = arith.constant 0 : index
    %c0_29 = arith.constant 0 : index
    %c0_30 = arith.constant 0 : index
    %75 = vector.load %arg7[%c0_28, %c0_29, %c0_30] : memref<2x64x64xbf16, #tpu.memory_space<vmem>>, vector<1x64x64xbf16>
    %76 = vector.shape_cast %75 : vector<1x64x64xbf16> to vector<64x64xbf16>
    %cst_31 = arith.constant dense<0.000000e+00> : vector<16x64xf32>
    %77 = tpu.matmul %74, %76, %cst_31 {dimension_numbers = #tpu.dot_dimension_numbers<[1], [0], [0], [1], [0, 0, 1, 1], [], []>} : vector<16x64xbf16>, vector<64x64xbf16>, vector<16x64xf32> -> vector<16x64xf32>
    %c0_32 = arith.constant 0 : index
    %c0_33 = arith.constant 0 : index
    %c0_34 = arith.constant 0 : index
    %78 = vector.load %arg8[%c0_32, %c0_33, %c0_34] : memref<2x1x64xf32, #tpu.memory_space<vmem>>, vector<1x1x64xf32>
    %79 = vector.shape_cast %78 : vector<1x1x64xf32> to vector<1x64xf32>
    %80 = vector.broadcast %79 : vector<1x64xf32> to vector<16x64xf32>
    %81 = arith.addf %77, %80 : vector<16x64xf32>
    %82 = arith.addf %81, %24 : vector<16x64xf32>
    %c0_35 = arith.constant 0 : index
    %c0_36 = arith.constant 0 : index
    %c0_37 = arith.constant 0 : index
    %83 = vector.load %arg9[%c0_35, %c0_36, %c0_37] : memref<2x1x64xf32, #tpu.memory_space<vmem>>, vector<1x1x64xf32>
    %84 = vector.shape_cast %83 : vector<1x1x64xf32> to vector<1x64xf32>
    %c0_38 = arith.constant 0 : index
    %c0_39 = arith.constant 0 : index
    %c0_40 = arith.constant 0 : index
    %85 = vector.load %arg10[%c0_38, %c0_39, %c0_40] : memref<2x1x64xf32, #tpu.memory_space<vmem>>, vector<1x1x64xf32>
    %86 = vector.shape_cast %85 : vector<1x1x64xf32> to vector<1x64xf32>
    %cst_41 = arith.constant dense<0.000000e+00> : vector<16xf32>
    %87 = vector.multi_reduction <add>, %82, %cst_41 [1] : vector<16x64xf32> to vector<16xf32>
    %88 = vector.shape_cast %87 : vector<16xf32> to vector<16x1xf32>
    %cst_42 = arith.constant 6.400000e+01 : f32
    %89 = vector.broadcast %cst_42 : f32 to vector<16x1xf32>
    %90 = arith.divf %88, %89 : vector<16x1xf32>
    %91 = vector.broadcast %90 : vector<16x1xf32> to vector<16x64xf32>
    %92 = arith.subf %82, %91 : vector<16x64xf32>
    %93 = arith.mulf %92, %92 : vector<16x64xf32>
    %cst_43 = arith.constant dense<0.000000e+00> : vector<16xf32>
    %94 = vector.multi_reduction <add>, %93, %cst_43 [1] : vector<16x64xf32> to vector<16xf32>
    %95 = vector.shape_cast %94 : vector<16xf32> to vector<16x1xf32>
    %cst_44 = arith.constant 6.400000e+01 : f32
    %96 = vector.broadcast %cst_44 : f32 to vector<16x1xf32>
    %97 = arith.divf %95, %96 : vector<16x1xf32>
    %98 = vector.broadcast %90 : vector<16x1xf32> to vector<16x64xf32>
    %99 = arith.subf %82, %98 : vector<16x64xf32>
    %cst_45 = arith.constant 9.99999996E-13 : f32
    %100 = vector.broadcast %cst_45 : f32 to vector<16x1xf32>
    %101 = arith.addf %97, %100 : vector<16x1xf32>
    %102 = math.rsqrt %101 : vector<16x1xf32>
    %103 = vector.broadcast %102 : vector<16x1xf32> to vector<16x64xf32>
    %104 = arith.mulf %99, %103 : vector<16x64xf32>
    %105 = vector.broadcast %84 : vector<1x64xf32> to vector<16x64xf32>
    %106 = arith.mulf %104, %105 : vector<16x64xf32>
    %107 = vector.broadcast %86 : vector<1x64xf32> to vector<16x64xf32>
    %108 = arith.addf %106, %107 : vector<16x64xf32>
    %109 = arith.truncf %108 : vector<16x64xf32> to vector<16x64xbf16>
    %c0_46 = arith.constant 0 : index
    %c0_47 = arith.constant 0 : index
    %c0_48 = arith.constant 0 : index
    %110 = vector.load %arg11[%c0_46, %c0_47, %c0_48] : memref<2x64x256xbf16, #tpu.memory_space<vmem>>, vector<1x64x256xbf16>
    %111 = vector.shape_cast %110 : vector<1x64x256xbf16> to vector<64x256xbf16>
    %cst_49 = arith.constant dense<0.000000e+00> : vector<16x256xf32>
    %112 = tpu.matmul %109, %111, %cst_49 {dimension_numbers = #tpu.dot_dimension_numbers<[1], [0], [0], [1], [0, 0, 1, 1], [], []>} : vector<16x64xbf16>, vector<64x256xbf16>, vector<16x256xf32> -> vector<16x256xf32>
    %c0_50 = arith.constant 0 : index
    %c0_51 = arith.constant 0 : index
    %c0_52 = arith.constant 0 : index
    %113 = vector.load %arg12[%c0_50, %c0_51, %c0_52] : memref<2x1x256xf32, #tpu.memory_space<vmem>>, vector<1x1x256xf32>
    %114 = vector.shape_cast %113 : vector<1x1x256xf32> to vector<1x256xf32>
    %115 = vector.broadcast %114 : vector<1x256xf32> to vector<16x256xf32>
    %116 = arith.addf %112, %115 : vector<16x256xf32>
    %117 = arith.mulf %116, %116 : vector<16x256xf32>
    %118 = arith.mulf %116, %117 : vector<16x256xf32>
    %cst_53 = arith.constant 4.471500e-02 : f32
    %119 = vector.broadcast %cst_53 : f32 to vector<16x256xf32>
    %120 = arith.mulf %119, %118 : vector<16x256xf32>
    %121 = arith.addf %116, %120 : vector<16x256xf32>
    %cst_54 = arith.constant 0.797884583 : f32
    %122 = vector.broadcast %cst_54 : f32 to vector<16x256xf32>
    %123 = arith.mulf %122, %121 : vector<16x256xf32>
    %124 = math.tanh %123 : vector<16x256xf32>
    %cst_55 = arith.constant 1.000000e+00 : f32
    %125 = vector.broadcast %cst_55 : f32 to vector<16x256xf32>
    %126 = arith.addf %125, %124 : vector<16x256xf32>
    %cst_56 = arith.constant 5.000000e-01 : f32
    %127 = vector.broadcast %cst_56 : f32 to vector<16x256xf32>
    %128 = arith.mulf %127, %126 : vector<16x256xf32>
    %129 = arith.mulf %116, %128 : vector<16x256xf32>
    %130 = arith.truncf %129 : vector<16x256xf32> to vector<16x256xbf16>
    %c0_57 = arith.constant 0 : index
    %c0_58 = arith.constant 0 : index
    %c0_59 = arith.constant 0 : index
    %131 = vector.load %arg13[%c0_57, %c0_58, %c0_59] : memref<2x256x64xbf16, #tpu.memory_space<vmem>>, vector<1x256x64xbf16>
    %132 = vector.shape_cast %131 : vector<1x256x64xbf16> to vector<256x64xbf16>
    %cst_60 = arith.constant dense<0.000000e+00> : vector<16x64xf32>
    %133 = tpu.matmul %130, %132, %cst_60 {dimension_numbers = #tpu.dot_dimension_numbers<[1], [0], [0], [1], [0, 0, 1, 1], [], []>} : vector<16x256xbf16>, vector<256x64xbf16>, vector<16x64xf32> -> vector<16x64xf32>
    %c0_61 = arith.constant 0 : index
    %c0_62 = arith.constant 0 : index
    %c0_63 = arith.constant 0 : index
    %134 = vector.load %arg14[%c0_61, %c0_62, %c0_63] : memref<2x1x64xf32, #tpu.memory_space<vmem>>, vector<1x1x64xf32>
    %135 = vector.shape_cast %134 : vector<1x1x64xf32> to vector<1x64xf32>
    %136 = vector.broadcast %135 : vector<1x64xf32> to vector<16x64xf32>
    %137 = arith.addf %133, %136 : vector<16x64xf32>
    %138 = arith.addf %137, %108 : vector<16x64xf32>
    %c0_64 = arith.constant 0 : index
    %c0_65 = arith.constant 0 : index
    %c0_66 = arith.constant 0 : index
    %139 = vector.load %arg15[%c0_64, %c0_65, %c0_66] : memref<2x1x64xf32, #tpu.memory_space<vmem>>, vector<1x1x64xf32>
    %140 = vector.shape_cast %139 : vector<1x1x64xf32> to vector<1x64xf32>
    %c0_67 = arith.constant 0 : index
    %c0_68 = arith.constant 0 : index
    %c0_69 = arith.constant 0 : index
    %141 = vector.load %arg16[%c0_67, %c0_68, %c0_69] : memref<2x1x64xf32, #tpu.memory_space<vmem>>, vector<1x1x64xf32>
    %142 = vector.shape_cast %141 : vector<1x1x64xf32> to vector<1x64xf32>
    %cst_70 = arith.constant dense<0.000000e+00> : vector<16xf32>
    %143 = vector.multi_reduction <add>, %138, %cst_70 [1] : vector<16x64xf32> to vector<16xf32>
    %144 = vector.shape_cast %143 : vector<16xf32> to vector<16x1xf32>
    %cst_71 = arith.constant 6.400000e+01 : f32
    %145 = vector.broadcast %cst_71 : f32 to vector<16x1xf32>
    %146 = arith.divf %144, %145 : vector<16x1xf32>
    %147 = vector.broadcast %146 : vector<16x1xf32> to vector<16x64xf32>
    %148 = arith.subf %138, %147 : vector<16x64xf32>
    %149 = arith.mulf %148, %148 : vector<16x64xf32>
    %cst_72 = arith.constant dense<0.000000e+00> : vector<16xf32>
    %150 = vector.multi_reduction <add>, %149, %cst_72 [1] : vector<16x64xf32> to vector<16xf32>
    %151 = vector.shape_cast %150 : vector<16xf32> to vector<16x1xf32>
    %cst_73 = arith.constant 6.400000e+01 : f32
    %152 = vector.broadcast %cst_73 : f32 to vector<16x1xf32>
    %153 = arith.divf %151, %152 : vector<16x1xf32>
    %154 = vector.broadcast %146 : vector<16x1xf32> to vector<16x64xf32>
    %155 = arith.subf %138, %154 : vector<16x64xf32>
    %cst_74 = arith.constant 9.99999996E-13 : f32
    %156 = vector.broadcast %cst_74 : f32 to vector<16x1xf32>
    %157 = arith.addf %153, %156 : vector<16x1xf32>
    %158 = math.rsqrt %157 : vector<16x1xf32>
    %159 = vector.broadcast %158 : vector<16x1xf32> to vector<16x64xf32>
    %160 = arith.mulf %155, %159 : vector<16x64xf32>
    %161 = vector.broadcast %140 : vector<1x64xf32> to vector<16x64xf32>
    %162 = arith.mulf %160, %161 : vector<16x64xf32>
    %163 = vector.broadcast %142 : vector<1x64xf32> to vector<16x64xf32>
    %164 = arith.addf %162, %163 : vector<16x64xf32>
    %165 = arith.truncf %164 : vector<16x64xf32> to vector<16x64xbf16>
    %c1 = arith.constant 1 : index
    %c0_75 = arith.constant 0 : index
    %c0_76 = arith.constant 0 : index
    %166 = vector.load %arg5[%c1, %c0_75, %c0_76] : memref<2x64x192xbf16, #tpu.memory_space<vmem>>, vector<1x64x192xbf16>
    %167 = vector.shape_cast %166 : vector<1x64x192xbf16> to vector<64x192xbf16>
    %cst_77 = arith.constant dense<0.000000e+00> : vector<16x192xf32>
    %168 = tpu.matmul %165, %167, %cst_77 {dimension_numbers = #tpu.dot_dimension_numbers<[1], [0], [0], [1], [0, 0, 1, 1], [], []>} : vector<16x64xbf16>, vector<64x192xbf16>, vector<16x192xf32> -> vector<16x192xf32>
    %c1_78 = arith.constant 1 : index
    %c0_79 = arith.constant 0 : index
    %c0_80 = arith.constant 0 : index
    %169 = vector.load %arg6[%c1_78, %c0_79, %c0_80] : memref<2x1x192xf32, #tpu.memory_space<vmem>>, vector<1x1x192xf32>
    %170 = vector.shape_cast %169 : vector<1x1x192xf32> to vector<1x192xf32>
    %171 = vector.broadcast %170 : vector<1x192xf32> to vector<16x192xf32>
    %172 = arith.addf %168, %171 : vector<16x192xf32>
    %173 = arith.truncf %172 : vector<16x192xf32> to vector<16x192xbf16>
    %174 = vector.extract_strided_slice %173 {offsets = [0, 0], sizes = [16, 32], strides = [1, 1]} : vector<16x192xbf16> to vector<16x32xbf16>
    %175 = vector.extract_strided_slice %173 {offsets = [0, 64], sizes = [16, 32], strides = [1, 1]} : vector<16x192xbf16> to vector<16x32xbf16>
    %176 = vector.extract_strided_slice %173 {offsets = [0, 128], sizes = [16, 32], strides = [1, 1]} : vector<16x192xbf16> to vector<16x32xbf16>
    %cst_81 = arith.constant dense<0.000000e+00> : vector<16x16xf32>
    %177 = tpu.matmul %174, %175, %cst_81 {dimension_numbers = #tpu.dot_dimension_numbers<[1], [1], [0], [0], [0, 0, 1, 0], [], []>} : vector<16x32xbf16>, vector<16x32xbf16>, vector<16x16xf32> -> vector<16x16xf32>
    %cst_82 = arith.constant 0.176776692 : f32
    %178 = vector.broadcast %cst_82 : f32 to vector<16x16xf32>
    %179 = arith.mulf %177, %178 : vector<16x16xf32>
    %180 = arith.addf %179, %25 : vector<16x16xf32>
    %cst_83 = arith.constant dense<0xFF800000> : vector<16xf32>
    %181 = vector.multi_reduction <maximumf>, %180, %cst_83 [1] : vector<16x16xf32> to vector<16xf32>
    %182 = vector.shape_cast %181 : vector<16xf32> to vector<16x1xf32>
    %183 = vector.broadcast %182 : vector<16x1xf32> to vector<16x16xf32>
    %184 = arith.subf %180, %183 : vector<16x16xf32>
    %185 = math.exp %184 : vector<16x16xf32>
    %cst_84 = arith.constant dense<0.000000e+00> : vector<16xf32>
    %186 = vector.multi_reduction <add>, %185, %cst_84 [1] : vector<16x16xf32> to vector<16xf32>
    %187 = vector.shape_cast %186 : vector<16xf32> to vector<16x1xf32>
    %188 = tpu.reciprocal %187 {approx = true} : vector<16x1xf32> -> vector<16x1xf32>
    %189 = vector.broadcast %188 : vector<16x1xf32> to vector<16x16xf32>
    %190 = arith.mulf %185, %189 : vector<16x16xf32>
    %191 = arith.truncf %190 : vector<16x16xf32> to vector<16x16xbf16>
    %cst_85 = arith.constant dense<0.000000e+00> : vector<16x32xf32>
    %192 = tpu.matmul %191, %176, %cst_85 {dimension_numbers = #tpu.dot_dimension_numbers<[1], [0], [0], [1], [0, 0, 1, 1], [], []>} : vector<16x16xbf16>, vector<16x32xbf16>, vector<16x32xf32> -> vector<16x32xf32>
    %193 = vector.extract_strided_slice %173 {offsets = [0, 32], sizes = [16, 32], strides = [1, 1]} : vector<16x192xbf16> to vector<16x32xbf16>
    %194 = vector.extract_strided_slice %173 {offsets = [0, 96], sizes = [16, 32], strides = [1, 1]} : vector<16x192xbf16> to vector<16x32xbf16>
    %195 = vector.extract_strided_slice %173 {offsets = [0, 160], sizes = [16, 32], strides = [1, 1]} : vector<16x192xbf16> to vector<16x32xbf16>
    %cst_86 = arith.constant dense<0.000000e+00> : vector<16x16xf32>
    %196 = tpu.matmul %193, %194, %cst_86 {dimension_numbers = #tpu.dot_dimension_numbers<[1], [1], [0], [0], [0, 0, 1, 0], [], []>} : vector<16x32xbf16>, vector<16x32xbf16>, vector<16x16xf32> -> vector<16x16xf32>
    %cst_87 = arith.constant 0.176776692 : f32
    %197 = vector.broadcast %cst_87 : f32 to vector<16x16xf32>
    %198 = arith.mulf %196, %197 : vector<16x16xf32>
    %199 = arith.addf %198, %25 : vector<16x16xf32>
    %cst_88 = arith.constant dense<0xFF800000> : vector<16xf32>
    %200 = vector.multi_reduction <maximumf>, %199, %cst_88 [1] : vector<16x16xf32> to vector<16xf32>
    %201 = vector.shape_cast %200 : vector<16xf32> to vector<16x1xf32>
    %202 = vector.broadcast %201 : vector<16x1xf32> to vector<16x16xf32>
    %203 = arith.subf %199, %202 : vector<16x16xf32>
    %204 = math.exp %203 : vector<16x16xf32>
    %cst_89 = arith.constant dense<0.000000e+00> : vector<16xf32>
    %205 = vector.multi_reduction <add>, %204, %cst_89 [1] : vector<16x16xf32> to vector<16xf32>
    %206 = vector.shape_cast %205 : vector<16xf32> to vector<16x1xf32>
    %207 = tpu.reciprocal %206 {approx = true} : vector<16x1xf32> -> vector<16x1xf32>
    %208 = vector.broadcast %207 : vector<16x1xf32> to vector<16x16xf32>
    %209 = arith.mulf %204, %208 : vector<16x16xf32>
    %210 = arith.truncf %209 : vector<16x16xf32> to vector<16x16xbf16>
    %cst_90 = arith.constant dense<0.000000e+00> : vector<16x32xf32>
    %211 = tpu.matmul %210, %195, %cst_90 {dimension_numbers = #tpu.dot_dimension_numbers<[1], [0], [0], [1], [0, 0, 1, 1], [], []>} : vector<16x16xbf16>, vector<16x32xbf16>, vector<16x32xf32> -> vector<16x32xf32>
    %212 = tpu.concatenate %192, %211 in 1 : vector<16x32xf32>, vector<16x32xf32> -> vector<16x64xf32>
    %213 = arith.truncf %212 : vector<16x64xf32> to vector<16x64xbf16>
    %c1_91 = arith.constant 1 : index
    %c0_92 = arith.constant 0 : index
    %c0_93 = arith.constant 0 : index
    %214 = vector.load %arg7[%c1_91, %c0_92, %c0_93] : memref<2x64x64xbf16, #tpu.memory_space<vmem>>, vector<1x64x64xbf16>
    %215 = vector.shape_cast %214 : vector<1x64x64xbf16> to vector<64x64xbf16>
    %cst_94 = arith.constant dense<0.000000e+00> : vector<16x64xf32>
    %216 = tpu.matmul %213, %215, %cst_94 {dimension_numbers = #tpu.dot_dimension_numbers<[1], [0], [0], [1], [0, 0, 1, 1], [], []>} : vector<16x64xbf16>, vector<64x64xbf16>, vector<16x64xf32> -> vector<16x64xf32>
    %c1_95 = arith.constant 1 : index
    %c0_96 = arith.constant 0 : index
    %c0_97 = arith.constant 0 : index
    %217 = vector.load %arg8[%c1_95, %c0_96, %c0_97] : memref<2x1x64xf32, #tpu.memory_space<vmem>>, vector<1x1x64xf32>
    %218 = vector.shape_cast %217 : vector<1x1x64xf32> to vector<1x64xf32>
    %219 = vector.broadcast %218 : vector<1x64xf32> to vector<16x64xf32>
    %220 = arith.addf %216, %219 : vector<16x64xf32>
    %221 = arith.addf %220, %164 : vector<16x64xf32>
    %c1_98 = arith.constant 1 : index
    %c0_99 = arith.constant 0 : index
    %c0_100 = arith.constant 0 : index
    %222 = vector.load %arg9[%c1_98, %c0_99, %c0_100] : memref<2x1x64xf32, #tpu.memory_space<vmem>>, vector<1x1x64xf32>
    %223 = vector.shape_cast %222 : vector<1x1x64xf32> to vector<1x64xf32>
    %c1_101 = arith.constant 1 : index
    %c0_102 = arith.constant 0 : index
    %c0_103 = arith.constant 0 : index
    %224 = vector.load %arg10[%c1_101, %c0_102, %c0_103] : memref<2x1x64xf32, #tpu.memory_space<vmem>>, vector<1x1x64xf32>
    %225 = vector.shape_cast %224 : vector<1x1x64xf32> to vector<1x64xf32>
    %cst_104 = arith.constant dense<0.000000e+00> : vector<16xf32>
    %226 = vector.multi_reduction <add>, %221, %cst_104 [1] : vector<16x64xf32> to vector<16xf32>
    %227 = vector.shape_cast %226 : vector<16xf32> to vector<16x1xf32>
    %cst_105 = arith.constant 6.400000e+01 : f32
    %228 = vector.broadcast %cst_105 : f32 to vector<16x1xf32>
    %229 = arith.divf %227, %228 : vector<16x1xf32>
    %230 = vector.broadcast %229 : vector<16x1xf32> to vector<16x64xf32>
    %231 = arith.subf %221, %230 : vector<16x64xf32>
    %232 = arith.mulf %231, %231 : vector<16x64xf32>
    %cst_106 = arith.constant dense<0.000000e+00> : vector<16xf32>
    %233 = vector.multi_reduction <add>, %232, %cst_106 [1] : vector<16x64xf32> to vector<16xf32>
    %234 = vector.shape_cast %233 : vector<16xf32> to vector<16x1xf32>
    %cst_107 = arith.constant 6.400000e+01 : f32
    %235 = vector.broadcast %cst_107 : f32 to vector<16x1xf32>
    %236 = arith.divf %234, %235 : vector<16x1xf32>
    %237 = vector.broadcast %229 : vector<16x1xf32> to vector<16x64xf32>
    %238 = arith.subf %221, %237 : vector<16x64xf32>
    %cst_108 = arith.constant 9.99999996E-13 : f32
    %239 = vector.broadcast %cst_108 : f32 to vector<16x1xf32>
    %240 = arith.addf %236, %239 : vector<16x1xf32>
    %241 = math.rsqrt %240 : vector<16x1xf32>
    %242 = vector.broadcast %241 : vector<16x1xf32> to vector<16x64xf32>
    %243 = arith.mulf %238, %242 : vector<16x64xf32>
    %244 = vector.broadcast %223 : vector<1x64xf32> to vector<16x64xf32>
    %245 = arith.mulf %243, %244 : vector<16x64xf32>
    %246 = vector.broadcast %225 : vector<1x64xf32> to vector<16x64xf32>
    %247 = arith.addf %245, %246 : vector<16x64xf32>
    %248 = arith.truncf %247 : vector<16x64xf32> to vector<16x64xbf16>
    %c1_109 = arith.constant 1 : index
    %c0_110 = arith.constant 0 : index
    %c0_111 = arith.constant 0 : index
    %249 = vector.load %arg11[%c1_109, %c0_110, %c0_111] : memref<2x64x256xbf16, #tpu.memory_space<vmem>>, vector<1x64x256xbf16>
    %250 = vector.shape_cast %249 : vector<1x64x256xbf16> to vector<64x256xbf16>
    %cst_112 = arith.constant dense<0.000000e+00> : vector<16x256xf32>
    %251 = tpu.matmul %248, %250, %cst_112 {dimension_numbers = #tpu.dot_dimension_numbers<[1], [0], [0], [1], [0, 0, 1, 1], [], []>} : vector<16x64xbf16>, vector<64x256xbf16>, vector<16x256xf32> -> vector<16x256xf32>
    %c1_113 = arith.constant 1 : index
    %c0_114 = arith.constant 0 : index
    %c0_115 = arith.constant 0 : index
    %252 = vector.load %arg12[%c1_113, %c0_114, %c0_115] : memref<2x1x256xf32, #tpu.memory_space<vmem>>, vector<1x1x256xf32>
    %253 = vector.shape_cast %252 : vector<1x1x256xf32> to vector<1x256xf32>
    %254 = vector.broadcast %253 : vector<1x256xf32> to vector<16x256xf32>
    %255 = arith.addf %251, %254 : vector<16x256xf32>
    %256 = arith.mulf %255, %255 : vector<16x256xf32>
    %257 = arith.mulf %255, %256 : vector<16x256xf32>
    %cst_116 = arith.constant 4.471500e-02 : f32
    %258 = vector.broadcast %cst_116 : f32 to vector<16x256xf32>
    %259 = arith.mulf %258, %257 : vector<16x256xf32>
    %260 = arith.addf %255, %259 : vector<16x256xf32>
    %cst_117 = arith.constant 0.797884583 : f32
    %261 = vector.broadcast %cst_117 : f32 to vector<16x256xf32>
    %262 = arith.mulf %261, %260 : vector<16x256xf32>
    %263 = math.tanh %262 : vector<16x256xf32>
    %cst_118 = arith.constant 1.000000e+00 : f32
    %264 = vector.broadcast %cst_118 : f32 to vector<16x256xf32>
    %265 = arith.addf %264, %263 : vector<16x256xf32>
    %cst_119 = arith.constant 5.000000e-01 : f32
    %266 = vector.broadcast %cst_119 : f32 to vector<16x256xf32>
    %267 = arith.mulf %266, %265 : vector<16x256xf32>
    %268 = arith.mulf %255, %267 : vector<16x256xf32>
    %269 = arith.truncf %268 : vector<16x256xf32> to vector<16x256xbf16>
    %c1_120 = arith.constant 1 : index
    %c0_121 = arith.constant 0 : index
    %c0_122 = arith.constant 0 : index
    %270 = vector.load %arg13[%c1_120, %c0_121, %c0_122] : memref<2x256x64xbf16, #tpu.memory_space<vmem>>, vector<1x256x64xbf16>
    %271 = vector.shape_cast %270 : vector<1x256x64xbf16> to vector<256x64xbf16>
    %cst_123 = arith.constant dense<0.000000e+00> : vector<16x64xf32>
    %272 = tpu.matmul %269, %271, %cst_123 {dimension_numbers = #tpu.dot_dimension_numbers<[1], [0], [0], [1], [0, 0, 1, 1], [], []>} : vector<16x256xbf16>, vector<256x64xbf16>, vector<16x64xf32> -> vector<16x64xf32>
    %c1_124 = arith.constant 1 : index
    %c0_125 = arith.constant 0 : index
    %c0_126 = arith.constant 0 : index
    %273 = vector.load %arg14[%c1_124, %c0_125, %c0_126] : memref<2x1x64xf32, #tpu.memory_space<vmem>>, vector<1x1x64xf32>
    %274 = vector.shape_cast %273 : vector<1x1x64xf32> to vector<1x64xf32>
    %275 = vector.broadcast %274 : vector<1x64xf32> to vector<16x64xf32>
    %276 = arith.addf %272, %275 : vector<16x64xf32>
    %277 = arith.addf %276, %247 : vector<16x64xf32>
    %c1_127 = arith.constant 1 : index
    %c0_128 = arith.constant 0 : index
    %c0_129 = arith.constant 0 : index
    %278 = vector.load %arg15[%c1_127, %c0_128, %c0_129] : memref<2x1x64xf32, #tpu.memory_space<vmem>>, vector<1x1x64xf32>
    %279 = vector.shape_cast %278 : vector<1x1x64xf32> to vector<1x64xf32>
    %c1_130 = arith.constant 1 : index
    %c0_131 = arith.constant 0 : index
    %c0_132 = arith.constant 0 : index
    %280 = vector.load %arg16[%c1_130, %c0_131, %c0_132] : memref<2x1x64xf32, #tpu.memory_space<vmem>>, vector<1x1x64xf32>
    %281 = vector.shape_cast %280 : vector<1x1x64xf32> to vector<1x64xf32>
    %cst_133 = arith.constant dense<0.000000e+00> : vector<16xf32>
    %282 = vector.multi_reduction <add>, %277, %cst_133 [1] : vector<16x64xf32> to vector<16xf32>
    %283 = vector.shape_cast %282 : vector<16xf32> to vector<16x1xf32>
    %cst_134 = arith.constant 6.400000e+01 : f32
    %284 = vector.broadcast %cst_134 : f32 to vector<16x1xf32>
    %285 = arith.divf %283, %284 : vector<16x1xf32>
    %286 = vector.broadcast %285 : vector<16x1xf32> to vector<16x64xf32>
    %287 = arith.subf %277, %286 : vector<16x64xf32>
    %288 = arith.mulf %287, %287 : vector<16x64xf32>
    %cst_135 = arith.constant dense<0.000000e+00> : vector<16xf32>
    %289 = vector.multi_reduction <add>, %288, %cst_135 [1] : vector<16x64xf32> to vector<16xf32>
    %290 = vector.shape_cast %289 : vector<16xf32> to vector<16x1xf32>
    %cst_136 = arith.constant 6.400000e+01 : f32
    %291 = vector.broadcast %cst_136 : f32 to vector<16x1xf32>
    %292 = arith.divf %290, %291 : vector<16x1xf32>
    %293 = vector.broadcast %285 : vector<16x1xf32> to vector<16x64xf32>
    %294 = arith.subf %277, %293 : vector<16x64xf32>
    %cst_137 = arith.constant 9.99999996E-13 : f32
    %295 = vector.broadcast %cst_137 : f32 to vector<16x1xf32>
    %296 = arith.addf %292, %295 : vector<16x1xf32>
    %297 = math.rsqrt %296 : vector<16x1xf32>
    %298 = vector.broadcast %297 : vector<16x1xf32> to vector<16x64xf32>
    %299 = arith.mulf %294, %298 : vector<16x64xf32>
    %300 = vector.broadcast %279 : vector<1x64xf32> to vector<16x64xf32>
    %301 = arith.mulf %299, %300 : vector<16x64xf32>
    %302 = vector.broadcast %281 : vector<1x64xf32> to vector<16x64xf32>
    %303 = arith.addf %301, %302 : vector<16x64xf32>
    %304 = arith.truncf %303 : vector<16x64xf32> to vector<16x64xbf16>
    %c0_138 = arith.constant 0 : index
    %c0_139 = arith.constant 0 : index
    %305 = vector.load %arg17[%c0_138, %c0_139] : memref<64x512xbf16, #tpu.memory_space<vmem>>, vector<64x512xbf16>
    %cst_140 = arith.constant dense<0.000000e+00> : vector<16x512xf32>
    %306 = tpu.matmul %304, %305, %cst_140 {dimension_numbers = #tpu.dot_dimension_numbers<[1], [0], [0], [1], [0, 0, 1, 1], [], []>} : vector<16x64xbf16>, vector<64x512xbf16>, vector<16x512xf32> -> vector<16x512xf32>
    %c0_141 = arith.constant 0 : index
    %c0_142 = arith.constant 0 : index
    %307 = vector.load %arg19[%c0_141, %c0_142] : memref<1x512xf32, #tpu.memory_space<vmem>>, vector<1x512xf32>
    %308 = vector.broadcast %307 : vector<1x512xf32> to vector<16x512xf32>
    %309 = arith.addf %306, %308 : vector<16x512xf32>
    %c0_143 = arith.constant 0 : index
    %c0_144 = arith.constant 0 : index
    %310 = vector.load %arg31[%c0_143, %c0_144] : memref<16x512xf32, #tpu.memory_space<vmem>>, vector<16x512xf32>
    tpu.vector_store %arg31[%c0_143, %c0_144], %309 {strides = array<i32>} : memref<16x512xf32, #tpu.memory_space<vmem>>, vector<16x512xf32>,
    %c0_145 = arith.constant 0 : index
    %c0_146 = arith.constant 0 : index
    %311 = vector.load %arg20[%c0_145, %c0_146] : memref<64x512xbf16, #tpu.memory_space<vmem>>, vector<64x512xbf16>
    %cst_147 = arith.constant dense<0.000000e+00> : vector<16x512xf32>
    %312 = tpu.matmul %304, %311, %cst_147 {dimension_numbers = #tpu.dot_dimension_numbers<[1], [0], [0], [1], [0, 0, 1, 1], [], []>} : vector<16x64xbf16>, vector<64x512xbf16>, vector<16x512xf32> -> vector<16x512xf32>
    %c0_148 = arith.constant 0 : index
    %c0_149 = arith.constant 0 : index
    %313 = vector.load %arg22[%c0_148, %c0_149] : memref<1x512xf32, #tpu.memory_space<vmem>>, vector<1x512xf32>
    %314 = vector.broadcast %313 : vector<1x512xf32> to vector<16x512xf32>
    %315 = arith.addf %312, %314 : vector<16x512xf32>
    %c0_150 = arith.constant 0 : index
    %c0_151 = arith.constant 0 : index
    %316 = vector.load %arg32[%c0_150, %c0_151] : memref<16x512xf32, #tpu.memory_space<vmem>>, vector<16x512xf32>
    tpu.vector_store %arg32[%c0_150, %c0_151], %315 {strides = array<i32>} : memref<16x512xf32, #tpu.memory_space<vmem>>, vector<16x512xf32>,
    %cst_152 = arith.constant 0.000000e+00 : f32
    %317 = vector.broadcast %cst_152 : f32 to vector<2x128xf32>
    %cst_153 = arith.constant 0.000000e+00 : f32
    %318 = vector.broadcast %cst_153 : f32 to vector<2x128xf32>
    %cst_154 = arith.constant 0.000000e+00 : f32
    %319 = vector.broadcast %cst_154 : f32 to vector<2x128xf32>
    %cst_155 = arith.constant 0.000000e+00 : f32
    %320 = vector.broadcast %cst_155 : f32 to vector<2x128xf32>
    %c0_156 = arith.constant 0 : index
    %c0_157 = arith.constant 0 : index
    %321 = vector.load %arg31[%c0_156, %c0_157] : memref<16x512xf32, #tpu.memory_space<vmem>>, vector<2x512xf32>
    %322 = arith.truncf %317 : vector<2x128xf32> to vector<2x128xbf16>
    %c0_158 = arith.constant 0 : index
    %c0_159 = arith.constant 0 : index
    %323 = vector.load %arg18[%c0_158, %c0_159] : memref<128x512xbf16, #tpu.memory_space<vmem>>, vector<128x512xbf16>
    %cst_160 = arith.constant dense<0.000000e+00> : vector<2x512xf32>
    %324 = tpu.matmul %322, %323, %cst_160 {dimension_numbers = #tpu.dot_dimension_numbers<[1], [0], [0], [1], [0, 0, 1, 1], [], []>} : vector<2x128xbf16>, vector<128x512xbf16>, vector<2x512xf32> -> vector<2x512xf32>
    %325 = arith.addf %321, %324 : vector<2x512xf32>
    %326 = vector.extract_strided_slice %325 {offsets = [0, 0], sizes = [2, 128], strides = [1, 1]} : vector<2x512xf32> to vector<2x128xf32>
    %327 = arith.negf %326 : vector<2x128xf32>
    %328 = math.exp %327 : vector<2x128xf32>
    %cst_161 = arith.constant 1.000000e+00 : f32
    %329 = vector.broadcast %cst_161 : f32 to vector<2x128xf32>
    %330 = arith.addf %329, %328 : vector<2x128xf32>
    %331 = arith.divf %329, %330 : vector<2x128xf32>
    %332 = vector.extract_strided_slice %325 {offsets = [0, 128], sizes = [2, 128], strides = [1, 1]} : vector<2x512xf32> to vector<2x128xf32>
    %333 = arith.negf %332 : vector<2x128xf32>
    %334 = math.exp %333 : vector<2x128xf32>
    %cst_162 = arith.constant 1.000000e+00 : f32
    %335 = vector.broadcast %cst_162 : f32 to vector<2x128xf32>
    %336 = arith.addf %335, %334 : vector<2x128xf32>
    %337 = arith.divf %335, %336 : vector<2x128xf32>
    %338 = vector.extract_strided_slice %325 {offsets = [0, 256], sizes = [2, 128], strides = [1, 1]} : vector<2x512xf32> to vector<2x128xf32>
    %339 = math.tanh %338 : vector<2x128xf32>
    %340 = vector.extract_strided_slice %325 {offsets = [0, 384], sizes = [2, 128], strides = [1, 1]} : vector<2x512xf32> to vector<2x128xf32>
    %341 = arith.negf %340 : vector<2x128xf32>
    %342 = math.exp %341 : vector<2x128xf32>
    %cst_163 = arith.constant 1.000000e+00 : f32
    %343 = vector.broadcast %cst_163 : f32 to vector<2x128xf32>
    %344 = arith.addf %343, %342 : vector<2x128xf32>
    %345 = arith.divf %343, %344 : vector<2x128xf32>
    %346 = arith.mulf %337, %318 : vector<2x128xf32>
    %347 = arith.mulf %331, %339 : vector<2x128xf32>
    %348 = arith.addf %346, %347 : vector<2x128xf32>
    %349 = math.tanh %348 : vector<2x128xf32>
    %350 = arith.mulf %345, %349 : vector<2x128xf32>
    %c0_164 = arith.constant 0 : index
    %c0_165 = arith.constant 0 : index
    %351 = vector.load %arg30[%c0_164, %c0_165] : memref<16x256xf32, #tpu.memory_space<vmem>>, vector<2x128xf32>
    tpu.vector_store %arg30[%c0_164, %c0_165], %350 {strides = array<i32>} : memref<16x256xf32, #tpu.memory_space<vmem>>, vector<2x128xf32>,
    %c14 = arith.constant 14 : index
    %c0_166 = arith.constant 0 : index
    %352 = vector.load %arg32[%c14, %c0_166] : memref<16x512xf32, #tpu.memory_space<vmem>>, vector<2x512xf32>
    %353 = arith.truncf %319 : vector<2x128xf32> to vector<2x128xbf16>
    %c0_167 = arith.constant 0 : index
    %c0_168 = arith.constant 0 : index
    %354 = vector.load %arg21[%c0_167, %c0_168] : memref<128x512xbf16, #tpu.memory_space<vmem>>, vector<128x512xbf16>
    %cst_169 = arith.constant dense<0.000000e+00> : vector<2x512xf32>
    %355 = tpu.matmul %353, %354, %cst_169 {dimension_numbers = #tpu.dot_dimension_numbers<[1], [0], [0], [1], [0, 0, 1, 1], [], []>} : vector<2x128xbf16>, vector<128x512xbf16>, vector<2x512xf32> -> vector<2x512xf32>
    %356 = arith.addf %352, %355 : vector<2x512xf32>
    %357 = vector.extract_strided_slice %356 {offsets = [0, 0], sizes = [2, 128], strides = [1, 1]} : vector<2x512xf32> to vector<2x128xf32>
    %358 = arith.negf %357 : vector<2x128xf32>
    %359 = math.exp %358 : vector<2x128xf32>
    %cst_170 = arith.constant 1.000000e+00 : f32
    %360 = vector.broadcast %cst_170 : f32 to vector<2x128xf32>
    %361 = arith.addf %360, %359 : vector<2x128xf32>
    %362 = arith.divf %360, %361 : vector<2x128xf32>
    %363 = vector.extract_strided_slice %356 {offsets = [0, 128], sizes = [2, 128], strides = [1, 1]} : vector<2x512xf32> to vector<2x128xf32>
    %364 = arith.negf %363 : vector<2x128xf32>
    %365 = math.exp %364 : vector<2x128xf32>
    %cst_171 = arith.constant 1.000000e+00 : f32
    %366 = vector.broadcast %cst_171 : f32 to vector<2x128xf32>
    %367 = arith.addf %366, %365 : vector<2x128xf32>
    %368 = arith.divf %366, %367 : vector<2x128xf32>
    %369 = vector.extract_strided_slice %356 {offsets = [0, 256], sizes = [2, 128], strides = [1, 1]} : vector<2x512xf32> to vector<2x128xf32>
    %370 = math.tanh %369 : vector<2x128xf32>
    %371 = vector.extract_strided_slice %356 {offsets = [0, 384], sizes = [2, 128], strides = [1, 1]} : vector<2x512xf32> to vector<2x128xf32>
    %372 = arith.negf %371 : vector<2x128xf32>
    %373 = math.exp %372 : vector<2x128xf32>
    %cst_172 = arith.constant 1.000000e+00 : f32
    %374 = vector.broadcast %cst_172 : f32 to vector<2x128xf32>
    %375 = arith.addf %374, %373 : vector<2x128xf32>
    %376 = arith.divf %374, %375 : vector<2x128xf32>
    %377 = arith.mulf %368, %320 : vector<2x128xf32>
    %378 = arith.mulf %362, %370 : vector<2x128xf32>
    %379 = arith.addf %377, %378 : vector<2x128xf32>
    %380 = math.tanh %379 : vector<2x128xf32>
    %381 = arith.mulf %376, %380 : vector<2x128xf32>
    %c14_173 = arith.constant 14 : index
    %c128 = arith.constant 128 : index
    %382 = vector.load %arg30[%c14_173, %c128] : memref<16x256xf32, #tpu.memory_space<vmem>>, vector<2x128xf32>
    tpu.vector_store %arg30[%c14_173, %c128], %381 {strides = array<i32>} : memref<16x256xf32, #tpu.memory_space<vmem>>, vector<2x128xf32>,
    %c2 = arith.constant 2 : index
    %c0_174 = arith.constant 0 : index
    %383 = vector.load %arg31[%c2, %c0_174] : memref<16x512xf32, #tpu.memory_space<vmem>>, vector<2x512xf32>
    %384 = arith.truncf %350 : vector<2x128xf32> to vector<2x128xbf16>
    %c0_175 = arith.constant 0 : index
    %c0_176 = arith.constant 0 : index
    %385 = vector.load %arg18[%c0_175, %c0_176] : memref<128x512xbf16, #tpu.memory_space<vmem>>, vector<128x512xbf16>
    %cst_177 = arith.constant dense<0.000000e+00> : vector<2x512xf32>
    %386 = tpu.matmul %384, %385, %cst_177 {dimension_numbers = #tpu.dot_dimension_numbers<[1], [0], [0], [1], [0, 0, 1, 1], [], []>} : vector<2x128xbf16>, vector<128x512xbf16>, vector<2x512xf32> -> vector<2x512xf32>
    %387 = arith.addf %383, %386 : vector<2x512xf32>
    %388 = vector.extract_strided_slice %387 {offsets = [0, 0], sizes = [2, 128], strides = [1, 1]} : vector<2x512xf32> to vector<2x128xf32>
    %389 = arith.negf %388 : vector<2x128xf32>
    %390 = math.exp %389 : vector<2x128xf32>
    %cst_178 = arith.constant 1.000000e+00 : f32
    %391 = vector.broadcast %cst_178 : f32 to vector<2x128xf32>
    %392 = arith.addf %391, %390 : vector<2x128xf32>
    %393 = arith.divf %391, %392 : vector<2x128xf32>
    %394 = vector.extract_strided_slice %387 {offsets = [0, 128], sizes = [2, 128], strides = [1, 1]} : vector<2x512xf32> to vector<2x128xf32>
    %395 = arith.negf %394 : vector<2x128xf32>
    %396 = math.exp %395 : vector<2x128xf32>
    %cst_179 = arith.constant 1.000000e+00 : f32
    %397 = vector.broadcast %cst_179 : f32 to vector<2x128xf32>
    %398 = arith.addf %397, %396 : vector<2x128xf32>
    %399 = arith.divf %397, %398 : vector<2x128xf32>
    %400 = vector.extract_strided_slice %387 {offsets = [0, 256], sizes = [2, 128], strides = [1, 1]} : vector<2x512xf32> to vector<2x128xf32>
    %401 = math.tanh %400 : vector<2x128xf32>
    %402 = vector.extract_strided_slice %387 {offsets = [0, 384], sizes = [2, 128], strides = [1, 1]} : vector<2x512xf32> to vector<2x128xf32>
    %403 = arith.negf %402 : vector<2x128xf32>
    %404 = math.exp %403 : vector<2x128xf32>
    %cst_180 = arith.constant 1.000000e+00 : f32
    %405 = vector.broadcast %cst_180 : f32 to vector<2x128xf32>
    %406 = arith.addf %405, %404 : vector<2x128xf32>
    %407 = arith.divf %405, %406 : vector<2x128xf32>
    %408 = arith.mulf %399, %348 : vector<2x128xf32>
    %409 = arith.mulf %393, %401 : vector<2x128xf32>
    %410 = arith.addf %408, %409 : vector<2x128xf32>
    %411 = math.tanh %410 : vector<2x128xf32>
    %412 = arith.mulf %407, %411 : vector<2x128xf32>
    %c2_181 = arith.constant 2 : index
    %c0_182 = arith.constant 0 : index
    %413 = vector.load %arg30[%c2_181, %c0_182] : memref<16x256xf32, #tpu.memory_space<vmem>>, vector<2x128xf32>
    tpu.vector_store %arg30[%c2_181, %c0_182], %412 {strides = array<i32>} : memref<16x256xf32, #tpu.memory_space<vmem>>, vector<2x128xf32>,
    %c12 = arith.constant 12 : index
    %c0_183 = arith.constant 0 : index
    %414 = vector.load %arg32[%c12, %c0_183] : memref<16x512xf32, #tpu.memory_space<vmem>>, vector<2x512xf32>
    %415 = arith.truncf %381 : vector<2x128xf32> to vector<2x128xbf16>
    %c0_184 = arith.constant 0 : index
    %c0_185 = arith.constant 0 : index
    %416 = vector.load %arg21[%c0_184, %c0_185] : memref<128x512xbf16, #tpu.memory_space<vmem>>, vector<128x512xbf16>
    %cst_186 = arith.constant dense<0.000000e+00> : vector<2x512xf32>
    %417 = tpu.matmul %415, %416, %cst_186 {dimension_numbers = #tpu.dot_dimension_numbers<[1], [0], [0], [1], [0, 0, 1, 1], [], []>} : vector<2x128xbf16>, vector<128x512xbf16>, vector<2x512xf32> -> vector<2x512xf32>
    %418 = arith.addf %414, %417 : vector<2x512xf32>
    %419 = vector.extract_strided_slice %418 {offsets = [0, 0], sizes = [2, 128], strides = [1, 1]} : vector<2x512xf32> to vector<2x128xf32>
    %420 = arith.negf %419 : vector<2x128xf32>
    %421 = math.exp %420 : vector<2x128xf32>
    %cst_187 = arith.constant 1.000000e+00 : f32
    %422 = vector.broadcast %cst_187 : f32 to vector<2x128xf32>
    %423 = arith.addf %422, %421 : vector<2x128xf32>
    %424 = arith.divf %422, %423 : vector<2x128xf32>
    %425 = vector.extract_strided_slice %418 {offsets = [0, 128], sizes = [2, 128], strides = [1, 1]} : vector<2x512xf32> to vector<2x128xf32>
    %426 = arith.negf %425 : vector<2x128xf32>
    %427 = math.exp %426 : vector<2x128xf32>
    %cst_188 = arith.constant 1.000000e+00 : f32
    %428 = vector.broadcast %cst_188 : f32 to vector<2x128xf32>
    %429 = arith.addf %428, %427 : vector<2x128xf32>
    %430 = arith.divf %428, %429 : vector<2x128xf32>
    %431 = vector.extract_strided_slice %418 {offsets = [0, 256], sizes = [2, 128], strides = [1, 1]} : vector<2x512xf32> to vector<2x128xf32>
    %432 = math.tanh %431 : vector<2x128xf32>
    %433 = vector.extract_strided_slice %418 {offsets = [0, 384], sizes = [2, 128], strides = [1, 1]} : vector<2x512xf32> to vector<2x128xf32>
    %434 = arith.negf %433 : vector<2x128xf32>
    %435 = math.exp %434 : vector<2x128xf32>
    %cst_189 = arith.constant 1.000000e+00 : f32
    %436 = vector.broadcast %cst_189 : f32 to vector<2x128xf32>
    %437 = arith.addf %436, %435 : vector<2x128xf32>
    %438 = arith.divf %436, %437 : vector<2x128xf32>
    %439 = arith.mulf %430, %379 : vector<2x128xf32>
    %440 = arith.mulf %424, %432 : vector<2x128xf32>
    %441 = arith.addf %439, %440 : vector<2x128xf32>
    %442 = math.tanh %441 : vector<2x128xf32>
    %443 = arith.mulf %438, %442 : vector<2x128xf32>
    %c12_190 = arith.constant 12 : index
    %c128_191 = arith.constant 128 : index
    %444 = vector.load %arg30[%c12_190, %c128_191] : memref<16x256xf32, #tpu.memory_space<vmem>>, vector<2x128xf32>
    tpu.vector_store %arg30[%c12_190, %c128_191], %443 {strides = array<i32>} : memref<16x256xf32, #tpu.memory_space<vmem>>, vector<2x128xf32>,
    %c4 = arith.constant 4 : index
    %c0_192 = arith.constant 0 : index
    %445 = vector.load %arg31[%c4, %c0_192] : memref<16x512xf32, #tpu.memory_space<vmem>>, vector<2x512xf32>
    %446 = arith.truncf %412 : vector<2x128xf32> to vector<2x128xbf16>
    %c0_193 = arith.constant 0 : index
    %c0_194 = arith.constant 0 : index
    %447 = vector.load %arg18[%c0_193, %c0_194] : memref<128x512xbf16, #tpu.memory_space<vmem>>, vector<128x512xbf16>
    %cst_195 = arith.constant dense<0.000000e+00> : vector<2x512xf32>
    %448 = tpu.matmul %446, %447, %cst_195 {dimension_numbers = #tpu.dot_dimension_numbers<[1], [0], [0], [1], [0, 0, 1, 1], [], []>} : vector<2x128xbf16>, vector<128x512xbf16>, vector<2x512xf32> -> vector<2x512xf32>
    %449 = arith.addf %445, %448 : vector<2x512xf32>
    %450 = vector.extract_strided_slice %449 {offsets = [0, 0], sizes = [2, 128], strides = [1, 1]} : vector<2x512xf32> to vector<2x128xf32>
    %451 = arith.negf %450 : vector<2x128xf32>
    %452 = math.exp %451 : vector<2x128xf32>
    %cst_196 = arith.constant 1.000000e+00 : f32
    %453 = vector.broadcast %cst_196 : f32 to vector<2x128xf32>
    %454 = arith.addf %453, %452 : vector<2x128xf32>
    %455 = arith.divf %453, %454 : vector<2x128xf32>
    %456 = vector.extract_strided_slice %449 {offsets = [0, 128], sizes = [2, 128], strides = [1, 1]} : vector<2x512xf32> to vector<2x128xf32>
    %457 = arith.negf %456 : vector<2x128xf32>
    %458 = math.exp %457 : vector<2x128xf32>
    %cst_197 = arith.constant 1.000000e+00 : f32
    %459 = vector.broadcast %cst_197 : f32 to vector<2x128xf32>
    %460 = arith.addf %459, %458 : vector<2x128xf32>
    %461 = arith.divf %459, %460 : vector<2x128xf32>
    %462 = vector.extract_strided_slice %449 {offsets = [0, 256], sizes = [2, 128], strides = [1, 1]} : vector<2x512xf32> to vector<2x128xf32>
    %463 = math.tanh %462 : vector<2x128xf32>
    %464 = vector.extract_strided_slice %449 {offsets = [0, 384], sizes = [2, 128], strides = [1, 1]} : vector<2x512xf32> to vector<2x128xf32>
    %465 = arith.negf %464 : vector<2x128xf32>
    %466 = math.exp %465 : vector<2x128xf32>
    %cst_198 = arith.constant 1.000000e+00 : f32
    %467 = vector.broadcast %cst_198 : f32 to vector<2x128xf32>
    %468 = arith.addf %467, %466 : vector<2x128xf32>
    %469 = arith.divf %467, %468 : vector<2x128xf32>
    %470 = arith.mulf %461, %410 : vector<2x128xf32>
    %471 = arith.mulf %455, %463 : vector<2x128xf32>
    %472 = arith.addf %470, %471 : vector<2x128xf32>
    %473 = math.tanh %472 : vector<2x128xf32>
    %474 = arith.mulf %469, %473 : vector<2x128xf32>
    %c4_199 = arith.constant 4 : index
    %c0_200 = arith.constant 0 : index
    %475 = vector.load %arg30[%c4_199, %c0_200] : memref<16x256xf32, #tpu.memory_space<vmem>>, vector<2x128xf32>
    tpu.vector_store %arg30[%c4_199, %c0_200], %474 {strides = array<i32>} : memref<16x256xf32, #tpu.memory_space<vmem>>, vector<2x128xf32>,
    %c10 = arith.constant 10 : index
    %c0_201 = arith.constant 0 : index
    %476 = vector.load %arg32[%c10, %c0_201] : memref<16x512xf32, #tpu.memory_space<vmem>>, vector<2x512xf32>
    %477 = arith.truncf %443 : vector<2x128xf32> to vector<2x128xbf16>
    %c0_202 = arith.constant 0 : index
    %c0_203 = arith.constant 0 : index
    %478 = vector.load %arg21[%c0_202, %c0_203] : memref<128x512xbf16, #tpu.memory_space<vmem>>, vector<128x512xbf16>
    %cst_204 = arith.constant dense<0.000000e+00> : vector<2x512xf32>
    %479 = tpu.matmul %477, %478, %cst_204 {dimension_numbers = #tpu.dot_dimension_numbers<[1], [0], [0], [1], [0, 0, 1, 1], [], []>} : vector<2x128xbf16>, vector<128x512xbf16>, vector<2x512xf32> -> vector<2x512xf32>
    %480 = arith.addf %476, %479 : vector<2x512xf32>
    %481 = vector.extract_strided_slice %480 {offsets = [0, 0], sizes = [2, 128], strides = [1, 1]} : vector<2x512xf32> to vector<2x128xf32>
    %482 = arith.negf %481 : vector<2x128xf32>
    %483 = math.exp %482 : vector<2x128xf32>
    %cst_205 = arith.constant 1.000000e+00 : f32
    %484 = vector.broadcast %cst_205 : f32 to vector<2x128xf32>
    %485 = arith.addf %484, %483 : vector<2x128xf32>
    %486 = arith.divf %484, %485 : vector<2x128xf32>
    %487 = vector.extract_strided_slice %480 {offsets = [0, 128], sizes = [2, 128], strides = [1, 1]} : vector<2x512xf32> to vector<2x128xf32>
    %488 = arith.negf %487 : vector<2x128xf32>
    %489 = math.exp %488 : vector<2x128xf32>
    %cst_206 = arith.constant 1.000000e+00 : f32
    %490 = vector.broadcast %cst_206 : f32 to vector<2x128xf32>
    %491 = arith.addf %490, %489 : vector<2x128xf32>
    %492 = arith.divf %490, %491 : vector<2x128xf32>
    %493 = vector.extract_strided_slice %480 {offsets = [0, 256], sizes = [2, 128], strides = [1, 1]} : vector<2x512xf32> to vector<2x128xf32>
    %494 = math.tanh %493 : vector<2x128xf32>
    %495 = vector.extract_strided_slice %480 {offsets = [0, 384], sizes = [2, 128], strides = [1, 1]} : vector<2x512xf32> to vector<2x128xf32>
    %496 = arith.negf %495 : vector<2x128xf32>
    %497 = math.exp %496 : vector<2x128xf32>
    %cst_207 = arith.constant 1.000000e+00 : f32
    %498 = vector.broadcast %cst_207 : f32 to vector<2x128xf32>
    %499 = arith.addf %498, %497 : vector<2x128xf32>
    %500 = arith.divf %498, %499 : vector<2x128xf32>
    %501 = arith.mulf %492, %441 : vector<2x128xf32>
    %502 = arith.mulf %486, %494 : vector<2x128xf32>
    %503 = arith.addf %501, %502 : vector<2x128xf32>
    %504 = math.tanh %503 : vector<2x128xf32>
    %505 = arith.mulf %500, %504 : vector<2x128xf32>
    %c10_208 = arith.constant 10 : index
    %c128_209 = arith.constant 128 : index
    %506 = vector.load %arg30[%c10_208, %c128_209] : memref<16x256xf32, #tpu.memory_space<vmem>>, vector<2x128xf32>
    tpu.vector_store %arg30[%c10_208, %c128_209], %505 {strides = array<i32>} : memref<16x256xf32, #tpu.memory_space<vmem>>, vector<2x128xf32>,
    %c6 = arith.constant 6 : index
    %c0_210 = arith.constant 0 : index
    %507 = vector.load %arg31[%c6, %c0_210] : memref<16x512xf32, #tpu.memory_space<vmem>>, vector<2x512xf32>
    %508 = arith.truncf %474 : vector<2x128xf32> to vector<2x128xbf16>
    %c0_211 = arith.constant 0 : index
    %c0_212 = arith.constant 0 : index
    %509 = vector.load %arg18[%c0_211, %c0_212] : memref<128x512xbf16, #tpu.memory_space<vmem>>, vector<128x512xbf16>
    %cst_213 = arith.constant dense<0.000000e+00> : vector<2x512xf32>
    %510 = tpu.matmul %508, %509, %cst_213 {dimension_numbers = #tpu.dot_dimension_numbers<[1], [0], [0], [1], [0, 0, 1, 1], [], []>} : vector<2x128xbf16>, vector<128x512xbf16>, vector<2x512xf32> -> vector<2x512xf32>
    %511 = arith.addf %507, %510 : vector<2x512xf32>
    %512 = vector.extract_strided_slice %511 {offsets = [0, 0], sizes = [2, 128], strides = [1, 1]} : vector<2x512xf32> to vector<2x128xf32>
    %513 = arith.negf %512 : vector<2x128xf32>
    %514 = math.exp %513 : vector<2x128xf32>
    %cst_214 = arith.constant 1.000000e+00 : f32
    %515 = vector.broadcast %cst_214 : f32 to vector<2x128xf32>
    %516 = arith.addf %515, %514 : vector<2x128xf32>
    %517 = arith.divf %515, %516 : vector<2x128xf32>
    %518 = vector.extract_strided_slice %511 {offsets = [0, 128], sizes = [2, 128], strides = [1, 1]} : vector<2x512xf32> to vector<2x128xf32>
    %519 = arith.negf %518 : vector<2x128xf32>
    %520 = math.exp %519 : vector<2x128xf32>
    %cst_215 = arith.constant 1.000000e+00 : f32
    %521 = vector.broadcast %cst_215 : f32 to vector<2x128xf32>
    %522 = arith.addf %521, %520 : vector<2x128xf32>
    %523 = arith.divf %521, %522 : vector<2x128xf32>
    %524 = vector.extract_strided_slice %511 {offsets = [0, 256], sizes = [2, 128], strides = [1, 1]} : vector<2x512xf32> to vector<2x128xf32>
    %525 = math.tanh %524 : vector<2x128xf32>
    %526 = vector.extract_strided_slice %511 {offsets = [0, 384], sizes = [2, 128], strides = [1, 1]} : vector<2x512xf32> to vector<2x128xf32>
    %527 = arith.negf %526 : vector<2x128xf32>
    %528 = math.exp %527 : vector<2x128xf32>
    %cst_216 = arith.constant 1.000000e+00 : f32
    %529 = vector.broadcast %cst_216 : f32 to vector<2x128xf32>
    %530 = arith.addf %529, %528 : vector<2x128xf32>
    %531 = arith.divf %529, %530 : vector<2x128xf32>
    %532 = arith.mulf %523, %472 : vector<2x128xf32>
    %533 = arith.mulf %517, %525 : vector<2x128xf32>
    %534 = arith.addf %532, %533 : vector<2x128xf32>
    %535 = math.tanh %534 : vector<2x128xf32>
    %536 = arith.mulf %531, %535 : vector<2x128xf32>
    %c6_217 = arith.constant 6 : index
    %c0_218 = arith.constant 0 : index
    %537 = vector.load %arg30[%c6_217, %c0_218] : memref<16x256xf32, #tpu.memory_space<vmem>>, vector<2x128xf32>
    tpu.vector_store %arg30[%c6_217, %c0_218], %536 {strides = array<i32>} : memref<16x256xf32, #tpu.memory_space<vmem>>, vector<2x128xf32>,
    %c8 = arith.constant 8 : index
    %c0_219 = arith.constant 0 : index
    %538 = vector.load %arg32[%c8, %c0_219] : memref<16x512xf32, #tpu.memory_space<vmem>>, vector<2x512xf32>
    %539 = arith.truncf %505 : vector<2x128xf32> to vector<2x128xbf16>
    %c0_220 = arith.constant 0 : index
    %c0_221 = arith.constant 0 : index
    %540 = vector.load %arg21[%c0_220, %c0_221] : memref<128x512xbf16, #tpu.memory_space<vmem>>, vector<128x512xbf16>
    %cst_222 = arith.constant dense<0.000000e+00> : vector<2x512xf32>
    %541 = tpu.matmul %539, %540, %cst_222 {dimension_numbers = #tpu.dot_dimension_numbers<[1], [0], [0], [1], [0, 0, 1, 1], [], []>} : vector<2x128xbf16>, vector<128x512xbf16>, vector<2x512xf32> -> vector<2x512xf32>
    %542 = arith.addf %538, %541 : vector<2x512xf32>
    %543 = vector.extract_strided_slice %542 {offsets = [0, 0], sizes = [2, 128], strides = [1, 1]} : vector<2x512xf32> to vector<2x128xf32>
    %544 = arith.negf %543 : vector<2x128xf32>
    %545 = math.exp %544 : vector<2x128xf32>
    %cst_223 = arith.constant 1.000000e+00 : f32
    %546 = vector.broadcast %cst_223 : f32 to vector<2x128xf32>
    %547 = arith.addf %546, %545 : vector<2x128xf32>
    %548 = arith.divf %546, %547 : vector<2x128xf32>
    %549 = vector.extract_strided_slice %542 {offsets = [0, 128], sizes = [2, 128], strides = [1, 1]} : vector<2x512xf32> to vector<2x128xf32>
    %550 = arith.negf %549 : vector<2x128xf32>
    %551 = math.exp %550 : vector<2x128xf32>
    %cst_224 = arith.constant 1.000000e+00 : f32
    %552 = vector.broadcast %cst_224 : f32 to vector<2x128xf32>
    %553 = arith.addf %552, %551 : vector<2x128xf32>
    %554 = arith.divf %552, %553 : vector<2x128xf32>
    %555 = vector.extract_strided_slice %542 {offsets = [0, 256], sizes = [2, 128], strides = [1, 1]} : vector<2x512xf32> to vector<2x128xf32>
    %556 = math.tanh %555 : vector<2x128xf32>
    %557 = vector.extract_strided_slice %542 {offsets = [0, 384], sizes = [2, 128], strides = [1, 1]} : vector<2x512xf32> to vector<2x128xf32>
    %558 = arith.negf %557 : vector<2x128xf32>
    %559 = math.exp %558 : vector<2x128xf32>
    %cst_225 = arith.constant 1.000000e+00 : f32
    %560 = vector.broadcast %cst_225 : f32 to vector<2x128xf32>
    %561 = arith.addf %560, %559 : vector<2x128xf32>
    %562 = arith.divf %560, %561 : vector<2x128xf32>
    %563 = arith.mulf %554, %503 : vector<2x128xf32>
    %564 = arith.mulf %548, %556 : vector<2x128xf32>
    %565 = arith.addf %563, %564 : vector<2x128xf32>
    %566 = math.tanh %565 : vector<2x128xf32>
    %567 = arith.mulf %562, %566 : vector<2x128xf32>
    %c8_226 = arith.constant 8 : index
    %c128_227 = arith.constant 128 : index
    %568 = vector.load %arg30[%c8_226, %c128_227] : memref<16x256xf32, #tpu.memory_space<vmem>>, vector<2x128xf32>
    tpu.vector_store %arg30[%c8_226, %c128_227], %567 {strides = array<i32>} : memref<16x256xf32, #tpu.memory_space<vmem>>, vector<2x128xf32>,
    %c8_228 = arith.constant 8 : index
    %c0_229 = arith.constant 0 : index
    %569 = vector.load %arg31[%c8_228, %c0_229] : memref<16x512xf32, #tpu.memory_space<vmem>>, vector<2x512xf32>
    %570 = arith.truncf %536 : vector<2x128xf32> to vector<2x128xbf16>
    %c0_230 = arith.constant 0 : index
    %c0_231 = arith.constant 0 : index
    %571 = vector.load %arg18[%c0_230, %c0_231] : memref<128x512xbf16, #tpu.memory_space<vmem>>, vector<128x512xbf16>
    %cst_232 = arith.constant dense<0.000000e+00> : vector<2x512xf32>
    %572 = tpu.matmul %570, %571, %cst_232 {dimension_numbers = #tpu.dot_dimension_numbers<[1], [0], [0], [1], [0, 0, 1, 1], [], []>} : vector<2x128xbf16>, vector<128x512xbf16>, vector<2x512xf32> -> vector<2x512xf32>
    %573 = arith.addf %569, %572 : vector<2x512xf32>
    %574 = vector.extract_strided_slice %573 {offsets = [0, 0], sizes = [2, 128], strides = [1, 1]} : vector<2x512xf32> to vector<2x128xf32>
    %575 = arith.negf %574 : vector<2x128xf32>
    %576 = math.exp %575 : vector<2x128xf32>
    %cst_233 = arith.constant 1.000000e+00 : f32
    %577 = vector.broadcast %cst_233 : f32 to vector<2x128xf32>
    %578 = arith.addf %577, %576 : vector<2x128xf32>
    %579 = arith.divf %577, %578 : vector<2x128xf32>
    %580 = vector.extract_strided_slice %573 {offsets = [0, 128], sizes = [2, 128], strides = [1, 1]} : vector<2x512xf32> to vector<2x128xf32>
    %581 = arith.negf %580 : vector<2x128xf32>
    %582 = math.exp %581 : vector<2x128xf32>
    %cst_234 = arith.constant 1.000000e+00 : f32
    %583 = vector.broadcast %cst_234 : f32 to vector<2x128xf32>
    %584 = arith.addf %583, %582 : vector<2x128xf32>
    %585 = arith.divf %583, %584 : vector<2x128xf32>
    %586 = vector.extract_strided_slice %573 {offsets = [0, 256], sizes = [2, 128], strides = [1, 1]} : vector<2x512xf32> to vector<2x128xf32>
    %587 = math.tanh %586 : vector<2x128xf32>
    %588 = vector.extract_strided_slice %573 {offsets = [0, 384], sizes = [2, 128], strides = [1, 1]} : vector<2x512xf32> to vector<2x128xf32>
    %589 = arith.negf %588 : vector<2x128xf32>
    %590 = math.exp %589 : vector<2x128xf32>
    %cst_235 = arith.constant 1.000000e+00 : f32
    %591 = vector.broadcast %cst_235 : f32 to vector<2x128xf32>
    %592 = arith.addf %591, %590 : vector<2x128xf32>
    %593 = arith.divf %591, %592 : vector<2x128xf32>
    %594 = arith.mulf %585, %534 : vector<2x128xf32>
    %595 = arith.mulf %579, %587 : vector<2x128xf32>
    %596 = arith.addf %594, %595 : vector<2x128xf32>
    %597 = math.tanh %596 : vector<2x128xf32>
    %598 = arith.mulf %593, %597 : vector<2x128xf32>
    %c8_236 = arith.constant 8 : index
    %c0_237 = arith.constant 0 : index
    %599 = vector.load %arg30[%c8_236, %c0_237] : memref<16x256xf32, #tpu.memory_space<vmem>>, vector<2x128xf32>
    tpu.vector_store %arg30[%c8_236, %c0_237], %598 {strides = array<i32>} : memref<16x256xf32, #tpu.memory_space<vmem>>, vector<2x128xf32>,
    %c6_238 = arith.constant 6 : index
    %c0_239 = arith.constant 0 : index
    %600 = vector.load %arg32[%c6_238, %c0_239] : memref<16x512xf32, #tpu.memory_space<vmem>>, vector<2x512xf32>
    %601 = arith.truncf %567 : vector<2x128xf32> to vector<2x128xbf16>
    %c0_240 = arith.constant 0 : index
    %c0_241 = arith.constant 0 : index
    %602 = vector.load %arg21[%c0_240, %c0_241] : memref<128x512xbf16, #tpu.memory_space<vmem>>, vector<128x512xbf16>
    %cst_242 = arith.constant dense<0.000000e+00> : vector<2x512xf32>
    %603 = tpu.matmul %601, %602, %cst_242 {dimension_numbers = #tpu.dot_dimension_numbers<[1], [0], [0], [1], [0, 0, 1, 1], [], []>} : vector<2x128xbf16>, vector<128x512xbf16>, vector<2x512xf32> -> vector<2x512xf32>
    %604 = arith.addf %600, %603 : vector<2x512xf32>
    %605 = vector.extract_strided_slice %604 {offsets = [0, 0], sizes = [2, 128], strides = [1, 1]} : vector<2x512xf32> to vector<2x128xf32>
    %606 = arith.negf %605 : vector<2x128xf32>
    %607 = math.exp %606 : vector<2x128xf32>
    %cst_243 = arith.constant 1.000000e+00 : f32
    %608 = vector.broadcast %cst_243 : f32 to vector<2x128xf32>
    %609 = arith.addf %608, %607 : vector<2x128xf32>
    %610 = arith.divf %608, %609 : vector<2x128xf32>
    %611 = vector.extract_strided_slice %604 {offsets = [0, 128], sizes = [2, 128], strides = [1, 1]} : vector<2x512xf32> to vector<2x128xf32>
    %612 = arith.negf %611 : vector<2x128xf32>
    %613 = math.exp %612 : vector<2x128xf32>
    %cst_244 = arith.constant 1.000000e+00 : f32
    %614 = vector.broadcast %cst_244 : f32 to vector<2x128xf32>
    %615 = arith.addf %614, %613 : vector<2x128xf32>
    %616 = arith.divf %614, %615 : vector<2x128xf32>
    %617 = vector.extract_strided_slice %604 {offsets = [0, 256], sizes = [2, 128], strides = [1, 1]} : vector<2x512xf32> to vector<2x128xf32>
    %618 = math.tanh %617 : vector<2x128xf32>
    %619 = vector.extract_strided_slice %604 {offsets = [0, 384], sizes = [2, 128], strides = [1, 1]} : vector<2x512xf32> to vector<2x128xf32>
    %620 = arith.negf %619 : vector<2x128xf32>
    %621 = math.exp %620 : vector<2x128xf32>
    %cst_245 = arith.constant 1.000000e+00 : f32
    %622 = vector.broadcast %cst_245 : f32 to vector<2x128xf32>
    %623 = arith.addf %622, %621 : vector<2x128xf32>
    %624 = arith.divf %622, %623 : vector<2x128xf32>
    %625 = arith.mulf %616, %565 : vector<2x128xf32>
    %626 = arith.mulf %610, %618 : vector<2x128xf32>
    %627 = arith.addf %625, %626 : vector<2x128xf32>
    %628 = math.tanh %627 : vector<2x128xf32>
    %629 = arith.mulf %624, %628 : vector<2x128xf32>
    %c6_246 = arith.constant 6 : index
    %c128_247 = arith.constant 128 : index
    %630 = vector.load %arg30[%c6_246, %c128_247] : memref<16x256xf32, #tpu.memory_space<vmem>>, vector<2x128xf32>
    tpu.vector_store %arg30[%c6_246, %c128_247], %629 {strides = array<i32>} : memref<16x256xf32, #tpu.memory_space<vmem>>, vector<2x128xf32>,
    %c10_248 = arith.constant 10 : index
    %c0_249 = arith.constant 0 : index
    %631 = vector.load %arg31[%c10_248, %c0_249] : memref<16x512xf32, #tpu.memory_space<vmem>>, vector<2x512xf32>
    %632 = arith.truncf %598 : vector<2x128xf32> to vector<2x128xbf16>
    %c0_250 = arith.constant 0 : index
    %c0_251 = arith.constant 0 : index
    %633 = vector.load %arg18[%c0_250, %c0_251] : memref<128x512xbf16, #tpu.memory_space<vmem>>, vector<128x512xbf16>
    %cst_252 = arith.constant dense<0.000000e+00> : vector<2x512xf32>
    %634 = tpu.matmul %632, %633, %cst_252 {dimension_numbers = #tpu.dot_dimension_numbers<[1], [0], [0], [1], [0, 0, 1, 1], [], []>} : vector<2x128xbf16>, vector<128x512xbf16>, vector<2x512xf32> -> vector<2x512xf32>
    %635 = arith.addf %631, %634 : vector<2x512xf32>
    %636 = vector.extract_strided_slice %635 {offsets = [0, 0], sizes = [2, 128], strides = [1, 1]} : vector<2x512xf32> to vector<2x128xf32>
    %637 = arith.negf %636 : vector<2x128xf32>
    %638 = math.exp %637 : vector<2x128xf32>
    %cst_253 = arith.constant 1.000000e+00 : f32
    %639 = vector.broadcast %cst_253 : f32 to vector<2x128xf32>
    %640 = arith.addf %639, %638 : vector<2x128xf32>
    %641 = arith.divf %639, %640 : vector<2x128xf32>
    %642 = vector.extract_strided_slice %635 {offsets = [0, 128], sizes = [2, 128], strides = [1, 1]} : vector<2x512xf32> to vector<2x128xf32>
    %643 = arith.negf %642 : vector<2x128xf32>
    %644 = math.exp %643 : vector<2x128xf32>
    %cst_254 = arith.constant 1.000000e+00 : f32
    %645 = vector.broadcast %cst_254 : f32 to vector<2x128xf32>
    %646 = arith.addf %645, %644 : vector<2x128xf32>
    %647 = arith.divf %645, %646 : vector<2x128xf32>
    %648 = vector.extract_strided_slice %635 {offsets = [0, 256], sizes = [2, 128], strides = [1, 1]} : vector<2x512xf32> to vector<2x128xf32>
    %649 = math.tanh %648 : vector<2x128xf32>
    %650 = vector.extract_strided_slice %635 {offsets = [0, 384], sizes = [2, 128], strides = [1, 1]} : vector<2x512xf32> to vector<2x128xf32>
    %651 = arith.negf %650 : vector<2x128xf32>
    %652 = math.exp %651 : vector<2x128xf32>
    %cst_255 = arith.constant 1.000000e+00 : f32
    %653 = vector.broadcast %cst_255 : f32 to vector<2x128xf32>
    %654 = arith.addf %653, %652 : vector<2x128xf32>
    %655 = arith.divf %653, %654 : vector<2x128xf32>
    %656 = arith.mulf %647, %596 : vector<2x128xf32>
    %657 = arith.mulf %641, %649 : vector<2x128xf32>
    %658 = arith.addf %656, %657 : vector<2x128xf32>
    %659 = math.tanh %658 : vector<2x128xf32>
    %660 = arith.mulf %655, %659 : vector<2x128xf32>
    %c10_256 = arith.constant 10 : index
    %c0_257 = arith.constant 0 : index
    %661 = vector.load %arg30[%c10_256, %c0_257] : memref<16x256xf32, #tpu.memory_space<vmem>>, vector<2x128xf32>
    tpu.vector_store %arg30[%c10_256, %c0_257], %660 {strides = array<i32>} : memref<16x256xf32, #tpu.memory_space<vmem>>, vector<2x128xf32>,
    %c4_258 = arith.constant 4 : index
    %c0_259 = arith.constant 0 : index
    %662 = vector.load %arg32[%c4_258, %c0_259] : memref<16x512xf32, #tpu.memory_space<vmem>>, vector<2x512xf32>
    %663 = arith.truncf %629 : vector<2x128xf32> to vector<2x128xbf16>
    %c0_260 = arith.constant 0 : index
    %c0_261 = arith.constant 0 : index
    %664 = vector.load %arg21[%c0_260, %c0_261] : memref<128x512xbf16, #tpu.memory_space<vmem>>, vector<128x512xbf16>
    %cst_262 = arith.constant dense<0.000000e+00> : vector<2x512xf32>
    %665 = tpu.matmul %663, %664, %cst_262 {dimension_numbers = #tpu.dot_dimension_numbers<[1], [0], [0], [1], [0, 0, 1, 1], [], []>} : vector<2x128xbf16>, vector<128x512xbf16>, vector<2x512xf32> -> vector<2x512xf32>
    %666 = arith.addf %662, %665 : vector<2x512xf32>
    %667 = vector.extract_strided_slice %666 {offsets = [0, 0], sizes = [2, 128], strides = [1, 1]} : vector<2x512xf32> to vector<2x128xf32>
    %668 = arith.negf %667 : vector<2x128xf32>
    %669 = math.exp %668 : vector<2x128xf32>
    %cst_263 = arith.constant 1.000000e+00 : f32
    %670 = vector.broadcast %cst_263 : f32 to vector<2x128xf32>
    %671 = arith.addf %670, %669 : vector<2x128xf32>
    %672 = arith.divf %670, %671 : vector<2x128xf32>
    %673 = vector.extract_strided_slice %666 {offsets = [0, 128], sizes = [2, 128], strides = [1, 1]} : vector<2x512xf32> to vector<2x128xf32>
    %674 = arith.negf %673 : vector<2x128xf32>
    %675 = math.exp %674 : vector<2x128xf32>
    %cst_264 = arith.constant 1.000000e+00 : f32
    %676 = vector.broadcast %cst_264 : f32 to vector<2x128xf32>
    %677 = arith.addf %676, %675 : vector<2x128xf32>
    %678 = arith.divf %676, %677 : vector<2x128xf32>
    %679 = vector.extract_strided_slice %666 {offsets = [0, 256], sizes = [2, 128], strides = [1, 1]} : vector<2x512xf32> to vector<2x128xf32>
    %680 = math.tanh %679 : vector<2x128xf32>
    %681 = vector.extract_strided_slice %666 {offsets = [0, 384], sizes = [2, 128], strides = [1, 1]} : vector<2x512xf32> to vector<2x128xf32>
    %682 = arith.negf %681 : vector<2x128xf32>
    %683 = math.exp %682 : vector<2x128xf32>
    %cst_265 = arith.constant 1.000000e+00 : f32
    %684 = vector.broadcast %cst_265 : f32 to vector<2x128xf32>
    %685 = arith.addf %684, %683 : vector<2x128xf32>
    %686 = arith.divf %684, %685 : vector<2x128xf32>
    %687 = arith.mulf %678, %627 : vector<2x128xf32>
    %688 = arith.mulf %672, %680 : vector<2x128xf32>
    %689 = arith.addf %687, %688 : vector<2x128xf32>
    %690 = math.tanh %689 : vector<2x128xf32>
    %691 = arith.mulf %686, %690 : vector<2x128xf32>
    %c4_266 = arith.constant 4 : index
    %c128_267 = arith.constant 128 : index
    %692 = vector.load %arg30[%c4_266, %c128_267] : memref<16x256xf32, #tpu.memory_space<vmem>>, vector<2x128xf32>
    tpu.vector_store %arg30[%c4_266, %c128_267], %691 {strides = array<i32>} : memref<16x256xf32, #tpu.memory_space<vmem>>, vector<2x128xf32>,
    %c12_268 = arith.constant 12 : index
    %c0_269 = arith.constant 0 : index
    %693 = vector.load %arg31[%c12_268, %c0_269] : memref<16x512xf32, #tpu.memory_space<vmem>>, vector<2x512xf32>
    %694 = arith.truncf %660 : vector<2x128xf32> to vector<2x128xbf16>
    %c0_270 = arith.constant 0 : index
    %c0_271 = arith.constant 0 : index
    %695 = vector.load %arg18[%c0_270, %c0_271] : memref<128x512xbf16, #tpu.memory_space<vmem>>, vector<128x512xbf16>
    %cst_272 = arith.constant dense<0.000000e+00> : vector<2x512xf32>
    %696 = tpu.matmul %694, %695, %cst_272 {dimension_numbers = #tpu.dot_dimension_numbers<[1], [0], [0], [1], [0, 0, 1, 1], [], []>} : vector<2x128xbf16>, vector<128x512xbf16>, vector<2x512xf32> -> vector<2x512xf32>
    %697 = arith.addf %693, %696 : vector<2x512xf32>
    %698 = vector.extract_strided_slice %697 {offsets = [0, 0], sizes = [2, 128], strides = [1, 1]} : vector<2x512xf32> to vector<2x128xf32>
    %699 = arith.negf %698 : vector<2x128xf32>
    %700 = math.exp %699 : vector<2x128xf32>
    %cst_273 = arith.constant 1.000000e+00 : f32
    %701 = vector.broadcast %cst_273 : f32 to vector<2x128xf32>
    %702 = arith.addf %701, %700 : vector<2x128xf32>
    %703 = arith.divf %701, %702 : vector<2x128xf32>
    %704 = vector.extract_strided_slice %697 {offsets = [0, 128], sizes = [2, 128], strides = [1, 1]} : vector<2x512xf32> to vector<2x128xf32>
    %705 = arith.negf %704 : vector<2x128xf32>
    %706 = math.exp %705 : vector<2x128xf32>
    %cst_274 = arith.constant 1.000000e+00 : f32
    %707 = vector.broadcast %cst_274 : f32 to vector<2x128xf32>
    %708 = arith.addf %707, %706 : vector<2x128xf32>
    %709 = arith.divf %707, %708 : vector<2x128xf32>
    %710 = vector.extract_strided_slice %697 {offsets = [0, 256], sizes = [2, 128], strides = [1, 1]} : vector<2x512xf32> to vector<2x128xf32>
    %711 = math.tanh %710 : vector<2x128xf32>
    %712 = vector.extract_strided_slice %697 {offsets = [0, 384], sizes = [2, 128], strides = [1, 1]} : vector<2x512xf32> to vector<2x128xf32>
    %713 = arith.negf %712 : vector<2x128xf32>
    %714 = math.exp %713 : vector<2x128xf32>
    %cst_275 = arith.constant 1.000000e+00 : f32
    %715 = vector.broadcast %cst_275 : f32 to vector<2x128xf32>
    %716 = arith.addf %715, %714 : vector<2x128xf32>
    %717 = arith.divf %715, %716 : vector<2x128xf32>
    %718 = arith.mulf %709, %658 : vector<2x128xf32>
    %719 = arith.mulf %703, %711 : vector<2x128xf32>
    %720 = arith.addf %718, %719 : vector<2x128xf32>
    %721 = math.tanh %720 : vector<2x128xf32>
    %722 = arith.mulf %717, %721 : vector<2x128xf32>
    %c12_276 = arith.constant 12 : index
    %c0_277 = arith.constant 0 : index
    %723 = vector.load %arg30[%c12_276, %c0_277] : memref<16x256xf32, #tpu.memory_space<vmem>>, vector<2x128xf32>
    tpu.vector_store %arg30[%c12_276, %c0_277], %722 {strides = array<i32>} : memref<16x256xf32, #tpu.memory_space<vmem>>, vector<2x128xf32>,
    %c2_278 = arith.constant 2 : index
    %c0_279 = arith.constant 0 : index
    %724 = vector.load %arg32[%c2_278, %c0_279] : memref<16x512xf32, #tpu.memory_space<vmem>>, vector<2x512xf32>
    %725 = arith.truncf %691 : vector<2x128xf32> to vector<2x128xbf16>
    %c0_280 = arith.constant 0 : index
    %c0_281 = arith.constant 0 : index
    %726 = vector.load %arg21[%c0_280, %c0_281] : memref<128x512xbf16, #tpu.memory_space<vmem>>, vector<128x512xbf16>
    %cst_282 = arith.constant dense<0.000000e+00> : vector<2x512xf32>
    %727 = tpu.matmul %725, %726, %cst_282 {dimension_numbers = #tpu.dot_dimension_numbers<[1], [0], [0], [1], [0, 0, 1, 1], [], []>} : vector<2x128xbf16>, vector<128x512xbf16>, vector<2x512xf32> -> vector<2x512xf32>
    %728 = arith.addf %724, %727 : vector<2x512xf32>
    %729 = vector.extract_strided_slice %728 {offsets = [0, 0], sizes = [2, 128], strides = [1, 1]} : vector<2x512xf32> to vector<2x128xf32>
    %730 = arith.negf %729 : vector<2x128xf32>
    %731 = math.exp %730 : vector<2x128xf32>
    %cst_283 = arith.constant 1.000000e+00 : f32
    %732 = vector.broadcast %cst_283 : f32 to vector<2x128xf32>
    %733 = arith.addf %732, %731 : vector<2x128xf32>
    %734 = arith.divf %732, %733 : vector<2x128xf32>
    %735 = vector.extract_strided_slice %728 {offsets = [0, 128], sizes = [2, 128], strides = [1, 1]} : vector<2x512xf32> to vector<2x128xf32>
    %736 = arith.negf %735 : vector<2x128xf32>
    %737 = math.exp %736 : vector<2x128xf32>
    %cst_284 = arith.constant 1.000000e+00 : f32
    %738 = vector.broadcast %cst_284 : f32 to vector<2x128xf32>
    %739 = arith.addf %738, %737 : vector<2x128xf32>
    %740 = arith.divf %738, %739 : vector<2x128xf32>
    %741 = vector.extract_strided_slice %728 {offsets = [0, 256], sizes = [2, 128], strides = [1, 1]} : vector<2x512xf32> to vector<2x128xf32>
    %742 = math.tanh %741 : vector<2x128xf32>
    %743 = vector.extract_strided_slice %728 {offsets = [0, 384], sizes = [2, 128], strides = [1, 1]} : vector<2x512xf32> to vector<2x128xf32>
    %744 = arith.negf %743 : vector<2x128xf32>
    %745 = math.exp %744 : vector<2x128xf32>
    %cst_285 = arith.constant 1.000000e+00 : f32
    %746 = vector.broadcast %cst_285 : f32 to vector<2x128xf32>
    %747 = arith.addf %746, %745 : vector<2x128xf32>
    %748 = arith.divf %746, %747 : vector<2x128xf32>
    %749 = arith.mulf %740, %689 : vector<2x128xf32>
    %750 = arith.mulf %734, %742 : vector<2x128xf32>
    %751 = arith.addf %749, %750 : vector<2x128xf32>
    %752 = math.tanh %751 : vector<2x128xf32>
    %753 = arith.mulf %748, %752 : vector<2x128xf32>
    %c2_286 = arith.constant 2 : index
    %c128_287 = arith.constant 128 : index
    %754 = vector.load %arg30[%c2_286, %c128_287] : memref<16x256xf32, #tpu.memory_space<vmem>>, vector<2x128xf32>
    tpu.vector_store %arg30[%c2_286, %c128_287], %753 {strides = array<i32>} : memref<16x256xf32, #tpu.memory_space<vmem>>, vector<2x128xf32>,
    %c14_288 = arith.constant 14 : index
    %c0_289 = arith.constant 0 : index
    %755 = vector.load %arg31[%c14_288, %c0_289] : memref<16x512xf32, #tpu.memory_space<vmem>>, vector<2x512xf32>
    %756 = arith.truncf %722 : vector<2x128xf32> to vector<2x128xbf16>
    %c0_290 = arith.constant 0 : index
    %c0_291 = arith.constant 0 : index
    %757 = vector.load %arg18[%c0_290, %c0_291] : memref<128x512xbf16, #tpu.memory_space<vmem>>, vector<128x512xbf16>
    %cst_292 = arith.constant dense<0.000000e+00> : vector<2x512xf32>
    %758 = tpu.matmul %756, %757, %cst_292 {dimension_numbers = #tpu.dot_dimension_numbers<[1], [0], [0], [1], [0, 0, 1, 1], [], []>} : vector<2x128xbf16>, vector<128x512xbf16>, vector<2x512xf32> -> vector<2x512xf32>
    %759 = arith.addf %755, %758 : vector<2x512xf32>
    %760 = vector.extract_strided_slice %759 {offsets = [0, 0], sizes = [2, 128], strides = [1, 1]} : vector<2x512xf32> to vector<2x128xf32>
    %761 = arith.negf %760 : vector<2x128xf32>
    %762 = math.exp %761 : vector<2x128xf32>
    %cst_293 = arith.constant 1.000000e+00 : f32
    %763 = vector.broadcast %cst_293 : f32 to vector<2x128xf32>
    %764 = arith.addf %763, %762 : vector<2x128xf32>
    %765 = arith.divf %763, %764 : vector<2x128xf32>
    %766 = vector.extract_strided_slice %759 {offsets = [0, 128], sizes = [2, 128], strides = [1, 1]} : vector<2x512xf32> to vector<2x128xf32>
    %767 = arith.negf %766 : vector<2x128xf32>
    %768 = math.exp %767 : vector<2x128xf32>
    %cst_294 = arith.constant 1.000000e+00 : f32
    %769 = vector.broadcast %cst_294 : f32 to vector<2x128xf32>
    %770 = arith.addf %769, %768 : vector<2x128xf32>
    %771 = arith.divf %769, %770 : vector<2x128xf32>
    %772 = vector.extract_strided_slice %759 {offsets = [0, 256], sizes = [2, 128], strides = [1, 1]} : vector<2x512xf32> to vector<2x128xf32>
    %773 = math.tanh %772 : vector<2x128xf32>
    %774 = vector.extract_strided_slice %759 {offsets = [0, 384], sizes = [2, 128], strides = [1, 1]} : vector<2x512xf32> to vector<2x128xf32>
    %775 = arith.negf %774 : vector<2x128xf32>
    %776 = math.exp %775 : vector<2x128xf32>
    %cst_295 = arith.constant 1.000000e+00 : f32
    %777 = vector.broadcast %cst_295 : f32 to vector<2x128xf32>
    %778 = arith.addf %777, %776 : vector<2x128xf32>
    %779 = arith.divf %777, %778 : vector<2x128xf32>
    %780 = arith.mulf %771, %720 : vector<2x128xf32>
    %781 = arith.mulf %765, %773 : vector<2x128xf32>
    %782 = arith.addf %780, %781 : vector<2x128xf32>
    %783 = math.tanh %782 : vector<2x128xf32>
    %784 = arith.mulf %779, %783 : vector<2x128xf32>
    %c14_296 = arith.constant 14 : index
    %c0_297 = arith.constant 0 : index
    %785 = vector.load %arg30[%c14_296, %c0_297] : memref<16x256xf32, #tpu.memory_space<vmem>>, vector<2x128xf32>
    tpu.vector_store %arg30[%c14_296, %c0_297], %784 {strides = array<i32>} : memref<16x256xf32, #tpu.memory_space<vmem>>, vector<2x128xf32>,
    %c0_298 = arith.constant 0 : index
    %c0_299 = arith.constant 0 : index
    %786 = vector.load %arg32[%c0_298, %c0_299] : memref<16x512xf32, #tpu.memory_space<vmem>>, vector<2x512xf32>
    %787 = arith.truncf %753 : vector<2x128xf32> to vector<2x128xbf16>
    %c0_300 = arith.constant 0 : index
    %c0_301 = arith.constant 0 : index
    %788 = vector.load %arg21[%c0_300, %c0_301] : memref<128x512xbf16, #tpu.memory_space<vmem>>, vector<128x512xbf16>
    %cst_302 = arith.constant dense<0.000000e+00> : vector<2x512xf32>
    %789 = tpu.matmul %787, %788, %cst_302 {dimension_numbers = #tpu.dot_dimension_numbers<[1], [0], [0], [1], [0, 0, 1, 1], [], []>} : vector<2x128xbf16>, vector<128x512xbf16>, vector<2x512xf32> -> vector<2x512xf32>
    %790 = arith.addf %786, %789 : vector<2x512xf32>
    %791 = vector.extract_strided_slice %790 {offsets = [0, 0], sizes = [2, 128], strides = [1, 1]} : vector<2x512xf32> to vector<2x128xf32>
    %792 = arith.negf %791 : vector<2x128xf32>
    %793 = math.exp %792 : vector<2x128xf32>
    %cst_303 = arith.constant 1.000000e+00 : f32
    %794 = vector.broadcast %cst_303 : f32 to vector<2x128xf32>
    %795 = arith.addf %794, %793 : vector<2x128xf32>
    %796 = arith.divf %794, %795 : vector<2x128xf32>
    %797 = vector.extract_strided_slice %790 {offsets = [0, 128], sizes = [2, 128], strides = [1, 1]} : vector<2x512xf32> to vector<2x128xf32>
    %798 = arith.negf %797 : vector<2x128xf32>
    %799 = math.exp %798 : vector<2x128xf32>
    %cst_304 = arith.constant 1.000000e+00 : f32
    %800 = vector.broadcast %cst_304 : f32 to vector<2x128xf32>
    %801 = arith.addf %800, %799 : vector<2x128xf32>
    %802 = arith.divf %800, %801 : vector<2x128xf32>
    %803 = vector.extract_strided_slice %790 {offsets = [0, 256], sizes = [2, 128], strides = [1, 1]} : vector<2x512xf32> to vector<2x128xf32>
    %804 = math.tanh %803 : vector<2x128xf32>
    %805 = vector.extract_strided_slice %790 {offsets = [0, 384], sizes = [2, 128], strides = [1, 1]} : vector<2x512xf32> to vector<2x128xf32>
    %806 = arith.negf %805 : vector<2x128xf32>
    %807 = math.exp %806 : vector<2x128xf32>
    %cst_305 = arith.constant 1.000000e+00 : f32
    %808 = vector.broadcast %cst_305 : f32 to vector<2x128xf32>
    %809 = arith.addf %808, %807 : vector<2x128xf32>
    %810 = arith.divf %808, %809 : vector<2x128xf32>
    %811 = arith.mulf %802, %751 : vector<2x128xf32>
    %812 = arith.mulf %796, %804 : vector<2x128xf32>
    %813 = arith.addf %811, %812 : vector<2x128xf32>
    %814 = math.tanh %813 : vector<2x128xf32>
    %815 = arith.mulf %810, %814 : vector<2x128xf32>
    %c0_306 = arith.constant 0 : index
    %c128_307 = arith.constant 128 : index
    %816 = vector.load %arg30[%c0_306, %c128_307] : memref<16x256xf32, #tpu.memory_space<vmem>>, vector<2x128xf32>
    tpu.vector_store %arg30[%c0_306, %c128_307], %815 {strides = array<i32>} : memref<16x256xf32, #tpu.memory_space<vmem>>, vector<2x128xf32>,
    %c0_308 = arith.constant 0 : index
    %c0_309 = arith.constant 0 : index
    %817 = vector.load %arg30[%c0_308, %c0_309] : memref<16x256xf32, #tpu.memory_space<vmem>>, vector<16x256xf32>
    %818 = arith.truncf %817 : vector<16x256xf32> to vector<16x256xbf16>
    %c0_310 = arith.constant 0 : index
    %c0_311 = arith.constant 0 : index
    %819 = vector.load %arg23[%c0_310, %c0_311] : memref<256x9xbf16, #tpu.memory_space<vmem>>, vector<256x9xbf16>
    %cst_312 = arith.constant dense<0.000000e+00> : vector<16x9xf32>
    %820 = tpu.matmul %818, %819, %cst_312 {dimension_numbers = #tpu.dot_dimension_numbers<[1], [0], [0], [1], [0, 0, 1, 1], [], []>} : vector<16x256xbf16>, vector<256x9xbf16>, vector<16x9xf32> -> vector<16x9xf32>
    %c0_313 = arith.constant 0 : index
    %c0_314 = arith.constant 0 : index
    %821 = vector.load %arg24[%c0_313, %c0_314] : memref<1x9xf32, #tpu.memory_space<vmem>>, vector<1x9xf32>
    %822 = vector.broadcast %821 : vector<1x9xf32> to vector<16x9xf32>
    %823 = arith.addf %820, %822 : vector<16x9xf32>
    %c0_315 = arith.constant 0 : index
    %c0_316 = arith.constant 0 : index
    %824 = vector.load %arg29[%c0_315, %c0_316] : memref<16x9xf32, #tpu.memory_space<vmem>>, vector<16x9xf32>
    tpu.vector_store %arg29[%c0_315, %c0_316], %823 {strides = array<i32>} : memref<16x9xf32, #tpu.memory_space<vmem>>, vector<16x9xf32>,
    %825 = tpu.iota {dimensions = array<i32: 1>} : vector<1x9xi32>
    %826 = tpu.iota {dimensions = array<i32: 0>} : vector<9x9xi32>
    %c0_317 = arith.constant 0 : index
    %c0_318 = arith.constant 0 : index
    %827 = vector.load %arg25[%c0_317, %c0_318] : memref<9x9xf32, #tpu.memory_space<vmem>>, vector<9x9xf32>
    %c0_319 = arith.constant 0 : index
    %c0_320 = arith.constant 0 : index
    %828 = vector.load %arg26[%c0_319, %c0_320] : memref<1x9xf32, #tpu.memory_space<vmem>>, vector<1x9xf32>
    %829 = vector.extract_strided_slice %823 {offsets = [0, 0], sizes = [1, 9], strides = [1, 1]} : vector<16x9xf32> to vector<1x9xf32>
    %830 = arith.addf %828, %829 : vector<1x9xf32>
    %831 = vector.extract_strided_slice %823 {offsets = [2, 0], sizes = [1, 9], strides = [1, 1]} : vector<16x9xf32> to vector<1x9xf32>
    %832 = tpu.transpose %830, [1, 0] : vector<1x9xf32> -> vector<9x1xf32>
    %833 = vector.broadcast %832 : vector<9x1xf32> to vector<9x9xf32>
    %834 = arith.addf %833, %827 : vector<9x9xf32>
    %835 = vector.broadcast %831 : vector<1x9xf32> to vector<9x9xf32>
    %836 = arith.addf %834, %835 : vector<9x9xf32>
    %cst_321 = arith.constant dense<0xFF800000> : vector<9xf32>
    %837 = vector.multi_reduction <maximumf>, %836, %cst_321 [0] : vector<9x9xf32> to vector<9xf32>
    %838 = vector.shape_cast %837 : vector<9xf32> to vector<1x9xf32>
    %839 = vector.broadcast %838 : vector<1x9xf32> to vector<9x9xf32>
    %840 = arith.cmpf oeq, %836, %839 : vector<9x9xf32>
    %c9_i32 = arith.constant 9 : i32
    %841 = vector.broadcast %c9_i32 : i32 to vector<9x9xi32>
    %842 = arith.select %840, %826, %841 : vector<9x9xi1>, vector<9x9xi32>
    %cst_322 = arith.constant dense<2147483647> : vector<9xi32>
    %843 = vector.multi_reduction <minsi>, %842, %cst_322 [0] : vector<9x9xi32> to vector<9xi32>
    %844 = vector.shape_cast %843 : vector<9xi32> to vector<1x9xi32>
    %c0_323 = arith.constant 0 : index
    %c1_324 = arith.constant 1 : index
    %845 = memref.load %arg2[%c0_323, %c1_324] : memref<2x8xi32, #tpu.memory_space<smem>>
    %c0_i32 = arith.constant 0 : i32
    %846 = arith.cmpi sgt, %845, %c0_i32 : i32
    %847 = arith.select %846, %838, %830 : vector<1x9xf32>
    %848 = vector.extract_strided_slice %823 {offsets = [4, 0], sizes = [1, 9], strides = [1, 1]} : vector<16x9xf32> to vector<1x9xf32>
    %849 = tpu.transpose %847, [1, 0] : vector<1x9xf32> -> vector<9x1xf32>
    %850 = vector.broadcast %849 : vector<9x1xf32> to vector<9x9xf32>
    %851 = arith.addf %850, %827 : vector<9x9xf32>
    %852 = vector.broadcast %848 : vector<1x9xf32> to vector<9x9xf32>
    %853 = arith.addf %851, %852 : vector<9x9xf32>
    %cst_325 = arith.constant dense<0xFF800000> : vector<9xf32>
    %854 = vector.multi_reduction <maximumf>, %853, %cst_325 [0] : vector<9x9xf32> to vector<9xf32>
    %855 = vector.shape_cast %854 : vector<9xf32> to vector<1x9xf32>
    %856 = vector.broadcast %855 : vector<1x9xf32> to vector<9x9xf32>
    %857 = arith.cmpf oeq, %853, %856 : vector<9x9xf32>
    %c9_i32_326 = arith.constant 9 : i32
    %858 = vector.broadcast %c9_i32_326 : i32 to vector<9x9xi32>
    %859 = arith.select %857, %826, %858 : vector<9x9xi1>, vector<9x9xi32>
    %cst_327 = arith.constant dense<2147483647> : vector<9xi32>
    %860 = vector.multi_reduction <minsi>, %859, %cst_327 [0] : vector<9x9xi32> to vector<9xi32>
    %861 = vector.shape_cast %860 : vector<9xi32> to vector<1x9xi32>
    %c0_328 = arith.constant 0 : index
    %c2_329 = arith.constant 2 : index
    %862 = memref.load %arg2[%c0_328, %c2_329] : memref<2x8xi32, #tpu.memory_space<smem>>
    %c0_i32_330 = arith.constant 0 : i32
    %863 = arith.cmpi sgt, %862, %c0_i32_330 : i32
    %864 = arith.select %863, %855, %847 : vector<1x9xf32>
    %865 = vector.extract_strided_slice %823 {offsets = [6, 0], sizes = [1, 9], strides = [1, 1]} : vector<16x9xf32> to vector<1x9xf32>
    %866 = tpu.transpose %864, [1, 0] : vector<1x9xf32> -> vector<9x1xf32>
    %867 = vector.broadcast %866 : vector<9x1xf32> to vector<9x9xf32>
    %868 = arith.addf %867, %827 : vector<9x9xf32>
    %869 = vector.broadcast %865 : vector<1x9xf32> to vector<9x9xf32>
    %870 = arith.addf %868, %869 : vector<9x9xf32>
    %cst_331 = arith.constant dense<0xFF800000> : vector<9xf32>
    %871 = vector.multi_reduction <maximumf>, %870, %cst_331 [0] : vector<9x9xf32> to vector<9xf32>
    %872 = vector.shape_cast %871 : vector<9xf32> to vector<1x9xf32>
    %873 = vector.broadcast %872 : vector<1x9xf32> to vector<9x9xf32>
    %874 = arith.cmpf oeq, %870, %873 : vector<9x9xf32>
    %c9_i32_332 = arith.constant 9 : i32
    %875 = vector.broadcast %c9_i32_332 : i32 to vector<9x9xi32>
    %876 = arith.select %874, %826, %875 : vector<9x9xi1>, vector<9x9xi32>
    %cst_333 = arith.constant dense<2147483647> : vector<9xi32>
    %877 = vector.multi_reduction <minsi>, %876, %cst_333 [0] : vector<9x9xi32> to vector<9xi32>
    %878 = vector.shape_cast %877 : vector<9xi32> to vector<1x9xi32>
    %c0_334 = arith.constant 0 : index
    %c3 = arith.constant 3 : index
    %879 = memref.load %arg2[%c0_334, %c3] : memref<2x8xi32, #tpu.memory_space<smem>>
    %c0_i32_335 = arith.constant 0 : i32
    %880 = arith.cmpi sgt, %879, %c0_i32_335 : i32
    %881 = arith.select %880, %872, %864 : vector<1x9xf32>
    %882 = vector.extract_strided_slice %823 {offsets = [8, 0], sizes = [1, 9], strides = [1, 1]} : vector<16x9xf32> to vector<1x9xf32>
    %883 = tpu.transpose %881, [1, 0] : vector<1x9xf32> -> vector<9x1xf32>
    %884 = vector.broadcast %883 : vector<9x1xf32> to vector<9x9xf32>
    %885 = arith.addf %884, %827 : vector<9x9xf32>
    %886 = vector.broadcast %882 : vector<1x9xf32> to vector<9x9xf32>
    %887 = arith.addf %885, %886 : vector<9x9xf32>
    %cst_336 = arith.constant dense<0xFF800000> : vector<9xf32>
    %888 = vector.multi_reduction <maximumf>, %887, %cst_336 [0] : vector<9x9xf32> to vector<9xf32>
    %889 = vector.shape_cast %888 : vector<9xf32> to vector<1x9xf32>
    %890 = vector.broadcast %889 : vector<1x9xf32> to vector<9x9xf32>
    %891 = arith.cmpf oeq, %887, %890 : vector<9x9xf32>
    %c9_i32_337 = arith.constant 9 : i32
    %892 = vector.broadcast %c9_i32_337 : i32 to vector<9x9xi32>
    %893 = arith.select %891, %826, %892 : vector<9x9xi1>, vector<9x9xi32>
    %cst_338 = arith.constant dense<2147483647> : vector<9xi32>
    %894 = vector.multi_reduction <minsi>, %893, %cst_338 [0] : vector<9x9xi32> to vector<9xi32>
    %895 = vector.shape_cast %894 : vector<9xi32> to vector<1x9xi32>
    %c0_339 = arith.constant 0 : index
    %c4_340 = arith.constant 4 : index
    %896 = memref.load %arg2[%c0_339, %c4_340] : memref<2x8xi32, #tpu.memory_space<smem>>
    %c0_i32_341 = arith.constant 0 : i32
    %897 = arith.cmpi sgt, %896, %c0_i32_341 : i32
    %898 = arith.select %897, %889, %881 : vector<1x9xf32>
    %899 = vector.extract_strided_slice %823 {offsets = [10, 0], sizes = [1, 9], strides = [1, 1]} : vector<16x9xf32> to vector<1x9xf32>
    %900 = tpu.transpose %898, [1, 0] : vector<1x9xf32> -> vector<9x1xf32>
    %901 = vector.broadcast %900 : vector<9x1xf32> to vector<9x9xf32>
    %902 = arith.addf %901, %827 : vector<9x9xf32>
    %903 = vector.broadcast %899 : vector<1x9xf32> to vector<9x9xf32>
    %904 = arith.addf %902, %903 : vector<9x9xf32>
    %cst_342 = arith.constant dense<0xFF800000> : vector<9xf32>
    %905 = vector.multi_reduction <maximumf>, %904, %cst_342 [0] : vector<9x9xf32> to vector<9xf32>
    %906 = vector.shape_cast %905 : vector<9xf32> to vector<1x9xf32>
    %907 = vector.broadcast %906 : vector<1x9xf32> to vector<9x9xf32>
    %908 = arith.cmpf oeq, %904, %907 : vector<9x9xf32>
    %c9_i32_343 = arith.constant 9 : i32
    %909 = vector.broadcast %c9_i32_343 : i32 to vector<9x9xi32>
    %910 = arith.select %908, %826, %909 : vector<9x9xi1>, vector<9x9xi32>
    %cst_344 = arith.constant dense<2147483647> : vector<9xi32>
    %911 = vector.multi_reduction <minsi>, %910, %cst_344 [0] : vector<9x9xi32> to vector<9xi32>
    %912 = vector.shape_cast %911 : vector<9xi32> to vector<1x9xi32>
    %c0_345 = arith.constant 0 : index
    %c5 = arith.constant 5 : index
    %913 = memref.load %arg2[%c0_345, %c5] : memref<2x8xi32, #tpu.memory_space<smem>>
    %c0_i32_346 = arith.constant 0 : i32
    %914 = arith.cmpi sgt, %913, %c0_i32_346 : i32
    %915 = arith.select %914, %906, %898 : vector<1x9xf32>
    %916 = vector.extract_strided_slice %823 {offsets = [12, 0], sizes = [1, 9], strides = [1, 1]} : vector<16x9xf32> to vector<1x9xf32>
    %917 = tpu.transpose %915, [1, 0] : vector<1x9xf32> -> vector<9x1xf32>
    %918 = vector.broadcast %917 : vector<9x1xf32> to vector<9x9xf32>
    %919 = arith.addf %918, %827 : vector<9x9xf32>
    %920 = vector.broadcast %916 : vector<1x9xf32> to vector<9x9xf32>
    %921 = arith.addf %919, %920 : vector<9x9xf32>
    %cst_347 = arith.constant dense<0xFF800000> : vector<9xf32>
    %922 = vector.multi_reduction <maximumf>, %921, %cst_347 [0] : vector<9x9xf32> to vector<9xf32>
    %923 = vector.shape_cast %922 : vector<9xf32> to vector<1x9xf32>
    %924 = vector.broadcast %923 : vector<1x9xf32> to vector<9x9xf32>
    %925 = arith.cmpf oeq, %921, %924 : vector<9x9xf32>
    %c9_i32_348 = arith.constant 9 : i32
    %926 = vector.broadcast %c9_i32_348 : i32 to vector<9x9xi32>
    %927 = arith.select %925, %826, %926 : vector<9x9xi1>, vector<9x9xi32>
    %cst_349 = arith.constant dense<2147483647> : vector<9xi32>
    %928 = vector.multi_reduction <minsi>, %927, %cst_349 [0] : vector<9x9xi32> to vector<9xi32>
    %929 = vector.shape_cast %928 : vector<9xi32> to vector<1x9xi32>
    %c0_350 = arith.constant 0 : index
    %c6_351 = arith.constant 6 : index
    %930 = memref.load %arg2[%c0_350, %c6_351] : memref<2x8xi32, #tpu.memory_space<smem>>
    %c0_i32_352 = arith.constant 0 : i32
    %931 = arith.cmpi sgt, %930, %c0_i32_352 : i32
    %932 = arith.select %931, %923, %915 : vector<1x9xf32>
    %933 = vector.extract_strided_slice %823 {offsets = [14, 0], sizes = [1, 9], strides = [1, 1]} : vector<16x9xf32> to vector<1x9xf32>
    %934 = tpu.transpose %932, [1, 0] : vector<1x9xf32> -> vector<9x1xf32>
    %935 = vector.broadcast %934 : vector<9x1xf32> to vector<9x9xf32>
    %936 = arith.addf %935, %827 : vector<9x9xf32>
    %937 = vector.broadcast %933 : vector<1x9xf32> to vector<9x9xf32>
    %938 = arith.addf %936, %937 : vector<9x9xf32>
    %cst_353 = arith.constant dense<0xFF800000> : vector<9xf32>
    %939 = vector.multi_reduction <maximumf>, %938, %cst_353 [0] : vector<9x9xf32> to vector<9xf32>
    %940 = vector.shape_cast %939 : vector<9xf32> to vector<1x9xf32>
    %941 = vector.broadcast %940 : vector<1x9xf32> to vector<9x9xf32>
    %942 = arith.cmpf oeq, %938, %941 : vector<9x9xf32>
    %c9_i32_354 = arith.constant 9 : i32
    %943 = vector.broadcast %c9_i32_354 : i32 to vector<9x9xi32>
    %944 = arith.select %942, %826, %943 : vector<9x9xi1>, vector<9x9xi32>
    %cst_355 = arith.constant dense<2147483647> : vector<9xi32>
    %945 = vector.multi_reduction <minsi>, %944, %cst_355 [0] : vector<9x9xi32> to vector<9xi32>
    %946 = vector.shape_cast %945 : vector<9xi32> to vector<1x9xi32>
    %c0_356 = arith.constant 0 : index
    %c7 = arith.constant 7 : index
    %947 = memref.load %arg2[%c0_356, %c7] : memref<2x8xi32, #tpu.memory_space<smem>>
    %c0_i32_357 = arith.constant 0 : i32
    %948 = arith.cmpi sgt, %947, %c0_i32_357 : i32
    %949 = arith.select %948, %940, %932 : vector<1x9xf32>
    %c0_358 = arith.constant 0 : index
    %c0_359 = arith.constant 0 : index
    %950 = vector.load %arg27[%c0_358, %c0_359] : memref<1x9xf32, #tpu.memory_space<vmem>>, vector<1x9xf32>
    %951 = arith.addf %949, %950 : vector<1x9xf32>
    %952 = vector.shape_cast %951 : vector<1x9xf32> to vector<1x1x9xf32>
    %cst_360 = arith.constant dense<0xFF800000> : vector<1xf32>
    %953 = vector.multi_reduction <maximumf>, %952, %cst_360 [1, 2] : vector<1x1x9xf32> to vector<1xf32>
    %954 = vector.shape_cast %953 : vector<1xf32> to vector<1x1x1xf32>
    %955 = vector.extract %954[0, 0, 0] : f32 from vector<1x1x1xf32>
    %956 = vector.broadcast %955 : f32 to vector<1x9xf32>
    %957 = arith.cmpf oeq, %951, %956 : vector<1x9xf32>
    %c9_i32_361 = arith.constant 9 : i32
    %958 = vector.broadcast %c9_i32_361 : i32 to vector<1x9xi32>
    %959 = arith.select %957, %825, %958 : vector<1x9xi1>, vector<1x9xi32>
    %960 = vector.shape_cast %959 : vector<1x9xi32> to vector<1x1x9xi32>
    %cst_362 = arith.constant dense<2147483647> : vector<1xi32>
    %961 = vector.multi_reduction <minsi>, %960, %cst_362 [1, 2] : vector<1x1x9xi32> to vector<1xi32>
    %962 = vector.shape_cast %961 : vector<1xi32> to vector<1x1x1xi32>
    %963 = vector.extract %962[0, 0, 0] : i32 from vector<1x1x1xi32>
    %c0_363 = arith.constant 0 : index
    %c7_364 = arith.constant 7 : index
    %964 = memref.load %arg2[%c0_363, %c7_364] : memref<2x8xi32, #tpu.memory_space<smem>>
    %c0_i32_365 = arith.constant 0 : i32
    %965 = arith.cmpi sgt, %964, %c0_i32_365 : i32
    %c0_i32_366 = arith.constant 0 : i32
    %966 = arith.select %965, %963, %c0_i32_366 : i32
    %c0_367 = arith.constant 0 : index
    %c7_368 = arith.constant 7 : index
    %967 = memref.load %arg28[%c0_367, %c7_368] : memref<2x8xi32, #tpu.memory_space<smem>>
    memref.store %966, %arg28[%c0_367, %c7_368] : memref<2x8xi32, #tpu.memory_space<smem>>
    %968 = vector.broadcast %963 : i32 to vector<1x9xi32>
    %969 = arith.cmpi eq, %825, %968 : vector<1x9xi32>
    %c0_i32_369 = arith.constant 0 : i32
    %970 = vector.broadcast %c0_i32_369 : i32 to vector<1x9xi32>
    %971 = arith.select %969, %946, %970 : vector<1x9xi1>, vector<1x9xi32>
    %972 = vector.shape_cast %971 : vector<1x9xi32> to vector<1x1x9xi32>
    %cst_370 = arith.constant dense<0> : vector<1xi32>
    %973 = vector.multi_reduction <add>, %972, %cst_370 [1, 2] : vector<1x1x9xi32> to vector<1xi32>
    %974 = vector.shape_cast %973 : vector<1xi32> to vector<1x1x1xi32>
    %975 = vector.extract %974[0, 0, 0] : i32 from vector<1x1x1xi32>
    %976 = arith.select %965, %975, %963 : i32
    %c0_371 = arith.constant 0 : index
    %c6_372 = arith.constant 6 : index
    %977 = memref.load %arg2[%c0_371, %c6_372] : memref<2x8xi32, #tpu.memory_space<smem>>
    %c0_i32_373 = arith.constant 0 : i32
    %978 = arith.cmpi sgt, %977, %c0_i32_373 : i32
    %c0_i32_374 = arith.constant 0 : i32
    %979 = arith.select %978, %976, %c0_i32_374 : i32
    %c0_375 = arith.constant 0 : index
    %c6_376 = arith.constant 6 : index
    %980 = memref.load %arg28[%c0_375, %c6_376] : memref<2x8xi32, #tpu.memory_space<smem>>
    memref.store %979, %arg28[%c0_375, %c6_376] : memref<2x8xi32, #tpu.memory_space<smem>>
    %981 = vector.broadcast %976 : i32 to vector<1x9xi32>
    %982 = arith.cmpi eq, %825, %981 : vector<1x9xi32>
    %c0_i32_377 = arith.constant 0 : i32
    %983 = vector.broadcast %c0_i32_377 : i32 to vector<1x9xi32>
    %984 = arith.select %982, %929, %983 : vector<1x9xi1>, vector<1x9xi32>
    %985 = vector.shape_cast %984 : vector<1x9xi32> to vector<1x1x9xi32>
    %cst_378 = arith.constant dense<0> : vector<1xi32>
    %986 = vector.multi_reduction <add>, %985, %cst_378 [1, 2] : vector<1x1x9xi32> to vector<1xi32>
    %987 = vector.shape_cast %986 : vector<1xi32> to vector<1x1x1xi32>
    %988 = vector.extract %987[0, 0, 0] : i32 from vector<1x1x1xi32>
    %989 = arith.select %978, %988, %976 : i32
    %c0_379 = arith.constant 0 : index
    %c5_380 = arith.constant 5 : index
    %990 = memref.load %arg2[%c0_379, %c5_380] : memref<2x8xi32, #tpu.memory_space<smem>>
    %c0_i32_381 = arith.constant 0 : i32
    %991 = arith.cmpi sgt, %990, %c0_i32_381 : i32
    %c0_i32_382 = arith.constant 0 : i32
    %992 = arith.select %991, %989, %c0_i32_382 : i32
    %c0_383 = arith.constant 0 : index
    %c5_384 = arith.constant 5 : index
    %993 = memref.load %arg28[%c0_383, %c5_384] : memref<2x8xi32, #tpu.memory_space<smem>>
    memref.store %992, %arg28[%c0_383, %c5_384] : memref<2x8xi32, #tpu.memory_space<smem>>
    %994 = vector.broadcast %989 : i32 to vector<1x9xi32>
    %995 = arith.cmpi eq, %825, %994 : vector<1x9xi32>
    %c0_i32_385 = arith.constant 0 : i32
    %996 = vector.broadcast %c0_i32_385 : i32 to vector<1x9xi32>
    %997 = arith.select %995, %912, %996 : vector<1x9xi1>, vector<1x9xi32>
    %998 = vector.shape_cast %997 : vector<1x9xi32> to vector<1x1x9xi32>
    %cst_386 = arith.constant dense<0> : vector<1xi32>
    %999 = vector.multi_reduction <add>, %998, %cst_386 [1, 2] : vector<1x1x9xi32> to vector<1xi32>
    %1000 = vector.shape_cast %999 : vector<1xi32> to vector<1x1x1xi32>
    %1001 = vector.extract %1000[0, 0, 0] : i32 from vector<1x1x1xi32>
    %1002 = arith.select %991, %1001, %989 : i32
    %c0_387 = arith.constant 0 : index
    %c4_388 = arith.constant 4 : index
    %1003 = memref.load %arg2[%c0_387, %c4_388] : memref<2x8xi32, #tpu.memory_space<smem>>
    %c0_i32_389 = arith.constant 0 : i32
    %1004 = arith.cmpi sgt, %1003, %c0_i32_389 : i32
    %c0_i32_390 = arith.constant 0 : i32
    %1005 = arith.select %1004, %1002, %c0_i32_390 : i32
    %c0_391 = arith.constant 0 : index
    %c4_392 = arith.constant 4 : index
    %1006 = memref.load %arg28[%c0_391, %c4_392] : memref<2x8xi32, #tpu.memory_space<smem>>
    memref.store %1005, %arg28[%c0_391, %c4_392] : memref<2x8xi32, #tpu.memory_space<smem>>
    %1007 = vector.broadcast %1002 : i32 to vector<1x9xi32>
    %1008 = arith.cmpi eq, %825, %1007 : vector<1x9xi32>
    %c0_i32_393 = arith.constant 0 : i32
    %1009 = vector.broadcast %c0_i32_393 : i32 to vector<1x9xi32>
    %1010 = arith.select %1008, %895, %1009 : vector<1x9xi1>, vector<1x9xi32>
    %1011 = vector.shape_cast %1010 : vector<1x9xi32> to vector<1x1x9xi32>
    %cst_394 = arith.constant dense<0> : vector<1xi32>
    %1012 = vector.multi_reduction <add>, %1011, %cst_394 [1, 2] : vector<1x1x9xi32> to vector<1xi32>
    %1013 = vector.shape_cast %1012 : vector<1xi32> to vector<1x1x1xi32>
    %1014 = vector.extract %1013[0, 0, 0] : i32 from vector<1x1x1xi32>
    %1015 = arith.select %1004, %1014, %1002 : i32
    %c0_395 = arith.constant 0 : index
    %c3_396 = arith.constant 3 : index
    %1016 = memref.load %arg2[%c0_395, %c3_396] : memref<2x8xi32, #tpu.memory_space<smem>>
    %c0_i32_397 = arith.constant 0 : i32
    %1017 = arith.cmpi sgt, %1016, %c0_i32_397 : i32
    %c0_i32_398 = arith.constant 0 : i32
    %1018 = arith.select %1017, %1015, %c0_i32_398 : i32
    %c0_399 = arith.constant 0 : index
    %c3_400 = arith.constant 3 : index
    %1019 = memref.load %arg28[%c0_399, %c3_400] : memref<2x8xi32, #tpu.memory_space<smem>>
    memref.store %1018, %arg28[%c0_399, %c3_400] : memref<2x8xi32, #tpu.memory_space<smem>>
    %1020 = vector.broadcast %1015 : i32 to vector<1x9xi32>
    %1021 = arith.cmpi eq, %825, %1020 : vector<1x9xi32>
    %c0_i32_401 = arith.constant 0 : i32
    %1022 = vector.broadcast %c0_i32_401 : i32 to vector<1x9xi32>
    %1023 = arith.select %1021, %878, %1022 : vector<1x9xi1>, vector<1x9xi32>
    %1024 = vector.shape_cast %1023 : vector<1x9xi32> to vector<1x1x9xi32>
    %cst_402 = arith.constant dense<0> : vector<1xi32>
    %1025 = vector.multi_reduction <add>, %1024, %cst_402 [1, 2] : vector<1x1x9xi32> to vector<1xi32>
    %1026 = vector.shape_cast %1025 : vector<1xi32> to vector<1x1x1xi32>
    %1027 = vector.extract %1026[0, 0, 0] : i32 from vector<1x1x1xi32>
    %1028 = arith.select %1017, %1027, %1015 : i32
    %c0_403 = arith.constant 0 : index
    %c2_404 = arith.constant 2 : index
    %1029 = memref.load %arg2[%c0_403, %c2_404] : memref<2x8xi32, #tpu.memory_space<smem>>
    %c0_i32_405 = arith.constant 0 : i32
    %1030 = arith.cmpi sgt, %1029, %c0_i32_405 : i32
    %c0_i32_406 = arith.constant 0 : i32
    %1031 = arith.select %1030, %1028, %c0_i32_406 : i32
    %c0_407 = arith.constant 0 : index
    %c2_408 = arith.constant 2 : index
    %1032 = memref.load %arg28[%c0_407, %c2_408] : memref<2x8xi32, #tpu.memory_space<smem>>
    memref.store %1031, %arg28[%c0_407, %c2_408] : memref<2x8xi32, #tpu.memory_space<smem>>
    %1033 = vector.broadcast %1028 : i32 to vector<1x9xi32>
    %1034 = arith.cmpi eq, %825, %1033 : vector<1x9xi32>
    %c0_i32_409 = arith.constant 0 : i32
    %1035 = vector.broadcast %c0_i32_409 : i32 to vector<1x9xi32>
    %1036 = arith.select %1034, %861, %1035 : vector<1x9xi1>, vector<1x9xi32>
    %1037 = vector.shape_cast %1036 : vector<1x9xi32> to vector<1x1x9xi32>
    %cst_410 = arith.constant dense<0> : vector<1xi32>
    %1038 = vector.multi_reduction <add>, %1037, %cst_410 [1, 2] : vector<1x1x9xi32> to vector<1xi32>
    %1039 = vector.shape_cast %1038 : vector<1xi32> to vector<1x1x1xi32>
    %1040 = vector.extract %1039[0, 0, 0] : i32 from vector<1x1x1xi32>
    %1041 = arith.select %1030, %1040, %1028 : i32
    %c0_411 = arith.constant 0 : index
    %c1_412 = arith.constant 1 : index
    %1042 = memref.load %arg2[%c0_411, %c1_412] : memref<2x8xi32, #tpu.memory_space<smem>>
    %c0_i32_413 = arith.constant 0 : i32
    %1043 = arith.cmpi sgt, %1042, %c0_i32_413 : i32
    %c0_i32_414 = arith.constant 0 : i32
    %1044 = arith.select %1043, %1041, %c0_i32_414 : i32
    %c0_415 = arith.constant 0 : index
    %c1_416 = arith.constant 1 : index
    %1045 = memref.load %arg28[%c0_415, %c1_416] : memref<2x8xi32, #tpu.memory_space<smem>>
    memref.store %1044, %arg28[%c0_415, %c1_416] : memref<2x8xi32, #tpu.memory_space<smem>>
    %1046 = vector.broadcast %1041 : i32 to vector<1x9xi32>
    %1047 = arith.cmpi eq, %825, %1046 : vector<1x9xi32>
    %c0_i32_417 = arith.constant 0 : i32
    %1048 = vector.broadcast %c0_i32_417 : i32 to vector<1x9xi32>
    %1049 = arith.select %1047, %844, %1048 : vector<1x9xi1>, vector<1x9xi32>
    %1050 = vector.shape_cast %1049 : vector<1x9xi32> to vector<1x1x9xi32>
    %cst_418 = arith.constant dense<0> : vector<1xi32>
    %1051 = vector.multi_reduction <add>, %1050, %cst_418 [1, 2] : vector<1x1x9xi32> to vector<1xi32>
    %1052 = vector.shape_cast %1051 : vector<1xi32> to vector<1x1x1xi32>
    %1053 = vector.extract %1052[0, 0, 0] : i32 from vector<1x1x1xi32>
    %1054 = arith.select %1043, %1053, %1041 : i32
    %c0_419 = arith.constant 0 : index
    %c0_420 = arith.constant 0 : index
    %1055 = memref.load %arg28[%c0_419, %c0_420] : memref<2x8xi32, #tpu.memory_space<smem>>
    memref.store %1054, %arg28[%c0_419, %c0_420] : memref<2x8xi32, #tpu.memory_space<smem>>
    %c0_421 = arith.constant 0 : index
    %c0_422 = arith.constant 0 : index
    %1056 = vector.load %arg26[%c0_421, %c0_422] : memref<1x9xf32, #tpu.memory_space<vmem>>, vector<1x9xf32>
    %1057 = vector.extract_strided_slice %823 {offsets = [1, 0], sizes = [1, 9], strides = [1, 1]} : vector<16x9xf32> to vector<1x9xf32>
    %1058 = arith.addf %1056, %1057 : vector<1x9xf32>
    %1059 = vector.extract_strided_slice %823 {offsets = [3, 0], sizes = [1, 9], strides = [1, 1]} : vector<16x9xf32> to vector<1x9xf32>
    %1060 = tpu.transpose %1058, [1, 0] : vector<1x9xf32> -> vector<9x1xf32>
    %1061 = vector.broadcast %1060 : vector<9x1xf32> to vector<9x9xf32>
    %1062 = arith.addf %1061, %827 : vector<9x9xf32>
    %1063 = vector.broadcast %1059 : vector<1x9xf32> to vector<9x9xf32>
    %1064 = arith.addf %1062, %1063 : vector<9x9xf32>
    %cst_423 = arith.constant dense<0xFF800000> : vector<9xf32>
    %1065 = vector.multi_reduction <maximumf>, %1064, %cst_423 [0] : vector<9x9xf32> to vector<9xf32>
    %1066 = vector.shape_cast %1065 : vector<9xf32> to vector<1x9xf32>
    %1067 = vector.broadcast %1066 : vector<1x9xf32> to vector<9x9xf32>
    %1068 = arith.cmpf oeq, %1064, %1067 : vector<9x9xf32>
    %c9_i32_424 = arith.constant 9 : i32
    %1069 = vector.broadcast %c9_i32_424 : i32 to vector<9x9xi32>
    %1070 = arith.select %1068, %826, %1069 : vector<9x9xi1>, vector<9x9xi32>
    %cst_425 = arith.constant dense<2147483647> : vector<9xi32>
    %1071 = vector.multi_reduction <minsi>, %1070, %cst_425 [0] : vector<9x9xi32> to vector<9xi32>
    %1072 = vector.shape_cast %1071 : vector<9xi32> to vector<1x9xi32>
    %c1_426 = arith.constant 1 : index
    %c1_427 = arith.constant 1 : index
    %1073 = memref.load %arg2[%c1_426, %c1_427] : memref<2x8xi32, #tpu.memory_space<smem>>
    %c0_i32_428 = arith.constant 0 : i32
    %1074 = arith.cmpi sgt, %1073, %c0_i32_428 : i32
    %1075 = arith.select %1074, %1066, %1058 : vector<1x9xf32>
    %1076 = vector.extract_strided_slice %823 {offsets = [5, 0], sizes = [1, 9], strides = [1, 1]} : vector<16x9xf32> to vector<1x9xf32>
    %1077 = tpu.transpose %1075, [1, 0] : vector<1x9xf32> -> vector<9x1xf32>
    %1078 = vector.broadcast %1077 : vector<9x1xf32> to vector<9x9xf32>
    %1079 = arith.addf %1078, %827 : vector<9x9xf32>
    %1080 = vector.broadcast %1076 : vector<1x9xf32> to vector<9x9xf32>
    %1081 = arith.addf %1079, %1080 : vector<9x9xf32>
    %cst_429 = arith.constant dense<0xFF800000> : vector<9xf32>
    %1082 = vector.multi_reduction <maximumf>, %1081, %cst_429 [0] : vector<9x9xf32> to vector<9xf32>
    %1083 = vector.shape_cast %1082 : vector<9xf32> to vector<1x9xf32>
    %1084 = vector.broadcast %1083 : vector<1x9xf32> to vector<9x9xf32>
    %1085 = arith.cmpf oeq, %1081, %1084 : vector<9x9xf32>
    %c9_i32_430 = arith.constant 9 : i32
    %1086 = vector.broadcast %c9_i32_430 : i32 to vector<9x9xi32>
    %1087 = arith.select %1085, %826, %1086 : vector<9x9xi1>, vector<9x9xi32>
    %cst_431 = arith.constant dense<2147483647> : vector<9xi32>
    %1088 = vector.multi_reduction <minsi>, %1087, %cst_431 [0] : vector<9x9xi32> to vector<9xi32>
    %1089 = vector.shape_cast %1088 : vector<9xi32> to vector<1x9xi32>
    %c1_432 = arith.constant 1 : index
    %c2_433 = arith.constant 2 : index
    %1090 = memref.load %arg2[%c1_432, %c2_433] : memref<2x8xi32, #tpu.memory_space<smem>>
    %c0_i32_434 = arith.constant 0 : i32
    %1091 = arith.cmpi sgt, %1090, %c0_i32_434 : i32
    %1092 = arith.select %1091, %1083, %1075 : vector<1x9xf32>
    %1093 = vector.extract_strided_slice %823 {offsets = [7, 0], sizes = [1, 9], strides = [1, 1]} : vector<16x9xf32> to vector<1x9xf32>
    %1094 = tpu.transpose %1092, [1, 0] : vector<1x9xf32> -> vector<9x1xf32>
    %1095 = vector.broadcast %1094 : vector<9x1xf32> to vector<9x9xf32>
    %1096 = arith.addf %1095, %827 : vector<9x9xf32>
    %1097 = vector.broadcast %1093 : vector<1x9xf32> to vector<9x9xf32>
    %1098 = arith.addf %1096, %1097 : vector<9x9xf32>
    %cst_435 = arith.constant dense<0xFF800000> : vector<9xf32>
    %1099 = vector.multi_reduction <maximumf>, %1098, %cst_435 [0] : vector<9x9xf32> to vector<9xf32>
    %1100 = vector.shape_cast %1099 : vector<9xf32> to vector<1x9xf32>
    %1101 = vector.broadcast %1100 : vector<1x9xf32> to vector<9x9xf32>
    %1102 = arith.cmpf oeq, %1098, %1101 : vector<9x9xf32>
    %c9_i32_436 = arith.constant 9 : i32
    %1103 = vector.broadcast %c9_i32_436 : i32 to vector<9x9xi32>
    %1104 = arith.select %1102, %826, %1103 : vector<9x9xi1>, vector<9x9xi32>
    %cst_437 = arith.constant dense<2147483647> : vector<9xi32>
    %1105 = vector.multi_reduction <minsi>, %1104, %cst_437 [0] : vector<9x9xi32> to vector<9xi32>
    %1106 = vector.shape_cast %1105 : vector<9xi32> to vector<1x9xi32>
    %c1_438 = arith.constant 1 : index
    %c3_439 = arith.constant 3 : index
    %1107 = memref.load %arg2[%c1_438, %c3_439] : memref<2x8xi32, #tpu.memory_space<smem>>
    %c0_i32_440 = arith.constant 0 : i32
    %1108 = arith.cmpi sgt, %1107, %c0_i32_440 : i32
    %1109 = arith.select %1108, %1100, %1092 : vector<1x9xf32>
    %1110 = vector.extract_strided_slice %823 {offsets = [9, 0], sizes = [1, 9], strides = [1, 1]} : vector<16x9xf32> to vector<1x9xf32>
    %1111 = tpu.transpose %1109, [1, 0] : vector<1x9xf32> -> vector<9x1xf32>
    %1112 = vector.broadcast %1111 : vector<9x1xf32> to vector<9x9xf32>
    %1113 = arith.addf %1112, %827 : vector<9x9xf32>
    %1114 = vector.broadcast %1110 : vector<1x9xf32> to vector<9x9xf32>
    %1115 = arith.addf %1113, %1114 : vector<9x9xf32>
    %cst_441 = arith.constant dense<0xFF800000> : vector<9xf32>
    %1116 = vector.multi_reduction <maximumf>, %1115, %cst_441 [0] : vector<9x9xf32> to vector<9xf32>
    %1117 = vector.shape_cast %1116 : vector<9xf32> to vector<1x9xf32>
    %1118 = vector.broadcast %1117 : vector<1x9xf32> to vector<9x9xf32>
    %1119 = arith.cmpf oeq, %1115, %1118 : vector<9x9xf32>
    %c9_i32_442 = arith.constant 9 : i32
    %1120 = vector.broadcast %c9_i32_442 : i32 to vector<9x9xi32>
    %1121 = arith.select %1119, %826, %1120 : vector<9x9xi1>, vector<9x9xi32>
    %cst_443 = arith.constant dense<2147483647> : vector<9xi32>
    %1122 = vector.multi_reduction <minsi>, %1121, %cst_443 [0] : vector<9x9xi32> to vector<9xi32>
    %1123 = vector.shape_cast %1122 : vector<9xi32> to vector<1x9xi32>
    %c1_444 = arith.constant 1 : index
    %c4_445 = arith.constant 4 : index
    %1124 = memref.load %arg2[%c1_444, %c4_445] : memref<2x8xi32, #tpu.memory_space<smem>>
    %c0_i32_446 = arith.constant 0 : i32
    %1125 = arith.cmpi sgt, %1124, %c0_i32_446 : i32
    %1126 = arith.select %1125, %1117, %1109 : vector<1x9xf32>
    %1127 = vector.extract_strided_slice %823 {offsets = [11, 0], sizes = [1, 9], strides = [1, 1]} : vector<16x9xf32> to vector<1x9xf32>
    %1128 = tpu.transpose %1126, [1, 0] : vector<1x9xf32> -> vector<9x1xf32>
    %1129 = vector.broadcast %1128 : vector<9x1xf32> to vector<9x9xf32>
    %1130 = arith.addf %1129, %827 : vector<9x9xf32>
    %1131 = vector.broadcast %1127 : vector<1x9xf32> to vector<9x9xf32>
    %1132 = arith.addf %1130, %1131 : vector<9x9xf32>
    %cst_447 = arith.constant dense<0xFF800000> : vector<9xf32>
    %1133 = vector.multi_reduction <maximumf>, %1132, %cst_447 [0] : vector<9x9xf32> to vector<9xf32>
    %1134 = vector.shape_cast %1133 : vector<9xf32> to vector<1x9xf32>
    %1135 = vector.broadcast %1134 : vector<1x9xf32> to vector<9x9xf32>
    %1136 = arith.cmpf oeq, %1132, %1135 : vector<9x9xf32>
    %c9_i32_448 = arith.constant 9 : i32
    %1137 = vector.broadcast %c9_i32_448 : i32 to vector<9x9xi32>
    %1138 = arith.select %1136, %826, %1137 : vector<9x9xi1>, vector<9x9xi32>
    %cst_449 = arith.constant dense<2147483647> : vector<9xi32>
    %1139 = vector.multi_reduction <minsi>, %1138, %cst_449 [0] : vector<9x9xi32> to vector<9xi32>
    %1140 = vector.shape_cast %1139 : vector<9xi32> to vector<1x9xi32>
    %c1_450 = arith.constant 1 : index
    %c5_451 = arith.constant 5 : index
    %1141 = memref.load %arg2[%c1_450, %c5_451] : memref<2x8xi32, #tpu.memory_space<smem>>
    %c0_i32_452 = arith.constant 0 : i32
    %1142 = arith.cmpi sgt, %1141, %c0_i32_452 : i32
    %1143 = arith.select %1142, %1134, %1126 : vector<1x9xf32>
    %1144 = vector.extract_strided_slice %823 {offsets = [13, 0], sizes = [1, 9], strides = [1, 1]} : vector<16x9xf32> to vector<1x9xf32>
    %1145 = tpu.transpose %1143, [1, 0] : vector<1x9xf32> -> vector<9x1xf32>
    %1146 = vector.broadcast %1145 : vector<9x1xf32> to vector<9x9xf32>
    %1147 = arith.addf %1146, %827 : vector<9x9xf32>
    %1148 = vector.broadcast %1144 : vector<1x9xf32> to vector<9x9xf32>
    %1149 = arith.addf %1147, %1148 : vector<9x9xf32>
    %cst_453 = arith.constant dense<0xFF800000> : vector<9xf32>
    %1150 = vector.multi_reduction <maximumf>, %1149, %cst_453 [0] : vector<9x9xf32> to vector<9xf32>
    %1151 = vector.shape_cast %1150 : vector<9xf32> to vector<1x9xf32>
    %1152 = vector.broadcast %1151 : vector<1x9xf32> to vector<9x9xf32>
    %1153 = arith.cmpf oeq, %1149, %1152 : vector<9x9xf32>
    %c9_i32_454 = arith.constant 9 : i32
    %1154 = vector.broadcast %c9_i32_454 : i32 to vector<9x9xi32>
    %1155 = arith.select %1153, %826, %1154 : vector<9x9xi1>, vector<9x9xi32>
    %cst_455 = arith.constant dense<2147483647> : vector<9xi32>
    %1156 = vector.multi_reduction <minsi>, %1155, %cst_455 [0] : vector<9x9xi32> to vector<9xi32>
    %1157 = vector.shape_cast %1156 : vector<9xi32> to vector<1x9xi32>
    %c1_456 = arith.constant 1 : index
    %c6_457 = arith.constant 6 : index
    %1158 = memref.load %arg2[%c1_456, %c6_457] : memref<2x8xi32, #tpu.memory_space<smem>>
    %c0_i32_458 = arith.constant 0 : i32
    %1159 = arith.cmpi sgt, %1158, %c0_i32_458 : i32
    %1160 = arith.select %1159, %1151, %1143 : vector<1x9xf32>
    %1161 = vector.extract_strided_slice %823 {offsets = [15, 0], sizes = [1, 9], strides = [1, 1]} : vector<16x9xf32> to vector<1x9xf32>
    %1162 = tpu.transpose %1160, [1, 0] : vector<1x9xf32> -> vector<9x1xf32>
    %1163 = vector.broadcast %1162 : vector<9x1xf32> to vector<9x9xf32>
    %1164 = arith.addf %1163, %827 : vector<9x9xf32>
    %1165 = vector.broadcast %1161 : vector<1x9xf32> to vector<9x9xf32>
    %1166 = arith.addf %1164, %1165 : vector<9x9xf32>
    %cst_459 = arith.constant dense<0xFF800000> : vector<9xf32>
    %1167 = vector.multi_reduction <maximumf>, %1166, %cst_459 [0] : vector<9x9xf32> to vector<9xf32>
    %1168 = vector.shape_cast %1167 : vector<9xf32> to vector<1x9xf32>
    %1169 = vector.broadcast %1168 : vector<1x9xf32> to vector<9x9xf32>
    %1170 = arith.cmpf oeq, %1166, %1169 : vector<9x9xf32>
    %c9_i32_460 = arith.constant 9 : i32
    %1171 = vector.broadcast %c9_i32_460 : i32 to vector<9x9xi32>
    %1172 = arith.select %1170, %826, %1171 : vector<9x9xi1>, vector<9x9xi32>
    %cst_461 = arith.constant dense<2147483647> : vector<9xi32>
    %1173 = vector.multi_reduction <minsi>, %1172, %cst_461 [0] : vector<9x9xi32> to vector<9xi32>
    %1174 = vector.shape_cast %1173 : vector<9xi32> to vector<1x9xi32>
    %c1_462 = arith.constant 1 : index
    %c7_463 = arith.constant 7 : index
    %1175 = memref.load %arg2[%c1_462, %c7_463] : memref<2x8xi32, #tpu.memory_space<smem>>
    %c0_i32_464 = arith.constant 0 : i32
    %1176 = arith.cmpi sgt, %1175, %c0_i32_464 : i32
    %1177 = arith.select %1176, %1168, %1160 : vector<1x9xf32>
    %c0_465 = arith.constant 0 : index
    %c0_466 = arith.constant 0 : index
    %1178 = vector.load %arg27[%c0_465, %c0_466] : memref<1x9xf32, #tpu.memory_space<vmem>>, vector<1x9xf32>
    %1179 = arith.addf %1177, %1178 : vector<1x9xf32>
    %1180 = vector.shape_cast %1179 : vector<1x9xf32> to vector<1x1x9xf32>
    %cst_467 = arith.constant dense<0xFF800000> : vector<1xf32>
    %1181 = vector.multi_reduction <maximumf>, %1180, %cst_467 [1, 2] : vector<1x1x9xf32> to vector<1xf32>
    %1182 = vector.shape_cast %1181 : vector<1xf32> to vector<1x1x1xf32>
    %1183 = vector.extract %1182[0, 0, 0] : f32 from vector<1x1x1xf32>
    %1184 = vector.broadcast %1183 : f32 to vector<1x9xf32>
    %1185 = arith.cmpf oeq, %1179, %1184 : vector<1x9xf32>
    %c9_i32_468 = arith.constant 9 : i32
    %1186 = vector.broadcast %c9_i32_468 : i32 to vector<1x9xi32>
    %1187 = arith.select %1185, %825, %1186 : vector<1x9xi1>, vector<1x9xi32>
    %1188 = vector.shape_cast %1187 : vector<1x9xi32> to vector<1x1x9xi32>
    %cst_469 = arith.constant dense<2147483647> : vector<1xi32>
    %1189 = vector.multi_reduction <minsi>, %1188, %cst_469 [1, 2] : vector<1x1x9xi32> to vector<1xi32>
    %1190 = vector.shape_cast %1189 : vector<1xi32> to vector<1x1x1xi32>
    %1191 = vector.extract %1190[0, 0, 0] : i32 from vector<1x1x1xi32>
    %c1_470 = arith.constant 1 : index
    %c7_471 = arith.constant 7 : index
    %1192 = memref.load %arg2[%c1_470, %c7_471] : memref<2x8xi32, #tpu.memory_space<smem>>
    %c0_i32_472 = arith.constant 0 : i32
    %1193 = arith.cmpi sgt, %1192, %c0_i32_472 : i32
    %c0_i32_473 = arith.constant 0 : i32
    %1194 = arith.select %1193, %1191, %c0_i32_473 : i32
    %c1_474 = arith.constant 1 : index
    %c7_475 = arith.constant 7 : index
    %1195 = memref.load %arg28[%c1_474, %c7_475] : memref<2x8xi32, #tpu.memory_space<smem>>
    memref.store %1194, %arg28[%c1_474, %c7_475] : memref<2x8xi32, #tpu.memory_space<smem>>
    %1196 = vector.broadcast %1191 : i32 to vector<1x9xi32>
    %1197 = arith.cmpi eq, %825, %1196 : vector<1x9xi32>
    %c0_i32_476 = arith.constant 0 : i32
    %1198 = vector.broadcast %c0_i32_476 : i32 to vector<1x9xi32>
    %1199 = arith.select %1197, %1174, %1198 : vector<1x9xi1>, vector<1x9xi32>
    %1200 = vector.shape_cast %1199 : vector<1x9xi32> to vector<1x1x9xi32>
    %cst_477 = arith.constant dense<0> : vector<1xi32>
    %1201 = vector.multi_reduction <add>, %1200, %cst_477 [1, 2] : vector<1x1x9xi32> to vector<1xi32>
    %1202 = vector.shape_cast %1201 : vector<1xi32> to vector<1x1x1xi32>
    %1203 = vector.extract %1202[0, 0, 0] : i32 from vector<1x1x1xi32>
    %1204 = arith.select %1193, %1203, %1191 : i32
    %c1_478 = arith.constant 1 : index
    %c6_479 = arith.constant 6 : index
    %1205 = memref.load %arg2[%c1_478, %c6_479] : memref<2x8xi32, #tpu.memory_space<smem>>
    %c0_i32_480 = arith.constant 0 : i32
    %1206 = arith.cmpi sgt, %1205, %c0_i32_480 : i32
    %c0_i32_481 = arith.constant 0 : i32
    %1207 = arith.select %1206, %1204, %c0_i32_481 : i32
    %c1_482 = arith.constant 1 : index
    %c6_483 = arith.constant 6 : index
    %1208 = memref.load %arg28[%c1_482, %c6_483] : memref<2x8xi32, #tpu.memory_space<smem>>
    memref.store %1207, %arg28[%c1_482, %c6_483] : memref<2x8xi32, #tpu.memory_space<smem>>
    %1209 = vector.broadcast %1204 : i32 to vector<1x9xi32>
    %1210 = arith.cmpi eq, %825, %1209 : vector<1x9xi32>
    %c0_i32_484 = arith.constant 0 : i32
    %1211 = vector.broadcast %c0_i32_484 : i32 to vector<1x9xi32>
    %1212 = arith.select %1210, %1157, %1211 : vector<1x9xi1>, vector<1x9xi32>
    %1213 = vector.shape_cast %1212 : vector<1x9xi32> to vector<1x1x9xi32>
    %cst_485 = arith.constant dense<0> : vector<1xi32>
    %1214 = vector.multi_reduction <add>, %1213, %cst_485 [1, 2] : vector<1x1x9xi32> to vector<1xi32>
    %1215 = vector.shape_cast %1214 : vector<1xi32> to vector<1x1x1xi32>
    %1216 = vector.extract %1215[0, 0, 0] : i32 from vector<1x1x1xi32>
    %1217 = arith.select %1206, %1216, %1204 : i32
    %c1_486 = arith.constant 1 : index
    %c5_487 = arith.constant 5 : index
    %1218 = memref.load %arg2[%c1_486, %c5_487] : memref<2x8xi32, #tpu.memory_space<smem>>
    %c0_i32_488 = arith.constant 0 : i32
    %1219 = arith.cmpi sgt, %1218, %c0_i32_488 : i32
    %c0_i32_489 = arith.constant 0 : i32
    %1220 = arith.select %1219, %1217, %c0_i32_489 : i32
    %c1_490 = arith.constant 1 : index
    %c5_491 = arith.constant 5 : index
    %1221 = memref.load %arg28[%c1_490, %c5_491] : memref<2x8xi32, #tpu.memory_space<smem>>
    memref.store %1220, %arg28[%c1_490, %c5_491] : memref<2x8xi32, #tpu.memory_space<smem>>
    %1222 = vector.broadcast %1217 : i32 to vector<1x9xi32>
    %1223 = arith.cmpi eq, %825, %1222 : vector<1x9xi32>
    %c0_i32_492 = arith.constant 0 : i32
    %1224 = vector.broadcast %c0_i32_492 : i32 to vector<1x9xi32>
    %1225 = arith.select %1223, %1140, %1224 : vector<1x9xi1>, vector<1x9xi32>
    %1226 = vector.shape_cast %1225 : vector<1x9xi32> to vector<1x1x9xi32>
    %cst_493 = arith.constant dense<0> : vector<1xi32>
    %1227 = vector.multi_reduction <add>, %1226, %cst_493 [1, 2] : vector<1x1x9xi32> to vector<1xi32>
    %1228 = vector.shape_cast %1227 : vector<1xi32> to vector<1x1x1xi32>
    %1229 = vector.extract %1228[0, 0, 0] : i32 from vector<1x1x1xi32>
    %1230 = arith.select %1219, %1229, %1217 : i32
    %c1_494 = arith.constant 1 : index
    %c4_495 = arith.constant 4 : index
    %1231 = memref.load %arg2[%c1_494, %c4_495] : memref<2x8xi32, #tpu.memory_space<smem>>
    %c0_i32_496 = arith.constant 0 : i32
    %1232 = arith.cmpi sgt, %1231, %c0_i32_496 : i32
    %c0_i32_497 = arith.constant 0 : i32
    %1233 = arith.select %1232, %1230, %c0_i32_497 : i32
    %c1_498 = arith.constant 1 : index
    %c4_499 = arith.constant 4 : index
    %1234 = memref.load %arg28[%c1_498, %c4_499] : memref<2x8xi32, #tpu.memory_space<smem>>
    memref.store %1233, %arg28[%c1_498, %c4_499] : memref<2x8xi32, #tpu.memory_space<smem>>
    %1235 = vector.broadcast %1230 : i32 to vector<1x9xi32>
    %1236 = arith.cmpi eq, %825, %1235 : vector<1x9xi32>
    %c0_i32_500 = arith.constant 0 : i32
    %1237 = vector.broadcast %c0_i32_500 : i32 to vector<1x9xi32>
    %1238 = arith.select %1236, %1123, %1237 : vector<1x9xi1>, vector<1x9xi32>
    %1239 = vector.shape_cast %1238 : vector<1x9xi32> to vector<1x1x9xi32>
    %cst_501 = arith.constant dense<0> : vector<1xi32>
    %1240 = vector.multi_reduction <add>, %1239, %cst_501 [1, 2] : vector<1x1x9xi32> to vector<1xi32>
    %1241 = vector.shape_cast %1240 : vector<1xi32> to vector<1x1x1xi32>
    %1242 = vector.extract %1241[0, 0, 0] : i32 from vector<1x1x1xi32>
    %1243 = arith.select %1232, %1242, %1230 : i32
    %c1_502 = arith.constant 1 : index
    %c3_503 = arith.constant 3 : index
    %1244 = memref.load %arg2[%c1_502, %c3_503] : memref<2x8xi32, #tpu.memory_space<smem>>
    %c0_i32_504 = arith.constant 0 : i32
    %1245 = arith.cmpi sgt, %1244, %c0_i32_504 : i32
    %c0_i32_505 = arith.constant 0 : i32
    %1246 = arith.select %1245, %1243, %c0_i32_505 : i32
    %c1_506 = arith.constant 1 : index
    %c3_507 = arith.constant 3 : index
    %1247 = memref.load %arg28[%c1_506, %c3_507] : memref<2x8xi32, #tpu.memory_space<smem>>
    memref.store %1246, %arg28[%c1_506, %c3_507] : memref<2x8xi32, #tpu.memory_space<smem>>
    %1248 = vector.broadcast %1243 : i32 to vector<1x9xi32>
    %1249 = arith.cmpi eq, %825, %1248 : vector<1x9xi32>
    %c0_i32_508 = arith.constant 0 : i32
    %1250 = vector.broadcast %c0_i32_508 : i32 to vector<1x9xi32>
    %1251 = arith.select %1249, %1106, %1250 : vector<1x9xi1>, vector<1x9xi32>
    %1252 = vector.shape_cast %1251 : vector<1x9xi32> to vector<1x1x9xi32>
    %cst_509 = arith.constant dense<0> : vector<1xi32>
    %1253 = vector.multi_reduction <add>, %1252, %cst_509 [1, 2] : vector<1x1x9xi32> to vector<1xi32>
    %1254 = vector.shape_cast %1253 : vector<1xi32> to vector<1x1x1xi32>
    %1255 = vector.extract %1254[0, 0, 0] : i32 from vector<1x1x1xi32>
    %1256 = arith.select %1245, %1255, %1243 : i32
    %c1_510 = arith.constant 1 : index
    %c2_511 = arith.constant 2 : index
    %1257 = memref.load %arg2[%c1_510, %c2_511] : memref<2x8xi32, #tpu.memory_space<smem>>
    %c0_i32_512 = arith.constant 0 : i32
    %1258 = arith.cmpi sgt, %1257, %c0_i32_512 : i32
    %c0_i32_513 = arith.constant 0 : i32
    %1259 = arith.select %1258, %1256, %c0_i32_513 : i32
    %c1_514 = arith.constant 1 : index
    %c2_515 = arith.constant 2 : index
    %1260 = memref.load %arg28[%c1_514, %c2_515] : memref<2x8xi32, #tpu.memory_space<smem>>
    memref.store %1259, %arg28[%c1_514, %c2_515] : memref<2x8xi32, #tpu.memory_space<smem>>
    %1261 = vector.broadcast %1256 : i32 to vector<1x9xi32>
    %1262 = arith.cmpi eq, %825, %1261 : vector<1x9xi32>
    %c0_i32_516 = arith.constant 0 : i32
    %1263 = vector.broadcast %c0_i32_516 : i32 to vector<1x9xi32>
    %1264 = arith.select %1262, %1089, %1263 : vector<1x9xi1>, vector<1x9xi32>
    %1265 = vector.shape_cast %1264 : vector<1x9xi32> to vector<1x1x9xi32>
    %cst_517 = arith.constant dense<0> : vector<1xi32>
    %1266 = vector.multi_reduction <add>, %1265, %cst_517 [1, 2] : vector<1x1x9xi32> to vector<1xi32>
    %1267 = vector.shape_cast %1266 : vector<1xi32> to vector<1x1x1xi32>
    %1268 = vector.extract %1267[0, 0, 0] : i32 from vector<1x1x1xi32>
    %1269 = arith.select %1258, %1268, %1256 : i32
    %c1_518 = arith.constant 1 : index
    %c1_519 = arith.constant 1 : index
    %1270 = memref.load %arg2[%c1_518, %c1_519] : memref<2x8xi32, #tpu.memory_space<smem>>
    %c0_i32_520 = arith.constant 0 : i32
    %1271 = arith.cmpi sgt, %1270, %c0_i32_520 : i32
    %c0_i32_521 = arith.constant 0 : i32
    %1272 = arith.select %1271, %1269, %c0_i32_521 : i32
    %c1_522 = arith.constant 1 : index
    %c1_523 = arith.constant 1 : index
    %1273 = memref.load %arg28[%c1_522, %c1_523] : memref<2x8xi32, #tpu.memory_space<smem>>
    memref.store %1272, %arg28[%c1_522, %c1_523] : memref<2x8xi32, #tpu.memory_space<smem>>
    %1274 = vector.broadcast %1269 : i32 to vector<1x9xi32>
    %1275 = arith.cmpi eq, %825, %1274 : vector<1x9xi32>
    %c0_i32_524 = arith.constant 0 : i32
    %1276 = vector.broadcast %c0_i32_524 : i32 to vector<1x9xi32>
    %1277 = arith.select %1275, %1072, %1276 : vector<1x9xi1>, vector<1x9xi32>
    %1278 = vector.shape_cast %1277 : vector<1x9xi32> to vector<1x1x9xi32>
    %cst_525 = arith.constant dense<0> : vector<1xi32>
    %1279 = vector.multi_reduction <add>, %1278, %cst_525 [1, 2] : vector<1x1x9xi32> to vector<1xi32>
    %1280 = vector.shape_cast %1279 : vector<1xi32> to vector<1x1x1xi32>
    %1281 = vector.extract %1280[0, 0, 0] : i32 from vector<1x1x1xi32>
    %1282 = arith.select %1271, %1281, %1269 : i32
    %c1_526 = arith.constant 1 : index
    %c0_527 = arith.constant 0 : index
    %1283 = memref.load %arg28[%c1_526, %c0_527] : memref<2x8xi32, #tpu.memory_space<smem>>
    memref.store %1282, %arg28[%c1_526, %c0_527] : memref<2x8xi32, #tpu.memory_space<smem>>
    return
  }
}

</mosaic_0001>

<llo_original>
// kernel: eq.8
$region0: #{eq.8}
  %s0 = inlined_call_operand.vmem [shape: s32[8,2], index: 0, kind: input, shape index: {}]
  %s1 = inlined_call_operand.vmem [shape: s32[16], index: 1, kind: output, shape index: {}]
  $region1: #{eq.8} parent=0
    #allocation0 [shape = 'u8[4096]{0}', space=vmem, size = 0x1000, scoped, tag = 'scoped mem for output reshape']
    %v2 = vld [vmem:[%s0] sm:$0x1]
    %vm3 = vcmask 15360
    %4 = vst.msk [vmem:[#allocation0] sm:$0x1] %vm3, %v2
    %s5 = scalar_lea.vmem %s0, 7
    %v6 = vld [vmem:[%s5] sm:$0x1]
    %7 = vrot.lane.b32.xlu0 %v6, 14
    %v8 = vpop.permute.xlu0 %7
    %vm9 = vcmask 130160
    %10 = vst.msk [vmem:[#allocation0] sm:$0x1] %vm9, %v8
    %s11 = scalar_lea.vmem %s0, 6
    %v12 = vld [vmem:[%s11] sm:$0x1]
    %13 = vrot.lane.b32.xlu0 %v12, 12
    %v14 = vpop.permute.xlu0 %13
    %vm15 = vcmask 113760
    %16 = vst.msk [vmem:[#allocation0] sm:$0x1] %vm15, %v14
    %s17 = scalar_lea.vmem %s0, 5
    %v18 = vld [vmem:[%s17] sm:$0x1]
    %19 = vrot.lane.b32.xlu0 %v18, 10
    %v20 = vpop.permute.xlu0 %19
    %vm21 = vcmask 97360
    %22 = vst.msk [vmem:[#allocation0] sm:$0x1] %vm21, %v20
    %s23 = scalar_lea.vmem %s0, 4
    %v24 = vld [vmem:[%s23] sm:$0x1]
    %25 = vrot.lane.b32.xlu0 %v24, 8
    %v26 = vpop.permute.xlu0 %25
    %vm27 = vcmask 80960
    %28 = vst.msk [vmem:[#allocation0] sm:$0x1] %vm27, %v26
    %s29 = scalar_lea.vmem %s0, 3
    %v30 = vld [vmem:[%s29] sm:$0x1]
    %31 = vrot.lane.b32.xlu0 %v30, 6
    %v32 = vpop.permute.xlu0 %31
    %vm33 = vcmask 64560
    %34 = vst.msk [vmem:[#allocation0] sm:$0x1] %vm33, %v32
    %s35 = scalar_lea.vmem %s0, 2
    %v36 = vld [vmem:[%s35] sm:$0x1]
    %37 = vrot.lane.b32.xlu0 %v36, 4
    %v38 = vpop.permute.xlu0 %37
    %vm39 = vcmask 48160
    %40 = vst.msk [vmem:[#allocation0] sm:$0x1] %vm39, %v38
    %s41 = scalar_lea.vmem %s0, 1
    %v42 = vld [vmem:[%s41] sm:$0x1]
    %43 = vrot.lane.b32.xlu0 %v42, 2
    %v44 = vpop.permute.xlu0 %43
    %vm45 = vcmask 31760
    %46 = vst.msk [vmem:[#allocation0] sm:$0x1] %vm45, %v44
    %s48 = sshll.u32 1, 1
    %s49 = ssub.s32 %s48, 1
    %v51 = vld [vmem:[#allocation0] sm:%s49]
    %s52 = sshll.u32 1, 1
    %s53 = ssub.s32 %s52, 1
    %54 = vst [vmem:[%s1] sm:%s53] %v51

// kernel: forward.1
$region0: #{forward.1}
  #allocation0 [shape = 'u32[]', space=smem, size = 0x4, offset = 0x4, fixed_abs, tag = 'smem constant byte address 0x4 - core index']
  #allocation1 [shape = 'u32[144,128]{1,0:T(1,128)}', space=vmem, size = 0x12000, scoped, tag = 'internal scratch']
  #allocation2 [shape = 'f32[16,256]{1,0:T(8,128)}', space=vmem, size = 0x4000, scoped, tag = 'scratch operand']
  #allocation3 [shape = 'f32[16,512]{1,0:T(8,128)}', space=vmem, size = 0x8000, scoped, tag = 'scratch operand']
  #allocation4 [shape = 'f32[16,512]{1,0:T(8,128)}', space=vmem, size = 0x8000, scoped, tag = 'scratch operand']
  %s0 = inlined_call_operand.smem [shape: u32[30], index: -1, kind: input, shape index: {}]
  %s1 = sld [smem:[%s0]]
  %s2 = scalar_lea.smem %s0, 1
  %s3 = sld [smem:[%s2]]
  %s4 = scalar_lea.smem %s0, 2
  %s5 = sld [smem:[%s4]]
  %s6 = scalar_lea.smem %s0, 3
  %s7 = sld [smem:[%s6]]
  %s8 = scalar_lea.smem %s0, 4
  %s9 = sld [smem:[%s8]]
  %s10 = scalar_lea.smem %s0, 5
  %s11 = sld [smem:[%s10]]
  %s12 = scalar_lea.smem %s0, 6
  %s13 = sld [smem:[%s12]]
  %s14 = scalar_lea.smem %s0, 7
  %s15 = sld [smem:[%s14]]
  %s16 = scalar_lea.smem %s0, 8
  %s17 = sld [smem:[%s16]]
  %s18 = scalar_lea.smem %s0, 9
  %s19 = sld [smem:[%s18]]
  %s20 = scalar_lea.smem %s0, 10
  %s21 = sld [smem:[%s20]]
  %s22 = scalar_lea.smem %s0, 11
  %s23 = sld [smem:[%s22]]
  %s24 = scalar_lea.smem %s0, 12
  %s25 = sld [smem:[%s24]]
  %s26 = scalar_lea.smem %s0, 13
  %s27 = sld [smem:[%s26]]
  %s28 = scalar_lea.smem %s0, 14
  %s29 = sld [smem:[%s28]]
  %s30 = scalar_lea.smem %s0, 15
  %s31 = sld [smem:[%s30]]
  %s32 = scalar_lea.smem %s0, 16
  %s33 = sld [smem:[%s32]]
  %s34 = scalar_lea.smem %s0, 17
  %s35 = sld [smem:[%s34]]
  %s36 = scalar_lea.smem %s0, 18
  %s37 = sld [smem:[%s36]]
  %s38 = scalar_lea.smem %s0, 19
  %s39 = sld [smem:[%s38]]
  %s40 = scalar_lea.smem %s0, 20
  %s41 = sld [smem:[%s40]]
  %s42 = scalar_lea.smem %s0, 21
  %s43 = sld [smem:[%s42]]
  %s44 = scalar_lea.smem %s0, 22
  %s45 = sld [smem:[%s44]]
  %s46 = scalar_lea.smem %s0, 23
  %s47 = sld [smem:[%s46]]
  %s48 = scalar_lea.smem %s0, 24
  %s49 = sld [smem:[%s48]]
  %s50 = scalar_lea.smem %s0, 25
  %s51 = sld [smem:[%s50]]
  %s52 = scalar_lea.smem %s0, 26
  %s53 = sld [smem:[%s52]]
  %s54 = scalar_lea.smem %s0, 27
  %s55 = sld [smem:[%s54]]
  %s56 = scalar_lea.smem %s0, 28
  %s57 = sld [smem:[%s56]]
  %s58 = scalar_lea.smem %s0, 29
  %s59 = sld [smem:[%s58]]
  %60 = xla_tuple %s57, %s59
  %s61 = sld [smem:[#allocation0]]
  $region190: #{forward.1} parent=0
    _
  %s63 = ssub.s32 1, %s61
  %s64 = scalar_select 0, %s63, %s61
  $region1: #{forward.1} parent=0
    #allocation5 [shape = 'u8[1024]{0}', space=smem, size = 0x400, scoped, tag = 'input window, operand 2, single buffered']
    #allocation6 [shape = 's32[1]{0}', space=sflag, size = 0x4, scoped, tag = 'scoped memory for forward.1']
    #allocation7 [shape = 's32[1]{0}', space=sflag, size = 0x4, scoped, tag = 'scoped memory for forward.1']
    #allocation8 [shape = 's32[1]{0}', space=sflag, size = 0x4, scoped, tag = 'scoped memory for forward.1']
    #allocation9 [shape = 'u8[512]{0}', space=vmem, size = 0x400, scoped, tag = 'input window, operand 3, single buffered']
    #allocation10 [shape = 'u8[512]{0}', space=vmem, size = 0x400, scoped, tag = 'input window, operand 4, single buffered']
    #allocation11 [shape = 's32[1]{0}', space=sflag, size = 0x4, scoped, tag = 'scoped memory for forward.1']
    #allocation12 [shape = 'u8[1024]{0}', space=vmem, size = 0x400, scoped, tag = 'input window, operand 9, single buffered']
    #allocation13 [shape = 'u8[1024]{0}', space=vmem, size = 0x400, scoped, tag = 'input window, operand 10, single buffered']
    #allocation14 [shape = 's32[1]{0}', space=sflag, size = 0x4, scoped, tag = 'scoped memory for forward.1']
    #allocation15 [shape = 'u8[2048]{0}', space=vmem, size = 0x800, scoped, tag = 'input window, operand 12, single buffered']
    #allocation16 [shape = 'u8[1024]{0}', space=vmem, size = 0x400, scoped, tag = 'input window, operand 14, single buffered']
    #allocation17 [shape = 's32[1]{0}', space=sflag, size = 0x4, scoped, tag = 'scoped memory for forward.1']
    #allocation18 [shape = 'u8[1024]{0}', space=vmem, size = 0x400, scoped, tag = 'input window, operand 16, single buffered']
    #allocation19 [shape = 'u8[65536]{0}', space=vmem, size = 0x10000, scoped, tag = 'input window, operand 17, single buffered']
    #allocation20 [shape = 's32[1]{0}', space=sflag, size = 0x4, scoped, tag = 'scoped memory for forward.1']
    #allocation21 [shape = 'u8[2048]{0}', space=vmem, size = 0x800, scoped, tag = 'input window, operand 19, single buffered']
    #allocation22 [shape = 'u8[65536]{0}', space=vmem, size = 0x10000, scoped, tag = 'input window, operand 20, single buffered']
    #allocation23 [shape = 's32[1]{0}', space=sflag, size = 0x4, scoped, tag = 'scoped memory for forward.1']
    #allocation24 [shape = 'u8[2048]{0}', space=vmem, size = 0x800, scoped, tag = 'input window, operand 22, single buffered']
    #allocation25 [shape = 'u8[8192]{0}', space=vmem, size = 0x2000, scoped, tag = 'input window, operand 25, single buffered']
    #allocation26 [shape = 's32[1]{0}', space=sflag, size = 0x4, scoped, tag = 'scoped memory for forward.1']
    #allocation27 [shape = 'u8[512]{0}', space=vmem, size = 0x400, scoped, tag = 'input window, operand 26, single buffered']
    #allocation28 [shape = 'u8[512]{0}', space=vmem, size = 0x400, scoped, tag = 'input window, operand 27, single buffered']
    #allocation29 [shape = 's32[1]{0}', space=sflag, size = 0x4, scoped, tag = 'scoped memory for forward.1']
    #allocation30 [shape = 'u8[1024]{0}', space=smem, size = 0x400, scoped, tag = 'output window, operand 0, single buffered']
    %65 = vsyncpa [#allocation8], 0
    %66 = vsyncpa [#allocation6], 0
    %67 = vsyncpa [#allocation11], 0
    %68 = vsyncpa [#allocation14], 0
    %69 = vsyncpa [#allocation17], 0
    %70 = vsyncpa [#allocation20], 0
    %71 = vsyncpa [#allocation23], 0
    %72 = vsyncpa [#allocation26], 0
    %73 = vsyncpa [#allocation29], 0
    %74 = vsyncpa [#allocation7], 0
    // Predicated region
    $region2: #{forward.1} parent=1 // pred_check
      _
    $region3: #{forward.1} parent=1 // pred_check_branch
      %76 = sbr.rel (0) target = $region5
    $region4: #{forward.1} parent=1 // pred_region
      _
    $region5: #{forward.1} parent=1 // pred_fallthru
      _
    // Predicated region
    $region6: #{forward.1} parent=1 // pred_check
      _
    $region7: #{forward.1} parent=1 // pred_check_branch
      %78 = sbr.rel (0) target = $region9
    $region8: #{forward.1} parent=1 // pred_region
      _
    $region9: #{forward.1} parent=1 // pred_fallthru
      _
    // Predicated region
    $region10: #{forward.1} parent=1 // pred_check
      _
    $region11: #{forward.1} parent=1 // pred_check_branch
      %80 = sbr.rel (0) target = $region13
    $region12: #{forward.1} parent=1 // pred_region
      %s82 = ssub.s32 32, 32
      %83 = vsyncadd [#allocation8], %s82
      %s85 = sshll.u32 %s5, 4
      %s86 = int_to_ptr.vmem [resolvable:$true] %s85
      %88 = dma.vmem_to_smem %s86, 32, [#allocation5], [#allocation8]
    $region13: #{forward.1} parent=1 // pred_fallthru
      _
    // Predicated region
    $region14: #{forward.1} parent=1 // pred_check
      _
    $region15: #{forward.1} parent=1 // pred_check_branch
      %90 = sbr.rel (0) target = $region17
    $region16: #{forward.1} parent=1 // pred_region
      %s92 = ssub.s32 16, 16
      %93 = vsyncadd [#allocation6], %s92
      %s95 = sshll.u32 [#allocation9], 4
      %s96 = int_to_ptr.vmem [resolvable:$true] %s95
      %98 = dma.hbm_to_vmem [thread:$0]  %s7, 16, %s96, [#allocation6]
    $region17: #{forward.1} parent=1 // pred_fallthru
      _
    // Predicated region
    $region18: #{forward.1} parent=1 // pred_check
      _
    $region19: #{forward.1} parent=1 // pred_check_branch
      %100 = sbr.rel (0) target = $region21
    $region20: #{forward.1} parent=1 // pred_region
      %s102 = ssub.s32 16, 16
      %103 = vsyncadd [#allocation11], %s102
      %s105 = sshll.u32 [#allocation10], 4
      %s106 = int_to_ptr.vmem [resolvable:$true] %s105
      %108 = dma.hbm_to_vmem [thread:$0]  %s9, 16, %s106, [#allocation11]
    $region21: #{forward.1} parent=1 // pred_fallthru
      _
    // Predicated region
    $region22: #{forward.1} parent=1 // pred_check
      _
    $region23: #{forward.1} parent=1 // pred_check_branch
      %110 = sbr.rel (0) target = $region25
    $region24: #{forward.1} parent=1 // pred_region
      _
    $region25: #{forward.1} parent=1 // pred_fallthru
      _
    // Predicated region
    $region26: #{forward.1} parent=1 // pred_check
      _
    $region27: #{forward.1} parent=1 // pred_check_branch
      %112 = sbr.rel (0) target = $region29
    $region28: #{forward.1} parent=1 // pred_region
      _
    $region29: #{forward.1} parent=1 // pred_fallthru
      _
    // Predicated region
    $region30: #{forward.1} parent=1 // pred_check
      _
    $region31: #{forward.1} parent=1 // pred_check_branch
      %114 = sbr.rel (0) target = $region33
    $region32: #{forward.1} parent=1 // pred_region
      _
    $region33: #{forward.1} parent=1 // pred_fallthru
      _
    // Predicated region
    $region34: #{forward.1} parent=1 // pred_check
      _
    $region35: #{forward.1} parent=1 // pred_check_branch
      %116 = sbr.rel (0) target = $region37
    $region36: #{forward.1} parent=1 // pred_region
      _
    $region37: #{forward.1} parent=1 // pred_fallthru
      _
    // Predicated region
    $region38: #{forward.1} parent=1 // pred_check
      _
    $region39: #{forward.1} parent=1 // pred_check_branch
      %118 = sbr.rel (0) target = $region41
    $region40: #{forward.1} parent=1 // pred_region
      %s120 = ssub.s32 32, 32
      %121 = vsyncadd [#allocation11], %s120
      %s122 = sshll.u32 [#allocation12], 4
      %s123 = int_to_ptr.vmem [resolvable:$true] %s122
      %128 = dma.hbm_to_vmem [thread:$0]  %s19, 32, %s123, [#allocation11], 16, 16, 1
    $region41: #{forward.1} parent=1 // pred_fallthru
      _
    // Predicated region
    $region42: #{forward.1} parent=1 // pred_check
      _
    $region43: #{forward.1} parent=1 // pred_check_branch
      %130 = sbr.rel (0) target = $region45
    $region44: #{forward.1} parent=1 // pred_region
      %s132 = ssub.s32 32, 32
      %133 = vsyncadd [#allocation14], %s132
      %s134 = sshll.u32 [#allocation13], 4
      %s135 = int_to_ptr.vmem [resolvable:$true] %s134
      %140 = dma.hbm_to_vmem [thread:$0]  %s21, 32, %s135, [#allocation14], 16, 16, 1
    $region45: #{forward.1} parent=1 // pred_fallthru
      _
    // Predicated region
    $region46: #{forward.1} parent=1 // pred_check
      _
    $region47: #{forward.1} parent=1 // pred_check_branch
      %142 = sbr.rel (0) target = $region49
    $region48: #{forward.1} parent=1 // pred_region
      _
    $region49: #{forward.1} parent=1 // pred_fallthru
      _
    // Predicated region
    $region50: #{forward.1} parent=1 // pred_check
      _
    $region51: #{forward.1} parent=1 // pred_check_branch
      %144 = sbr.rel (0) target = $region53
    $region52: #{forward.1} parent=1 // pred_region
      %s146 = ssub.s32 64, 64
      %147 = vsyncadd [#allocation14], %s146
      %s148 = sshll.u32 [#allocation15], 4
      %s149 = int_to_ptr.vmem [resolvable:$true] %s148
      %154 = dma.hbm_to_vmem [thread:$0]  %s25, 64, %s149, [#allocation14], 32, 32, 2
    $region53: #{forward.1} parent=1 // pred_fallthru
      _
    // Predicated region
    $region54: #{forward.1} parent=1 // pred_check
      _
    $region55: #{forward.1} parent=1 // pred_check_branch
      %156 = sbr.rel (0) target = $region57
    $region56: #{forward.1} parent=1 // pred_region
      _
    $region57: #{forward.1} parent=1 // pred_fallthru
      _
    // Predicated region
    $region58: #{forward.1} parent=1 // pred_check
      _
    $region59: #{forward.1} parent=1 // pred_check_branch
      %158 = sbr.rel (0) target = $region61
    $region60: #{forward.1} parent=1 // pred_region
      %s160 = ssub.s32 32, 32
      %161 = vsyncadd [#allocation17], %s160
      %s162 = sshll.u32 [#allocation16], 4
      %s163 = int_to_ptr.vmem [resolvable:$true] %s162
      %168 = dma.hbm_to_vmem [thread:$0]  %s29, 32, %s163, [#allocation17], 16, 16, 1
    $region61: #{forward.1} parent=1 // pred_fallthru
      _
    // Predicated region
    $region62: #{forward.1} parent=1 // pred_check
      _
    $region63: #{forward.1} parent=1 // pred_check_branch
      %170 = sbr.rel (0) target = $region65
    $region64: #{forward.1} parent=1 // pred_region
      _
    $region65: #{forward.1} parent=1 // pred_fallthru
      _
    // Predicated region
    $region66: #{forward.1} parent=1 // pred_check
      _
    $region67: #{forward.1} parent=1 // pred_check_branch
      %172 = sbr.rel (0) target = $region69
    $region68: #{forward.1} parent=1 // pred_region
      %s174 = ssub.s32 32, 32
      %175 = vsyncadd [#allocation17], %s174
      %s176 = sshll.u32 [#allocation18], 4
      %s177 = int_to_ptr.vmem [resolvable:$true] %s176
      %182 = dma.hbm_to_vmem [thread:$0]  %s33, 32, %s177, [#allocation17], 16, 16, 1
    $region69: #{forward.1} parent=1 // pred_fallthru
      _
    // Predicated region
    $region70: #{forward.1} parent=1 // pred_check
      _
    $region71: #{forward.1} parent=1 // pred_check_branch
      %184 = sbr.rel (0) target = $region73
    $region72: #{forward.1} parent=1 // pred_region
      %s186 = ssub.s32 2048, 2048
      %187 = vsyncadd [#allocation20], %s186
      %s188 = sshll.u32 [#allocation19], 4
      %s189 = int_to_ptr.vmem [resolvable:$true] %s188
      %194 = dma.hbm_to_vmem [thread:$0]  %s35, 2048, %s189, [#allocation20], 256, 256, 16
    $region73: #{forward.1} parent=1 // pred_fallthru
      _
    // Predicated region
    $region74: #{forward.1} parent=1 // pred_check
      _
    $region75: #{forward.1} parent=1 // pred_check_branch
      %196 = sbr.rel (0) target = $region77
    $region76: #{forward.1} parent=1 // pred_region
      _
    $region77: #{forward.1} parent=1 // pred_fallthru
      _
    // Predicated region
    $region78: #{forward.1} parent=1 // pred_check
      _
    $region79: #{forward.1} parent=1 // pred_check_branch
      %198 = sbr.rel (0) target = $region81
    $region80: #{forward.1} parent=1 // pred_region
      %s200 = ssub.s32 64, 64
      %201 = vsyncadd [#allocation20], %s200
      %s203 = sshll.u32 [#allocation21], 4
      %s204 = int_to_ptr.vmem [resolvable:$true] %s203
      %206 = dma.hbm_to_vmem [thread:$0]  %s39, 64, %s204, [#allocation20]
    $region81: #{forward.1} parent=1 // pred_fallthru
      _
    // Predicated region
    $region82: #{forward.1} parent=1 // pred_check
      _
    $region83: #{forward.1} parent=1 // pred_check_branch
      %208 = sbr.rel (0) target = $region85
    $region84: #{forward.1} parent=1 // pred_region
      %s210 = ssub.s32 2048, 2048
      %211 = vsyncadd [#allocation23], %s210
      %s212 = sshll.u32 [#allocation22], 4
      %s213 = int_to_ptr.vmem [resolvable:$true] %s212
      %218 = dma.hbm_to_vmem [thread:$0]  %s41, 2048, %s213, [#allocation23], 256, 256, 16
    $region85: #{forward.1} parent=1 // pred_fallthru
      _
    // Predicated region
    $region86: #{forward.1} parent=1 // pred_check
      _
    $region87: #{forward.1} parent=1 // pred_check_branch
      %220 = sbr.rel (0) target = $region89
    $region88: #{forward.1} parent=1 // pred_region
      _
    $region89: #{forward.1} parent=1 // pred_fallthru
      _
    // Predicated region
    $region90: #{forward.1} parent=1 // pred_check
      _
    $region91: #{forward.1} parent=1 // pred_check_branch
      %222 = sbr.rel (0) target = $region93
    $region92: #{forward.1} parent=1 // pred_region
      %s224 = ssub.s32 64, 64
      %225 = vsyncadd [#allocation23], %s224
      %s227 = sshll.u32 [#allocation24], 4
      %s228 = int_to_ptr.vmem [resolvable:$true] %s227
      %230 = dma.hbm_to_vmem [thread:$0]  %s45, 64, %s228, [#allocation23]
    $region93: #{forward.1} parent=1 // pred_fallthru
      _
    // Predicated region
    $region94: #{forward.1} parent=1 // pred_check
      _
    $region95: #{forward.1} parent=1 // pred_check_branch
      %232 = sbr.rel (0) target = $region97
    $region96: #{forward.1} parent=1 // pred_region
      _
    $region97: #{forward.1} parent=1 // pred_fallthru
      _
    // Predicated region
    $region98: #{forward.1} parent=1 // pred_check
      _
    $region99: #{forward.1} parent=1 // pred_check_branch
      %234 = sbr.rel (0) target = $region101
    $region100: #{forward.1} parent=1 // pred_region
      _
    $region101: #{forward.1} parent=1 // pred_fallthru
      _
    // Predicated region
    $region102: #{forward.1} parent=1 // pred_check
      _
    $region103: #{forward.1} parent=1 // pred_check_branch
      %236 = sbr.rel (0) target = $region105
    $region104: #{forward.1} parent=1 // pred_region
      %s238 = ssub.s32 256, 256
      %239 = vsyncadd [#allocation26], %s238
      %s240 = sshll.u32 [#allocation25], 4
      %s241 = int_to_ptr.vmem [resolvable:$true] %s240
      %246 = dma.hbm_to_vmem [thread:$0]  %s51, 256, %s241, [#allocation26], 128, 128, 8
    $region105: #{forward.1} parent=1 // pred_fallthru
      _
    // Predicated region
    $region106: #{forward.1} parent=1 // pred_check
      _
    $region107: #{forward.1} parent=1 // pred_check_branch
      %248 = sbr.rel (0) target = $region109
    $region108: #{forward.1} parent=1 // pred_region
      %s250 = ssub.s32 16, 16
      %251 = vsyncadd [#allocation26], %s250
      %s253 = sshll.u32 [#allocation27], 4
      %s254 = int_to_ptr.vmem [resolvable:$true] %s253
      %256 = dma.hbm_to_vmem [thread:$0]  %s53, 16, %s254, [#allocation26]
    $region109: #{forward.1} parent=1 // pred_fallthru
      _
    // Predicated region
    $region110: #{forward.1} parent=1 // pred_check
      _
    $region111: #{forward.1} parent=1 // pred_check_branch
      %258 = sbr.rel (0) target = $region113
    $region112: #{forward.1} parent=1 // pred_region
      %s260 = ssub.s32 16, 16
      %261 = vsyncadd [#allocation29], %s260
      %s263 = sshll.u32 [#allocation28], 4
      %s264 = int_to_ptr.vmem [resolvable:$true] %s263
      %266 = dma.hbm_to_vmem [thread:$0]  %s55, 16, %s264, [#allocation29]
    $region113: #{forward.1} parent=1 // pred_fallthru
      _
    // Predicated region
    $region114: #{forward.1} parent=1 // pred_check
      _
    $region115: #{forward.1} parent=1 // pred_check_branch
      %268 = sbr.rel (0) target = $region117
    $region116: #{forward.1} parent=1 // pred_region
      %269 = dma.done [#allocation8], 32
    $region117: #{forward.1} parent=1 // pred_fallthru
      _
    // Predicated region
    $region118: #{forward.1} parent=1 // pred_check
      _
    $region119: #{forward.1} parent=1 // pred_check_branch
      %271 = sbr.rel (0) target = $region121
    $region120: #{forward.1} parent=1 // pred_region
      %272 = dma.done [#allocation6], 16
    $region121: #{forward.1} parent=1 // pred_fallthru
      _
    // Predicated region
    $region122: #{forward.1} parent=1 // pred_check
      _
    $region123: #{forward.1} parent=1 // pred_check_branch
      %274 = sbr.rel (0) target = $region125
    $region124: #{forward.1} parent=1 // pred_region
      %275 = dma.done [#allocation11], 16
    $region125: #{forward.1} parent=1 // pred_fallthru
      _
    // Predicated region
    $region126: #{forward.1} parent=1 // pred_check
      _
    $region127: #{forward.1} parent=1 // pred_check_branch
      %277 = sbr.rel (0) target = $region129
    $region128: #{forward.1} parent=1 // pred_region
      %278 = dma.done [#allocation11], 32
    $region129: #{forward.1} parent=1 // pred_fallthru
      _
    // Predicated region
    $region130: #{forward.1} parent=1 // pred_check
      _
    $region131: #{forward.1} parent=1 // pred_check_branch
      %280 = sbr.rel (0) target = $region133
    $region132: #{forward.1} parent=1 // pred_region
      %281 = dma.done [#allocation14], 32
    $region133: #{forward.1} parent=1 // pred_fallthru
      _
    // Predicated region
    $region134: #{forward.1} parent=1 // pred_check
      _
    $region135: #{forward.1} parent=1 // pred_check_branch
      %283 = sbr.rel (0) target = $region137
    $region136: #{forward.1} parent=1 // pred_region
      %284 = dma.done [#allocation14], 64
    $region137: #{forward.1} parent=1 // pred_fallthru
      _
    // Predicated region
    $region138: #{forward.1} parent=1 // pred_check
      _
    $region139: #{forward.1} parent=1 // pred_check_branch
      %286 = sbr.rel (0) target = $region141
    $region140: #{forward.1} parent=1 // pred_region
      %287 = dma.done [#allocation17], 32
    $region141: #{forward.1} parent=1 // pred_fallthru
      _
    // Predicated region
    $region142: #{forward.1} parent=1 // pred_check
      _
    $region143: #{forward.1} parent=1 // pred_check_branch
      %289 = sbr.rel (0) target = $region145
    $region144: #{forward.1} parent=1 // pred_region
      %290 = dma.done [#allocation17], 32
    $region145: #{forward.1} parent=1 // pred_fallthru
      _
    // Predicated region
    $region146: #{forward.1} parent=1 // pred_check
      _
    $region147: #{forward.1} parent=1 // pred_check_branch
      %292 = sbr.rel (0) target = $region149
    $region148: #{forward.1} parent=1 // pred_region
      %293 = dma.done [#allocation20], 2048
    $region149: #{forward.1} parent=1 // pred_fallthru
      _
    // Predicated region
    $region150: #{forward.1} parent=1 // pred_check
      _
    $region151: #{forward.1} parent=1 // pred_check_branch
      %295 = sbr.rel (0) target = $region153
    $region152: #{forward.1} parent=1 // pred_region
      %296 = dma.done [#allocation20], 64
    $region153: #{forward.1} parent=1 // pred_fallthru
      _
    // Predicated region
    $region154: #{forward.1} parent=1 // pred_check
      _
    $region155: #{forward.1} parent=1 // pred_check_branch
      %298 = sbr.rel (0) target = $region157
    $region156: #{forward.1} parent=1 // pred_region
      %299 = dma.done [#allocation23], 2048
    $region157: #{forward.1} parent=1 // pred_fallthru
      _
    // Predicated region
    $region158: #{forward.1} parent=1 // pred_check
      _
    $region159: #{forward.1} parent=1 // pred_check_branch
      %301 = sbr.rel (0) target = $region161
    $region160: #{forward.1} parent=1 // pred_region
      %302 = dma.done [#allocation23], 64
    $region161: #{forward.1} parent=1 // pred_fallthru
      _
    // Predicated region
    $region162: #{forward.1} parent=1 // pred_check
      _
    $region163: #{forward.1} parent=1 // pred_check_branch
      %304 = sbr.rel (0) target = $region165
    $region164: #{forward.1} parent=1 // pred_region
      %305 = dma.done [#allocation26], 256
    $region165: #{forward.1} parent=1 // pred_fallthru
      _
    // Predicated region
    $region166: #{forward.1} parent=1 // pred_check
      _
    $region167: #{forward.1} parent=1 // pred_check_branch
      %307 = sbr.rel (0) target = $region169
    $region168: #{forward.1} parent=1 // pred_region
      %308 = dma.done [#allocation26], 16
    $region169: #{forward.1} parent=1 // pred_fallthru
      _
    // Predicated region
    $region170: #{forward.1} parent=1 // pred_check
      _
    $region171: #{forward.1} parent=1 // pred_check_branch
      %310 = sbr.rel (0) target = $region173
    $region172: #{forward.1} parent=1 // pred_region
      %311 = dma.done [#allocation29], 16
    $region173: #{forward.1} parent=1 // pred_fallthru
      _
    %312 = sfence
    %v314 = vld [vmem:[%s1] sm:$0xff]
    %v315 = vld [vmem:[%s1 + $0x8] sm:$0xff]
    %v316 = vld [vmem:[#allocation9] sm:$0x1]
    %v317 = vld [vmem:[#allocation10] sm:$0x1]
    %vm318 = vcmask 523264
    %v319 = vsel %vm318, %v314, 0.0
    %320 = vadd.xlane.f32.xlu0 %v319
    %v321 = vpop.xlane.xlu0 %320
    %v322 = vsel %vm318, %v315, 0.0
    %323 = vadd.xlane.f32.xlu0 %v322
    %v324 = vpop.xlane.xlu0 %323
    %v325 = vrcp.pop 64.0
    %v326 = vmul.f32 %v321, %v325
    %v327 = vmul.f32 %v324, %v325
    %v328 = vsub.f32 %v314, %v326
    %v329 = vsub.f32 %v315, %v327
    %v330 = vmul.f32 %v328, %v328
    %v331 = vmul.f32 %v329, %v329
    %v332 = vsel %vm318, %v330, 0.0
    %333 = vadd.xlane.f32.xlu0 %v332
    %v334 = vpop.xlane.xlu0 %333
    %v335 = vsel %vm318, %v331, 0.0
    %336 = vadd.xlane.f32.xlu0 %v335
    %v337 = vpop.xlane.xlu0 %336
    %v338 = vmul.f32 %v334, %v325
    %v339 = vmul.f32 %v337, %v325
    %v340 = vadd.f32 %v338, 1e-12
    %v341 = vadd.f32 %v339, 1e-12
    %v342 = vrsqrt.pop %v340
    %v343 = vrsqrt.pop %v341
    %v344 = vmul.f32 %v328, %v342
    %v345 = vmul.f32 %v329, %v343
    %v347 = vlaneseq
    %v348 = vshrl.u32 %v347, 7
    %v349 = vsub.s32 0, %v348
    %v350 = vrot.slane %v316, %v349
    %v352 = vmul.f32 %v344, %v350
    %v353 = vmul.f32 %v345, %v350
    %v355 = vlaneseq
    %v356 = vshrl.u32 %v355, 7
    %v357 = vsub.s32 0, %v356
    %v358 = vrot.slane %v317, %v357
    %v360 = vadd.f32 %v352, %v358
    %v361 = vadd.f32 %v353, %v358
    %v362 = vld [vmem:[%s3] sm:$0xff]
    %v363 = vld [vmem:[%s3 + $0x8] sm:$0xff]
    %v364 = vpack.c.bf16 %v361, %v360
    %v365 = vld [vmem:[%s11] sm:$0xff]
    %v366 = vld [vmem:[%s11 + $0x8] sm:$0xff]
    %v367 = vld [vmem:[%s11 + $0x10] sm:$0xff]
    %v368 = vld [vmem:[%s11 + $0x18] sm:$0xff]
    %v369 = vld [vmem:[%s11 + $0x20] sm:$0xff]
    %v370 = vld [vmem:[%s11 + $0x28] sm:$0xff]
    %v371 = vld [vmem:[%s11 + $0x30] sm:$0xff]
    %v372 = vld [vmem:[%s11 + $0x38] sm:$0xff]
    %v373 = vld [vmem:[%s13] sm:$0x3]
    %v375 = vlaneseq
    %v376 = vshrl.u32 %v375, 7
    %v377 = vsub.s32 0, %v376
    %v378 = vrot.slane %v373, %v377
    %v379 = vlaneseq
    %v380 = vshrl.u32 %v379, 7
    %v381 = vsub.s32 1, %v380
    %v382 = vrot.slane %v373, %v381
    %v393 = vunpack.c.l.b16 %v365
    %v394 = vunpack.c.h.b16 %v365
    %v395 = vunpack.c.l.b16 %v366
    %v396 = vunpack.c.h.b16 %v366
    %v397 = vunpack.c.l.b16 %v367
    %v398 = vunpack.c.h.b16 %v367
    %v399 = vunpack.c.l.b16 %v368
    %v400 = vunpack.c.h.b16 %v368
    %v401 = vunpack.c.l.b16 %v369
    %v402 = vunpack.c.h.b16 %v369
    %v403 = vunpack.c.l.b16 %v370
    %v404 = vunpack.c.h.b16 %v370
    %v405 = vunpack.c.l.b16 %v371
    %v406 = vunpack.c.h.b16 %v371
    %v407 = vunpack.c.l.b16 %v372
    %v408 = vunpack.c.h.b16 %v372
    %v409 = vpack.c.b16 %v395, %v393
    %v410 = vpack.c.b16 %v396, %v394
    %v411 = vpack.c.b16 %v399, %v397
    %v412 = vpack.c.b16 %v400, %v398
    %v413 = vpack.c.b16 %v403, %v401
    %v414 = vpack.c.b16 %v404, %v402
    %v415 = vpack.c.b16 %v407, %v405
    %v416 = vpack.c.b16 %v408, %v406
    %v426 = vsel %vm318, %v364, 0
    %428 = vmatprep.subr.bf16.mxu0 0
    %429 = vmatpush1.bf16.msra.mxu0 0
    %430 = vmatprep.subr.bf16.mxu0 0
    %431 = vmatpush1.bf16.msra.mxu0 0
    %432 = vmatprep.subr.bf16.mxu0 0
    %433 = vmatpush1.bf16.msra.mxu0 0
    %434 = vmatprep.subr.bf16.mxu0 0
    %435 = vmatpush1.bf16.msra.mxu0 0
    %436 = vmatprep.subr.bf16.mxu0 %v416
    %437 = vmatpush1.bf16.msra.mxu0 %v415
    %438 = vmatprep.subr.bf16.mxu0 %v414
    %439 = vmatpush1.bf16.msra.mxu0 %v413
    %440 = vmatprep.subr.bf16.mxu0 %v412
    %441 = vmatpush1.bf16.msra.mxu0 %v411
    %442 = vmatprep.subr.bf16.mxu0 %v410
    %443 = vmatpush1.bf16.msra.mxu0 %v409
    %444 = vmatprep.subr.bf16.mxu0 0
    %445 = vmatpush2.bf16.msra.mxu0 0
    %446 = vmatprep.subr.bf16.mxu0 0
    %447 = vmatpush2.bf16.msra.mxu0 0
    %448 = vmatprep.subr.bf16.mxu0 0
    %449 = vmatpush2.bf16.msra.mxu0 0
    %450 = vmatprep.subr.bf16.mxu0 0
    %451 = vmatpush2.bf16.msra.mxu0 0
    %452 = vmatprep.subr.bf16.mxu0 0
    %453 = vmatpush2.bf16.msra.mxu0 0
    %454 = vmatprep.subr.bf16.mxu0 0
    %455 = vmatpush2.bf16.msra.mxu0 0
    %456 = vmatprep.subr.bf16.mxu0 0
    %457 = vmatpush2.bf16.msra.mxu0 0
    %458 = vmatprep.subr.bf16.mxu0 0
    %459 = vmatpush2.bf16.msra.mxu0 0
    %460 = vmatprep.mubr.bf16.mxu0 0
    %461 = vmatmul.mubr.bf16.gmra.mxu0 %v426
    %v462 = vpop.f32.mrf.mxu0
    %v463 = vadd.f32 %v378, %v462
    %v464 = vpop.f32.mrf.mxu0
    %v465 = vadd.f32 %v382, %v464
    %v466 = vpop.f32.mrf.mxu0
    %v467 = vadd.f32 %v378, %v466
    %v468 = vpop.f32.mrf.mxu0
    %v469 = vadd.f32 %v382, %v468
    %470 = vdwg.mxu0
    %v471 = vpack.c.bf16 %v467, %v463
    %v472 = vpack.c.bf16 %v469, %v465
    %474 = vrot.lane.b32.xlu0 %v471, 64
    %v475 = vpop.permute.xlu0 %474
    %vm476 = vcmask 261120
    %v478 = vsel %vm476, %v471, 0
    %v481 = vsel %vm476, %v475, 0
    %483 = vmatprep.subr.bf16.mxu0 0
    %484 = vmatpush1.bf16.xpose.msra.mxu0 0
    %485 = vmatprep.subr.bf16.mxu0 0
    %486 = vmatpush1.bf16.xpose.msra.mxu0 0
    %487 = vmatprep.subr.bf16.mxu0 0
    %488 = vmatpush1.bf16.xpose.msra.mxu0 0
    %489 = vmatprep.subr.bf16.mxu0 0
    %490 = vmatpush1.bf16.xpose.msra.mxu0 0
    %491 = vmatprep.subr.bf16.mxu0 0
    %492 = vmatpush1.bf16.xpose.msra.mxu0 0
    %493 = vmatprep.subr.bf16.mxu0 0
    %494 = vmatpush1.bf16.xpose.msra.mxu0 0
    %495 = vmatprep.subr.bf16.mxu0 0
    %496 = vmatpush1.bf16.xpose.msra.mxu0 0
    %497 = vmatprep.subr.bf16.mxu0 0
    %498 = vmatpush1.bf16.xpose.msra.mxu0 %v481
    %499 = vmatprep.subr.bf16.mxu0 0
    %500 = vmatpush2.bf16.xpose.msra.mxu0 0
    %501 = vmatprep.subr.bf16.mxu0 0
    %502 = vmatpush2.bf16.xpose.msra.mxu0 0
    %503 = vmatprep.subr.bf16.mxu0 0
    %504 = vmatpush2.bf16.xpose.msra.mxu0 0
    %505 = vmatprep.subr.bf16.mxu0 0
    %506 = vmatpush2.bf16.xpose.msra.mxu0 0
    %507 = vmatprep.subr.bf16.mxu0 0
    %508 = vmatpush2.bf16.xpose.msra.mxu0 0
    %509 = vmatprep.subr.bf16.mxu0 0
    %510 = vmatpush2.bf16.xpose.msra.mxu0 0
    %511 = vmatprep.subr.bf16.mxu0 0
    %512 = vmatpush2.bf16.xpose.msra.mxu0 0
    %513 = vmatprep.subr.bf16.mxu0 0
    %514 = vmatpush2.bf16.xpose.msra.mxu0 0
    %515 = vmatprep.mubr.bf16.mxu0 0
    %516 = vmatmul.mubr.bf16.gmra.mxu0 %v478
    %v517 = vpop.f32.mrf.mxu0
    %v518 = vadd.f32 0.0, %v517
    %v519 = vpop.f32.mrf.mxu0
    %v520 = vpop.f32.mrf.mxu0
    %v521 = vadd.f32 0.0, %v520
    %v522 = vpop.f32.mrf.mxu0
    %523 = vdwg.mxu0
    %v524 = vmul.f32 %v518, 0.17677669
    %v525 = vmul.f32 %v521, 0.17677669
    %v526 = vadd.f32 %v524, %v362
    %v527 = vadd.f32 %v525, %v363
    %vm528 = vcmask 130048
    %v529 = vsel %vm528, %v526, -inf
    %530 = vmax.xlane.f32.xlu0 %v529
    %v531 = vpop.xlane.xlu0 %530
    %v532 = vsel %vm528, %v527, -inf
    %533 = vmax.xlane.f32.xlu0 %v532
    %v534 = vpop.xlane.xlu0 %533
    %v535 = vsub.f32 %v526, %v531
    %v536 = vsub.f32 %v527, %v534
    %v537 = vmul.f32 %v535, 1.442695
    %v538 = vpow.pop %v537
    %v539 = vmul.f32 %v536, 1.442695
    %v540 = vpow.pop %v539
    %v541 = vsel %vm528, %v538, 0.0
    %542 = vadd.xlane.f32.xlu0 %v541
    %v543 = vpop.xlane.xlu0 %542
    %v544 = vsel %vm528, %v540, 0.0
    %545 = vadd.xlane.f32.xlu0 %v544
    %v546 = vpop.xlane.xlu0 %545
    %v547 = vrcp.pop %v543
    %v548 = vrcp.pop %v546
    %v549 = vmul.f32 %v538, %v547
    %v550 = vmul.f32 %v540, %v548
    %v551 = vpack.c.bf16 %v550, %v549
    %v553 = vsel %vm528, %v551, 0
    %555 = vmatprep.subr.bf16.mxu0 0
    %556 = vmatpush1.bf16.msra.mxu0 0
    %557 = vmatprep.subr.bf16.mxu0 0
    %558 = vmatpush1.bf16.msra.mxu0 0
    %559 = vmatprep.subr.bf16.mxu0 0
    %560 = vmatpush1.bf16.msra.mxu0 0
    %561 = vmatprep.subr.bf16.mxu0 0
    %562 = vmatpush1.bf16.msra.mxu0 0
    %563 = vmatprep.subr.bf16.mxu0 0
    %564 = vmatpush1.bf16.msra.mxu0 0
    %565 = vmatprep.subr.bf16.mxu0 0
    %566 = vmatpush1.bf16.msra.mxu0 0
    %567 = vmatprep.subr.bf16.mxu0 0
    %568 = vmatpush1.bf16.msra.mxu0 0
    %569 = vmatprep.subr.bf16.mxu0 0
    %570 = vmatpush1.bf16.msra.mxu0 %v472
    %571 = vmatprep.subr.bf16.mxu0 0
    %572 = vmatpush2.bf16.msra.mxu0 0
    %573 = vmatprep.subr.bf16.mxu0 0
    %574 = vmatpush2.bf16.msra.mxu0 0
    %575 = vmatprep.subr.bf16.mxu0 0
    %576 = vmatpush2.bf16.msra.mxu0 0
    %577 = vmatprep.subr.bf16.mxu0 0
    %578 = vmatpush2.bf16.msra.mxu0 0
    %579 = vmatprep.subr.bf16.mxu0 0
    %580 = vmatpush2.bf16.msra.mxu0 0
    %581 = vmatprep.subr.bf16.mxu0 0
    %582 = vmatpush2.bf16.msra.mxu0 0
    %583 = vmatprep.subr.bf16.mxu0 0
    %584 = vmatpush2.bf16.msra.mxu0 0
    %585 = vmatprep.subr.bf16.mxu0 0
    %586 = vmatpush2.bf16.msra.mxu0 0
    %587 = vmatprep.mubr.bf16.mxu0 0
    %588 = vmatmul.mubr.bf16.gmra.mxu0 %v553
    %v589 = vpop.f32.mrf.mxu0
    %v590 = vadd.f32 0.0, %v589
    %v591 = vpop.f32.mrf.mxu0
    %v592 = vpop.f32.mrf.mxu0
    %v593 = vadd.f32 0.0, %v592
    %v594 = vpop.f32.mrf.mxu0
    %595 = vdwg.mxu0
    %596 = vrot.lane.b32.xlu0 %v471, 96
    %v597 = vpop.permute.xlu0 %596
    %598 = vrot.lane.b32.xlu0 %v471, 32
    %v599 = vpop.permute.xlu0 %598
    %v601 = vsel %vm476, %v597, 0
    %v604 = vsel %vm476, %v599, 0
    %606 = vmatprep.subr.bf16.mxu0 0
    %607 = vmatpush1.bf16.xpose.msra.mxu0 0
    %608 = vmatprep.subr.bf16.mxu0 0
    %609 = vmatpush1.bf16.xpose.msra.mxu0 0
    %610 = vmatprep.subr.bf16.mxu0 0
    %611 = vmatpush1.bf16.xpose.msra.mxu0 0
    %612 = vmatprep.subr.bf16.mxu0 0
    %613 = vmatpush1.bf16.xpose.msra.mxu0 0
    %614 = vmatprep.subr.bf16.mxu0 0
    %615 = vmatpush1.bf16.xpose.msra.mxu0 0
    %616 = vmatprep.subr.bf16.mxu0 0
    %617 = vmatpush1.bf16.xpose.msra.mxu0 0
    %618 = vmatprep.subr.bf16.mxu0 0
    %619 = vmatpush1.bf16.xpose.msra.mxu0 0
    %620 = vmatprep.subr.bf16.mxu0 0
    %621 = vmatpush1.bf16.xpose.msra.mxu0 %v604
    %622 = vmatprep.subr.bf16.mxu0 0
    %623 = vmatpush2.bf16.xpose.msra.mxu0 0
    %624 = vmatprep.subr.bf16.mxu0 0
    %625 = vmatpush2.bf16.xpose.msra.mxu0 0
    %626 = vmatprep.subr.bf16.mxu0 0
    %627 = vmatpush2.bf16.xpose.msra.mxu0 0
    %628 = vmatprep.subr.bf16.mxu0 0
    %629 = vmatpush2.bf16.xpose.msra.mxu0 0
    %630 = vmatprep.subr.bf16.mxu0 0
    %631 = vmatpush2.bf16.xpose.msra.mxu0 0
    %632 = vmatprep.subr.bf16.mxu0 0
    %633 = vmatpush2.bf16.xpose.msra.mxu0 0
    %634 = vmatprep.subr.bf16.mxu0 0
    %635 = vmatpush2.bf16.xpose.msra.mxu0 0
    %636 = vmatprep.subr.bf16.mxu0 0
    %637 = vmatpush2.bf16.xpose.msra.mxu0 0
    %638 = vmatprep.mubr.bf16.mxu0 0
    %639 = vmatmul.mubr.bf16.gmra.mxu0 %v601
    %v640 = vpop.f32.mrf.mxu0
    %v641 = vadd.f32 0.0, %v640
    %v642 = vpop.f32.mrf.mxu0
    %v643 = vpop.f32.mrf.mxu0
    %v644 = vadd.f32 0.0, %v643
    %v645 = vpop.f32.mrf.mxu0
    %646 = vdwg.mxu0
    %v647 = vmul.f32 %v641, 0.17677669
    %v648 = vmul.f32 %v644, 0.17677669
    %v649 = vadd.f32 %v647, %v362
    %v650 = vadd.f32 %v648, %v363
    %v651 = vsel %vm528, %v649, -inf
    %652 = vmax.xlane.f32.xlu0 %v651
    %v653 = vpop.xlane.xlu0 %652
    %v654 = vsel %vm528, %v650, -inf
    %655 = vmax.xlane.f32.xlu0 %v654
    %v656 = vpop.xlane.xlu0 %655
    %v657 = vsub.f32 %v649, %v653
    %v658 = vsub.f32 %v650, %v656
    %v659 = vmul.f32 %v657, 1.442695
    %v660 = vpow.pop %v659
    %v661 = vmul.f32 %v658, 1.442695
    %v662 = vpow.pop %v661
    %v663 = vsel %vm528, %v660, 0.0
    %664 = vadd.xlane.f32.xlu0 %v663
    %v665 = vpop.xlane.xlu0 %664
    %v666 = vsel %vm528, %v662, 0.0
    %667 = vadd.xlane.f32.xlu0 %v666
    %v668 = vpop.xlane.xlu0 %667
    %v669 = vrcp.pop %v665
    %v670 = vrcp.pop %v668
    %v671 = vmul.f32 %v660, %v669
    %v672 = vmul.f32 %v662, %v670
    %v673 = vpack.c.bf16 %v672, %v671
    %675 = vrot.lane.b32.xlu0 %v472, 96
    %v676 = vpop.permute.xlu0 %675
    %v679 = vsel %vm528, %v673, 0
    %681 = vmatprep.subr.bf16.mxu0 0
    %682 = vmatpush1.bf16.msra.mxu0 0
    %683 = vmatprep.subr.bf16.mxu0 0
    %684 = vmatpush1.bf16.msra.mxu0 0
    %685 = vmatprep.subr.bf16.mxu0 0
    %686 = vmatpush1.bf16.msra.mxu0 0
    %687 = vmatprep.subr.bf16.mxu0 0
    %688 = vmatpush1.bf16.msra.mxu0 0
    %689 = vmatprep.subr.bf16.mxu0 0
    %690 = vmatpush1.bf16.msra.mxu0 0
    %691 = vmatprep.subr.bf16.mxu0 0
    %692 = vmatpush1.bf16.msra.mxu0 0
    %693 = vmatprep.subr.bf16.mxu0 0
    %694 = vmatpush1.bf16.msra.mxu0 0
    %695 = vmatprep.subr.bf16.mxu0 0
    %696 = vmatpush1.bf16.msra.mxu0 %v676
    %697 = vmatprep.subr.bf16.mxu0 0
    %698 = vmatpush2.bf16.msra.mxu0 0
    %699 = vmatprep.subr.bf16.mxu0 0
    %700 = vmatpush2.bf16.msra.mxu0 0
    %701 = vmatprep.subr.bf16.mxu0 0
    %702 = vmatpush2.bf16.msra.mxu0 0
    %703 = vmatprep.subr.bf16.mxu0 0
    %704 = vmatpush2.bf16.msra.mxu0 0
    %705 = vmatprep.subr.bf16.mxu0 0
    %706 = vmatpush2.bf16.msra.mxu0 0
    %707 = vmatprep.subr.bf16.mxu0 0
    %708 = vmatpush2.bf16.msra.mxu0 0
    %709 = vmatprep.subr.bf16.mxu0 0
    %710 = vmatpush2.bf16.msra.mxu0 0
    %711 = vmatprep.subr.bf16.mxu0 0
    %712 = vmatpush2.bf16.msra.mxu0 0
    %713 = vmatprep.mubr.bf16.mxu0 0
    %714 = vmatmul.mubr.bf16.gmra.mxu0 %v679
    %v715 = vpop.f32.mrf.mxu0
    %v716 = vadd.f32 0.0, %v715
    %v717 = vpop.f32.mrf.mxu0
    %v718 = vpop.f32.mrf.mxu0
    %v719 = vadd.f32 0.0, %v718
    %v720 = vpop.f32.mrf.mxu0
    %721 = vdwg.mxu0
    %724 = vrot.lane.b32.xlu0 %v716, 32
    %v725 = vpop.permute.xlu0 %724
    %726 = vrot.lane.b32.xlu0 %v719, 32
    %v727 = vpop.permute.xlu0 %726
    %v730 = vsel %vm476, %v590, %v725
    %v731 = vsel %vm476, %v593, %v727
    %v732 = vpack.c.bf16 %v731, %v730
    %v733 = vld [vmem:[%s15] sm:$0xf]
    %v734 = vld [vmem:[%s15 + $0x4] sm:$0xf]
    %v735 = vld [vmem:[%s15 + $0x8] sm:$0xf]
    %v736 = vld [vmem:[%s15 + $0xc] sm:$0xf]
    %v737 = vld [vmem:[%s15 + $0x10] sm:$0xf]
    %v738 = vld [vmem:[%s15 + $0x14] sm:$0xf]
    %v739 = vld [vmem:[%s15 + $0x18] sm:$0xf]
    %v740 = vld [vmem:[%s15 + $0x1c] sm:$0xf]
    %v741 = vld [vmem:[%s17] sm:$0x1]
    %v743 = vlaneseq
    %v744 = vshrl.u32 %v743, 7
    %v745 = vsub.s32 0, %v744
    %v746 = vrot.slane %v741, %v745
    %v756 = vunpack.c.l.b16 %v733
    %v757 = vunpack.c.l.b16 %v734
    %v758 = vunpack.c.l.b16 %v735
    %v759 = vunpack.c.l.b16 %v736
    %v760 = vunpack.c.l.b16 %v737
    %v761 = vunpack.c.l.b16 %v738
    %v762 = vunpack.c.l.b16 %v739
    %v763 = vunpack.c.l.b16 %v740
    %v764 = vpack.c.b16 %v757, %v756
    %v765 = vpack.c.b16 %v759, %v758
    %v766 = vpack.c.b16 %v761, %v760
    %v767 = vpack.c.b16 %v763, %v762
    %v773 = vsel %vm318, %v732, 0
    %775 = vmatprep.subr.bf16.mxu0 0
    %776 = vmatpush1.bf16.msra.mxu0 0
    %777 = vmatprep.subr.bf16.mxu0 0
    %778 = vmatpush1.bf16.msra.mxu0 0
    %779 = vmatprep.subr.bf16.mxu0 0
    %780 = vmatpush1.bf16.msra.mxu0 0
    %781 = vmatprep.subr.bf16.mxu0 0
    %782 = vmatpush1.bf16.msra.mxu0 0
    %783 = vmatprep.subr.bf16.mxu0 0
    %784 = vmatpush1.bf16.msra.mxu0 %v767
    %785 = vmatprep.subr.bf16.mxu0 0
    %786 = vmatpush1.bf16.msra.mxu0 %v766
    %787 = vmatprep.subr.bf16.mxu0 0
    %788 = vmatpush1.bf16.msra.mxu0 %v765
    %789 = vmatprep.subr.bf16.mxu0 0
    %790 = vmatpush1.bf16.msra.mxu0 %v764
    %791 = vmatprep.subr.bf16.mxu0 0
    %792 = vmatpush2.bf16.msra.mxu0 0
    %793 = vmatprep.subr.bf16.mxu0 0
    %794 = vmatpush2.bf16.msra.mxu0 0
    %795 = vmatprep.subr.bf16.mxu0 0
    %796 = vmatpush2.bf16.msra.mxu0 0
    %797 = vmatprep.subr.bf16.mxu0 0
    %798 = vmatpush2.bf16.msra.mxu0 0
    %799 = vmatprep.subr.bf16.mxu0 0
    %800 = vmatpush2.bf16.msra.mxu0 0
    %801 = vmatprep.subr.bf16.mxu0 0
    %802 = vmatpush2.bf16.msra.mxu0 0
    %803 = vmatprep.subr.bf16.mxu0 0
    %804 = vmatpush2.bf16.msra.mxu0 0
    %805 = vmatprep.subr.bf16.mxu0 0
    %806 = vmatpush2.bf16.msra.mxu0 0
    %807 = vmatprep.mubr.bf16.mxu0 0
    %808 = vmatmul.mubr.bf16.gmra.mxu0 %v773
    %v809 = vpop.f32.mrf.mxu0
    %v810 = vadd.f32 %v746, %v809
    %v811 = vpop.f32.mrf.mxu0
    %v812 = vpop.f32.mrf.mxu0
    %v813 = vadd.f32 %v746, %v812
    %v814 = vpop.f32.mrf.mxu0
    %815 = vdwg.mxu0
    %v816 = vadd.f32 %v810, %v360
    %v817 = vadd.f32 %v813, %v361
    %v818 = vld [vmem:[#allocation12] sm:$0x1]
    %v819 = vld [vmem:[#allocation13] sm:$0x1]
    %v820 = vsel %vm318, %v816, 0.0
    %821 = vadd.xlane.f32.xlu0 %v820
    %v822 = vpop.xlane.xlu0 %821
    %v823 = vsel %vm318, %v817, 0.0
    %824 = vadd.xlane.f32.xlu0 %v823
    %v825 = vpop.xlane.xlu0 %824
    %v826 = vmul.f32 %v822, %v325
    %v827 = vmul.f32 %v825, %v325
    %v828 = vsub.f32 %v816, %v826
    %v829 = vsub.f32 %v817, %v827
    %v830 = vmul.f32 %v828, %v828
    %v831 = vmul.f32 %v829, %v829
    %v832 = vsel %vm318, %v830, 0.0
    %833 = vadd.xlane.f32.xlu0 %v832
    %v834 = vpop.xlane.xlu0 %833
    %v835 = vsel %vm318, %v831, 0.0
    %836 = vadd.xlane.f32.xlu0 %v835
    %v837 = vpop.xlane.xlu0 %836
    %v838 = vmul.f32 %v834, %v325
    %v839 = vmul.f32 %v837, %v325
    %v840 = vadd.f32 %v838, 1e-12
    %v841 = vadd.f32 %v839, 1e-12
    %v842 = vrsqrt.pop %v840
    %v843 = vrsqrt.pop %v841
    %v844 = vmul.f32 %v828, %v842
    %v845 = vmul.f32 %v829, %v843
    %v847 = vlaneseq
    %v848 = vshrl.u32 %v847, 7
    %v849 = vsub.s32 0, %v848
    %v850 = vrot.slane %v818, %v849
    %v852 = vmul.f32 %v844, %v850
    %v853 = vmul.f32 %v845, %v850
    %v855 = vlaneseq
    %v856 = vshrl.u32 %v855, 7
    %v857 = vsub.s32 0, %v856
    %v858 = vrot.slane %v819, %v857
    %v860 = vadd.f32 %v852, %v858
    %v861 = vadd.f32 %v853, %v858
    %v862 = vpack.c.bf16 %v861, %v860
    %v863 = vld [vmem:[%s23] sm:$0xff]
    %v864 = vld [vmem:[%s23 + $0x8] sm:$0xff]
    %v865 = vld [vmem:[%s23 + $0x10] sm:$0xff]
    %v866 = vld [vmem:[%s23 + $0x18] sm:$0xff]
    %v867 = vld [vmem:[%s23 + $0x20] sm:$0xff]
    %v868 = vld [vmem:[%s23 + $0x28] sm:$0xff]
    %v869 = vld [vmem:[%s23 + $0x30] sm:$0xff]
    %v870 = vld [vmem:[%s23 + $0x38] sm:$0xff]
    %v871 = vld [vmem:[#allocation15] sm:$0x3]
    %v873 = vlaneseq
    %v874 = vshrl.u32 %v873, 7
    %v875 = vsub.s32 0, %v874
    %v876 = vrot.slane %v871, %v875
    %v877 = vlaneseq
    %v878 = vshrl.u32 %v877, 7
    %v879 = vsub.s32 1, %v878
    %v880 = vrot.slane %v871, %v879
    %v891 = vunpack.c.l.b16 %v863
    %v892 = vunpack.c.h.b16 %v863
    %v893 = vunpack.c.l.b16 %v864
    %v894 = vunpack.c.h.b16 %v864
    %v895 = vunpack.c.l.b16 %v865
    %v896 = vunpack.c.h.b16 %v865
    %v897 = vunpack.c.l.b16 %v866
    %v898 = vunpack.c.h.b16 %v866
    %v899 = vunpack.c.l.b16 %v867
    %v900 = vunpack.c.h.b16 %v867
    %v901 = vunpack.c.l.b16 %v868
    %v902 = vunpack.c.h.b16 %v868
    %v903 = vunpack.c.l.b16 %v869
    %v904 = vunpack.c.h.b16 %v869
    %v905 = vunpack.c.l.b16 %v870
    %v906 = vunpack.c.h.b16 %v870
    %v907 = vpack.c.b16 %v893, %v891
    %v908 = vpack.c.b16 %v894, %v892
    %v909 = vpack.c.b16 %v897, %v895
    %v910 = vpack.c.b16 %v898, %v896
    %v911 = vpack.c.b16 %v901, %v899
    %v912 = vpack.c.b16 %v902, %v900
    %v913 = vpack.c.b16 %v905, %v903
    %v914 = vpack.c.b16 %v906, %v904
    %v924 = vsel %vm318, %v862, 0
    %926 = vmatprep.subr.bf16.mxu0 0
    %927 = vmatpush1.bf16.msra.mxu0 0
    %928 = vmatprep.subr.bf16.mxu0 0
    %929 = vmatpush1.bf16.msra.mxu0 0
    %930 = vmatprep.subr.bf16.mxu0 0
    %931 = vmatpush1.bf16.msra.mxu0 0
    %932 = vmatprep.subr.bf16.mxu0 0
    %933 = vmatpush1.bf16.msra.mxu0 0
    %934 = vmatprep.subr.bf16.mxu0 %v914
    %935 = vmatpush1.bf16.msra.mxu0 %v913
    %936 = vmatprep.subr.bf16.mxu0 %v912
    %937 = vmatpush1.bf16.msra.mxu0 %v911
    %938 = vmatprep.subr.bf16.mxu0 %v910
    %939 = vmatpush1.bf16.msra.mxu0 %v909
    %940 = vmatprep.subr.bf16.mxu0 %v908
    %941 = vmatpush1.bf16.msra.mxu0 %v907
    %942 = vmatprep.subr.bf16.mxu0 0
    %943 = vmatpush2.bf16.msra.mxu0 0
    %944 = vmatprep.subr.bf16.mxu0 0
    %945 = vmatpush2.bf16.msra.mxu0 0
    %946 = vmatprep.subr.bf16.mxu0 0
    %947 = vmatpush2.bf16.msra.mxu0 0
    %948 = vmatprep.subr.bf16.mxu0 0
    %949 = vmatpush2.bf16.msra.mxu0 0
    %950 = vmatprep.subr.bf16.mxu0 0
    %951 = vmatpush2.bf16.msra.mxu0 0
    %952 = vmatprep.subr.bf16.mxu0 0
    %953 = vmatpush2.bf16.msra.mxu0 0
    %954 = vmatprep.subr.bf16.mxu0 0
    %955 = vmatpush2.bf16.msra.mxu0 0
    %956 = vmatprep.subr.bf16.mxu0 0
    %957 = vmatpush2.bf16.msra.mxu0 0
    %958 = vmatprep.mubr.bf16.mxu0 0
    %959 = vmatmul.mubr.bf16.gmra.mxu0 %v924
    %v960 = vpop.f32.mrf.mxu0
    %v961 = vadd.f32 %v876, %v960
    %v962 = vpop.f32.mrf.mxu0
    %v963 = vadd.f32 %v880, %v962
    %v964 = vpop.f32.mrf.mxu0
    %v965 = vadd.f32 %v876, %v964
    %v966 = vpop.f32.mrf.mxu0
    %v967 = vadd.f32 %v880, %v966
    %968 = vdwg.mxu0
    %v969 = vmul.f32 %v961, %v961
    %v970 = vmul.f32 %v963, %v963
    %v971 = vmul.f32 %v965, %v965
    %v972 = vmul.f32 %v967, %v967
    %v973 = vmul.f32 %v961, %v969
    %v974 = vmul.f32 %v963, %v970
    %v975 = vmul.f32 %v965, %v971
    %v976 = vmul.f32 %v967, %v972
    %v977 = vmul.f32 %v973, 0.044715
    %v978 = vmul.f32 %v974, 0.044715
    %v979 = vmul.f32 %v975, 0.044715
    %v980 = vmul.f32 %v976, 0.044715
    %v981 = vadd.f32 %v961, %v977
    %v982 = vadd.f32 %v963, %v978
    %v983 = vadd.f32 %v965, %v979
    %v984 = vadd.f32 %v967, %v980
    %v985 = vmul.f32 %v981, 0.7978846
    %v986 = vmul.f32 %v982, 0.7978846
    %v987 = vmul.f32 %v983, 0.7978846
    %v988 = vmul.f32 %v984, 0.7978846
    %v989 = vtanh.pop %v985
    %v990 = vtanh.pop %v986
    %v991 = vtanh.pop %v987
    %v992 = vtanh.pop %v988
    %v993 = vadd.f32 %v989, 1.0
    %v994 = vadd.f32 %v990, 1.0
    %v995 = vadd.f32 %v991, 1.0
    %v996 = vadd.f32 %v992, 1.0
    %v997 = vmul.f32 %v993, 0.5
    %v998 = vmul.f32 %v994, 0.5
    %v999 = vmul.f32 %v995, 0.5
    %v1000 = vmul.f32 %v996, 0.5
    %v1001 = vmul.f32 %v961, %v997
    %v1002 = vmul.f32 %v963, %v998
    %v1003 = vmul.f32 %v965, %v999
    %v1004 = vmul.f32 %v967, %v1000
    %v1005 = vpack.c.bf16 %v1003, %v1001
    %v1006 = vpack.c.bf16 %v1004, %v1002
    %v1007 = vld [vmem:[%s27] sm:$0xf]
    %v1008 = vld [vmem:[%s27 + $0x4] sm:$0xf]
    %v1009 = vld [vmem:[%s27 + $0x8] sm:$0xf]
    %v1010 = vld [vmem:[%s27 + $0xc] sm:$0xf]
    %v1011 = vld [vmem:[%s27 + $0x10] sm:$0xf]
    %v1012 = vld [vmem:[%s27 + $0x14] sm:$0xf]
    %v1013 = vld [vmem:[%s27 + $0x18] sm:$0xf]
    %v1014 = vld [vmem:[%s27 + $0x1c] sm:$0xf]
    %v1015 = vld [vmem:[%s27 + $0x20] sm:$0xf]
    %v1016 = vld [vmem:[%s27 + $0x24] sm:$0xf]
    %v1017 = vld [vmem:[%s27 + $0x28] sm:$0xf]
    %v1018 = vld [vmem:[%s27 + $0x2c] sm:$0xf]
    %v1019 = vld [vmem:[%s27 + $0x30] sm:$0xf]
    %v1020 = vld [vmem:[%s27 + $0x34] sm:$0xf]
    %v1021 = vld [vmem:[%s27 + $0x38] sm:$0xf]
    %v1022 = vld [vmem:[%s27 + $0x3c] sm:$0xf]
    %v1023 = vld [vmem:[%s27 + $0x40] sm:$0xf]
    %v1024 = vld [vmem:[%s27 + $0x44] sm:$0xf]
    %v1025 = vld [vmem:[%s27 + $0x48] sm:$0xf]
    %v1026 = vld [vmem:[%s27 + $0x4c] sm:$0xf]
    %v1027 = vld [vmem:[%s27 + $0x50] sm:$0xf]
    %v1028 = vld [vmem:[%s27 + $0x54] sm:$0xf]
    %v1029 = vld [vmem:[%s27 + $0x58] sm:$0xf]
    %v1030 = vld [vmem:[%s27 + $0x5c] sm:$0xf]
    %v1031 = vld [vmem:[%s27 + $0x60] sm:$0xf]
    %v1032 = vld [vmem:[%s27 + $0x64] sm:$0xf]
    %v1033 = vld [vmem:[%s27 + $0x68] sm:$0xf]
    %v1034 = vld [vmem:[%s27 + $0x6c] sm:$0xf]
    %v1035 = vld [vmem:[%s27 + $0x70] sm:$0xf]
    %v1036 = vld [vmem:[%s27 + $0x74] sm:$0xf]
    %v1037 = vld [vmem:[%s27 + $0x78] sm:$0xf]
    %v1038 = vld [vmem:[%s27 + $0x7c] sm:$0xf]
    %v1039 = vld [vmem:[#allocation16] sm:$0x1]
    %v1041 = vlaneseq
    %v1042 = vshrl.u32 %v1041, 7
    %v1043 = vsub.s32 0, %v1042
    %v1044 = vrot.slane %v1039, %v1043
    %v1078 = vunpack.c.l.b16 %v1007
    %v1079 = vunpack.c.l.b16 %v1008
    %v1080 = vunpack.c.l.b16 %v1009
    %v1081 = vunpack.c.l.b16 %v1010
    %v1082 = vunpack.c.l.b16 %v1011
    %v1083 = vunpack.c.l.b16 %v1012
    %v1084 = vunpack.c.l.b16 %v1013
    %v1085 = vunpack.c.l.b16 %v1014
    %v1086 = vunpack.c.l.b16 %v1015
    %v1087 = vunpack.c.l.b16 %v1016
    %v1088 = vunpack.c.l.b16 %v1017
    %v1089 = vunpack.c.l.b16 %v1018
    %v1090 = vunpack.c.l.b16 %v1019
    %v1091 = vunpack.c.l.b16 %v1020
    %v1092 = vunpack.c.l.b16 %v1021
    %v1093 = vunpack.c.l.b16 %v1022
    %v1094 = vunpack.c.l.b16 %v1023
    %v1095 = vunpack.c.l.b16 %v1024
    %v1096 = vunpack.c.l.b16 %v1025
    %v1097 = vunpack.c.l.b16 %v1026
    %v1098 = vunpack.c.l.b16 %v1027
    %v1099 = vunpack.c.l.b16 %v1028
    %v1100 = vunpack.c.l.b16 %v1029
    %v1101 = vunpack.c.l.b16 %v1030
    %v1102 = vunpack.c.l.b16 %v1031
    %v1103 = vunpack.c.l.b16 %v1032
    %v1104 = vunpack.c.l.b16 %v1033
    %v1105 = vunpack.c.l.b16 %v1034
    %v1106 = vunpack.c.l.b16 %v1035
    %v1107 = vunpack.c.l.b16 %v1036
    %v1108 = vunpack.c.l.b16 %v1037
    %v1109 = vunpack.c.l.b16 %v1038
    %v1110 = vpack.c.b16 %v1079, %v1078
    %v1111 = vpack.c.b16 %v1081, %v1080
    %v1112 = vpack.c.b16 %v1083, %v1082
    %v1113 = vpack.c.b16 %v1085, %v1084
    %v1114 = vpack.c.b16 %v1087, %v1086
    %v1115 = vpack.c.b16 %v1089, %v1088
    %v1116 = vpack.c.b16 %v1091, %v1090
    %v1117 = vpack.c.b16 %v1093, %v1092
    %v1118 = vpack.c.b16 %v1095, %v1094
    %v1119 = vpack.c.b16 %v1097, %v1096
    %v1120 = vpack.c.b16 %v1099, %v1098
    %v1121 = vpack.c.b16 %v1101, %v1100
    %v1122 = vpack.c.b16 %v1103, %v1102
    %v1123 = vpack.c.b16 %v1105, %v1104
    %v1124 = vpack.c.b16 %v1107, %v1106
    %v1125 = vpack.c.b16 %v1109, %v1108
    %1142 = vmatprep.subr.bf16.mxu0 0
    %1143 = vmatpush1.bf16.msra.mxu0 %v1117
    %1144 = vmatprep.subr.bf16.mxu0 0
    %1145 = vmatpush1.bf16.msra.mxu0 %v1116
    %1146 = vmatprep.subr.bf16.mxu0 0
    %1147 = vmatpush1.bf16.msra.mxu0 %v1115
    %1148 = vmatprep.subr.bf16.mxu0 0
    %1149 = vmatpush1.bf16.msra.mxu0 %v1114
    %1150 = vmatprep.subr.bf16.mxu0 0
    %1151 = vmatpush1.bf16.msra.mxu0 %v1113
    %1152 = vmatprep.subr.bf16.mxu0 0
    %1153 = vmatpush1.bf16.msra.mxu0 %v1112
    %1154 = vmatprep.subr.bf16.mxu0 0
    %1155 = vmatpush1.bf16.msra.mxu0 %v1111
    %1156 = vmatprep.subr.bf16.mxu0 0
    %1157 = vmatpush1.bf16.msra.mxu0 %v1110
    %1158 = vmatprep.subr.bf16.mxu0 0
    %1159 = vmatpush2.bf16.msra.mxu0 %v1125
    %1160 = vmatprep.subr.bf16.mxu0 0
    %1161 = vmatpush2.bf16.msra.mxu0 %v1124
    %1162 = vmatprep.subr.bf16.mxu0 0
    %1163 = vmatpush2.bf16.msra.mxu0 %v1123
    %1164 = vmatprep.subr.bf16.mxu0 0
    %1165 = vmatpush2.bf16.msra.mxu0 %v1122
    %1166 = vmatprep.subr.bf16.mxu0 0
    %1167 = vmatpush2.bf16.msra.mxu0 %v1121
    %1168 = vmatprep.subr.bf16.mxu0 0
    %1169 = vmatpush2.bf16.msra.mxu0 %v1120
    %1170 = vmatprep.subr.bf16.mxu0 0
    %1171 = vmatpush2.bf16.msra.mxu0 %v1119
    %1172 = vmatprep.subr.bf16.mxu0 0
    %1173 = vmatpush2.bf16.msra.mxu0 %v1118
    %1174 = vmatprep.mubr.bf16.mxu0 %v1006
    %1175 = vmatmul.mubr.bf16.gmra.mxu0 %v1005
    %v1176 = vpop.f32.mrf.mxu0
    %v1177 = vadd.f32 %v1044, %v1176
    %v1178 = vpop.f32.mrf.mxu0
    %v1179 = vpop.f32.mrf.mxu0
    %v1180 = vadd.f32 %v1044, %v1179
    %v1181 = vpop.f32.mrf.mxu0
    %1182 = vdwg.mxu0
    %v1183 = vadd.f32 %v1177, %v860
    %v1184 = vadd.f32 %v1180, %v861
    %v1185 = vld [vmem:[%s31] sm:$0x1]
    %v1186 = vld [vmem:[#allocation18] sm:$0x1]
    %v1187 = vsel %vm318, %v1183, 0.0
    %1188 = vadd.xlane.f32.xlu0 %v1187
    %v1189 = vpop.xlane.xlu0 %1188
    %v1190 = vsel %vm318, %v1184, 0.0
    %1191 = vadd.xlane.f32.xlu0 %v1190
    %v1192 = vpop.xlane.xlu0 %1191
    %v1193 = vmul.f32 %v1189, %v325
    %v1194 = vmul.f32 %v1192, %v325
    %v1195 = vsub.f32 %v1183, %v1193
    %v1196 = vsub.f32 %v1184, %v1194
    %v1197 = vmul.f32 %v1195, %v1195
    %v1198 = vmul.f32 %v1196, %v1196
    %v1199 = vsel %vm318, %v1197, 0.0
    %1200 = vadd.xlane.f32.xlu0 %v1199
    %v1201 = vpop.xlane.xlu0 %1200
    %v1202 = vsel %vm318, %v1198, 0.0
    %1203 = vadd.xlane.f32.xlu0 %v1202
    %v1204 = vpop.xlane.xlu0 %1203
    %v1205 = vmul.f32 %v1201, %v325
    %v1206 = vmul.f32 %v1204, %v325
    %v1207 = vadd.f32 %v1205, 1e-12
    %v1208 = vadd.f32 %v1206, 1e-12
    %v1209 = vrsqrt.pop %v1207
    %v1210 = vrsqrt.pop %v1208
    %v1211 = vmul.f32 %v1195, %v1209
    %v1212 = vmul.f32 %v1196, %v1210
    %v1214 = vlaneseq
    %v1215 = vshrl.u32 %v1214, 7
    %v1216 = vsub.s32 0, %v1215
    %v1217 = vrot.slane %v1185, %v1216
    %v1219 = vmul.f32 %v1211, %v1217
    %v1220 = vmul.f32 %v1212, %v1217
    %v1222 = vlaneseq
    %v1223 = vshrl.u32 %v1222, 7
    %v1224 = vsub.s32 0, %v1223
    %v1225 = vrot.slane %v1186, %v1224
    %v1227 = vadd.f32 %v1219, %v1225
    %v1228 = vadd.f32 %v1220, %v1225
    %v1229 = vpack.c.bf16 %v1228, %v1227
    %s1230 = scalar_lea.vmem %s11, 64
    %v1231 = vld [vmem:[%s1230] sm:$0xff]
    %v1232 = vld [vmem:[%s1230 + $0x8] sm:$0xff]
    %v1233 = vld [vmem:[%s1230 + $0x10] sm:$0xff]
    %v1234 = vld [vmem:[%s1230 + $0x18] sm:$0xff]
    %v1235 = vld [vmem:[%s1230 + $0x20] sm:$0xff]
    %v1236 = vld [vmem:[%s1230 + $0x28] sm:$0xff]
    %v1237 = vld [vmem:[%s1230 + $0x30] sm:$0xff]
    %v1238 = vld [vmem:[%s1230 + $0x38] sm:$0xff]
    %s1239 = scalar_lea.vmem %s13, 2
    %v1240 = vld [vmem:[%s1239] sm:$0x3]
    %v1242 = vlaneseq
    %v1243 = vshrl.u32 %v1242, 7
    %v1244 = vsub.s32 0, %v1243
    %v1245 = vrot.slane %v1240, %v1244
    %v1246 = vlaneseq
    %v1247 = vshrl.u32 %v1246, 7
    %v1248 = vsub.s32 1, %v1247
    %v1249 = vrot.slane %v1240, %v1248
    %v1260 = vunpack.c.l.b16 %v1231
    %v1261 = vunpack.c.h.b16 %v1231
    %v1262 = vunpack.c.l.b16 %v1232
    %v1263 = vunpack.c.h.b16 %v1232
    %v1264 = vunpack.c.l.b16 %v1233
    %v1265 = vunpack.c.h.b16 %v1233
    %v1266 = vunpack.c.l.b16 %v1234
    %v1267 = vunpack.c.h.b16 %v1234
    %v1268 = vunpack.c.l.b16 %v1235
    %v1269 = vunpack.c.h.b16 %v1235
    %v1270 = vunpack.c.l.b16 %v1236
    %v1271 = vunpack.c.h.b16 %v1236
    %v1272 = vunpack.c.l.b16 %v1237
    %v1273 = vunpack.c.h.b16 %v1237
    %v1274 = vunpack.c.l.b16 %v1238
    %v1275 = vunpack.c.h.b16 %v1238
    %v1276 = vpack.c.b16 %v1262, %v1260
    %v1277 = vpack.c.b16 %v1263, %v1261
    %v1278 = vpack.c.b16 %v1266, %v1264
    %v1279 = vpack.c.b16 %v1267, %v1265
    %v1280 = vpack.c.b16 %v1270, %v1268
    %v1281 = vpack.c.b16 %v1271, %v1269
    %v1282 = vpack.c.b16 %v1274, %v1272
    %v1283 = vpack.c.b16 %v1275, %v1273
    %v1293 = vsel %vm318, %v1229, 0
    %1295 = vmatprep.subr.bf16.mxu0 0
    %1296 = vmatpush1.bf16.msra.mxu0 0
    %1297 = vmatprep.subr.bf16.mxu0 0
    %1298 = vmatpush1.bf16.msra.mxu0 0
    %1299 = vmatprep.subr.bf16.mxu0 0
    %1300 = vmatpush1.bf16.msra.mxu0 0
    %1301 = vmatprep.subr.bf16.mxu0 0
    %1302 = vmatpush1.bf16.msra.mxu0 0
    %1303 = vmatprep.subr.bf16.mxu0 %v1283
    %1304 = vmatpush1.bf16.msra.mxu0 %v1282
    %1305 = vmatprep.subr.bf16.mxu0 %v1281
    %1306 = vmatpush1.bf16.msra.mxu0 %v1280
    %1307 = vmatprep.subr.bf16.mxu0 %v1279
    %1308 = vmatpush1.bf16.msra.mxu0 %v1278
    %1309 = vmatprep.subr.bf16.mxu0 %v1277
    %1310 = vmatpush1.bf16.msra.mxu0 %v1276
    %1311 = vmatprep.subr.bf16.mxu0 0
    %1312 = vmatpush2.bf16.msra.mxu0 0
    %1313 = vmatprep.subr.bf16.mxu0 0
    %1314 = vmatpush2.bf16.msra.mxu0 0
    %1315 = vmatprep.subr.bf16.mxu0 0
    %1316 = vmatpush2.bf16.msra.mxu0 0
    %1317 = vmatprep.subr.bf16.mxu0 0
    %1318 = vmatpush2.bf16.msra.mxu0 0
    %1319 = vmatprep.subr.bf16.mxu0 0
    %1320 = vmatpush2.bf16.msra.mxu0 0
    %1321 = vmatprep.subr.bf16.mxu0 0
    %1322 = vmatpush2.bf16.msra.mxu0 0
    %1323 = vmatprep.subr.bf16.mxu0 0
    %1324 = vmatpush2.bf16.msra.mxu0 0
    %1325 = vmatprep.subr.bf16.mxu0 0
    %1326 = vmatpush2.bf16.msra.mxu0 0
    %1327 = vmatprep.mubr.bf16.mxu0 0
    %1328 = vmatmul.mubr.bf16.gmra.mxu0 %v1293
    %v1329 = vpop.f32.mrf.mxu0
    %v1330 = vadd.f32 %v1245, %v1329
    %v1331 = vpop.f32.mrf.mxu0
    %v1332 = vadd.f32 %v1249, %v1331
    %v1333 = vpop.f32.mrf.mxu0
    %v1334 = vadd.f32 %v1245, %v1333
    %v1335 = vpop.f32.mrf.mxu0
    %v1336 = vadd.f32 %v1249, %v1335
    %1337 = vdwg.mxu0
    %v1338 = vpack.c.bf16 %v1334, %v1330
    %v1339 = vpack.c.bf16 %v1336, %v1332
    %1341 = vrot.lane.b32.xlu0 %v1338, 64
    %v1342 = vpop.permute.xlu0 %1341
    %v1344 = vsel %vm476, %v1338, 0
    %v1347 = vsel %vm476, %v1342, 0
    %1349 = vmatprep.subr.bf16.mxu0 0
    %1350 = vmatpush1.bf16.xpose.msra.mxu0 0
    %1351 = vmatprep.subr.bf16.mxu0 0
    %1352 = vmatpush1.bf16.xpose.msra.mxu0 0
    %1353 = vmatprep.subr.bf16.mxu0 0
    %1354 = vmatpush1.bf16.xpose.msra.mxu0 0
    %1355 = vmatprep.subr.bf16.mxu0 0
    %1356 = vmatpush1.bf16.xpose.msra.mxu0 0
    %1357 = vmatprep.subr.bf16.mxu0 0
    %1358 = vmatpush1.bf16.xpose.msra.mxu0 0
    %1359 = vmatprep.subr.bf16.mxu0 0
    %1360 = vmatpush1.bf16.xpose.msra.mxu0 0
    %1361 = vmatprep.subr.bf16.mxu0 0
    %1362 = vmatpush1.bf16.xpose.msra.mxu0 0
    %1363 = vmatprep.subr.bf16.mxu0 0
    %1364 = vmatpush1.bf16.xpose.msra.mxu0 %v1347
    %1365 = vmatprep.subr.bf16.mxu0 0
    %1366 = vmatpush2.bf16.xpose.msra.mxu0 0
    %1367 = vmatprep.subr.bf16.mxu0 0
    %1368 = vmatpush2.bf16.xpose.msra.mxu0 0
    %1369 = vmatprep.subr.bf16.mxu0 0
    %1370 = vmatpush2.bf16.xpose.msra.mxu0 0
    %1371 = vmatprep.subr.bf16.mxu0 0
    %1372 = vmatpush2.bf16.xpose.msra.mxu0 0
    %1373 = vmatprep.subr.bf16.mxu0 0
    %1374 = vmatpush2.bf16.xpose.msra.mxu0 0
    %1375 = vmatprep.subr.bf16.mxu0 0
    %1376 = vmatpush2.bf16.xpose.msra.mxu0 0
    %1377 = vmatprep.subr.bf16.mxu0 0
    %1378 = vmatpush2.bf16.xpose.msra.mxu0 0
    %1379 = vmatprep.subr.bf16.mxu0 0
    %1380 = vmatpush2.bf16.xpose.msra.mxu0 0
    %1381 = vmatprep.mubr.bf16.mxu0 0
    %1382 = vmatmul.mubr.bf16.gmra.mxu0 %v1344
    %v1383 = vpop.f32.mrf.mxu0
    %v1384 = vadd.f32 0.0, %v1383
    %v1385 = vpop.f32.mrf.mxu0
    %v1386 = vpop.f32.mrf.mxu0
    %v1387 = vadd.f32 0.0, %v1386
    %v1388 = vpop.f32.mrf.mxu0
    %1389 = vdwg.mxu0
    %v1390 = vmul.f32 %v1384, 0.17677669
    %v1391 = vmul.f32 %v1387, 0.17677669
    %v1392 = vadd.f32 %v1390, %v362
    %v1393 = vadd.f32 %v1391, %v363
    %v1394 = vsel %vm528, %v1392, -inf
    %1395 = vmax.xlane.f32.xlu0 %v1394
    %v1396 = vpop.xlane.xlu0 %1395
    %v1397 = vsel %vm528, %v1393, -inf
    %1398 = vmax.xlane.f32.xlu0 %v1397
    %v1399 = vpop.xlane.xlu0 %1398
    %v1400 = vsub.f32 %v1392, %v1396
    %v1401 = vsub.f32 %v1393, %v1399
    %v1402 = vmul.f32 %v1400, 1.442695
    %v1403 = vpow.pop %v1402
    %v1404 = vmul.f32 %v1401, 1.442695
    %v1405 = vpow.pop %v1404
    %v1406 = vsel %vm528, %v1403, 0.0
    %1407 = vadd.xlane.f32.xlu0 %v1406
    %v1408 = vpop.xlane.xlu0 %1407
    %v1409 = vsel %vm528, %v1405, 0.0
    %1410 = vadd.xlane.f32.xlu0 %v1409
    %v1411 = vpop.xlane.xlu0 %1410
    %v1412 = vrcp.pop %v1408
    %v1413 = vrcp.pop %v1411
    %v1414 = vmul.f32 %v1403, %v1412
    %v1415 = vmul.f32 %v1405, %v1413
    %v1416 = vpack.c.bf16 %v1415, %v1414
    %v1418 = vsel %vm528, %v1416, 0
    %1420 = vmatprep.subr.bf16.mxu0 0
    %1421 = vmatpush1.bf16.msra.mxu0 0
    %1422 = vmatprep.subr.bf16.mxu0 0
    %1423 = vmatpush1.bf16.msra.mxu0 0
    %1424 = vmatprep.subr.bf16.mxu0 0
    %1425 = vmatpush1.bf16.msra.mxu0 0
    %1426 = vmatprep.subr.bf16.mxu0 0
    %1427 = vmatpush1.bf16.msra.mxu0 0
    %1428 = vmatprep.subr.bf16.mxu0 0
    %1429 = vmatpush1.bf16.msra.mxu0 0
    %1430 = vmatprep.subr.bf16.mxu0 0
    %1431 = vmatpush1.bf16.msra.mxu0 0
    %1432 = vmatprep.subr.bf16.mxu0 0
    %1433 = vmatpush1.bf16.msra.mxu0 0
    %1434 = vmatprep.subr.bf16.mxu0 0
    %1435 = vmatpush1.bf16.msra.mxu0 %v1339
    %1436 = vmatprep.subr.bf16.mxu0 0
    %1437 = vmatpush2.bf16.msra.mxu0 0
    %1438 = vmatprep.subr.bf16.mxu0 0
    %1439 = vmatpush2.bf16.msra.mxu0 0
    %1440 = vmatprep.subr.bf16.mxu0 0
    %1441 = vmatpush2.bf16.msra.mxu0 0
    %1442 = vmatprep.subr.bf16.mxu0 0
    %1443 = vmatpush2.bf16.msra.mxu0 0
    %1444 = vmatprep.subr.bf16.mxu0 0
    %1445 = vmatpush2.bf16.msra.mxu0 0
    %1446 = vmatprep.subr.bf16.mxu0 0
    %1447 = vmatpush2.bf16.msra.mxu0 0
    %1448 = vmatprep.subr.bf16.mxu0 0
    %1449 = vmatpush2.bf16.msra.mxu0 0
    %1450 = vmatprep.subr.bf16.mxu0 0
    %1451 = vmatpush2.bf16.msra.mxu0 0
    %1452 = vmatprep.mubr.bf16.mxu0 0
    %1453 = vmatmul.mubr.bf16.gmra.mxu0 %v1418
    %v1454 = vpop.f32.mrf.mxu0
    %v1455 = vadd.f32 0.0, %v1454
    %v1456 = vpop.f32.mrf.mxu0
    %v1457 = vpop.f32.mrf.mxu0
    %v1458 = vadd.f32 0.0, %v1457
    %v1459 = vpop.f32.mrf.mxu0
    %1460 = vdwg.mxu0
    %1461 = vrot.lane.b32.xlu0 %v1338, 96
    %v1462 = vpop.permute.xlu0 %1461
    %1463 = vrot.lane.b32.xlu0 %v1338, 32
    %v1464 = vpop.permute.xlu0 %1463
    %v1466 = vsel %vm476, %v1462, 0
    %v1469 = vsel %vm476, %v1464, 0
    %1471 = vmatprep.subr.bf16.mxu0 0
    %1472 = vmatpush1.bf16.xpose.msra.mxu0 0
    %1473 = vmatprep.subr.bf16.mxu0 0
    %1474 = vmatpush1.bf16.xpose.msra.mxu0 0
    %1475 = vmatprep.subr.bf16.mxu0 0
    %1476 = vmatpush1.bf16.xpose.msra.mxu0 0
    %1477 = vmatprep.subr.bf16.mxu0 0
    %1478 = vmatpush1.bf16.xpose.msra.mxu0 0
    %1479 = vmatprep.subr.bf16.mxu0 0
    %1480 = vmatpush1.bf16.xpose.msra.mxu0 0
    %1481 = vmatprep.subr.bf16.mxu0 0
    %1482 = vmatpush1.bf16.xpose.msra.mxu0 0
    %1483 = vmatprep.subr.bf16.mxu0 0
    %1484 = vmatpush1.bf16.xpose.msra.mxu0 0
    %1485 = vmatprep.subr.bf16.mxu0 0
    %1486 = vmatpush1.bf16.xpose.msra.mxu0 %v1469
    %1487 = vmatprep.subr.bf16.mxu0 0
    %1488 = vmatpush2.bf16.xpose.msra.mxu0 0
    %1489 = vmatprep.subr.bf16.mxu0 0
    %1490 = vmatpush2.bf16.xpose.msra.mxu0 0
    %1491 = vmatprep.subr.bf16.mxu0 0
    %1492 = vmatpush2.bf16.xpose.msra.mxu0 0
    %1493 = vmatprep.subr.bf16.mxu0 0
    %1494 = vmatpush2.bf16.xpose.msra.mxu0 0
    %1495 = vmatprep.subr.bf16.mxu0 0
    %1496 = vmatpush2.bf16.xpose.msra.mxu0 0
    %1497 = vmatprep.subr.bf16.mxu0 0
    %1498 = vmatpush2.bf16.xpose.msra.mxu0 0
    %1499 = vmatprep.subr.bf16.mxu0 0
    %1500 = vmatpush2.bf16.xpose.msra.mxu0 0
    %1501 = vmatprep.subr.bf16.mxu0 0
    %1502 = vmatpush2.bf16.xpose.msra.mxu0 0
    %1503 = vmatprep.mubr.bf16.mxu0 0
    %1504 = vmatmul.mubr.bf16.gmra.mxu0 %v1466
    %v1505 = vpop.f32.mrf.mxu0
    %v1506 = vadd.f32 0.0, %v1505
    %v1507 = vpop.f32.mrf.mxu0
    %v1508 = vpop.f32.mrf.mxu0
    %v1509 = vadd.f32 0.0, %v1508
    %v1510 = vpop.f32.mrf.mxu0
    %1511 = vdwg.mxu0
    %v1512 = vmul.f32 %v1506, 0.17677669
    %v1513 = vmul.f32 %v1509, 0.17677669
    %v1514 = vadd.f32 %v1512, %v362
    %v1515 = vadd.f32 %v1513, %v363
    %v1516 = vsel %vm528, %v1514, -inf
    %1517 = vmax.xlane.f32.xlu0 %v1516
    %v1518 = vpop.xlane.xlu0 %1517
    %v1519 = vsel %vm528, %v1515, -inf
    %1520 = vmax.xlane.f32.xlu0 %v1519
    %v1521 = vpop.xlane.xlu0 %1520
    %v1522 = vsub.f32 %v1514, %v1518
    %v1523 = vsub.f32 %v1515, %v1521
    %v1524 = vmul.f32 %v1522, 1.442695
    %v1525 = vpow.pop %v1524
    %v1526 = vmul.f32 %v1523, 1.442695
    %v1527 = vpow.pop %v1526
    %v1528 = vsel %vm528, %v1525, 0.0
    %1529 = vadd.xlane.f32.xlu0 %v1528
    %v1530 = vpop.xlane.xlu0 %1529
    %v1531 = vsel %vm528, %v1527, 0.0
    %1532 = vadd.xlane.f32.xlu0 %v1531
    %v1533 = vpop.xlane.xlu0 %1532
    %v1534 = vrcp.pop %v1530
    %v1535 = vrcp.pop %v1533
    %v1536 = vmul.f32 %v1525, %v1534
    %v1537 = vmul.f32 %v1527, %v1535
    %v1538 = vpack.c.bf16 %v1537, %v1536
    %1540 = vrot.lane.b32.xlu0 %v1339, 96
    %v1541 = vpop.permute.xlu0 %1540
    %v1544 = vsel %vm528, %v1538, 0
    %1546 = vmatprep.subr.bf16.mxu0 0
    %1547 = vmatpush1.bf16.msra.mxu0 0
    %1548 = vmatprep.subr.bf16.mxu0 0
    %1549 = vmatpush1.bf16.msra.mxu0 0
    %1550 = vmatprep.subr.bf16.mxu0 0
    %1551 = vmatpush1.bf16.msra.mxu0 0
    %1552 = vmatprep.subr.bf16.mxu0 0
    %1553 = vmatpush1.bf16.msra.mxu0 0
    %1554 = vmatprep.subr.bf16.mxu0 0
    %1555 = vmatpush1.bf16.msra.mxu0 0
    %1556 = vmatprep.subr.bf16.mxu0 0
    %1557 = vmatpush1.bf16.msra.mxu0 0
    %1558 = vmatprep.subr.bf16.mxu0 0
    %1559 = vmatpush1.bf16.msra.mxu0 0
    %1560 = vmatprep.subr.bf16.mxu0 0
    %1561 = vmatpush1.bf16.msra.mxu0 %v1541
    %1562 = vmatprep.subr.bf16.mxu0 0
    %1563 = vmatpush2.bf16.msra.mxu0 0
    %1564 = vmatprep.subr.bf16.mxu0 0
    %1565 = vmatpush2.bf16.msra.mxu0 0
    %1566 = vmatprep.subr.bf16.mxu0 0
    %1567 = vmatpush2.bf16.msra.mxu0 0
    %1568 = vmatprep.subr.bf16.mxu0 0
    %1569 = vmatpush2.bf16.msra.mxu0 0
    %1570 = vmatprep.subr.bf16.mxu0 0
    %1571 = vmatpush2.bf16.msra.mxu0 0
    %1572 = vmatprep.subr.bf16.mxu0 0
    %1573 = vmatpush2.bf16.msra.mxu0 0
    %1574 = vmatprep.subr.bf16.mxu0 0
    %1575 = vmatpush2.bf16.msra.mxu0 0
    %1576 = vmatprep.subr.bf16.mxu0 0
    %1577 = vmatpush2.bf16.msra.mxu0 0
    %1578 = vmatprep.mubr.bf16.mxu0 0
    %1579 = vmatmul.mubr.bf16.gmra.mxu0 %v1544
    %v1580 = vpop.f32.mrf.mxu0
    %v1581 = vadd.f32 0.0, %v1580
    %v1582 = vpop.f32.mrf.mxu0
    %v1583 = vpop.f32.mrf.mxu0
    %v1584 = vadd.f32 0.0, %v1583
    %v1585 = vpop.f32.mrf.mxu0
    %1586 = vdwg.mxu0
    %1589 = vrot.lane.b32.xlu0 %v1581, 32
    %v1590 = vpop.permute.xlu0 %1589
    %1591 = vrot.lane.b32.xlu0 %v1584, 32
    %v1592 = vpop.permute.xlu0 %1591
    %v1595 = vsel %vm476, %v1455, %v1590
    %v1596 = vsel %vm476, %v1458, %v1592
    %v1597 = vpack.c.bf16 %v1596, %v1595
    %s1598 = scalar_lea.vmem %s15, 32
    %v1599 = vld [vmem:[%s1598] sm:$0xf]
    %v1600 = vld [vmem:[%s1598 + $0x4] sm:$0xf]
    %v1601 = vld [vmem:[%s1598 + $0x8] sm:$0xf]
    %v1602 = vld [vmem:[%s1598 + $0xc] sm:$0xf]
    %v1603 = vld [vmem:[%s1598 + $0x10] sm:$0xf]
    %v1604 = vld [vmem:[%s1598 + $0x14] sm:$0xf]
    %v1605 = vld [vmem:[%s1598 + $0x18] sm:$0xf]
    %v1606 = vld [vmem:[%s1598 + $0x1c] sm:$0xf]
    %s1607 = scalar_lea.vmem %s17, 1
    %v1608 = vld [vmem:[%s1607] sm:$0x1]
    %v1610 = vlaneseq
    %v1611 = vshrl.u32 %v1610, 7
    %v1612 = vsub.s32 0, %v1611
    %v1613 = vrot.slane %v1608, %v1612
    %v1623 = vunpack.c.l.b16 %v1599
    %v1624 = vunpack.c.l.b16 %v1600
    %v1625 = vunpack.c.l.b16 %v1601
    %v1626 = vunpack.c.l.b16 %v1602
    %v1627 = vunpack.c.l.b16 %v1603
    %v1628 = vunpack.c.l.b16 %v1604
    %v1629 = vunpack.c.l.b16 %v1605
    %v1630 = vunpack.c.l.b16 %v1606
    %v1631 = vpack.c.b16 %v1624, %v1623
    %v1632 = vpack.c.b16 %v1626, %v1625
    %v1633 = vpack.c.b16 %v1628, %v1627
    %v1634 = vpack.c.b16 %v1630, %v1629
    %v1640 = vsel %vm318, %v1597, 0
    %1642 = vmatprep.subr.bf16.mxu0 0
    %1643 = vmatpush1.bf16.msra.mxu0 0
    %1644 = vmatprep.subr.bf16.mxu0 0
    %1645 = vmatpush1.bf16.msra.mxu0 0
    %1646 = vmatprep.subr.bf16.mxu0 0
    %1647 = vmatpush1.bf16.msra.mxu0 0
    %1648 = vmatprep.subr.bf16.mxu0 0
    %1649 = vmatpush1.bf16.msra.mxu0 0
    %1650 = vmatprep.subr.bf16.mxu0 0
    %1651 = vmatpush1.bf16.msra.mxu0 %v1634
    %1652 = vmatprep.subr.bf16.mxu0 0
    %1653 = vmatpush1.bf16.msra.mxu0 %v1633
    %1654 = vmatprep.subr.bf16.mxu0 0
    %1655 = vmatpush1.bf16.msra.mxu0 %v1632
    %1656 = vmatprep.subr.bf16.mxu0 0
    %1657 = vmatpush1.bf16.msra.mxu0 %v1631
    %1658 = vmatprep.subr.bf16.mxu0 0
    %1659 = vmatpush2.bf16.msra.mxu0 0
    %1660 = vmatprep.subr.bf16.mxu0 0
    %1661 = vmatpush2.bf16.msra.mxu0 0
    %1662 = vmatprep.subr.bf16.mxu0 0
    %1663 = vmatpush2.bf16.msra.mxu0 0
    %1664 = vmatprep.subr.bf16.mxu0 0
    %1665 = vmatpush2.bf16.msra.mxu0 0
    %1666 = vmatprep.subr.bf16.mxu0 0
    %1667 = vmatpush2.bf16.msra.mxu0 0
    %1668 = vmatprep.subr.bf16.mxu0 0
    %1669 = vmatpush2.bf16.msra.mxu0 0
    %1670 = vmatprep.subr.bf16.mxu0 0
    %1671 = vmatpush2.bf16.msra.mxu0 0
    %1672 = vmatprep.subr.bf16.mxu0 0
    %1673 = vmatpush2.bf16.msra.mxu0 0
    %1674 = vmatprep.mubr.bf16.mxu0 0
    %1675 = vmatmul.mubr.bf16.gmra.mxu0 %v1640
    %v1676 = vpop.f32.mrf.mxu0
    %v1677 = vadd.f32 %v1613, %v1676
    %v1678 = vpop.f32.mrf.mxu0
    %v1679 = vpop.f32.mrf.mxu0
    %v1680 = vadd.f32 %v1613, %v1679
    %v1681 = vpop.f32.mrf.mxu0
    %1682 = vdwg.mxu0
    %v1683 = vadd.f32 %v1677, %v1227
    %v1684 = vadd.f32 %v1680, %v1228
    %s1685 = scalar_lea.vmem [#allocation12], 1
    %v1686 = vld [vmem:[%s1685] sm:$0x1]
    %s1687 = scalar_lea.vmem [#allocation13], 1
    %v1688 = vld [vmem:[%s1687] sm:$0x1]
    %v1689 = vsel %vm318, %v1683, 0.0
    %1690 = vadd.xlane.f32.xlu0 %v1689
    %v1691 = vpop.xlane.xlu0 %1690
    %v1692 = vsel %vm318, %v1684, 0.0
    %1693 = vadd.xlane.f32.xlu0 %v1692
    %v1694 = vpop.xlane.xlu0 %1693
    %v1695 = vmul.f32 %v1691, %v325
    %v1696 = vmul.f32 %v1694, %v325
    %v1697 = vsub.f32 %v1683, %v1695
    %v1698 = vsub.f32 %v1684, %v1696
    %v1699 = vmul.f32 %v1697, %v1697
    %v1700 = vmul.f32 %v1698, %v1698
    %v1701 = vsel %vm318, %v1699, 0.0
    %1702 = vadd.xlane.f32.xlu0 %v1701
    %v1703 = vpop.xlane.xlu0 %1702
    %v1704 = vsel %vm318, %v1700, 0.0
    %1705 = vadd.xlane.f32.xlu0 %v1704
    %v1706 = vpop.xlane.xlu0 %1705
    %v1707 = vmul.f32 %v1703, %v325
    %v1708 = vmul.f32 %v1706, %v325
    %v1709 = vadd.f32 %v1707, 1e-12
    %v1710 = vadd.f32 %v1708, 1e-12
    %v1711 = vrsqrt.pop %v1709
    %v1712 = vrsqrt.pop %v1710
    %v1713 = vmul.f32 %v1697, %v1711
    %v1714 = vmul.f32 %v1698, %v1712
    %v1716 = vlaneseq
    %v1717 = vshrl.u32 %v1716, 7
    %v1718 = vsub.s32 0, %v1717
    %v1719 = vrot.slane %v1686, %v1718
    %v1721 = vmul.f32 %v1713, %v1719
    %v1722 = vmul.f32 %v1714, %v1719
    %v1724 = vlaneseq
    %v1725 = vshrl.u32 %v1724, 7
    %v1726 = vsub.s32 0, %v1725
    %v1727 = vrot.slane %v1688, %v1726
    %v1729 = vadd.f32 %v1721, %v1727
    %v1730 = vadd.f32 %v1722, %v1727
    %v1731 = vpack.c.bf16 %v1730, %v1729
    %s1732 = scalar_lea.vmem %s23, 64
    %v1733 = vld [vmem:[%s1732] sm:$0xff]
    %v1734 = vld [vmem:[%s1732 + $0x8] sm:$0xff]
    %v1735 = vld [vmem:[%s1732 + $0x10] sm:$0xff]
    %v1736 = vld [vmem:[%s1732 + $0x18] sm:$0xff]
    %v1737 = vld [vmem:[%s1732 + $0x20] sm:$0xff]
    %v1738 = vld [vmem:[%s1732 + $0x28] sm:$0xff]
    %v1739 = vld [vmem:[%s1732 + $0x30] sm:$0xff]
    %v1740 = vld [vmem:[%s1732 + $0x38] sm:$0xff]
    %s1741 = scalar_lea.vmem [#allocation15], 2
    %v1742 = vld [vmem:[%s1741] sm:$0x3]
    %v1744 = vlaneseq
    %v1745 = vshrl.u32 %v1744, 7
    %v1746 = vsub.s32 0, %v1745
    %v1747 = vrot.slane %v1742, %v1746
    %v1748 = vlaneseq
    %v1749 = vshrl.u32 %v1748, 7
    %v1750 = vsub.s32 1, %v1749
    %v1751 = vrot.slane %v1742, %v1750
    %v1762 = vunpack.c.l.b16 %v1733
    %v1763 = vunpack.c.h.b16 %v1733
    %v1764 = vunpack.c.l.b16 %v1734
    %v1765 = vunpack.c.h.b16 %v1734
    %v1766 = vunpack.c.l.b16 %v1735
    %v1767 = vunpack.c.h.b16 %v1735
    %v1768 = vunpack.c.l.b16 %v1736
    %v1769 = vunpack.c.h.b16 %v1736
    %v1770 = vunpack.c.l.b16 %v1737
    %v1771 = vunpack.c.h.b16 %v1737
    %v1772 = vunpack.c.l.b16 %v1738
    %v1773 = vunpack.c.h.b16 %v1738
    %v1774 = vunpack.c.l.b16 %v1739
    %v1775 = vunpack.c.h.b16 %v1739
    %v1776 = vunpack.c.l.b16 %v1740
    %v1777 = vunpack.c.h.b16 %v1740
    %v1778 = vpack.c.b16 %v1764, %v1762
    %v1779 = vpack.c.b16 %v1765, %v1763
    %v1780 = vpack.c.b16 %v1768, %v1766
    %v1781 = vpack.c.b16 %v1769, %v1767
    %v1782 = vpack.c.b16 %v1772, %v1770
    %v1783 = vpack.c.b16 %v1773, %v1771
    %v1784 = vpack.c.b16 %v1776, %v1774
    %v1785 = vpack.c.b16 %v1777, %v1775
    %v1795 = vsel %vm318, %v1731, 0
    %1797 = vmatprep.subr.bf16.mxu0 0
    %1798 = vmatpush1.bf16.msra.mxu0 0
    %1799 = vmatprep.subr.bf16.mxu0 0
    %1800 = vmatpush1.bf16.msra.mxu0 0
    %1801 = vmatprep.subr.bf16.mxu0 0
    %1802 = vmatpush1.bf16.msra.mxu0 0
    %1803 = vmatprep.subr.bf16.mxu0 0
    %1804 = vmatpush1.bf16.msra.mxu0 0
    %1805 = vmatprep.subr.bf16.mxu0 %v1785
    %1806 = vmatpush1.bf16.msra.mxu0 %v1784
    %1807 = vmatprep.subr.bf16.mxu0 %v1783
    %1808 = vmatpush1.bf16.msra.mxu0 %v1782
    %1809 = vmatprep.subr.bf16.mxu0 %v1781
    %1810 = vmatpush1.bf16.msra.mxu0 %v1780
    %1811 = vmatprep.subr.bf16.mxu0 %v1779
    %1812 = vmatpush1.bf16.msra.mxu0 %v1778
    %1813 = vmatprep.subr.bf16.mxu0 0
    %1814 = vmatpush2.bf16.msra.mxu0 0
    %1815 = vmatprep.subr.bf16.mxu0 0
    %1816 = vmatpush2.bf16.msra.mxu0 0
    %1817 = vmatprep.subr.bf16.mxu0 0
    %1818 = vmatpush2.bf16.msra.mxu0 0
    %1819 = vmatprep.subr.bf16.mxu0 0
    %1820 = vmatpush2.bf16.msra.mxu0 0
    %1821 = vmatprep.subr.bf16.mxu0 0
    %1822 = vmatpush2.bf16.msra.mxu0 0
    %1823 = vmatprep.subr.bf16.mxu0 0
    %1824 = vmatpush2.bf16.msra.mxu0 0
    %1825 = vmatprep.subr.bf16.mxu0 0
    %1826 = vmatpush2.bf16.msra.mxu0 0
    %1827 = vmatprep.subr.bf16.mxu0 0
    %1828 = vmatpush2.bf16.msra.mxu0 0
    %1829 = vmatprep.mubr.bf16.mxu0 0
    %1830 = vmatmul.mubr.bf16.gmra.mxu0 %v1795
    %v1831 = vpop.f32.mrf.mxu0
    %v1832 = vadd.f32 %v1747, %v1831
    %v1833 = vpop.f32.mrf.mxu0
    %v1834 = vadd.f32 %v1751, %v1833
    %v1835 = vpop.f32.mrf.mxu0
    %v1836 = vadd.f32 %v1747, %v1835
    %v1837 = vpop.f32.mrf.mxu0
    %v1838 = vadd.f32 %v1751, %v1837
    %1839 = vdwg.mxu0
    %v1840 = vmul.f32 %v1832, %v1832
    %v1841 = vmul.f32 %v1834, %v1834
    %v1842 = vmul.f32 %v1836, %v1836
    %v1843 = vmul.f32 %v1838, %v1838
    %v1844 = vmul.f32 %v1832, %v1840
    %v1845 = vmul.f32 %v1834, %v1841
    %v1846 = vmul.f32 %v1836, %v1842
    %v1847 = vmul.f32 %v1838, %v1843
    %v1848 = vmul.f32 %v1844, 0.044715
    %v1849 = vmul.f32 %v1845, 0.044715
    %v1850 = vmul.f32 %v1846, 0.044715
    %v1851 = vmul.f32 %v1847, 0.044715
    %v1852 = vadd.f32 %v1832, %v1848
    %v1853 = vadd.f32 %v1834, %v1849
    %v1854 = vadd.f32 %v1836, %v1850
    %v1855 = vadd.f32 %v1838, %v1851
    %v1856 = vmul.f32 %v1852, 0.7978846
    %v1857 = vmul.f32 %v1853, 0.7978846
    %v1858 = vmul.f32 %v1854, 0.7978846
    %v1859 = vmul.f32 %v1855, 0.7978846
    %v1860 = vtanh.pop %v1856
    %v1861 = vtanh.pop %v1857
    %v1862 = vtanh.pop %v1858
    %v1863 = vtanh.pop %v1859
    %v1864 = vadd.f32 %v1860, 1.0
    %v1865 = vadd.f32 %v1861, 1.0
    %v1866 = vadd.f32 %v1862, 1.0
    %v1867 = vadd.f32 %v1863, 1.0
    %v1868 = vmul.f32 %v1864, 0.5
    %v1869 = vmul.f32 %v1865, 0.5
    %v1870 = vmul.f32 %v1866, 0.5
    %v1871 = vmul.f32 %v1867, 0.5
    %v1872 = vmul.f32 %v1832, %v1868
    %v1873 = vmul.f32 %v1834, %v1869
    %v1874 = vmul.f32 %v1836, %v1870
    %v1875 = vmul.f32 %v1838, %v1871
    %v1876 = vpack.c.bf16 %v1874, %v1872
    %v1877 = vpack.c.bf16 %v1875, %v1873
    %s1878 = scalar_lea.vmem %s27, 128
    %v1879 = vld [vmem:[%s1878] sm:$0xf]
    %v1880 = vld [vmem:[%s1878 + $0x4] sm:$0xf]
    %v1881 = vld [vmem:[%s1878 + $0x8] sm:$0xf]
    %v1882 = vld [vmem:[%s1878 + $0xc] sm:$0xf]
    %v1883 = vld [vmem:[%s1878 + $0x10] sm:$0xf]
    %v1884 = vld [vmem:[%s1878 + $0x14] sm:$0xf]
    %v1885 = vld [vmem:[%s1878 + $0x18] sm:$0xf]
    %v1886 = vld [vmem:[%s1878 + $0x1c] sm:$0xf]
    %v1887 = vld [vmem:[%s1878 + $0x20] sm:$0xf]
    %v1888 = vld [vmem:[%s1878 + $0x24] sm:$0xf]
    %v1889 = vld [vmem:[%s1878 + $0x28] sm:$0xf]
    %v1890 = vld [vmem:[%s1878 + $0x2c] sm:$0xf]
    %v1891 = vld [vmem:[%s1878 + $0x30] sm:$0xf]
    %v1892 = vld [vmem:[%s1878 + $0x34] sm:$0xf]
    %v1893 = vld [vmem:[%s1878 + $0x38] sm:$0xf]
    %v1894 = vld [vmem:[%s1878 + $0x3c] sm:$0xf]
    %v1895 = vld [vmem:[%s1878 + $0x40] sm:$0xf]
    %v1896 = vld [vmem:[%s1878 + $0x44] sm:$0xf]
    %v1897 = vld [vmem:[%s1878 + $0x48] sm:$0xf]
    %v1898 = vld [vmem:[%s1878 + $0x4c] sm:$0xf]
    %v1899 = vld [vmem:[%s1878 + $0x50] sm:$0xf]
    %v1900 = vld [vmem:[%s1878 + $0x54] sm:$0xf]
    %v1901 = vld [vmem:[%s1878 + $0x58] sm:$0xf]
    %v1902 = vld [vmem:[%s1878 + $0x5c] sm:$0xf]
    %v1903 = vld [vmem:[%s1878 + $0x60] sm:$0xf]
    %v1904 = vld [vmem:[%s1878 + $0x64] sm:$0xf]
    %v1905 = vld [vmem:[%s1878 + $0x68] sm:$0xf]
    %v1906 = vld [vmem:[%s1878 + $0x6c] sm:$0xf]
    %v1907 = vld [vmem:[%s1878 + $0x70] sm:$0xf]
    %v1908 = vld [vmem:[%s1878 + $0x74] sm:$0xf]
    %v1909 = vld [vmem:[%s1878 + $0x78] sm:$0xf]
    %v1910 = vld [vmem:[%s1878 + $0x7c] sm:$0xf]
    %s1911 = scalar_lea.vmem [#allocation16], 1
    %v1912 = vld [vmem:[%s1911] sm:$0x1]
    %v1914 = vlaneseq
    %v1915 = vshrl.u32 %v1914, 7
    %v1916 = vsub.s32 0, %v1915
    %v1917 = vrot.slane %v1912, %v1916
    %v1951 = vunpack.c.l.b16 %v1879
    %v1952 = vunpack.c.l.b16 %v1880
    %v1953 = vunpack.c.l.b16 %v1881
    %v1954 = vunpack.c.l.b16 %v1882
    %v1955 = vunpack.c.l.b16 %v1883
    %v1956 = vunpack.c.l.b16 %v1884
    %v1957 = vunpack.c.l.b16 %v1885
    %v1958 = vunpack.c.l.b16 %v1886
    %v1959 = vunpack.c.l.b16 %v1887
    %v1960 = vunpack.c.l.b16 %v1888
    %v1961 = vunpack.c.l.b16 %v1889
    %v1962 = vunpack.c.l.b16 %v1890
    %v1963 = vunpack.c.l.b16 %v1891
    %v1964 = vunpack.c.l.b16 %v1892
    %v1965 = vunpack.c.l.b16 %v1893
    %v1966 = vunpack.c.l.b16 %v1894
    %v1967 = vunpack.c.l.b16 %v1895
    %v1968 = vunpack.c.l.b16 %v1896
    %v1969 = vunpack.c.l.b16 %v1897
    %v1970 = vunpack.c.l.b16 %v1898
    %v1971 = vunpack.c.l.b16 %v1899
    %v1972 = vunpack.c.l.b16 %v1900
    %v1973 = vunpack.c.l.b16 %v1901
    %v1974 = vunpack.c.l.b16 %v1902
    %v1975 = vunpack.c.l.b16 %v1903
    %v1976 = vunpack.c.l.b16 %v1904
    %v1977 = vunpack.c.l.b16 %v1905
    %v1978 = vunpack.c.l.b16 %v1906
    %v1979 = vunpack.c.l.b16 %v1907
    %v1980 = vunpack.c.l.b16 %v1908
    %v1981 = vunpack.c.l.b16 %v1909
    %v1982 = vunpack.c.l.b16 %v1910
    %v1983 = vpack.c.b16 %v1952, %v1951
    %v1984 = vpack.c.b16 %v1954, %v1953
    %v1985 = vpack.c.b16 %v1956, %v1955
    %v1986 = vpack.c.b16 %v1958, %v1957
    %v1987 = vpack.c.b16 %v1960, %v1959
    %v1988 = vpack.c.b16 %v1962, %v1961
    %v1989 = vpack.c.b16 %v1964, %v1963
    %v1990 = vpack.c.b16 %v1966, %v1965
    %v1991 = vpack.c.b16 %v1968, %v1967
    %v1992 = vpack.c.b16 %v1970, %v1969
    %v1993 = vpack.c.b16 %v1972, %v1971
    %v1994 = vpack.c.b16 %v1974, %v1973
    %v1995 = vpack.c.b16 %v1976, %v1975
    %v1996 = vpack.c.b16 %v1978, %v1977
    %v1997 = vpack.c.b16 %v1980, %v1979
    %v1998 = vpack.c.b16 %v1982, %v1981
    %2015 = vmatprep.subr.bf16.mxu0 0
    %2016 = vmatpush1.bf16.msra.mxu0 %v1990
    %2017 = vmatprep.subr.bf16.mxu0 0
    %2018 = vmatpush1.bf16.msra.mxu0 %v1989
    %2019 = vmatprep.subr.bf16.mxu0 0
    %2020 = vmatpush1.bf16.msra.mxu0 %v1988
    %2021 = vmatprep.subr.bf16.mxu0 0
    %2022 = vmatpush1.bf16.msra.mxu0 %v1987
    %2023 = vmatprep.subr.bf16.mxu0 0
    %2024 = vmatpush1.bf16.msra.mxu0 %v1986
    %2025 = vmatprep.subr.bf16.mxu0 0
    %2026 = vmatpush1.bf16.msra.mxu0 %v1985
    %2027 = vmatprep.subr.bf16.mxu0 0
    %2028 = vmatpush1.bf16.msra.mxu0 %v1984
    %2029 = vmatprep.subr.bf16.mxu0 0
    %2030 = vmatpush1.bf16.msra.mxu0 %v1983
    %2031 = vmatprep.subr.bf16.mxu0 0
    %2032 = vmatpush2.bf16.msra.mxu0 %v1998
    %2033 = vmatprep.subr.bf16.mxu0 0
    %2034 = vmatpush2.bf16.msra.mxu0 %v1997
    %2035 = vmatprep.subr.bf16.mxu0 0
    %2036 = vmatpush2.bf16.msra.mxu0 %v1996
    %2037 = vmatprep.subr.bf16.mxu0 0
    %2038 = vmatpush2.bf16.msra.mxu0 %v1995
    %2039 = vmatprep.subr.bf16.mxu0 0
    %2040 = vmatpush2.bf16.msra.mxu0 %v1994
    %2041 = vmatprep.subr.bf16.mxu0 0
    %2042 = vmatpush2.bf16.msra.mxu0 %v1993
    %2043 = vmatprep.subr.bf16.mxu0 0
    %2044 = vmatpush2.bf16.msra.mxu0 %v1992
    %2045 = vmatprep.subr.bf16.mxu0 0
    %2046 = vmatpush2.bf16.msra.mxu0 %v1991
    %2047 = vmatprep.mubr.bf16.mxu0 %v1877
    %2048 = vmatmul.mubr.bf16.gmra.mxu0 %v1876
    %v2049 = vpop.f32.mrf.mxu0
    %v2050 = vadd.f32 %v1917, %v2049
    %v2051 = vpop.f32.mrf.mxu0
    %v2052 = vpop.f32.mrf.mxu0
    %v2053 = vadd.f32 %v1917, %v2052
    %v2054 = vpop.f32.mrf.mxu0
    %2055 = vdwg.mxu0
    %v2056 = vadd.f32 %v2050, %v1729
    %v2057 = vadd.f32 %v2053, %v1730
    %s2058 = scalar_lea.vmem %s31, 1
    %v2059 = vld [vmem:[%s2058] sm:$0x1]
    %s2060 = scalar_lea.vmem [#allocation18], 1
    %v2061 = vld [vmem:[%s2060] sm:$0x1]
    %v2062 = vsel %vm318, %v2056, 0.0
    %2063 = vadd.xlane.f32.xlu0 %v2062
    %v2064 = vpop.xlane.xlu0 %2063
    %v2065 = vsel %vm318, %v2057, 0.0
    %2066 = vadd.xlane.f32.xlu0 %v2065
    %v2067 = vpop.xlane.xlu0 %2066
    %v2068 = vmul.f32 %v2064, %v325
    %v2069 = vmul.f32 %v2067, %v325
    %v2070 = vsub.f32 %v2056, %v2068
    %v2071 = vsub.f32 %v2057, %v2069
    %v2072 = vmul.f32 %v2070, %v2070
    %v2073 = vmul.f32 %v2071, %v2071
    %v2074 = vsel %vm318, %v2072, 0.0
    %2075 = vadd.xlane.f32.xlu0 %v2074
    %v2076 = vpop.xlane.xlu0 %2075
    %v2077 = vsel %vm318, %v2073, 0.0
    %2078 = vadd.xlane.f32.xlu0 %v2077
    %v2079 = vpop.xlane.xlu0 %2078
    %v2080 = vmul.f32 %v2076, %v325
    %v2081 = vmul.f32 %v2079, %v325
    %v2082 = vadd.f32 %v2080, 1e-12
    %v2083 = vadd.f32 %v2081, 1e-12
    %v2084 = vrsqrt.pop %v2082
    %v2085 = vrsqrt.pop %v2083
    %v2086 = vmul.f32 %v2070, %v2084
    %v2087 = vmul.f32 %v2071, %v2085
    %v2089 = vlaneseq
    %v2090 = vshrl.u32 %v2089, 7
    %v2091 = vsub.s32 0, %v2090
    %v2092 = vrot.slane %v2059, %v2091
    %v2094 = vmul.f32 %v2086, %v2092
    %v2095 = vmul.f32 %v2087, %v2092
    %v2097 = vlaneseq
    %v2098 = vshrl.u32 %v2097, 7
    %v2099 = vsub.s32 0, %v2098
    %v2100 = vrot.slane %v2061, %v2099
    %v2102 = vadd.f32 %v2094, %v2100
    %v2103 = vadd.f32 %v2095, %v2100
    %v2104 = vpack.c.bf16 %v2103, %v2102
    %v2105 = vld [vmem:[#allocation19] sm:$0xff]
    %v2106 = vld [vmem:[#allocation19 + $0x8] sm:$0xff]
    %v2107 = vld [vmem:[#allocation19 + $0x10] sm:$0xff]
    %v2108 = vld [vmem:[#allocation19 + $0x18] sm:$0xff]
    %v2109 = vld [vmem:[#allocation19 + $0x20] sm:$0xff]
    %v2110 = vld [vmem:[#allocation19 + $0x28] sm:$0xff]
    %v2111 = vld [vmem:[#allocation19 + $0x30] sm:$0xff]
    %v2112 = vld [vmem:[#allocation19 + $0x38] sm:$0xff]
    %v2113 = vld [vmem:[#allocation19 + $0x40] sm:$0xff]
    %v2114 = vld [vmem:[#allocation19 + $0x48] sm:$0xff]
    %v2115 = vld [vmem:[#allocation19 + $0x50] sm:$0xff]
    %v2116 = vld [vmem:[#allocation19 + $0x58] sm:$0xff]
    %v2117 = vld [vmem:[#allocation19 + $0x60] sm:$0xff]
    %v2118 = vld [vmem:[#allocation19 + $0x68] sm:$0xff]
    %v2119 = vld [vmem:[#allocation19 + $0x70] sm:$0xff]
    %v2120 = vld [vmem:[#allocation19 + $0x78] sm:$0xff]
    %v2121 = vld [vmem:[#allocation21] sm:$0xf]
    %v2123 = vlaneseq
    %v2124 = vshrl.u32 %v2123, 7
    %v2125 = vsub.s32 0, %v2124
    %v2126 = vrot.slane %v2121, %v2125
    %v2127 = vlaneseq
    %v2128 = vshrl.u32 %v2127, 7
    %v2129 = vsub.s32 1, %v2128
    %v2130 = vrot.slane %v2121, %v2129
    %v2131 = vlaneseq
    %v2132 = vshrl.u32 %v2131, 7
    %v2133 = vsub.s32 2, %v2132
    %v2134 = vrot.slane %v2121, %v2133
    %v2135 = vlaneseq
    %v2136 = vshrl.u32 %v2135, 7
    %v2137 = vsub.s32 3, %v2136
    %v2138 = vrot.slane %v2121, %v2137
    %v2159 = vunpack.c.l.b16 %v2105
    %v2160 = vunpack.c.h.b16 %v2105
    %v2161 = vunpack.c.l.b16 %v2106
    %v2162 = vunpack.c.h.b16 %v2106
    %v2163 = vunpack.c.l.b16 %v2107
    %v2164 = vunpack.c.h.b16 %v2107
    %v2165 = vunpack.c.l.b16 %v2108
    %v2166 = vunpack.c.h.b16 %v2108
    %v2167 = vunpack.c.l.b16 %v2109
    %v2168 = vunpack.c.h.b16 %v2109
    %v2169 = vunpack.c.l.b16 %v2110
    %v2170 = vunpack.c.h.b16 %v2110
    %v2171 = vunpack.c.l.b16 %v2111
    %v2172 = vunpack.c.h.b16 %v2111
    %v2173 = vunpack.c.l.b16 %v2112
    %v2174 = vunpack.c.h.b16 %v2112
    %v2175 = vunpack.c.l.b16 %v2113
    %v2176 = vunpack.c.h.b16 %v2113
    %v2177 = vunpack.c.l.b16 %v2114
    %v2178 = vunpack.c.h.b16 %v2114
    %v2179 = vunpack.c.l.b16 %v2115
    %v2180 = vunpack.c.h.b16 %v2115
    %v2181 = vunpack.c.l.b16 %v2116
    %v2182 = vunpack.c.h.b16 %v2116
    %v2183 = vunpack.c.l.b16 %v2117
    %v2184 = vunpack.c.h.b16 %v2117
    %v2185 = vunpack.c.l.b16 %v2118
    %v2186 = vunpack.c.h.b16 %v2118
    %v2187 = vunpack.c.l.b16 %v2119
    %v2188 = vunpack.c.h.b16 %v2119
    %v2189 = vunpack.c.l.b16 %v2120
    %v2190 = vunpack.c.h.b16 %v2120
    %v2191 = vpack.c.b16 %v2163, %v2159
    %v2192 = vpack.c.b16 %v2164, %v2160
    %v2193 = vpack.c.b16 %v2165, %v2161
    %v2194 = vpack.c.b16 %v2166, %v2162
    %v2195 = vpack.c.b16 %v2171, %v2167
    %v2196 = vpack.c.b16 %v2172, %v2168
    %v2197 = vpack.c.b16 %v2173, %v2169
    %v2198 = vpack.c.b16 %v2174, %v2170
    %v2199 = vpack.c.b16 %v2179, %v2175
    %v2200 = vpack.c.b16 %v2180, %v2176
    %v2201 = vpack.c.b16 %v2181, %v2177
    %v2202 = vpack.c.b16 %v2182, %v2178
    %v2203 = vpack.c.b16 %v2187, %v2183
    %v2204 = vpack.c.b16 %v2188, %v2184
    %v2205 = vpack.c.b16 %v2189, %v2185
    %v2206 = vpack.c.b16 %v2190, %v2186
    %v2224 = vsel %vm318, %v2104, 0
    %2226 = vmatprep.subr.bf16.mxu0 0
    %2227 = vmatpush1.bf16.msra.mxu0 0
    %2228 = vmatprep.subr.bf16.mxu0 0
    %2229 = vmatpush1.bf16.msra.mxu0 0
    %2230 = vmatprep.subr.bf16.mxu0 0
    %2231 = vmatpush1.bf16.msra.mxu0 0
    %2232 = vmatprep.subr.bf16.mxu0 0
    %2233 = vmatpush1.bf16.msra.mxu0 0
    %2234 = vmatprep.subr.bf16.mxu0 %v2204
    %2235 = vmatpush1.bf16.msra.mxu0 %v2203
    %2236 = vmatprep.subr.bf16.mxu0 %v2200
    %2237 = vmatpush1.bf16.msra.mxu0 %v2199
    %2238 = vmatprep.subr.bf16.mxu0 %v2196
    %2239 = vmatpush1.bf16.msra.mxu0 %v2195
    %2240 = vmatprep.subr.bf16.mxu0 %v2192
    %2241 = vmatpush1.bf16.msra.mxu0 %v2191
    %2242 = vmatprep.subr.bf16.mxu0 0
    %2243 = vmatpush2.bf16.msra.mxu0 0
    %2244 = vmatprep.subr.bf16.mxu0 0
    %2245 = vmatpush2.bf16.msra.mxu0 0
    %2246 = vmatprep.subr.bf16.mxu0 0
    %2247 = vmatpush2.bf16.msra.mxu0 0
    %2248 = vmatprep.subr.bf16.mxu0 0
    %2249 = vmatpush2.bf16.msra.mxu0 0
    %2250 = vmatprep.subr.bf16.mxu0 0
    %2251 = vmatpush2.bf16.msra.mxu0 0
    %2252 = vmatprep.subr.bf16.mxu0 0
    %2253 = vmatpush2.bf16.msra.mxu0 0
    %2254 = vmatprep.subr.bf16.mxu0 0
    %2255 = vmatpush2.bf16.msra.mxu0 0
    %2256 = vmatprep.subr.bf16.mxu0 0
    %2257 = vmatpush2.bf16.msra.mxu0 0
    %2258 = vmatprep.mubr.bf16.mxu0 0
    %2259 = vmatmul.mubr.bf16.gmra.mxu0 %v2224
    %v2260 = vpop.f32.mrf.mxu0
    %v2261 = vadd.f32 %v2126, %v2260
    %v2262 = vpop.f32.mrf.mxu0
    %v2263 = vadd.f32 %v2130, %v2262
    %v2264 = vpop.f32.mrf.mxu0
    %v2265 = vadd.f32 %v2126, %v2264
    %v2266 = vpop.f32.mrf.mxu0
    %v2267 = vadd.f32 %v2130, %v2266
    %2268 = vdwg.mxu0
    %2269 = vmatprep.subr.bf16.mxu0 0
    %2270 = vmatpush1.bf16.msra.mxu0 0
    %2271 = vmatprep.subr.bf16.mxu0 0
    %2272 = vmatpush1.bf16.msra.mxu0 0
    %2273 = vmatprep.subr.bf16.mxu0 0
    %2274 = vmatpush1.bf16.msra.mxu0 0
    %2275 = vmatprep.subr.bf16.mxu0 0
    %2276 = vmatpush1.bf16.msra.mxu0 0
    %2277 = vmatprep.subr.bf16.mxu0 %v2206
    %2278 = vmatpush1.bf16.msra.mxu0 %v2205
    %2279 = vmatprep.subr.bf16.mxu0 %v2202
    %2280 = vmatpush1.bf16.msra.mxu0 %v2201
    %2281 = vmatprep.subr.bf16.mxu0 %v2198
    %2282 = vmatpush1.bf16.msra.mxu0 %v2197
    %2283 = vmatprep.subr.bf16.mxu0 %v2194
    %2284 = vmatpush1.bf16.msra.mxu0 %v2193
    %2285 = vmatprep.subr.bf16.mxu0 0
    %2286 = vmatpush2.bf16.msra.mxu0 0
    %2287 = vmatprep.subr.bf16.mxu0 0
    %2288 = vmatpush2.bf16.msra.mxu0 0
    %2289 = vmatprep.subr.bf16.mxu0 0
    %2290 = vmatpush2.bf16.msra.mxu0 0
    %2291 = vmatprep.subr.bf16.mxu0 0
    %2292 = vmatpush2.bf16.msra.mxu0 0
    %2293 = vmatprep.subr.bf16.mxu0 0
    %2294 = vmatpush2.bf16.msra.mxu0 0
    %2295 = vmatprep.subr.bf16.mxu0 0
    %2296 = vmatpush2.bf16.msra.mxu0 0
    %2297 = vmatprep.subr.bf16.mxu0 0
    %2298 = vmatpush2.bf16.msra.mxu0 0
    %2299 = vmatprep.subr.bf16.mxu0 0
    %2300 = vmatpush2.bf16.msra.mxu0 0
    %2301 = vmatprep.mubr.bf16.mxu0 0
    %2302 = vmatmul.mubr.bf16.gmra.mxu0 %v2224
    %v2303 = vpop.f32.mrf.mxu0
    %v2304 = vadd.f32 %v2134, %v2303
    %v2305 = vpop.f32.mrf.mxu0
    %v2306 = vadd.f32 %v2138, %v2305
    %v2307 = vpop.f32.mrf.mxu0
    %v2308 = vadd.f32 %v2134, %v2307
    %v2309 = vpop.f32.mrf.mxu0
    %v2310 = vadd.f32 %v2138, %v2309
    %2311 = vdwg.mxu0
    %2312 = vst [vmem:[#allocation3] sm:$0xff] %v2261
    %2313 = vst [vmem:[#allocation3 + $0x8] sm:$0xff] %v2263
    %2314 = vst [vmem:[#allocation3 + $0x10] sm:$0xff] %v2304
    %2315 = vst [vmem:[#allocation3 + $0x18] sm:$0xff] %v2306
    %2316 = vst [vmem:[#allocation3 + $0x20] sm:$0xff] %v2265
    %2317 = vst [vmem:[#allocation3 + $0x28] sm:$0xff] %v2267
    %2318 = vst [vmem:[#allocation3 + $0x30] sm:$0xff] %v2308
    %2319 = vst [vmem:[#allocation3 + $0x38] sm:$0xff] %v2310
    %v2320 = vld [vmem:[#allocation22] sm:$0xff]
    %v2321 = vld [vmem:[#allocation22 + $0x8] sm:$0xff]
    %v2322 = vld [vmem:[#allocation22 + $0x10] sm:$0xff]
    %v2323 = vld [vmem:[#allocation22 + $0x18] sm:$0xff]
    %v2324 = vld [vmem:[#allocation22 + $0x20] sm:$0xff]
    %v2325 = vld [vmem:[#allocation22 + $0x28] sm:$0xff]
    %v2326 = vld [vmem:[#allocation22 + $0x30] sm:$0xff]
    %v2327 = vld [vmem:[#allocation22 + $0x38] sm:$0xff]
    %v2328 = vld [vmem:[#allocation22 + $0x40] sm:$0xff]
    %v2329 = vld [vmem:[#allocation22 + $0x48] sm:$0xff]
    %v2330 = vld [vmem:[#allocation22 + $0x50] sm:$0xff]
    %v2331 = vld [vmem:[#allocation22 + $0x58] sm:$0xff]
    %v2332 = vld [vmem:[#allocation22 + $0x60] sm:$0xff]
    %v2333 = vld [vmem:[#allocation22 + $0x68] sm:$0xff]
    %v2334 = vld [vmem:[#allocation22 + $0x70] sm:$0xff]
    %v2335 = vld [vmem:[#allocation22 + $0x78] sm:$0xff]
    %v2336 = vld [vmem:[#allocation24] sm:$0xf]
    %v2338 = vlaneseq
    %v2339 = vshrl.u32 %v2338, 7
    %v2340 = vsub.s32 0, %v2339
    %v2341 = vrot.slane %v2336, %v2340
    %v2342 = vlaneseq
    %v2343 = vshrl.u32 %v2342, 7
    %v2344 = vsub.s32 1, %v2343
    %v2345 = vrot.slane %v2336, %v2344
    %v2346 = vlaneseq
    %v2347 = vshrl.u32 %v2346, 7
    %v2348 = vsub.s32 2, %v2347
    %v2349 = vrot.slane %v2336, %v2348
    %v2350 = vlaneseq
    %v2351 = vshrl.u32 %v2350, 7
    %v2352 = vsub.s32 3, %v2351
    %v2353 = vrot.slane %v2336, %v2352
    %v2374 = vunpack.c.l.b16 %v2320
    %v2375 = vunpack.c.h.b16 %v2320
    %v2376 = vunpack.c.l.b16 %v2321
    %v2377 = vunpack.c.h.b16 %v2321
    %v2378 = vunpack.c.l.b16 %v2322
    %v2379 = vunpack.c.h.b16 %v2322
    %v2380 = vunpack.c.l.b16 %v2323
    %v2381 = vunpack.c.h.b16 %v2323
    %v2382 = vunpack.c.l.b16 %v2324
    %v2383 = vunpack.c.h.b16 %v2324
    %v2384 = vunpack.c.l.b16 %v2325
    %v2385 = vunpack.c.h.b16 %v2325
    %v2386 = vunpack.c.l.b16 %v2326
    %v2387 = vunpack.c.h.b16 %v2326
    %v2388 = vunpack.c.l.b16 %v2327
    %v2389 = vunpack.c.h.b16 %v2327
    %v2390 = vunpack.c.l.b16 %v2328
    %v2391 = vunpack.c.h.b16 %v2328
    %v2392 = vunpack.c.l.b16 %v2329
    %v2393 = vunpack.c.h.b16 %v2329
    %v2394 = vunpack.c.l.b16 %v2330
    %v2395 = vunpack.c.h.b16 %v2330
    %v2396 = vunpack.c.l.b16 %v2331
    %v2397 = vunpack.c.h.b16 %v2331
    %v2398 = vunpack.c.l.b16 %v2332
    %v2399 = vunpack.c.h.b16 %v2332
    %v2400 = vunpack.c.l.b16 %v2333
    %v2401 = vunpack.c.h.b16 %v2333
    %v2402 = vunpack.c.l.b16 %v2334
    %v2403 = vunpack.c.h.b16 %v2334
    %v2404 = vunpack.c.l.b16 %v2335
    %v2405 = vunpack.c.h.b16 %v2335
    %v2406 = vpack.c.b16 %v2378, %v2374
    %v2407 = vpack.c.b16 %v2379, %v2375
    %v2408 = vpack.c.b16 %v2380, %v2376
    %v2409 = vpack.c.b16 %v2381, %v2377
    %v2410 = vpack.c.b16 %v2386, %v2382
    %v2411 = vpack.c.b16 %v2387, %v2383
    %v2412 = vpack.c.b16 %v2388, %v2384
    %v2413 = vpack.c.b16 %v2389, %v2385
    %v2414 = vpack.c.b16 %v2394, %v2390
    %v2415 = vpack.c.b16 %v2395, %v2391
    %v2416 = vpack.c.b16 %v2396, %v2392
    %v2417 = vpack.c.b16 %v2397, %v2393
    %v2418 = vpack.c.b16 %v2402, %v2398
    %v2419 = vpack.c.b16 %v2403, %v2399
    %v2420 = vpack.c.b16 %v2404, %v2400
    %v2421 = vpack.c.b16 %v2405, %v2401
    %2438 = vmatprep.subr.bf16.mxu0 0
    %2439 = vmatpush1.bf16.msra.mxu0 0
    %2440 = vmatprep.subr.bf16.mxu0 0
    %2441 = vmatpush1.bf16.msra.mxu0 0
    %2442 = vmatprep.subr.bf16.mxu0 0
    %2443 = vmatpush1.bf16.msra.mxu0 0
    %2444 = vmatprep.subr.bf16.mxu0 0
    %2445 = vmatpush1.bf16.msra.mxu0 0
    %2446 = vmatprep.subr.bf16.mxu0 %v2419
    %2447 = vmatpush1.bf16.msra.mxu0 %v2418
    %2448 = vmatprep.subr.bf16.mxu0 %v2415
    %2449 = vmatpush1.bf16.msra.mxu0 %v2414
    %2450 = vmatprep.subr.bf16.mxu0 %v2411
    %2451 = vmatpush1.bf16.msra.mxu0 %v2410
    %2452 = vmatprep.subr.bf16.mxu0 %v2407
    %2453 = vmatpush1.bf16.msra.mxu0 %v2406
    %2454 = vmatprep.subr.bf16.mxu0 0
    %2455 = vmatpush2.bf16.msra.mxu0 0
    %2456 = vmatprep.subr.bf16.mxu0 0
    %2457 = vmatpush2.bf16.msra.mxu0 0
    %2458 = vmatprep.subr.bf16.mxu0 0
    %2459 = vmatpush2.bf16.msra.mxu0 0
    %2460 = vmatprep.subr.bf16.mxu0 0
    %2461 = vmatpush2.bf16.msra.mxu0 0
    %2462 = vmatprep.subr.bf16.mxu0 0
    %2463 = vmatpush2.bf16.msra.mxu0 0
    %2464 = vmatprep.subr.bf16.mxu0 0
    %2465 = vmatpush2.bf16.msra.mxu0 0
    %2466 = vmatprep.subr.bf16.mxu0 0
    %2467 = vmatpush2.bf16.msra.mxu0 0
    %2468 = vmatprep.subr.bf16.mxu0 0
    %2469 = vmatpush2.bf16.msra.mxu0 0
    %2470 = vmatprep.mubr.bf16.mxu0 0
    %2471 = vmatmul.mubr.bf16.gmra.mxu0 %v2224
    %v2472 = vpop.f32.mrf.mxu0
    %v2473 = vadd.f32 %v2341, %v2472
    %v2474 = vpop.f32.mrf.mxu0
    %v2475 = vadd.f32 %v2345, %v2474
    %v2476 = vpop.f32.mrf.mxu0
    %v2477 = vadd.f32 %v2341, %v2476
    %v2478 = vpop.f32.mrf.mxu0
    %v2479 = vadd.f32 %v2345, %v2478
    %2480 = vdwg.mxu0
    %2481 = vmatprep.subr.bf16.mxu0 0
    %2482 = vmatpush1.bf16.msra.mxu0 0
    %2483 = vmatprep.subr.bf16.mxu0 0
    %2484 = vmatpush1.bf16.msra.mxu0 0
    %2485 = vmatprep.subr.bf16.mxu0 0
    %2486 = vmatpush1.bf16.msra.mxu0 0
    %2487 = vmatprep.subr.bf16.mxu0 0
    %2488 = vmatpush1.bf16.msra.mxu0 0
    %2489 = vmatprep.subr.bf16.mxu0 %v2421
    %2490 = vmatpush1.bf16.msra.mxu0 %v2420
    %2491 = vmatprep.subr.bf16.mxu0 %v2417
    %2492 = vmatpush1.bf16.msra.mxu0 %v2416
    %2493 = vmatprep.subr.bf16.mxu0 %v2413
    %2494 = vmatpush1.bf16.msra.mxu0 %v2412
    %2495 = vmatprep.subr.bf16.mxu0 %v2409
    %2496 = vmatpush1.bf16.msra.mxu0 %v2408
    %2497 = vmatprep.subr.bf16.mxu0 0
    %2498 = vmatpush2.bf16.msra.mxu0 0
    %2499 = vmatprep.subr.bf16.mxu0 0
    %2500 = vmatpush2.bf16.msra.mxu0 0
    %2501 = vmatprep.subr.bf16.mxu0 0
    %2502 = vmatpush2.bf16.msra.mxu0 0
    %2503 = vmatprep.subr.bf16.mxu0 0
    %2504 = vmatpush2.bf16.msra.mxu0 0
    %2505 = vmatprep.subr.bf16.mxu0 0
    %2506 = vmatpush2.bf16.msra.mxu0 0
    %2507 = vmatprep.subr.bf16.mxu0 0
    %2508 = vmatpush2.bf16.msra.mxu0 0
    %2509 = vmatprep.subr.bf16.mxu0 0
    %2510 = vmatpush2.bf16.msra.mxu0 0
    %2511 = vmatprep.subr.bf16.mxu0 0
    %2512 = vmatpush2.bf16.msra.mxu0 0
    %2513 = vmatprep.mubr.bf16.mxu0 0
    %2514 = vmatmul.mubr.bf16.gmra.mxu0 %v2224
    %v2515 = vpop.f32.mrf.mxu0
    %v2516 = vadd.f32 %v2349, %v2515
    %v2517 = vpop.f32.mrf.mxu0
    %v2518 = vadd.f32 %v2353, %v2517
    %v2519 = vpop.f32.mrf.mxu0
    %v2520 = vadd.f32 %v2349, %v2519
    %v2521 = vpop.f32.mrf.mxu0
    %v2522 = vadd.f32 %v2353, %v2521
    %2523 = vdwg.mxu0
    %2524 = vst [vmem:[#allocation4] sm:$0xff] %v2473
    %2525 = vst [vmem:[#allocation4 + $0x8] sm:$0xff] %v2475
    %2526 = vst [vmem:[#allocation4 + $0x10] sm:$0xff] %v2516
    %2527 = vst [vmem:[#allocation4 + $0x18] sm:$0xff] %v2518
    %2528 = vst [vmem:[#allocation4 + $0x20] sm:$0xff] %v2477
    %2529 = vst [vmem:[#allocation4 + $0x28] sm:$0xff] %v2479
    %2530 = vst [vmem:[#allocation4 + $0x30] sm:$0xff] %v2520
    %2531 = vst [vmem:[#allocation4 + $0x38] sm:$0xff] %v2522
    %v2532 = vld [vmem:[#allocation3] sm:$0x3]
    %v2533 = vld [vmem:[#allocation3 + $0x8] sm:$0x3]
    %v2534 = vld [vmem:[#allocation3 + $0x10] sm:$0x3]
    %v2535 = vld [vmem:[#allocation3 + $0x18] sm:$0x3]
    %v2536 = vld [vmem:[%s37] sm:$0xff]
    %v2537 = vld [vmem:[%s37 + $0x8] sm:$0xff]
    %v2538 = vld [vmem:[%s37 + $0x10] sm:$0xff]
    %v2539 = vld [vmem:[%s37 + $0x18] sm:$0xff]
    %v2540 = vld [vmem:[%s37 + $0x20] sm:$0xff]
    %v2541 = vld [vmem:[%s37 + $0x28] sm:$0xff]
    %v2542 = vld [vmem:[%s37 + $0x30] sm:$0xff]
    %v2543 = vld [vmem:[%s37 + $0x38] sm:$0xff]
    %v2544 = vld [vmem:[%s37 + $0x40] sm:$0xff]
    %v2545 = vld [vmem:[%s37 + $0x48] sm:$0xff]
    %v2546 = vld [vmem:[%s37 + $0x50] sm:$0xff]
    %v2547 = vld [vmem:[%s37 + $0x58] sm:$0xff]
    %v2548 = vld [vmem:[%s37 + $0x60] sm:$0xff]
    %v2549 = vld [vmem:[%s37 + $0x68] sm:$0xff]
    %v2550 = vld [vmem:[%s37 + $0x70] sm:$0xff]
    %v2551 = vld [vmem:[%s37 + $0x78] sm:$0xff]
    %v2552 = vld [vmem:[%s37 + $0x80] sm:$0xff]
    %v2553 = vld [vmem:[%s37 + $0x88] sm:$0xff]
    %v2554 = vld [vmem:[%s37 + $0x90] sm:$0xff]
    %v2555 = vld [vmem:[%s37 + $0x98] sm:$0xff]
    %v2556 = vld [vmem:[%s37 + $0xa0] sm:$0xff]
    %v2557 = vld [vmem:[%s37 + $0xa8] sm:$0xff]
    %v2558 = vld [vmem:[%s37 + $0xb0] sm:$0xff]
    %v2559 = vld [vmem:[%s37 + $0xb8] sm:$0xff]
    %v2560 = vld [vmem:[%s37 + $0xc0] sm:$0xff]
    %v2561 = vld [vmem:[%s37 + $0xc8] sm:$0xff]
    %v2562 = vld [vmem:[%s37 + $0xd0] sm:$0xff]
    %v2563 = vld [vmem:[%s37 + $0xd8] sm:$0xff]
    %v2564 = vld [vmem:[%s37 + $0xe0] sm:$0xff]
    %v2565 = vld [vmem:[%s37 + $0xe8] sm:$0xff]
    %v2566 = vld [vmem:[%s37 + $0xf0] sm:$0xff]
    %v2567 = vld [vmem:[%s37 + $0xf8] sm:$0xff]
    %v2600 = vunpack.c.l.b16 %v2536
    %v2601 = vunpack.c.h.b16 %v2536
    %v2602 = vunpack.c.l.b16 %v2537
    %v2603 = vunpack.c.h.b16 %v2537
    %v2604 = vunpack.c.l.b16 %v2538
    %v2605 = vunpack.c.h.b16 %v2538
    %v2606 = vunpack.c.l.b16 %v2539
    %v2607 = vunpack.c.h.b16 %v2539
    %v2608 = vunpack.c.l.b16 %v2540
    %v2609 = vunpack.c.h.b16 %v2540
    %v2610 = vunpack.c.l.b16 %v2541
    %v2611 = vunpack.c.h.b16 %v2541
    %v2612 = vunpack.c.l.b16 %v2542
    %v2613 = vunpack.c.h.b16 %v2542
    %v2614 = vunpack.c.l.b16 %v2543
    %v2615 = vunpack.c.h.b16 %v2543
    %v2616 = vunpack.c.l.b16 %v2544
    %v2617 = vunpack.c.h.b16 %v2544
    %v2618 = vunpack.c.l.b16 %v2545
    %v2619 = vunpack.c.h.b16 %v2545
    %v2620 = vunpack.c.l.b16 %v2546
    %v2621 = vunpack.c.h.b16 %v2546
    %v2622 = vunpack.c.l.b16 %v2547
    %v2623 = vunpack.c.h.b16 %v2547
    %v2624 = vunpack.c.l.b16 %v2548
    %v2625 = vunpack.c.h.b16 %v2548
    %v2626 = vunpack.c.l.b16 %v2549
    %v2627 = vunpack.c.h.b16 %v2549
    %v2628 = vunpack.c.l.b16 %v2550
    %v2629 = vunpack.c.h.b16 %v2550
    %v2630 = vunpack.c.l.b16 %v2551
    %v2631 = vunpack.c.h.b16 %v2551
    %v2632 = vunpack.c.l.b16 %v2552
    %v2633 = vunpack.c.h.b16 %v2552
    %v2634 = vunpack.c.l.b16 %v2553
    %v2635 = vunpack.c.h.b16 %v2553
    %v2636 = vunpack.c.l.b16 %v2554
    %v2637 = vunpack.c.h.b16 %v2554
    %v2638 = vunpack.c.l.b16 %v2555
    %v2639 = vunpack.c.h.b16 %v2555
    %v2640 = vunpack.c.l.b16 %v2556
    %v2641 = vunpack.c.h.b16 %v2556
    %v2642 = vunpack.c.l.b16 %v2557
    %v2643 = vunpack.c.h.b16 %v2557
    %v2644 = vunpack.c.l.b16 %v2558
    %v2645 = vunpack.c.h.b16 %v2558
    %v2646 = vunpack.c.l.b16 %v2559
    %v2647 = vunpack.c.h.b16 %v2559
    %v2648 = vunpack.c.l.b16 %v2560
    %v2649 = vunpack.c.h.b16 %v2560
    %v2650 = vunpack.c.l.b16 %v2561
    %v2651 = vunpack.c.h.b16 %v2561
    %v2652 = vunpack.c.l.b16 %v2562
    %v2653 = vunpack.c.h.b16 %v2562
    %v2654 = vunpack.c.l.b16 %v2563
    %v2655 = vunpack.c.h.b16 %v2563
    %v2656 = vunpack.c.l.b16 %v2564
    %v2657 = vunpack.c.h.b16 %v2564
    %v2658 = vunpack.c.l.b16 %v2565
    %v2659 = vunpack.c.h.b16 %v2565
    %v2660 = vunpack.c.l.b16 %v2566
    %v2661 = vunpack.c.h.b16 %v2566
    %v2662 = vunpack.c.l.b16 %v2567
    %v2663 = vunpack.c.h.b16 %v2567
    %v2664 = vpack.c.b16 %v2604, %v2600
    %v2665 = vpack.c.b16 %v2605, %v2601
    %v2666 = vpack.c.b16 %v2606, %v2602
    %v2667 = vpack.c.b16 %v2607, %v2603
    %v2668 = vpack.c.b16 %v2612, %v2608
    %v2669 = vpack.c.b16 %v2613, %v2609
    %v2670 = vpack.c.b16 %v2614, %v2610
    %v2671 = vpack.c.b16 %v2615, %v2611
    %v2672 = vpack.c.b16 %v2620, %v2616
    %v2673 = vpack.c.b16 %v2621, %v2617
    %v2674 = vpack.c.b16 %v2622, %v2618
    %v2675 = vpack.c.b16 %v2623, %v2619
    %v2676 = vpack.c.b16 %v2628, %v2624
    %v2677 = vpack.c.b16 %v2629, %v2625
    %v2678 = vpack.c.b16 %v2630, %v2626
    %v2679 = vpack.c.b16 %v2631, %v2627
    %v2680 = vpack.c.b16 %v2636, %v2632
    %v2681 = vpack.c.b16 %v2637, %v2633
    %v2682 = vpack.c.b16 %v2638, %v2634
    %v2683 = vpack.c.b16 %v2639, %v2635
    %v2684 = vpack.c.b16 %v2644, %v2640
    %v2685 = vpack.c.b16 %v2645, %v2641
    %v2686 = vpack.c.b16 %v2646, %v2642
    %v2687 = vpack.c.b16 %v2647, %v2643
    %v2688 = vpack.c.b16 %v2652, %v2648
    %v2689 = vpack.c.b16 %v2653, %v2649
    %v2690 = vpack.c.b16 %v2654, %v2650
    %v2691 = vpack.c.b16 %v2655, %v2651
    %v2692 = vpack.c.b16 %v2660, %v2656
    %v2693 = vpack.c.b16 %v2661, %v2657
    %v2694 = vpack.c.b16 %v2662, %v2658
    %v2695 = vpack.c.b16 %v2663, %v2659
    %2728 = vmatprep.subr.bf16.mxu0 %v2693
    %2729 = vmatpush1.bf16.msra.mxu0 %v2692
    %2730 = vmatprep.subr.bf16.mxu0 %v2689
    %2731 = vmatpush1.bf16.msra.mxu0 %v2688
    %2732 = vmatprep.subr.bf16.mxu0 %v2685
    %2733 = vmatpush1.bf16.msra.mxu0 %v2684
    %2734 = vmatprep.subr.bf16.mxu0 %v2681
    %2735 = vmatpush1.bf16.msra.mxu0 %v2680
    %2736 = vmatprep.subr.bf16.mxu0 %v2677
    %2737 = vmatpush1.bf16.msra.mxu0 %v2676
    %2738 = vmatprep.subr.bf16.mxu0 %v2673
    %2739 = vmatpush1.bf16.msra.mxu0 %v2672
    %2740 = vmatprep.subr.bf16.mxu0 %v2669
    %2741 = vmatpush1.bf16.msra.mxu0 %v2668
    %2742 = vmatprep.subr.bf16.mxu0 %v2665
    %2743 = vmatpush1.bf16.msra.mxu0 %v2664
    %2744 = vmatprep.subr.bf16.mxu0 0
    %2745 = vmatpush2.bf16.msra.mxu0 0
    %2746 = vmatprep.subr.bf16.mxu0 0
    %2747 = vmatpush2.bf16.msra.mxu0 0
    %2748 = vmatprep.subr.bf16.mxu0 0
    %2749 = vmatpush2.bf16.msra.mxu0 0
    %2750 = vmatprep.subr.bf16.mxu0 0
    %2751 = vmatpush2.bf16.msra.mxu0 0
    %2752 = vmatprep.subr.bf16.mxu0 0
    %2753 = vmatpush2.bf16.msra.mxu0 0
    %2754 = vmatprep.subr.bf16.mxu0 0
    %2755 = vmatpush2.bf16.msra.mxu0 0
    %2756 = vmatprep.subr.bf16.mxu0 0
    %2757 = vmatpush2.bf16.msra.mxu0 0
    %2758 = vmatprep.subr.bf16.mxu0 0
    %2759 = vmatpush2.bf16.msra.mxu0 0
    %2760 = vmatprep.mubr.bf16.mxu0 0
    %2761 = vmatmul.mubr.bf16.gmra.mxu0 0
    %v2762 = vpop.f32.mrf.mxu0
    %v2763 = vadd.f32 0.0, %v2762
    %v2764 = vpop.f32.mrf.mxu0
    %v2765 = vadd.f32 0.0, %v2764
    %v2766 = vpop.f32.mrf.mxu0
    %v2767 = vpop.f32.mrf.mxu0
    %2768 = vdwg.mxu0
    %2769 = vmatprep.subr.bf16.mxu0 %v2695
    %2770 = vmatpush1.bf16.msra.mxu0 %v2694
    %2771 = vmatprep.subr.bf16.mxu0 %v2691
    %2772 = vmatpush1.bf16.msra.mxu0 %v2690
    %2773 = vmatprep.subr.bf16.mxu0 %v2687
    %2774 = vmatpush1.bf16.msra.mxu0 %v2686
    %2775 = vmatprep.subr.bf16.mxu0 %v2683
    %2776 = vmatpush1.bf16.msra.mxu0 %v2682
    %2777 = vmatprep.subr.bf16.mxu0 %v2679
    %2778 = vmatpush1.bf16.msra.mxu0 %v2678
    %2779 = vmatprep.subr.bf16.mxu0 %v2675
    %2780 = vmatpush1.bf16.msra.mxu0 %v2674
    %2781 = vmatprep.subr.bf16.mxu0 %v2671
    %2782 = vmatpush1.bf16.msra.mxu0 %v2670
    %2783 = vmatprep.subr.bf16.mxu0 %v2667
    %2784 = vmatpush1.bf16.msra.mxu0 %v2666
    %2785 = vmatprep.subr.bf16.mxu0 0
    %2786 = vmatpush2.bf16.msra.mxu0 0
    %2787 = vmatprep.subr.bf16.mxu0 0
    %2788 = vmatpush2.bf16.msra.mxu0 0
    %2789 = vmatprep.subr.bf16.mxu0 0
    %2790 = vmatpush2.bf16.msra.mxu0 0
    %2791 = vmatprep.subr.bf16.mxu0 0
    %2792 = vmatpush2.bf16.msra.mxu0 0
    %2793 = vmatprep.subr.bf16.mxu0 0
    %2794 = vmatpush2.bf16.msra.mxu0 0
    %2795 = vmatprep.subr.bf16.mxu0 0
    %2796 = vmatpush2.bf16.msra.mxu0 0
    %2797 = vmatprep.subr.bf16.mxu0 0
    %2798 = vmatpush2.bf16.msra.mxu0 0
    %2799 = vmatprep.subr.bf16.mxu0 0
    %2800 = vmatpush2.bf16.msra.mxu0 0
    %2801 = vmatprep.mubr.bf16.mxu0 0
    %2802 = vmatmul.mubr.bf16.gmra.mxu0 0
    %v2803 = vpop.f32.mrf.mxu0
    %v2804 = vadd.f32 0.0, %v2803
    %v2805 = vpop.f32.mrf.mxu0
    %v2806 = vadd.f32 0.0, %v2805
    %v2807 = vpop.f32.mrf.mxu0
    %v2808 = vpop.f32.mrf.mxu0
    %2809 = vdwg.mxu0
    %v2810 = vadd.f32 %v2532, %v2763
    %v2811 = vadd.f32 %v2533, %v2765
    %v2812 = vadd.f32 %v2534, %v2804
    %v2813 = vadd.f32 %v2535, %v2806
    %v2814 = vxor.u32 %v2810, 2147483648
    %v2815 = vmul.f32 %v2814, 1.442695
    %v2816 = vpow.pop %v2815
    %v2817 = vadd.f32 %v2816, 1.0
    %v2818 = vrcp.pop %v2817
    %v2819 = vmul.f32 1.0, %v2818
    %v2820 = vxor.u32 %v2811, 2147483648
    %v2821 = vmul.f32 %v2820, 1.442695
    %v2822 = vpow.pop %v2821
    %v2823 = vadd.f32 %v2822, 1.0
    %v2824 = vrcp.pop %v2823
    %v2825 = vmul.f32 1.0, %v2824
    %v2826 = vtanh.pop %v2812
    %v2827 = vxor.u32 %v2813, 2147483648
    %v2828 = vmul.f32 %v2827, 1.442695
    %v2829 = vpow.pop %v2828
    %v2830 = vadd.f32 %v2829, 1.0
    %v2831 = vrcp.pop %v2830
    %v2832 = vmul.f32 1.0, %v2831
    %v2833 = vmul.f32 %v2825, 0.0
    %v2834 = vmul.f32 %v2819, %v2826
    %v2835 = vadd.f32 %v2833, %v2834
    %v2836 = vtanh.pop %v2835
    %v2837 = vmul.f32 %v2832, %v2836
    %2838 = vst [vmem:[#allocation2] sm:$0x3] %v2837
    %v2839 = vld [vmem:[#allocation4 + $0x20] sm:$0xc0]
    %v2840 = vld [vmem:[#allocation4 + $0x28] sm:$0xc0]
    %v2841 = vld [vmem:[#allocation4 + $0x30] sm:$0xc0]
    %v2842 = vld [vmem:[#allocation4 + $0x38] sm:$0xc0]
    %v2843 = vld [vmem:[%s43] sm:$0xff]
    %v2844 = vld [vmem:[%s43 + $0x8] sm:$0xff]
    %v2845 = vld [vmem:[%s43 + $0x10] sm:$0xff]
    %v2846 = vld [vmem:[%s43 + $0x18] sm:$0xff]
    %v2847 = vld [vmem:[%s43 + $0x20] sm:$0xff]
    %v2848 = vld [vmem:[%s43 + $0x28] sm:$0xff]
    %v2849 = vld [vmem:[%s43 + $0x30] sm:$0xff]
    %v2850 = vld [vmem:[%s43 + $0x38] sm:$0xff]
    %v2851 = vld [vmem:[%s43 + $0x40] sm:$0xff]
    %v2852 = vld [vmem:[%s43 + $0x48] sm:$0xff]
    %v2853 = vld [vmem:[%s43 + $0x50] sm:$0xff]
    %v2854 = vld [vmem:[%s43 + $0x58] sm:$0xff]
    %v2855 = vld [vmem:[%s43 + $0x60] sm:$0xff]
    %v2856 = vld [vmem:[%s43 + $0x68] sm:$0xff]
    %v2857 = vld [vmem:[%s43 + $0x70] sm:$0xff]
    %v2858 = vld [vmem:[%s43 + $0x78] sm:$0xff]
    %v2859 = vld [vmem:[%s43 + $0x80] sm:$0xff]
    %v2860 = vld [vmem:[%s43 + $0x88] sm:$0xff]
    %v2861 = vld [vmem:[%s43 + $0x90] sm:$0xff]
    %v2862 = vld [vmem:[%s43 + $0x98] sm:$0xff]
    %v2863 = vld [vmem:[%s43 + $0xa0] sm:$0xff]
    %v2864 = vld [vmem:[%s43 + $0xa8] sm:$0xff]
    %v2865 = vld [vmem:[%s43 + $0xb0] sm:$0xff]
    %v2866 = vld [vmem:[%s43 + $0xb8] sm:$0xff]
    %v2867 = vld [vmem:[%s43 + $0xc0] sm:$0xff]
    %v2868 = vld [vmem:[%s43 + $0xc8] sm:$0xff]
    %v2869 = vld [vmem:[%s43 + $0xd0] sm:$0xff]
    %v2870 = vld [vmem:[%s43 + $0xd8] sm:$0xff]
    %v2871 = vld [vmem:[%s43 + $0xe0] sm:$0xff]
    %v2872 = vld [vmem:[%s43 + $0xe8] sm:$0xff]
    %v2873 = vld [vmem:[%s43 + $0xf0] sm:$0xff]
    %v2874 = vld [vmem:[%s43 + $0xf8] sm:$0xff]
    %v2907 = vunpack.c.l.b16 %v2843
    %v2908 = vunpack.c.h.b16 %v2843
    %v2909 = vunpack.c.l.b16 %v2844
    %v2910 = vunpack.c.h.b16 %v2844
    %v2911 = vunpack.c.l.b16 %v2845
    %v2912 = vunpack.c.h.b16 %v2845
    %v2913 = vunpack.c.l.b16 %v2846
    %v2914 = vunpack.c.h.b16 %v2846
    %v2915 = vunpack.c.l.b16 %v2847
    %v2916 = vunpack.c.h.b16 %v2847
    %v2917 = vunpack.c.l.b16 %v2848
    %v2918 = vunpack.c.h.b16 %v2848
    %v2919 = vunpack.c.l.b16 %v2849
    %v2920 = vunpack.c.h.b16 %v2849
    %v2921 = vunpack.c.l.b16 %v2850
    %v2922 = vunpack.c.h.b16 %v2850
    %v2923 = vunpack.c.l.b16 %v2851
    %v2924 = vunpack.c.h.b16 %v2851
    %v2925 = vunpack.c.l.b16 %v2852
    %v2926 = vunpack.c.h.b16 %v2852
    %v2927 = vunpack.c.l.b16 %v2853
    %v2928 = vunpack.c.h.b16 %v2853
    %v2929 = vunpack.c.l.b16 %v2854
    %v2930 = vunpack.c.h.b16 %v2854
    %v2931 = vunpack.c.l.b16 %v2855
    %v2932 = vunpack.c.h.b16 %v2855
    %v2933 = vunpack.c.l.b16 %v2856
    %v2934 = vunpack.c.h.b16 %v2856
    %v2935 = vunpack.c.l.b16 %v2857
    %v2936 = vunpack.c.h.b16 %v2857
    %v2937 = vunpack.c.l.b16 %v2858
    %v2938 = vunpack.c.h.b16 %v2858
    %v2939 = vunpack.c.l.b16 %v2859
    %v2940 = vunpack.c.h.b16 %v2859
    %v2941 = vunpack.c.l.b16 %v2860
    %v2942 = vunpack.c.h.b16 %v2860
    %v2943 = vunpack.c.l.b16 %v2861
    %v2944 = vunpack.c.h.b16 %v2861
    %v2945 = vunpack.c.l.b16 %v2862
    %v2946 = vunpack.c.h.b16 %v2862
    %v2947 = vunpack.c.l.b16 %v2863
    %v2948 = vunpack.c.h.b16 %v2863
    %v2949 = vunpack.c.l.b16 %v2864
    %v2950 = vunpack.c.h.b16 %v2864
    %v2951 = vunpack.c.l.b16 %v2865
    %v2952 = vunpack.c.h.b16 %v2865
    %v2953 = vunpack.c.l.b16 %v2866
    %v2954 = vunpack.c.h.b16 %v2866
    %v2955 = vunpack.c.l.b16 %v2867
    %v2956 = vunpack.c.h.b16 %v2867
    %v2957 = vunpack.c.l.b16 %v2868
    %v2958 = vunpack.c.h.b16 %v2868
    %v2959 = vunpack.c.l.b16 %v2869
    %v2960 = vunpack.c.h.b16 %v2869
    %v2961 = vunpack.c.l.b16 %v2870
    %v2962 = vunpack.c.h.b16 %v2870
    %v2963 = vunpack.c.l.b16 %v2871
    %v2964 = vunpack.c.h.b16 %v2871
    %v2965 = vunpack.c.l.b16 %v2872
    %v2966 = vunpack.c.h.b16 %v2872
    %v2967 = vunpack.c.l.b16 %v2873
    %v2968 = vunpack.c.h.b16 %v2873
    %v2969 = vunpack.c.l.b16 %v2874
    %v2970 = vunpack.c.h.b16 %v2874
    %v2971 = vpack.c.b16 %v2911, %v2907
    %v2972 = vpack.c.b16 %v2912, %v2908
    %v2973 = vpack.c.b16 %v2913, %v2909
    %v2974 = vpack.c.b16 %v2914, %v2910
    %v2975 = vpack.c.b16 %v2919, %v2915
    %v2976 = vpack.c.b16 %v2920, %v2916
    %v2977 = vpack.c.b16 %v2921, %v2917
    %v2978 = vpack.c.b16 %v2922, %v2918
    %v2979 = vpack.c.b16 %v2927, %v2923
    %v2980 = vpack.c.b16 %v2928, %v2924
    %v2981 = vpack.c.b16 %v2929, %v2925
    %v2982 = vpack.c.b16 %v2930, %v2926
    %v2983 = vpack.c.b16 %v2935, %v2931
    %v2984 = vpack.c.b16 %v2936, %v2932
    %v2985 = vpack.c.b16 %v2937, %v2933
    %v2986 = vpack.c.b16 %v2938, %v2934
    %v2987 = vpack.c.b16 %v2943, %v2939
    %v2988 = vpack.c.b16 %v2944, %v2940
    %v2989 = vpack.c.b16 %v2945, %v2941
    %v2990 = vpack.c.b16 %v2946, %v2942
    %v2991 = vpack.c.b16 %v2951, %v2947
    %v2992 = vpack.c.b16 %v2952, %v2948
    %v2993 = vpack.c.b16 %v2953, %v2949
    %v2994 = vpack.c.b16 %v2954, %v2950
    %v2995 = vpack.c.b16 %v2959, %v2955
    %v2996 = vpack.c.b16 %v2960, %v2956
    %v2997 = vpack.c.b16 %v2961, %v2957
    %v2998 = vpack.c.b16 %v2962, %v2958
    %v2999 = vpack.c.b16 %v2967, %v2963
    %v3000 = vpack.c.b16 %v2968, %v2964
    %v3001 = vpack.c.b16 %v2969, %v2965
    %v3002 = vpack.c.b16 %v2970, %v2966
    %3035 = vmatprep.subr.bf16.mxu0 %v3000
    %3036 = vmatpush1.bf16.msra.mxu0 %v2999
    %3037 = vmatprep.subr.bf16.mxu0 %v2996
    %3038 = vmatpush1.bf16.msra.mxu0 %v2995
    %3039 = vmatprep.subr.bf16.mxu0 %v2992
    %3040 = vmatpush1.bf16.msra.mxu0 %v2991
    %3041 = vmatprep.subr.bf16.mxu0 %v2988
    %3042 = vmatpush1.bf16.msra.mxu0 %v2987
    %3043 = vmatprep.subr.bf16.mxu0 %v2984
    %3044 = vmatpush1.bf16.msra.mxu0 %v2983
    %3045 = vmatprep.subr.bf16.mxu0 %v2980
    %3046 = vmatpush1.bf16.msra.mxu0 %v2979
    %3047 = vmatprep.subr.bf16.mxu0 %v2976
    %3048 = vmatpush1.bf16.msra.mxu0 %v2975
    %3049 = vmatprep.subr.bf16.mxu0 %v2972
    %3050 = vmatpush1.bf16.msra.mxu0 %v2971
    %3051 = vmatprep.subr.bf16.mxu0 0
    %3052 = vmatpush2.bf16.msra.mxu0 0
    %3053 = vmatprep.subr.bf16.mxu0 0
    %3054 = vmatpush2.bf16.msra.mxu0 0
    %3055 = vmatprep.subr.bf16.mxu0 0
    %3056 = vmatpush2.bf16.msra.mxu0 0
    %3057 = vmatprep.subr.bf16.mxu0 0
    %3058 = vmatpush2.bf16.msra.mxu0 0
    %3059 = vmatprep.subr.bf16.mxu0 0
    %3060 = vmatpush2.bf16.msra.mxu0 0
    %3061 = vmatprep.subr.bf16.mxu0 0
    %3062 = vmatpush2.bf16.msra.mxu0 0
    %3063 = vmatprep.subr.bf16.mxu0 0
    %3064 = vmatpush2.bf16.msra.mxu0 0
    %3065 = vmatprep.subr.bf16.mxu0 0
    %3066 = vmatpush2.bf16.msra.mxu0 0
    %3067 = vmatprep.mubr.bf16.mxu0 0
    %3068 = vmatmul.mubr.bf16.gmra.mxu0 0
    %v3069 = vpop.f32.mrf.mxu0
    %v3070 = vadd.f32 0.0, %v3069
    %v3071 = vpop.f32.mrf.mxu0
    %v3072 = vadd.f32 0.0, %v3071
    %v3073 = vpop.f32.mrf.mxu0
    %v3074 = vpop.f32.mrf.mxu0
    %3075 = vdwg.mxu0
    %3076 = vmatprep.subr.bf16.mxu0 %v3002
    %3077 = vmatpush1.bf16.msra.mxu0 %v3001
    %3078 = vmatprep.subr.bf16.mxu0 %v2998
    %3079 = vmatpush1.bf16.msra.mxu0 %v2997
    %3080 = vmatprep.subr.bf16.mxu0 %v2994
    %3081 = vmatpush1.bf16.msra.mxu0 %v2993
    %3082 = vmatprep.subr.bf16.mxu0 %v2990
    %3083 = vmatpush1.bf16.msra.mxu0 %v2989
    %3084 = vmatprep.subr.bf16.mxu0 %v2986
    %3085 = vmatpush1.bf16.msra.mxu0 %v2985
    %3086 = vmatprep.subr.bf16.mxu0 %v2982
    %3087 = vmatpush1.bf16.msra.mxu0 %v2981
    %3088 = vmatprep.subr.bf16.mxu0 %v2978
    %3089 = vmatpush1.bf16.msra.mxu0 %v2977
    %3090 = vmatprep.subr.bf16.mxu0 %v2974
    %3091 = vmatpush1.bf16.msra.mxu0 %v2973
    %3092 = vmatprep.subr.bf16.mxu0 0
    %3093 = vmatpush2.bf16.msra.mxu0 0
    %3094 = vmatprep.subr.bf16.mxu0 0
    %3095 = vmatpush2.bf16.msra.mxu0 0
    %3096 = vmatprep.subr.bf16.mxu0 0
    %3097 = vmatpush2.bf16.msra.mxu0 0
    %3098 = vmatprep.subr.bf16.mxu0 0
    %3099 = vmatpush2.bf16.msra.mxu0 0
    %3100 = vmatprep.subr.bf16.mxu0 0
    %3101 = vmatpush2.bf16.msra.mxu0 0
    %3102 = vmatprep.subr.bf16.mxu0 0
    %3103 = vmatpush2.bf16.msra.mxu0 0
    %3104 = vmatprep.subr.bf16.mxu0 0
    %3105 = vmatpush2.bf16.msra.mxu0 0
    %3106 = vmatprep.subr.bf16.mxu0 0
    %3107 = vmatpush2.bf16.msra.mxu0 0
    %3108 = vmatprep.mubr.bf16.mxu0 0
    %3109 = vmatmul.mubr.bf16.gmra.mxu0 0
    %v3110 = vpop.f32.mrf.mxu0
    %v3111 = vadd.f32 0.0, %v3110
    %v3112 = vpop.f32.mrf.mxu0
    %v3113 = vadd.f32 0.0, %v3112
    %v3114 = vpop.f32.mrf.mxu0
    %v3115 = vpop.f32.mrf.mxu0
    %3116 = vdwg.mxu0
    %v3121 = vrot.slane %v3070, 2
    %v3122 = vrot.slane %v3072, 2
    %v3123 = vrot.slane %v3111, 2
    %v3124 = vrot.slane %v3113, 2
    %v3129 = vadd.f32 %v2839, %v3121
    %v3130 = vadd.f32 %v2840, %v3122
    %v3131 = vadd.f32 %v2841, %v3123
    %v3132 = vadd.f32 %v2842, %v3124
    %v3133 = vxor.u32 %v3129, 2147483648
    %v3134 = vmul.f32 %v3133, 1.442695
    %v3135 = vpow.pop %v3134
    %v3136 = vadd.f32 %v3135, 1.0
    %v3137 = vrcp.pop %v3136
    %v3138 = vmul.f32 1.0, %v3137
    %v3139 = vxor.u32 %v3130, 2147483648
    %v3140 = vmul.f32 %v3139, 1.442695
    %v3141 = vpow.pop %v3140
    %v3142 = vadd.f32 %v3141, 1.0
    %v3143 = vrcp.pop %v3142
    %v3144 = vmul.f32 1.0, %v3143
    %v3145 = vtanh.pop %v3131
    %v3146 = vxor.u32 %v3132, 2147483648
    %v3147 = vmul.f32 %v3146, 1.442695
    %v3148 = vpow.pop %v3147
    %v3149 = vadd.f32 %v3148, 1.0
    %v3150 = vrcp.pop %v3149
    %v3151 = vmul.f32 1.0, %v3150
    %v3152 = vmul.f32 %v3144, 0.0
    %v3153 = vmul.f32 %v3138, %v3145
    %v3154 = vadd.f32 %v3152, %v3153
    %v3155 = vtanh.pop %v3154
    %v3156 = vmul.f32 %v3151, %v3155
    %3157 = vst [vmem:[#allocation2 + $0x18] sm:$0xc0] %v3156
    %v3158 = vld [vmem:[#allocation3] sm:$0xc]
    %v3159 = vld [vmem:[#allocation3 + $0x8] sm:$0xc]
    %v3160 = vld [vmem:[#allocation3 + $0x10] sm:$0xc]
    %v3161 = vld [vmem:[#allocation3 + $0x18] sm:$0xc]
    %v3162 = vpack.c.bf16 %v2837, %v2837
    %v3163 = vld [vmem:[%s37] sm:$0xff]
    %v3164 = vld [vmem:[%s37 + $0x8] sm:$0xff]
    %v3165 = vld [vmem:[%s37 + $0x10] sm:$0xff]
    %v3166 = vld [vmem:[%s37 + $0x18] sm:$0xff]
    %v3167 = vld [vmem:[%s37 + $0x20] sm:$0xff]
    %v3168 = vld [vmem:[%s37 + $0x28] sm:$0xff]
    %v3169 = vld [vmem:[%s37 + $0x30] sm:$0xff]
    %v3170 = vld [vmem:[%s37 + $0x38] sm:$0xff]
    %v3171 = vld [vmem:[%s37 + $0x40] sm:$0xff]
    %v3172 = vld [vmem:[%s37 + $0x48] sm:$0xff]
    %v3173 = vld [vmem:[%s37 + $0x50] sm:$0xff]
    %v3174 = vld [vmem:[%s37 + $0x58] sm:$0xff]
    %v3175 = vld [vmem:[%s37 + $0x60] sm:$0xff]
    %v3176 = vld [vmem:[%s37 + $0x68] sm:$0xff]
    %v3177 = vld [vmem:[%s37 + $0x70] sm:$0xff]
    %v3178 = vld [vmem:[%s37 + $0x78] sm:$0xff]
    %v3179 = vld [vmem:[%s37 + $0x80] sm:$0xff]
    %v3180 = vld [vmem:[%s37 + $0x88] sm:$0xff]
    %v3181 = vld [vmem:[%s37 + $0x90] sm:$0xff]
    %v3182 = vld [vmem:[%s37 + $0x98] sm:$0xff]
    %v3183 = vld [vmem:[%s37 + $0xa0] sm:$0xff]
    %v3184 = vld [vmem:[%s37 + $0xa8] sm:$0xff]
    %v3185 = vld [vmem:[%s37 + $0xb0] sm:$0xff]
    %v3186 = vld [vmem:[%s37 + $0xb8] sm:$0xff]
    %v3187 = vld [vmem:[%s37 + $0xc0] sm:$0xff]
    %v3188 = vld [vmem:[%s37 + $0xc8] sm:$0xff]
    %v3189 = vld [vmem:[%s37 + $0xd0] sm:$0xff]
    %v3190 = vld [vmem:[%s37 + $0xd8] sm:$0xff]
    %v3191 = vld [vmem:[%s37 + $0xe0] sm:$0xff]
    %v3192 = vld [vmem:[%s37 + $0xe8] sm:$0xff]
    %v3193 = vld [vmem:[%s37 + $0xf0] sm:$0xff]
    %v3194 = vld [vmem:[%s37 + $0xf8] sm:$0xff]
    %v3227 = vunpack.c.l.b16 %v3163
    %v3228 = vunpack.c.h.b16 %v3163
    %v3229 = vunpack.c.l.b16 %v3164
    %v3230 = vunpack.c.h.b16 %v3164
    %v3231 = vunpack.c.l.b16 %v3165
    %v3232 = vunpack.c.h.b16 %v3165
    %v3233 = vunpack.c.l.b16 %v3166
    %v3234 = vunpack.c.h.b16 %v3166
    %v3235 = vunpack.c.l.b16 %v3167
    %v3236 = vunpack.c.h.b16 %v3167
    %v3237 = vunpack.c.l.b16 %v3168
    %v3238 = vunpack.c.h.b16 %v3168
    %v3239 = vunpack.c.l.b16 %v3169
    %v3240 = vunpack.c.h.b16 %v3169
    %v3241 = vunpack.c.l.b16 %v3170
    %v3242 = vunpack.c.h.b16 %v3170
    %v3243 = vunpack.c.l.b16 %v3171
    %v3244 = vunpack.c.h.b16 %v3171
    %v3245 = vunpack.c.l.b16 %v3172
    %v3246 = vunpack.c.h.b16 %v3172
    %v3247 = vunpack.c.l.b16 %v3173
    %v3248 = vunpack.c.h.b16 %v3173
    %v3249 = vunpack.c.l.b16 %v3174
    %v3250 = vunpack.c.h.b16 %v3174
    %v3251 = vunpack.c.l.b16 %v3175
    %v3252 = vunpack.c.h.b16 %v3175
    %v3253 = vunpack.c.l.b16 %v3176
    %v3254 = vunpack.c.h.b16 %v3176
    %v3255 = vunpack.c.l.b16 %v3177
    %v3256 = vunpack.c.h.b16 %v3177
    %v3257 = vunpack.c.l.b16 %v3178
    %v3258 = vunpack.c.h.b16 %v3178
    %v3259 = vunpack.c.l.b16 %v3179
    %v3260 = vunpack.c.h.b16 %v3179
    %v3261 = vunpack.c.l.b16 %v3180
    %v3262 = vunpack.c.h.b16 %v3180
    %v3263 = vunpack.c.l.b16 %v3181
    %v3264 = vunpack.c.h.b16 %v3181
    %v3265 = vunpack.c.l.b16 %v3182
    %v3266 = vunpack.c.h.b16 %v3182
    %v3267 = vunpack.c.l.b16 %v3183
    %v3268 = vunpack.c.h.b16 %v3183
    %v3269 = vunpack.c.l.b16 %v3184
    %v3270 = vunpack.c.h.b16 %v3184
    %v3271 = vunpack.c.l.b16 %v3185
    %v3272 = vunpack.c.h.b16 %v3185
    %v3273 = vunpack.c.l.b16 %v3186
    %v3274 = vunpack.c.h.b16 %v3186
    %v3275 = vunpack.c.l.b16 %v3187
    %v3276 = vunpack.c.h.b16 %v3187
    %v3277 = vunpack.c.l.b16 %v3188
    %v3278 = vunpack.c.h.b16 %v3188
    %v3279 = vunpack.c.l.b16 %v3189
    %v3280 = vunpack.c.h.b16 %v3189
    %v3281 = vunpack.c.l.b16 %v3190
    %v3282 = vunpack.c.h.b16 %v3190
    %v3283 = vunpack.c.l.b16 %v3191
    %v3284 = vunpack.c.h.b16 %v3191
    %v3285 = vunpack.c.l.b16 %v3192
    %v3286 = vunpack.c.h.b16 %v3192
    %v3287 = vunpack.c.l.b16 %v3193
    %v3288 = vunpack.c.h.b16 %v3193
    %v3289 = vunpack.c.l.b16 %v3194
    %v3290 = vunpack.c.h.b16 %v3194
    %v3291 = vpack.c.b16 %v3231, %v3227
    %v3292 = vpack.c.b16 %v3232, %v3228
    %v3293 = vpack.c.b16 %v3233, %v3229
    %v3294 = vpack.c.b16 %v3234, %v3230
    %v3295 = vpack.c.b16 %v3239, %v3235
    %v3296 = vpack.c.b16 %v3240, %v3236
    %v3297 = vpack.c.b16 %v3241, %v3237
    %v3298 = vpack.c.b16 %v3242, %v3238
    %v3299 = vpack.c.b16 %v3247, %v3243
    %v3300 = vpack.c.b16 %v3248, %v3244
    %v3301 = vpack.c.b16 %v3249, %v3245
    %v3302 = vpack.c.b16 %v3250, %v3246
    %v3303 = vpack.c.b16 %v3255, %v3251
    %v3304 = vpack.c.b16 %v3256, %v3252
    %v3305 = vpack.c.b16 %v3257, %v3253
    %v3306 = vpack.c.b16 %v3258, %v3254
    %v3307 = vpack.c.b16 %v3263, %v3259
    %v3308 = vpack.c.b16 %v3264, %v3260
    %v3309 = vpack.c.b16 %v3265, %v3261
    %v3310 = vpack.c.b16 %v3266, %v3262
    %v3311 = vpack.c.b16 %v3271, %v3267
    %v3312 = vpack.c.b16 %v3272, %v3268
    %v3313 = vpack.c.b16 %v3273, %v3269
    %v3314 = vpack.c.b16 %v3274, %v3270
    %v3315 = vpack.c.b16 %v3279, %v3275
    %v3316 = vpack.c.b16 %v3280, %v3276
    %v3317 = vpack.c.b16 %v3281, %v3277
    %v3318 = vpack.c.b16 %v3282, %v3278
    %v3319 = vpack.c.b16 %v3287, %v3283
    %v3320 = vpack.c.b16 %v3288, %v3284
    %v3321 = vpack.c.b16 %v3289, %v3285
    %v3322 = vpack.c.b16 %v3290, %v3286
    %3355 = vmatprep.subr.bf16.mxu0 %v3320
    %3356 = vmatpush1.bf16.msra.mxu0 %v3319
    %3357 = vmatprep.subr.bf16.mxu0 %v3316
    %3358 = vmatpush1.bf16.msra.mxu0 %v3315
    %3359 = vmatprep.subr.bf16.mxu0 %v3312
    %3360 = vmatpush1.bf16.msra.mxu0 %v3311
    %3361 = vmatprep.subr.bf16.mxu0 %v3308
    %3362 = vmatpush1.bf16.msra.mxu0 %v3307
    %3363 = vmatprep.subr.bf16.mxu0 %v3304
    %3364 = vmatpush1.bf16.msra.mxu0 %v3303
    %3365 = vmatprep.subr.bf16.mxu0 %v3300
    %3366 = vmatpush1.bf16.msra.mxu0 %v3299
    %3367 = vmatprep.subr.bf16.mxu0 %v3296
    %3368 = vmatpush1.bf16.msra.mxu0 %v3295
    %3369 = vmatprep.subr.bf16.mxu0 %v3292
    %3370 = vmatpush1.bf16.msra.mxu0 %v3291
    %3371 = vmatprep.subr.bf16.mxu0 0
    %3372 = vmatpush2.bf16.msra.mxu0 0
    %3373 = vmatprep.subr.bf16.mxu0 0
    %3374 = vmatpush2.bf16.msra.mxu0 0
    %3375 = vmatprep.subr.bf16.mxu0 0
    %3376 = vmatpush2.bf16.msra.mxu0 0
    %3377 = vmatprep.subr.bf16.mxu0 0
    %3378 = vmatpush2.bf16.msra.mxu0 0
    %3379 = vmatprep.subr.bf16.mxu0 0
    %3380 = vmatpush2.bf16.msra.mxu0 0
    %3381 = vmatprep.subr.bf16.mxu0 0
    %3382 = vmatpush2.bf16.msra.mxu0 0
    %3383 = vmatprep.subr.bf16.mxu0 0
    %3384 = vmatpush2.bf16.msra.mxu0 0
    %3385 = vmatprep.subr.bf16.mxu0 0
    %3386 = vmatpush2.bf16.msra.mxu0 0
    %3387 = vmatprep.mubr.bf16.mxu0 0
    %3388 = vmatmul.mubr.bf16.gmra.mxu0 %v3162
    %v3389 = vpop.f32.mrf.mxu0
    %v3390 = vadd.f32 0.0, %v3389
    %v3391 = vpop.f32.mrf.mxu0
    %v3392 = vadd.f32 0.0, %v3391
    %v3393 = vpop.f32.mrf.mxu0
    %v3394 = vpop.f32.mrf.mxu0
    %3395 = vdwg.mxu0
    %3396 = vmatprep.subr.bf16.mxu0 %v3322
    %3397 = vmatpush1.bf16.msra.mxu0 %v3321
    %3398 = vmatprep.subr.bf16.mxu0 %v3318
    %3399 = vmatpush1.bf16.msra.mxu0 %v3317
    %3400 = vmatprep.subr.bf16.mxu0 %v3314
    %3401 = vmatpush1.bf16.msra.mxu0 %v3313
    %3402 = vmatprep.subr.bf16.mxu0 %v3310
    %3403 = vmatpush1.bf16.msra.mxu0 %v3309
    %3404 = vmatprep.subr.bf16.mxu0 %v3306
    %3405 = vmatpush1.bf16.msra.mxu0 %v3305
    %3406 = vmatprep.subr.bf16.mxu0 %v3302
    %3407 = vmatpush1.bf16.msra.mxu0 %v3301
    %3408 = vmatprep.subr.bf16.mxu0 %v3298
    %3409 = vmatpush1.bf16.msra.mxu0 %v3297
    %3410 = vmatprep.subr.bf16.mxu0 %v3294
    %3411 = vmatpush1.bf16.msra.mxu0 %v3293
    %3412 = vmatprep.subr.bf16.mxu0 0
    %3413 = vmatpush2.bf16.msra.mxu0 0
    %3414 = vmatprep.subr.bf16.mxu0 0
    %3415 = vmatpush2.bf16.msra.mxu0 0
    %3416 = vmatprep.subr.bf16.mxu0 0
    %3417 = vmatpush2.bf16.msra.mxu0 0
    %3418 = vmatprep.subr.bf16.mxu0 0
    %3419 = vmatpush2.bf16.msra.mxu0 0
    %3420 = vmatprep.subr.bf16.mxu0 0
    %3421 = vmatpush2.bf16.msra.mxu0 0
    %3422 = vmatprep.subr.bf16.mxu0 0
    %3423 = vmatpush2.bf16.msra.mxu0 0
    %3424 = vmatprep.subr.bf16.mxu0 0
    %3425 = vmatpush2.bf16.msra.mxu0 0
    %3426 = vmatprep.subr.bf16.mxu0 0
    %3427 = vmatpush2.bf16.msra.mxu0 0
    %3428 = vmatprep.mubr.bf16.mxu0 0
    %3429 = vmatmul.mubr.bf16.gmra.mxu0 %v3162
    %v3430 = vpop.f32.mrf.mxu0
    %v3431 = vadd.f32 0.0, %v3430
    %v3432 = vpop.f32.mrf.mxu0
    %v3433 = vadd.f32 0.0, %v3432
    %v3434 = vpop.f32.mrf.mxu0
    %v3435 = vpop.f32.mrf.mxu0
    %3436 = vdwg.mxu0
    %v3441 = vrot.slane %v3390, 6
    %v3442 = vrot.slane %v3392, 6
    %v3443 = vrot.slane %v3431, 6
    %v3444 = vrot.slane %v3433, 6
    %v3449 = vadd.f32 %v3158, %v3441
    %v3450 = vadd.f32 %v3159, %v3442
    %v3451 = vadd.f32 %v3160, %v3443
    %v3452 = vadd.f32 %v3161, %v3444
    %v3453 = vxor.u32 %v3449, 2147483648
    %v3454 = vmul.f32 %v3453, 1.442695
    %v3455 = vpow.pop %v3454
    %v3456 = vadd.f32 %v3455, 1.0
    %v3457 = vrcp.pop %v3456
    %v3458 = vmul.f32 1.0, %v3457
    %v3459 = vxor.u32 %v3450, 2147483648
    %v3460 = vmul.f32 %v3459, 1.442695
    %v3461 = vpow.pop %v3460
    %v3462 = vadd.f32 %v3461, 1.0
    %v3463 = vrcp.pop %v3462
    %v3464 = vmul.f32 1.0, %v3463
    %v3465 = vtanh.pop %v3451
    %v3466 = vxor.u32 %v3452, 2147483648
    %v3467 = vmul.f32 %v3466, 1.442695
    %v3468 = vpow.pop %v3467
    %v3469 = vadd.f32 %v3468, 1.0
    %v3470 = vrcp.pop %v3469
    %v3471 = vmul.f32 1.0, %v3470
    %v3473 = vrot.slane %v2835, 6
    %v3475 = vmul.f32 %v3464, %v3473
    %v3476 = vmul.f32 %v3458, %v3465
    %v3477 = vadd.f32 %v3475, %v3476
    %v3478 = vtanh.pop %v3477
    %v3479 = vmul.f32 %v3471, %v3478
    %3480 = vst [vmem:[#allocation2] sm:$0xc] %v3479
    %v3481 = vld [vmem:[#allocation4 + $0x20] sm:$0x30]
    %v3482 = vld [vmem:[#allocation4 + $0x28] sm:$0x30]
    %v3483 = vld [vmem:[#allocation4 + $0x30] sm:$0x30]
    %v3484 = vld [vmem:[#allocation4 + $0x38] sm:$0x30]
    %v3485 = vpack.c.bf16 %v3156, %v3156
    %v3486 = vld [vmem:[%s43] sm:$0xff]
    %v3487 = vld [vmem:[%s43 + $0x8] sm:$0xff]
    %v3488 = vld [vmem:[%s43 + $0x10] sm:$0xff]
    %v3489 = vld [vmem:[%s43 + $0x18] sm:$0xff]
    %v3490 = vld [vmem:[%s43 + $0x20] sm:$0xff]
    %v3491 = vld [vmem:[%s43 + $0x28] sm:$0xff]
    %v3492 = vld [vmem:[%s43 + $0x30] sm:$0xff]
    %v3493 = vld [vmem:[%s43 + $0x38] sm:$0xff]
    %v3494 = vld [vmem:[%s43 + $0x40] sm:$0xff]
    %v3495 = vld [vmem:[%s43 + $0x48] sm:$0xff]
    %v3496 = vld [vmem:[%s43 + $0x50] sm:$0xff]
    %v3497 = vld [vmem:[%s43 + $0x58] sm:$0xff]
    %v3498 = vld [vmem:[%s43 + $0x60] sm:$0xff]
    %v3499 = vld [vmem:[%s43 + $0x68] sm:$0xff]
    %v3500 = vld [vmem:[%s43 + $0x70] sm:$0xff]
    %v3501 = vld [vmem:[%s43 + $0x78] sm:$0xff]
    %v3502 = vld [vmem:[%s43 + $0x80] sm:$0xff]
    %v3503 = vld [vmem:[%s43 + $0x88] sm:$0xff]
    %v3504 = vld [vmem:[%s43 + $0x90] sm:$0xff]
    %v3505 = vld [vmem:[%s43 + $0x98] sm:$0xff]
    %v3506 = vld [vmem:[%s43 + $0xa0] sm:$0xff]
    %v3507 = vld [vmem:[%s43 + $0xa8] sm:$0xff]
    %v3508 = vld [vmem:[%s43 + $0xb0] sm:$0xff]
    %v3509 = vld [vmem:[%s43 + $0xb8] sm:$0xff]
    %v3510 = vld [vmem:[%s43 + $0xc0] sm:$0xff]
    %v3511 = vld [vmem:[%s43 + $0xc8] sm:$0xff]
    %v3512 = vld [vmem:[%s43 + $0xd0] sm:$0xff]
    %v3513 = vld [vmem:[%s43 + $0xd8] sm:$0xff]
    %v3514 = vld [vmem:[%s43 + $0xe0] sm:$0xff]
    %v3515 = vld [vmem:[%s43 + $0xe8] sm:$0xff]
    %v3516 = vld [vmem:[%s43 + $0xf0] sm:$0xff]
    %v3517 = vld [vmem:[%s43 + $0xf8] sm:$0xff]
    %v3519 = vrot.slane %v3485, 3
    %v3553 = vunpack.c.l.b16 %v3486
    %v3554 = vunpack.c.h.b16 %v3486
    %v3555 = vunpack.c.l.b16 %v3487
    %v3556 = vunpack.c.h.b16 %v3487
    %v3557 = vunpack.c.l.b16 %v3488
    %v3558 = vunpack.c.h.b16 %v3488
    %v3559 = vunpack.c.l.b16 %v3489
    %v3560 = vunpack.c.h.b16 %v3489
    %v3561 = vunpack.c.l.b16 %v3490
    %v3562 = vunpack.c.h.b16 %v3490
    %v3563 = vunpack.c.l.b16 %v3491
    %v3564 = vunpack.c.h.b16 %v3491
    %v3565 = vunpack.c.l.b16 %v3492
    %v3566 = vunpack.c.h.b16 %v3492
    %v3567 = vunpack.c.l.b16 %v3493
    %v3568 = vunpack.c.h.b16 %v3493
    %v3569 = vunpack.c.l.b16 %v3494
    %v3570 = vunpack.c.h.b16 %v3494
    %v3571 = vunpack.c.l.b16 %v3495
    %v3572 = vunpack.c.h.b16 %v3495
    %v3573 = vunpack.c.l.b16 %v3496
    %v3574 = vunpack.c.h.b16 %v3496
    %v3575 = vunpack.c.l.b16 %v3497
    %v3576 = vunpack.c.h.b16 %v3497
    %v3577 = vunpack.c.l.b16 %v3498
    %v3578 = vunpack.c.h.b16 %v3498
    %v3579 = vunpack.c.l.b16 %v3499
    %v3580 = vunpack.c.h.b16 %v3499
    %v3581 = vunpack.c.l.b16 %v3500
    %v3582 = vunpack.c.h.b16 %v3500
    %v3583 = vunpack.c.l.b16 %v3501
    %v3584 = vunpack.c.h.b16 %v3501
    %v3585 = vunpack.c.l.b16 %v3502
    %v3586 = vunpack.c.h.b16 %v3502
    %v3587 = vunpack.c.l.b16 %v3503
    %v3588 = vunpack.c.h.b16 %v3503
    %v3589 = vunpack.c.l.b16 %v3504
    %v3590 = vunpack.c.h.b16 %v3504
    %v3591 = vunpack.c.l.b16 %v3505
    %v3592 = vunpack.c.h.b16 %v3505
    %v3593 = vunpack.c.l.b16 %v3506
    %v3594 = vunpack.c.h.b16 %v3506
    %v3595 = vunpack.c.l.b16 %v3507
    %v3596 = vunpack.c.h.b16 %v3507
    %v3597 = vunpack.c.l.b16 %v3508
    %v3598 = vunpack.c.h.b16 %v3508
    %v3599 = vunpack.c.l.b16 %v3509
    %v3600 = vunpack.c.h.b16 %v3509
    %v3601 = vunpack.c.l.b16 %v3510
    %v3602 = vunpack.c.h.b16 %v3510
    %v3603 = vunpack.c.l.b16 %v3511
    %v3604 = vunpack.c.h.b16 %v3511
    %v3605 = vunpack.c.l.b16 %v3512
    %v3606 = vunpack.c.h.b16 %v3512
    %v3607 = vunpack.c.l.b16 %v3513
    %v3608 = vunpack.c.h.b16 %v3513
    %v3609 = vunpack.c.l.b16 %v3514
    %v3610 = vunpack.c.h.b16 %v3514
    %v3611 = vunpack.c.l.b16 %v3515
    %v3612 = vunpack.c.h.b16 %v3515
    %v3613 = vunpack.c.l.b16 %v3516
    %v3614 = vunpack.c.h.b16 %v3516
    %v3615 = vunpack.c.l.b16 %v3517
    %v3616 = vunpack.c.h.b16 %v3517
    %v3617 = vpack.c.b16 %v3557, %v3553
    %v3618 = vpack.c.b16 %v3558, %v3554
    %v3619 = vpack.c.b16 %v3559, %v3555
    %v3620 = vpack.c.b16 %v3560, %v3556
    %v3621 = vpack.c.b16 %v3565, %v3561
    %v3622 = vpack.c.b16 %v3566, %v3562
    %v3623 = vpack.c.b16 %v3567, %v3563
    %v3624 = vpack.c.b16 %v3568, %v3564
    %v3625 = vpack.c.b16 %v3573, %v3569
    %v3626 = vpack.c.b16 %v3574, %v3570
    %v3627 = vpack.c.b16 %v3575, %v3571
    %v3628 = vpack.c.b16 %v3576, %v3572
    %v3629 = vpack.c.b16 %v3581, %v3577
    %v3630 = vpack.c.b16 %v3582, %v3578
    %v3631 = vpack.c.b16 %v3583, %v3579
    %v3632 = vpack.c.b16 %v3584, %v3580
    %v3633 = vpack.c.b16 %v3589, %v3585
    %v3634 = vpack.c.b16 %v3590, %v3586
    %v3635 = vpack.c.b16 %v3591, %v3587
    %v3636 = vpack.c.b16 %v3592, %v3588
    %v3637 = vpack.c.b16 %v3597, %v3593
    %v3638 = vpack.c.b16 %v3598, %v3594
    %v3639 = vpack.c.b16 %v3599, %v3595
    %v3640 = vpack.c.b16 %v3600, %v3596
    %v3641 = vpack.c.b16 %v3605, %v3601
    %v3642 = vpack.c.b16 %v3606, %v3602
    %v3643 = vpack.c.b16 %v3607, %v3603
    %v3644 = vpack.c.b16 %v3608, %v3604
    %v3645 = vpack.c.b16 %v3613, %v3609
    %v3646 = vpack.c.b16 %v3614, %v3610
    %v3647 = vpack.c.b16 %v3615, %v3611
    %v3648 = vpack.c.b16 %v3616, %v3612
    %3681 = vmatprep.subr.bf16.mxu0 %v3646
    %3682 = vmatpush1.bf16.msra.mxu0 %v3645
    %3683 = vmatprep.subr.bf16.mxu0 %v3642
    %3684 = vmatpush1.bf16.msra.mxu0 %v3641
    %3685 = vmatprep.subr.bf16.mxu0 %v3638
    %3686 = vmatpush1.bf16.msra.mxu0 %v3637
    %3687 = vmatprep.subr.bf16.mxu0 %v3634
    %3688 = vmatpush1.bf16.msra.mxu0 %v3633
    %3689 = vmatprep.subr.bf16.mxu0 %v3630
    %3690 = vmatpush1.bf16.msra.mxu0 %v3629
    %3691 = vmatprep.subr.bf16.mxu0 %v3626
    %3692 = vmatpush1.bf16.msra.mxu0 %v3625
    %3693 = vmatprep.subr.bf16.mxu0 %v3622
    %3694 = vmatpush1.bf16.msra.mxu0 %v3621
    %3695 = vmatprep.subr.bf16.mxu0 %v3618
    %3696 = vmatpush1.bf16.msra.mxu0 %v3617
    %3697 = vmatprep.subr.bf16.mxu0 0
    %3698 = vmatpush2.bf16.msra.mxu0 0
    %3699 = vmatprep.subr.bf16.mxu0 0
    %3700 = vmatpush2.bf16.msra.mxu0 0
    %3701 = vmatprep.subr.bf16.mxu0 0
    %3702 = vmatpush2.bf16.msra.mxu0 0
    %3703 = vmatprep.subr.bf16.mxu0 0
    %3704 = vmatpush2.bf16.msra.mxu0 0
    %3705 = vmatprep.subr.bf16.mxu0 0
    %3706 = vmatpush2.bf16.msra.mxu0 0
    %3707 = vmatprep.subr.bf16.mxu0 0
    %3708 = vmatpush2.bf16.msra.mxu0 0
    %3709 = vmatprep.subr.bf16.mxu0 0
    %3710 = vmatpush2.bf16.msra.mxu0 0
    %3711 = vmatprep.subr.bf16.mxu0 0
    %3712 = vmatpush2.bf16.msra.mxu0 0
    %3713 = vmatprep.mubr.bf16.mxu0 0
    %3714 = vmatmul.mubr.bf16.gmra.mxu0 %v3519
    %v3715 = vpop.f32.mrf.mxu0
    %v3716 = vadd.f32 0.0, %v3715
    %v3717 = vpop.f32.mrf.mxu0
    %v3718 = vadd.f32 0.0, %v3717
    %v3719 = vpop.f32.mrf.mxu0
    %v3720 = vpop.f32.mrf.mxu0
    %3721 = vdwg.mxu0
    %3722 = vmatprep.subr.bf16.mxu0 %v3648
    %3723 = vmatpush1.bf16.msra.mxu0 %v3647
    %3724 = vmatprep.subr.bf16.mxu0 %v3644
    %3725 = vmatpush1.bf16.msra.mxu0 %v3643
    %3726 = vmatprep.subr.bf16.mxu0 %v3640
    %3727 = vmatpush1.bf16.msra.mxu0 %v3639
    %3728 = vmatprep.subr.bf16.mxu0 %v3636
    %3729 = vmatpush1.bf16.msra.mxu0 %v3635
    %3730 = vmatprep.subr.bf16.mxu0 %v3632
    %3731 = vmatpush1.bf16.msra.mxu0 %v3631
    %3732 = vmatprep.subr.bf16.mxu0 %v3628
    %3733 = vmatpush1.bf16.msra.mxu0 %v3627
    %3734 = vmatprep.subr.bf16.mxu0 %v3624
    %3735 = vmatpush1.bf16.msra.mxu0 %v3623
    %3736 = vmatprep.subr.bf16.mxu0 %v3620
    %3737 = vmatpush1.bf16.msra.mxu0 %v3619
    %3738 = vmatprep.subr.bf16.mxu0 0
    %3739 = vmatpush2.bf16.msra.mxu0 0
    %3740 = vmatprep.subr.bf16.mxu0 0
    %3741 = vmatpush2.bf16.msra.mxu0 0
    %3742 = vmatprep.subr.bf16.mxu0 0
    %3743 = vmatpush2.bf16.msra.mxu0 0
    %3744 = vmatprep.subr.bf16.mxu0 0
    %3745 = vmatpush2.bf16.msra.mxu0 0
    %3746 = vmatprep.subr.bf16.mxu0 0
    %3747 = vmatpush2.bf16.msra.mxu0 0
    %3748 = vmatprep.subr.bf16.mxu0 0
    %3749 = vmatpush2.bf16.msra.mxu0 0
    %3750 = vmatprep.subr.bf16.mxu0 0
    %3751 = vmatpush2.bf16.msra.mxu0 0
    %3752 = vmatprep.subr.bf16.mxu0 0
    %3753 = vmatpush2.bf16.msra.mxu0 0
    %3754 = vmatprep.mubr.bf16.mxu0 0
    %3755 = vmatmul.mubr.bf16.gmra.mxu0 %v3519
    %v3756 = vpop.f32.mrf.mxu0
    %v3757 = vadd.f32 0.0, %v3756
    %v3758 = vpop.f32.mrf.mxu0
    %v3759 = vadd.f32 0.0, %v3758
    %v3760 = vpop.f32.mrf.mxu0
    %v3761 = vpop.f32.mrf.mxu0
    %3762 = vdwg.mxu0
    %v3767 = vrot.slane %v3716, 4
    %v3768 = vrot.slane %v3718, 4
    %v3769 = vrot.slane %v3757, 4
    %v3770 = vrot.slane %v3759, 4
    %v3775 = vadd.f32 %v3481, %v3767
    %v3776 = vadd.f32 %v3482, %v3768
    %v3777 = vadd.f32 %v3483, %v3769
    %v3778 = vadd.f32 %v3484, %v3770
    %v3779 = vxor.u32 %v3775, 2147483648
    %v3780 = vmul.f32 %v3779, 1.442695
    %v3781 = vpow.pop %v3780
    %v3782 = vadd.f32 %v3781, 1.0
    %v3783 = vrcp.pop %v3782
    %v3784 = vmul.f32 1.0, %v3783
    %v3785 = vxor.u32 %v3776, 2147483648
    %v3786 = vmul.f32 %v3785, 1.442695
    %v3787 = vpow.pop %v3786
    %v3788 = vadd.f32 %v3787, 1.0
    %v3789 = vrcp.pop %v3788
    %v3790 = vmul.f32 1.0, %v3789
    %v3791 = vtanh.pop %v3777
    %v3792 = vxor.u32 %v3778, 2147483648
    %v3793 = vmul.f32 %v3792, 1.442695
    %v3794 = vpow.pop %v3793
    %v3795 = vadd.f32 %v3794, 1.0
    %v3796 = vrcp.pop %v3795
    %v3797 = vmul.f32 1.0, %v3796
    %v3799 = vrot.slane %v3154, 2
    %v3801 = vmul.f32 %v3790, %v3799
    %v3802 = vmul.f32 %v3784, %v3791
    %v3803 = vadd.f32 %v3801, %v3802
    %v3804 = vtanh.pop %v3803
    %v3805 = vmul.f32 %v3797, %v3804
    %3806 = vst [vmem:[#allocation2 + $0x18] sm:$0x30] %v3805
    %v3807 = vld [vmem:[#allocation3] sm:$0x30]
    %v3808 = vld [vmem:[#allocation3 + $0x8] sm:$0x30]
    %v3809 = vld [vmem:[#allocation3 + $0x10] sm:$0x30]
    %v3810 = vld [vmem:[#allocation3 + $0x18] sm:$0x30]
    %v3811 = vpack.c.bf16 %v3479, %v3479
    %v3812 = vld [vmem:[%s37] sm:$0xff]
    %v3813 = vld [vmem:[%s37 + $0x8] sm:$0xff]
    %v3814 = vld [vmem:[%s37 + $0x10] sm:$0xff]
    %v3815 = vld [vmem:[%s37 + $0x18] sm:$0xff]
    %v3816 = vld [vmem:[%s37 + $0x20] sm:$0xff]
    %v3817 = vld [vmem:[%s37 + $0x28] sm:$0xff]
    %v3818 = vld [vmem:[%s37 + $0x30] sm:$0xff]
    %v3819 = vld [vmem:[%s37 + $0x38] sm:$0xff]
    %v3820 = vld [vmem:[%s37 + $0x40] sm:$0xff]
    %v3821 = vld [vmem:[%s37 + $0x48] sm:$0xff]
    %v3822 = vld [vmem:[%s37 + $0x50] sm:$0xff]
    %v3823 = vld [vmem:[%s37 + $0x58] sm:$0xff]
    %v3824 = vld [vmem:[%s37 + $0x60] sm:$0xff]
    %v3825 = vld [vmem:[%s37 + $0x68] sm:$0xff]
    %v3826 = vld [vmem:[%s37 + $0x70] sm:$0xff]
    %v3827 = vld [vmem:[%s37 + $0x78] sm:$0xff]
    %v3828 = vld [vmem:[%s37 + $0x80] sm:$0xff]
    %v3829 = vld [vmem:[%s37 + $0x88] sm:$0xff]
    %v3830 = vld [vmem:[%s37 + $0x90] sm:$0xff]
    %v3831 = vld [vmem:[%s37 + $0x98] sm:$0xff]
    %v3832 = vld [vmem:[%s37 + $0xa0] sm:$0xff]
    %v3833 = vld [vmem:[%s37 + $0xa8] sm:$0xff]
    %v3834 = vld [vmem:[%s37 + $0xb0] sm:$0xff]
    %v3835 = vld [vmem:[%s37 + $0xb8] sm:$0xff]
    %v3836 = vld [vmem:[%s37 + $0xc0] sm:$0xff]
    %v3837 = vld [vmem:[%s37 + $0xc8] sm:$0xff]
    %v3838 = vld [vmem:[%s37 + $0xd0] sm:$0xff]
    %v3839 = vld [vmem:[%s37 + $0xd8] sm:$0xff]
    %v3840 = vld [vmem:[%s37 + $0xe0] sm:$0xff]
    %v3841 = vld [vmem:[%s37 + $0xe8] sm:$0xff]
    %v3842 = vld [vmem:[%s37 + $0xf0] sm:$0xff]
    %v3843 = vld [vmem:[%s37 + $0xf8] sm:$0xff]
    %v3845 = vrot.slane %v3811, 1
    %v3879 = vunpack.c.l.b16 %v3812
    %v3880 = vunpack.c.h.b16 %v3812
    %v3881 = vunpack.c.l.b16 %v3813
    %v3882 = vunpack.c.h.b16 %v3813
    %v3883 = vunpack.c.l.b16 %v3814
    %v3884 = vunpack.c.h.b16 %v3814
    %v3885 = vunpack.c.l.b16 %v3815
    %v3886 = vunpack.c.h.b16 %v3815
    %v3887 = vunpack.c.l.b16 %v3816
    %v3888 = vunpack.c.h.b16 %v3816
    %v3889 = vunpack.c.l.b16 %v3817
    %v3890 = vunpack.c.h.b16 %v3817
    %v3891 = vunpack.c.l.b16 %v3818
    %v3892 = vunpack.c.h.b16 %v3818
    %v3893 = vunpack.c.l.b16 %v3819
    %v3894 = vunpack.c.h.b16 %v3819
    %v3895 = vunpack.c.l.b16 %v3820
    %v3896 = vunpack.c.h.b16 %v3820
    %v3897 = vunpack.c.l.b16 %v3821
    %v3898 = vunpack.c.h.b16 %v3821
    %v3899 = vunpack.c.l.b16 %v3822
    %v3900 = vunpack.c.h.b16 %v3822
    %v3901 = vunpack.c.l.b16 %v3823
    %v3902 = vunpack.c.h.b16 %v3823
    %v3903 = vunpack.c.l.b16 %v3824
    %v3904 = vunpack.c.h.b16 %v3824
    %v3905 = vunpack.c.l.b16 %v3825
    %v3906 = vunpack.c.h.b16 %v3825
    %v3907 = vunpack.c.l.b16 %v3826
    %v3908 = vunpack.c.h.b16 %v3826
    %v3909 = vunpack.c.l.b16 %v3827
    %v3910 = vunpack.c.h.b16 %v3827
    %v3911 = vunpack.c.l.b16 %v3828
    %v3912 = vunpack.c.h.b16 %v3828
    %v3913 = vunpack.c.l.b16 %v3829
    %v3914 = vunpack.c.h.b16 %v3829
    %v3915 = vunpack.c.l.b16 %v3830
    %v3916 = vunpack.c.h.b16 %v3830
    %v3917 = vunpack.c.l.b16 %v3831
    %v3918 = vunpack.c.h.b16 %v3831
    %v3919 = vunpack.c.l.b16 %v3832
    %v3920 = vunpack.c.h.b16 %v3832
    %v3921 = vunpack.c.l.b16 %v3833
    %v3922 = vunpack.c.h.b16 %v3833
    %v3923 = vunpack.c.l.b16 %v3834
    %v3924 = vunpack.c.h.b16 %v3834
    %v3925 = vunpack.c.l.b16 %v3835
    %v3926 = vunpack.c.h.b16 %v3835
    %v3927 = vunpack.c.l.b16 %v3836
    %v3928 = vunpack.c.h.b16 %v3836
    %v3929 = vunpack.c.l.b16 %v3837
    %v3930 = vunpack.c.h.b16 %v3837
    %v3931 = vunpack.c.l.b16 %v3838
    %v3932 = vunpack.c.h.b16 %v3838
    %v3933 = vunpack.c.l.b16 %v3839
    %v3934 = vunpack.c.h.b16 %v3839
    %v3935 = vunpack.c.l.b16 %v3840
    %v3936 = vunpack.c.h.b16 %v3840
    %v3937 = vunpack.c.l.b16 %v3841
    %v3938 = vunpack.c.h.b16 %v3841
    %v3939 = vunpack.c.l.b16 %v3842
    %v3940 = vunpack.c.h.b16 %v3842
    %v3941 = vunpack.c.l.b16 %v3843
    %v3942 = vunpack.c.h.b16 %v3843
    %v3943 = vpack.c.b16 %v3883, %v3879
    %v3944 = vpack.c.b16 %v3884, %v3880
    %v3945 = vpack.c.b16 %v3885, %v3881
    %v3946 = vpack.c.b16 %v3886, %v3882
    %v3947 = vpack.c.b16 %v3891, %v3887
    %v3948 = vpack.c.b16 %v3892, %v3888
    %v3949 = vpack.c.b16 %v3893, %v3889
    %v3950 = vpack.c.b16 %v3894, %v3890
    %v3951 = vpack.c.b16 %v3899, %v3895
    %v3952 = vpack.c.b16 %v3900, %v3896
    %v3953 = vpack.c.b16 %v3901, %v3897
    %v3954 = vpack.c.b16 %v3902, %v3898
    %v3955 = vpack.c.b16 %v3907, %v3903
    %v3956 = vpack.c.b16 %v3908, %v3904
    %v3957 = vpack.c.b16 %v3909, %v3905
    %v3958 = vpack.c.b16 %v3910, %v3906
    %v3959 = vpack.c.b16 %v3915, %v3911
    %v3960 = vpack.c.b16 %v3916, %v3912
    %v3961 = vpack.c.b16 %v3917, %v3913
    %v3962 = vpack.c.b16 %v3918, %v3914
    %v3963 = vpack.c.b16 %v3923, %v3919
    %v3964 = vpack.c.b16 %v3924, %v3920
    %v3965 = vpack.c.b16 %v3925, %v3921
    %v3966 = vpack.c.b16 %v3926, %v3922
    %v3967 = vpack.c.b16 %v3931, %v3927
    %v3968 = vpack.c.b16 %v3932, %v3928
    %v3969 = vpack.c.b16 %v3933, %v3929
    %v3970 = vpack.c.b16 %v3934, %v3930
    %v3971 = vpack.c.b16 %v3939, %v3935
    %v3972 = vpack.c.b16 %v3940, %v3936
    %v3973 = vpack.c.b16 %v3941, %v3937
    %v3974 = vpack.c.b16 %v3942, %v3938
    %4007 = vmatprep.subr.bf16.mxu0 %v3972
    %4008 = vmatpush1.bf16.msra.mxu0 %v3971
    %4009 = vmatprep.subr.bf16.mxu0 %v3968
    %4010 = vmatpush1.bf16.msra.mxu0 %v3967
    %4011 = vmatprep.subr.bf16.mxu0 %v3964
    %4012 = vmatpush1.bf16.msra.mxu0 %v3963
    %4013 = vmatprep.subr.bf16.mxu0 %v3960
    %4014 = vmatpush1.bf16.msra.mxu0 %v3959
    %4015 = vmatprep.subr.bf16.mxu0 %v3956
    %4016 = vmatpush1.bf16.msra.mxu0 %v3955
    %4017 = vmatprep.subr.bf16.mxu0 %v3952
    %4018 = vmatpush1.bf16.msra.mxu0 %v3951
    %4019 = vmatprep.subr.bf16.mxu0 %v3948
    %4020 = vmatpush1.bf16.msra.mxu0 %v3947
    %4021 = vmatprep.subr.bf16.mxu0 %v3944
    %4022 = vmatpush1.bf16.msra.mxu0 %v3943
    %4023 = vmatprep.subr.bf16.mxu0 0
    %4024 = vmatpush2.bf16.msra.mxu0 0
    %4025 = vmatprep.subr.bf16.mxu0 0
    %4026 = vmatpush2.bf16.msra.mxu0 0
    %4027 = vmatprep.subr.bf16.mxu0 0
    %4028 = vmatpush2.bf16.msra.mxu0 0
    %4029 = vmatprep.subr.bf16.mxu0 0
    %4030 = vmatpush2.bf16.msra.mxu0 0
    %4031 = vmatprep.subr.bf16.mxu0 0
    %4032 = vmatpush2.bf16.msra.mxu0 0
    %4033 = vmatprep.subr.bf16.mxu0 0
    %4034 = vmatpush2.bf16.msra.mxu0 0
    %4035 = vmatprep.subr.bf16.mxu0 0
    %4036 = vmatpush2.bf16.msra.mxu0 0
    %4037 = vmatprep.subr.bf16.mxu0 0
    %4038 = vmatpush2.bf16.msra.mxu0 0
    %4039 = vmatprep.mubr.bf16.mxu0 0
    %4040 = vmatmul.mubr.bf16.gmra.mxu0 %v3845
    %v4041 = vpop.f32.mrf.mxu0
    %v4042 = vadd.f32 0.0, %v4041
    %v4043 = vpop.f32.mrf.mxu0
    %v4044 = vadd.f32 0.0, %v4043
    %v4045 = vpop.f32.mrf.mxu0
    %v4046 = vpop.f32.mrf.mxu0
    %4047 = vdwg.mxu0
    %4048 = vmatprep.subr.bf16.mxu0 %v3974
    %4049 = vmatpush1.bf16.msra.mxu0 %v3973
    %4050 = vmatprep.subr.bf16.mxu0 %v3970
    %4051 = vmatpush1.bf16.msra.mxu0 %v3969
    %4052 = vmatprep.subr.bf16.mxu0 %v3966
    %4053 = vmatpush1.bf16.msra.mxu0 %v3965
    %4054 = vmatprep.subr.bf16.mxu0 %v3962
    %4055 = vmatpush1.bf16.msra.mxu0 %v3961
    %4056 = vmatprep.subr.bf16.mxu0 %v3958
    %4057 = vmatpush1.bf16.msra.mxu0 %v3957
    %4058 = vmatprep.subr.bf16.mxu0 %v3954
    %4059 = vmatpush1.bf16.msra.mxu0 %v3953
    %4060 = vmatprep.subr.bf16.mxu0 %v3950
    %4061 = vmatpush1.bf16.msra.mxu0 %v3949
    %4062 = vmatprep.subr.bf16.mxu0 %v3946
    %4063 = vmatpush1.bf16.msra.mxu0 %v3945
    %4064 = vmatprep.subr.bf16.mxu0 0
    %4065 = vmatpush2.bf16.msra.mxu0 0
    %4066 = vmatprep.subr.bf16.mxu0 0
    %4067 = vmatpush2.bf16.msra.mxu0 0
    %4068 = vmatprep.subr.bf16.mxu0 0
    %4069 = vmatpush2.bf16.msra.mxu0 0
    %4070 = vmatprep.subr.bf16.mxu0 0
    %4071 = vmatpush2.bf16.msra.mxu0 0
    %4072 = vmatprep.subr.bf16.mxu0 0
    %4073 = vmatpush2.bf16.msra.mxu0 0
    %4074 = vmatprep.subr.bf16.mxu0 0
    %4075 = vmatpush2.bf16.msra.mxu0 0
    %4076 = vmatprep.subr.bf16.mxu0 0
    %4077 = vmatpush2.bf16.msra.mxu0 0
    %4078 = vmatprep.subr.bf16.mxu0 0
    %4079 = vmatpush2.bf16.msra.mxu0 0
    %4080 = vmatprep.mubr.bf16.mxu0 0
    %4081 = vmatmul.mubr.bf16.gmra.mxu0 %v3845
    %v4082 = vpop.f32.mrf.mxu0
    %v4083 = vadd.f32 0.0, %v4082
    %v4084 = vpop.f32.mrf.mxu0
    %v4085 = vadd.f32 0.0, %v4084
    %v4086 = vpop.f32.mrf.mxu0
    %v4087 = vpop.f32.mrf.mxu0
    %4088 = vdwg.mxu0
    %v4093 = vrot.slane %v4042, 4
    %v4094 = vrot.slane %v4044, 4
    %v4095 = vrot.slane %v4083, 4
    %v4096 = vrot.slane %v4085, 4
    %v4101 = vadd.f32 %v3807, %v4093
    %v4102 = vadd.f32 %v3808, %v4094
    %v4103 = vadd.f32 %v3809, %v4095
    %v4104 = vadd.f32 %v3810, %v4096
    %v4105 = vxor.u32 %v4101, 2147483648
    %v4106 = vmul.f32 %v4105, 1.442695
    %v4107 = vpow.pop %v4106
    %v4108 = vadd.f32 %v4107, 1.0
    %v4109 = vrcp.pop %v4108
    %v4110 = vmul.f32 1.0, %v4109
    %v4111 = vxor.u32 %v4102, 2147483648
    %v4112 = vmul.f32 %v4111, 1.442695
    %v4113 = vpow.pop %v4112
    %v4114 = vadd.f32 %v4113, 1.0
    %v4115 = vrcp.pop %v4114
    %v4116 = vmul.f32 1.0, %v4115
    %v4117 = vtanh.pop %v4103
    %v4118 = vxor.u32 %v4104, 2147483648
    %v4119 = vmul.f32 %v4118, 1.442695
    %v4120 = vpow.pop %v4119
    %v4121 = vadd.f32 %v4120, 1.0
    %v4122 = vrcp.pop %v4121
    %v4123 = vmul.f32 1.0, %v4122
    %v4125 = vrot.slane %v3477, 6
    %v4127 = vmul.f32 %v4116, %v4125
    %v4128 = vmul.f32 %v4110, %v4117
    %v4129 = vadd.f32 %v4127, %v4128
    %v4130 = vtanh.pop %v4129
    %v4131 = vmul.f32 %v4123, %v4130
    %4132 = vst [vmem:[#allocation2] sm:$0x30] %v4131
    %v4133 = vld [vmem:[#allocation4 + $0x20] sm:$0xc]
    %v4134 = vld [vmem:[#allocation4 + $0x28] sm:$0xc]
    %v4135 = vld [vmem:[#allocation4 + $0x30] sm:$0xc]
    %v4136 = vld [vmem:[#allocation4 + $0x38] sm:$0xc]
    %v4137 = vpack.c.bf16 %v3805, %v3805
    %v4138 = vld [vmem:[%s43] sm:$0xff]
    %v4139 = vld [vmem:[%s43 + $0x8] sm:$0xff]
    %v4140 = vld [vmem:[%s43 + $0x10] sm:$0xff]
    %v4141 = vld [vmem:[%s43 + $0x18] sm:$0xff]
    %v4142 = vld [vmem:[%s43 + $0x20] sm:$0xff]
    %v4143 = vld [vmem:[%s43 + $0x28] sm:$0xff]
    %v4144 = vld [vmem:[%s43 + $0x30] sm:$0xff]
    %v4145 = vld [vmem:[%s43 + $0x38] sm:$0xff]
    %v4146 = vld [vmem:[%s43 + $0x40] sm:$0xff]
    %v4147 = vld [vmem:[%s43 + $0x48] sm:$0xff]
    %v4148 = vld [vmem:[%s43 + $0x50] sm:$0xff]
    %v4149 = vld [vmem:[%s43 + $0x58] sm:$0xff]
    %v4150 = vld [vmem:[%s43 + $0x60] sm:$0xff]
    %v4151 = vld [vmem:[%s43 + $0x68] sm:$0xff]
    %v4152 = vld [vmem:[%s43 + $0x70] sm:$0xff]
    %v4153 = vld [vmem:[%s43 + $0x78] sm:$0xff]
    %v4154 = vld [vmem:[%s43 + $0x80] sm:$0xff]
    %v4155 = vld [vmem:[%s43 + $0x88] sm:$0xff]
    %v4156 = vld [vmem:[%s43 + $0x90] sm:$0xff]
    %v4157 = vld [vmem:[%s43 + $0x98] sm:$0xff]
    %v4158 = vld [vmem:[%s43 + $0xa0] sm:$0xff]
    %v4159 = vld [vmem:[%s43 + $0xa8] sm:$0xff]
    %v4160 = vld [vmem:[%s43 + $0xb0] sm:$0xff]
    %v4161 = vld [vmem:[%s43 + $0xb8] sm:$0xff]
    %v4162 = vld [vmem:[%s43 + $0xc0] sm:$0xff]
    %v4163 = vld [vmem:[%s43 + $0xc8] sm:$0xff]
    %v4164 = vld [vmem:[%s43 + $0xd0] sm:$0xff]
    %v4165 = vld [vmem:[%s43 + $0xd8] sm:$0xff]
    %v4166 = vld [vmem:[%s43 + $0xe0] sm:$0xff]
    %v4167 = vld [vmem:[%s43 + $0xe8] sm:$0xff]
    %v4168 = vld [vmem:[%s43 + $0xf0] sm:$0xff]
    %v4169 = vld [vmem:[%s43 + $0xf8] sm:$0xff]
    %v4171 = vrot.slane %v4137, 2
    %v4205 = vunpack.c.l.b16 %v4138
    %v4206 = vunpack.c.h.b16 %v4138
    %v4207 = vunpack.c.l.b16 %v4139
    %v4208 = vunpack.c.h.b16 %v4139
    %v4209 = vunpack.c.l.b16 %v4140
    %v4210 = vunpack.c.h.b16 %v4140
    %v4211 = vunpack.c.l.b16 %v4141
    %v4212 = vunpack.c.h.b16 %v4141
    %v4213 = vunpack.c.l.b16 %v4142
    %v4214 = vunpack.c.h.b16 %v4142
    %v4215 = vunpack.c.l.b16 %v4143
    %v4216 = vunpack.c.h.b16 %v4143
    %v4217 = vunpack.c.l.b16 %v4144
    %v4218 = vunpack.c.h.b16 %v4144
    %v4219 = vunpack.c.l.b16 %v4145
    %v4220 = vunpack.c.h.b16 %v4145
    %v4221 = vunpack.c.l.b16 %v4146
    %v4222 = vunpack.c.h.b16 %v4146
    %v4223 = vunpack.c.l.b16 %v4147
    %v4224 = vunpack.c.h.b16 %v4147
    %v4225 = vunpack.c.l.b16 %v4148
    %v4226 = vunpack.c.h.b16 %v4148
    %v4227 = vunpack.c.l.b16 %v4149
    %v4228 = vunpack.c.h.b16 %v4149
    %v4229 = vunpack.c.l.b16 %v4150
    %v4230 = vunpack.c.h.b16 %v4150
    %v4231 = vunpack.c.l.b16 %v4151
    %v4232 = vunpack.c.h.b16 %v4151
    %v4233 = vunpack.c.l.b16 %v4152
    %v4234 = vunpack.c.h.b16 %v4152
    %v4235 = vunpack.c.l.b16 %v4153
    %v4236 = vunpack.c.h.b16 %v4153
    %v4237 = vunpack.c.l.b16 %v4154
    %v4238 = vunpack.c.h.b16 %v4154
    %v4239 = vunpack.c.l.b16 %v4155
    %v4240 = vunpack.c.h.b16 %v4155
    %v4241 = vunpack.c.l.b16 %v4156
    %v4242 = vunpack.c.h.b16 %v4156
    %v4243 = vunpack.c.l.b16 %v4157
    %v4244 = vunpack.c.h.b16 %v4157
    %v4245 = vunpack.c.l.b16 %v4158
    %v4246 = vunpack.c.h.b16 %v4158
    %v4247 = vunpack.c.l.b16 %v4159
    %v4248 = vunpack.c.h.b16 %v4159
    %v4249 = vunpack.c.l.b16 %v4160
    %v4250 = vunpack.c.h.b16 %v4160
    %v4251 = vunpack.c.l.b16 %v4161
    %v4252 = vunpack.c.h.b16 %v4161
    %v4253 = vunpack.c.l.b16 %v4162
    %v4254 = vunpack.c.h.b16 %v4162
    %v4255 = vunpack.c.l.b16 %v4163
    %v4256 = vunpack.c.h.b16 %v4163
    %v4257 = vunpack.c.l.b16 %v4164
    %v4258 = vunpack.c.h.b16 %v4164
    %v4259 = vunpack.c.l.b16 %v4165
    %v4260 = vunpack.c.h.b16 %v4165
    %v4261 = vunpack.c.l.b16 %v4166
    %v4262 = vunpack.c.h.b16 %v4166
    %v4263 = vunpack.c.l.b16 %v4167
    %v4264 = vunpack.c.h.b16 %v4167
    %v4265 = vunpack.c.l.b16 %v4168
    %v4266 = vunpack.c.h.b16 %v4168
    %v4267 = vunpack.c.l.b16 %v4169
    %v4268 = vunpack.c.h.b16 %v4169
    %v4269 = vpack.c.b16 %v4209, %v4205
    %v4270 = vpack.c.b16 %v4210, %v4206
    %v4271 = vpack.c.b16 %v4211, %v4207
    %v4272 = vpack.c.b16 %v4212, %v4208
    %v4273 = vpack.c.b16 %v4217, %v4213
    %v4274 = vpack.c.b16 %v4218, %v4214
    %v4275 = vpack.c.b16 %v4219, %v4215
    %v4276 = vpack.c.b16 %v4220, %v4216
    %v4277 = vpack.c.b16 %v4225, %v4221
    %v4278 = vpack.c.b16 %v4226, %v4222
    %v4279 = vpack.c.b16 %v4227, %v4223
    %v4280 = vpack.c.b16 %v4228, %v4224
    %v4281 = vpack.c.b16 %v4233, %v4229
    %v4282 = vpack.c.b16 %v4234, %v4230
    %v4283 = vpack.c.b16 %v4235, %v4231
    %v4284 = vpack.c.b16 %v4236, %v4232
    %v4285 = vpack.c.b16 %v4241, %v4237
    %v4286 = vpack.c.b16 %v4242, %v4238
    %v4287 = vpack.c.b16 %v4243, %v4239
    %v4288 = vpack.c.b16 %v4244, %v4240
    %v4289 = vpack.c.b16 %v4249, %v4245
    %v4290 = vpack.c.b16 %v4250, %v4246
    %v4291 = vpack.c.b16 %v4251, %v4247
    %v4292 = vpack.c.b16 %v4252, %v4248
    %v4293 = vpack.c.b16 %v4257, %v4253
    %v4294 = vpack.c.b16 %v4258, %v4254
    %v4295 = vpack.c.b16 %v4259, %v4255
    %v4296 = vpack.c.b16 %v4260, %v4256
    %v4297 = vpack.c.b16 %v4265, %v4261
    %v4298 = vpack.c.b16 %v4266, %v4262
    %v4299 = vpack.c.b16 %v4267, %v4263
    %v4300 = vpack.c.b16 %v4268, %v4264
    %4333 = vmatprep.subr.bf16.mxu0 %v4298
    %4334 = vmatpush1.bf16.msra.mxu0 %v4297
    %4335 = vmatprep.subr.bf16.mxu0 %v4294
    %4336 = vmatpush1.bf16.msra.mxu0 %v4293
    %4337 = vmatprep.subr.bf16.mxu0 %v4290
    %4338 = vmatpush1.bf16.msra.mxu0 %v4289
    %4339 = vmatprep.subr.bf16.mxu0 %v4286
    %4340 = vmatpush1.bf16.msra.mxu0 %v4285
    %4341 = vmatprep.subr.bf16.mxu0 %v4282
    %4342 = vmatpush1.bf16.msra.mxu0 %v4281
    %4343 = vmatprep.subr.bf16.mxu0 %v4278
    %4344 = vmatpush1.bf16.msra.mxu0 %v4277
    %4345 = vmatprep.subr.bf16.mxu0 %v4274
    %4346 = vmatpush1.bf16.msra.mxu0 %v4273
    %4347 = vmatprep.subr.bf16.mxu0 %v4270
    %4348 = vmatpush1.bf16.msra.mxu0 %v4269
    %4349 = vmatprep.subr.bf16.mxu0 0
    %4350 = vmatpush2.bf16.msra.mxu0 0
    %4351 = vmatprep.subr.bf16.mxu0 0
    %4352 = vmatpush2.bf16.msra.mxu0 0
    %4353 = vmatprep.subr.bf16.mxu0 0
    %4354 = vmatpush2.bf16.msra.mxu0 0
    %4355 = vmatprep.subr.bf16.mxu0 0
    %4356 = vmatpush2.bf16.msra.mxu0 0
    %4357 = vmatprep.subr.bf16.mxu0 0
    %4358 = vmatpush2.bf16.msra.mxu0 0
    %4359 = vmatprep.subr.bf16.mxu0 0
    %4360 = vmatpush2.bf16.msra.mxu0 0
    %4361 = vmatprep.subr.bf16.mxu0 0
    %4362 = vmatpush2.bf16.msra.mxu0 0
    %4363 = vmatprep.subr.bf16.mxu0 0
    %4364 = vmatpush2.bf16.msra.mxu0 0
    %4365 = vmatprep.mubr.bf16.mxu0 0
    %4366 = vmatmul.mubr.bf16.gmra.mxu0 %v4171
    %v4367 = vpop.f32.mrf.mxu0
    %v4368 = vadd.f32 0.0, %v4367
    %v4369 = vpop.f32.mrf.mxu0
    %v4370 = vadd.f32 0.0, %v4369
    %v4371 = vpop.f32.mrf.mxu0
    %v4372 = vpop.f32.mrf.mxu0
    %4373 = vdwg.mxu0
    %4374 = vmatprep.subr.bf16.mxu0 %v4300
    %4375 = vmatpush1.bf16.msra.mxu0 %v4299
    %4376 = vmatprep.subr.bf16.mxu0 %v4296
    %4377 = vmatpush1.bf16.msra.mxu0 %v4295
    %4378 = vmatprep.subr.bf16.mxu0 %v4292
    %4379 = vmatpush1.bf16.msra.mxu0 %v4291
    %4380 = vmatprep.subr.bf16.mxu0 %v4288
    %4381 = vmatpush1.bf16.msra.mxu0 %v4287
    %4382 = vmatprep.subr.bf16.mxu0 %v4284
    %4383 = vmatpush1.bf16.msra.mxu0 %v4283
    %4384 = vmatprep.subr.bf16.mxu0 %v4280
    %4385 = vmatpush1.bf16.msra.mxu0 %v4279
    %4386 = vmatprep.subr.bf16.mxu0 %v4276
    %4387 = vmatpush1.bf16.msra.mxu0 %v4275
    %4388 = vmatprep.subr.bf16.mxu0 %v4272
    %4389 = vmatpush1.bf16.msra.mxu0 %v4271
    %4390 = vmatprep.subr.bf16.mxu0 0
    %4391 = vmatpush2.bf16.msra.mxu0 0
    %4392 = vmatprep.subr.bf16.mxu0 0
    %4393 = vmatpush2.bf16.msra.mxu0 0
    %4394 = vmatprep.subr.bf16.mxu0 0
    %4395 = vmatpush2.bf16.msra.mxu0 0
    %4396 = vmatprep.subr.bf16.mxu0 0
    %4397 = vmatpush2.bf16.msra.mxu0 0
    %4398 = vmatprep.subr.bf16.mxu0 0
    %4399 = vmatpush2.bf16.msra.mxu0 0
    %4400 = vmatprep.subr.bf16.mxu0 0
    %4401 = vmatpush2.bf16.msra.mxu0 0
    %4402 = vmatprep.subr.bf16.mxu0 0
    %4403 = vmatpush2.bf16.msra.mxu0 0
    %4404 = vmatprep.subr.bf16.mxu0 0
    %4405 = vmatpush2.bf16.msra.mxu0 0
    %4406 = vmatprep.mubr.bf16.mxu0 0
    %4407 = vmatmul.mubr.bf16.gmra.mxu0 %v4171
    %v4408 = vpop.f32.mrf.mxu0
    %v4409 = vadd.f32 0.0, %v4408
    %v4410 = vpop.f32.mrf.mxu0
    %v4411 = vadd.f32 0.0, %v4410
    %v4412 = vpop.f32.mrf.mxu0
    %v4413 = vpop.f32.mrf.mxu0
    %4414 = vdwg.mxu0
    %v4419 = vrot.slane %v4368, 6
    %v4420 = vrot.slane %v4370, 6
    %v4421 = vrot.slane %v4409, 6
    %v4422 = vrot.slane %v4411, 6
    %v4427 = vadd.f32 %v4133, %v4419
    %v4428 = vadd.f32 %v4134, %v4420
    %v4429 = vadd.f32 %v4135, %v4421
    %v4430 = vadd.f32 %v4136, %v4422
    %v4431 = vxor.u32 %v4427, 2147483648
    %v4432 = vmul.f32 %v4431, 1.442695
    %v4433 = vpow.pop %v4432
    %v4434 = vadd.f32 %v4433, 1.0
    %v4435 = vrcp.pop %v4434
    %v4436 = vmul.f32 1.0, %v4435
    %v4437 = vxor.u32 %v4428, 2147483648
    %v4438 = vmul.f32 %v4437, 1.442695
    %v4439 = vpow.pop %v4438
    %v4440 = vadd.f32 %v4439, 1.0
    %v4441 = vrcp.pop %v4440
    %v4442 = vmul.f32 1.0, %v4441
    %v4443 = vtanh.pop %v4429
    %v4444 = vxor.u32 %v4430, 2147483648
    %v4445 = vmul.f32 %v4444, 1.442695
    %v4446 = vpow.pop %v4445
    %v4447 = vadd.f32 %v4446, 1.0
    %v4448 = vrcp.pop %v4447
    %v4449 = vmul.f32 1.0, %v4448
    %v4451 = vrot.slane %v3803, 2
    %v4453 = vmul.f32 %v4442, %v4451
    %v4454 = vmul.f32 %v4436, %v4443
    %v4455 = vadd.f32 %v4453, %v4454
    %v4456 = vtanh.pop %v4455
    %v4457 = vmul.f32 %v4449, %v4456
    %4458 = vst [vmem:[#allocation2 + $0x18] sm:$0xc] %v4457
    %v4459 = vld [vmem:[#allocation3] sm:$0xc0]
    %v4460 = vld [vmem:[#allocation3 + $0x8] sm:$0xc0]
    %v4461 = vld [vmem:[#allocation3 + $0x10] sm:$0xc0]
    %v4462 = vld [vmem:[#allocation3 + $0x18] sm:$0xc0]
    %v4463 = vpack.c.bf16 %v4131, %v4131
    %v4464 = vld [vmem:[%s37] sm:$0xff]
    %v4465 = vld [vmem:[%s37 + $0x8] sm:$0xff]
    %v4466 = vld [vmem:[%s37 + $0x10] sm:$0xff]
    %v4467 = vld [vmem:[%s37 + $0x18] sm:$0xff]
    %v4468 = vld [vmem:[%s37 + $0x20] sm:$0xff]
    %v4469 = vld [vmem:[%s37 + $0x28] sm:$0xff]
    %v4470 = vld [vmem:[%s37 + $0x30] sm:$0xff]
    %v4471 = vld [vmem:[%s37 + $0x38] sm:$0xff]
    %v4472 = vld [vmem:[%s37 + $0x40] sm:$0xff]
    %v4473 = vld [vmem:[%s37 + $0x48] sm:$0xff]
    %v4474 = vld [vmem:[%s37 + $0x50] sm:$0xff]
    %v4475 = vld [vmem:[%s37 + $0x58] sm:$0xff]
    %v4476 = vld [vmem:[%s37 + $0x60] sm:$0xff]
    %v4477 = vld [vmem:[%s37 + $0x68] sm:$0xff]
    %v4478 = vld [vmem:[%s37 + $0x70] sm:$0xff]
    %v4479 = vld [vmem:[%s37 + $0x78] sm:$0xff]
    %v4480 = vld [vmem:[%s37 + $0x80] sm:$0xff]
    %v4481 = vld [vmem:[%s37 + $0x88] sm:$0xff]
    %v4482 = vld [vmem:[%s37 + $0x90] sm:$0xff]
    %v4483 = vld [vmem:[%s37 + $0x98] sm:$0xff]
    %v4484 = vld [vmem:[%s37 + $0xa0] sm:$0xff]
    %v4485 = vld [vmem:[%s37 + $0xa8] sm:$0xff]
    %v4486 = vld [vmem:[%s37 + $0xb0] sm:$0xff]
    %v4487 = vld [vmem:[%s37 + $0xb8] sm:$0xff]
    %v4488 = vld [vmem:[%s37 + $0xc0] sm:$0xff]
    %v4489 = vld [vmem:[%s37 + $0xc8] sm:$0xff]
    %v4490 = vld [vmem:[%s37 + $0xd0] sm:$0xff]
    %v4491 = vld [vmem:[%s37 + $0xd8] sm:$0xff]
    %v4492 = vld [vmem:[%s37 + $0xe0] sm:$0xff]
    %v4493 = vld [vmem:[%s37 + $0xe8] sm:$0xff]
    %v4494 = vld [vmem:[%s37 + $0xf0] sm:$0xff]
    %v4495 = vld [vmem:[%s37 + $0xf8] sm:$0xff]
    %v4497 = vrot.slane %v4463, 2
    %v4531 = vunpack.c.l.b16 %v4464
    %v4532 = vunpack.c.h.b16 %v4464
    %v4533 = vunpack.c.l.b16 %v4465
    %v4534 = vunpack.c.h.b16 %v4465
    %v4535 = vunpack.c.l.b16 %v4466
    %v4536 = vunpack.c.h.b16 %v4466
    %v4537 = vunpack.c.l.b16 %v4467
    %v4538 = vunpack.c.h.b16 %v4467
    %v4539 = vunpack.c.l.b16 %v4468
    %v4540 = vunpack.c.h.b16 %v4468
    %v4541 = vunpack.c.l.b16 %v4469
    %v4542 = vunpack.c.h.b16 %v4469
    %v4543 = vunpack.c.l.b16 %v4470
    %v4544 = vunpack.c.h.b16 %v4470
    %v4545 = vunpack.c.l.b16 %v4471
    %v4546 = vunpack.c.h.b16 %v4471
    %v4547 = vunpack.c.l.b16 %v4472
    %v4548 = vunpack.c.h.b16 %v4472
    %v4549 = vunpack.c.l.b16 %v4473
    %v4550 = vunpack.c.h.b16 %v4473
    %v4551 = vunpack.c.l.b16 %v4474
    %v4552 = vunpack.c.h.b16 %v4474
    %v4553 = vunpack.c.l.b16 %v4475
    %v4554 = vunpack.c.h.b16 %v4475
    %v4555 = vunpack.c.l.b16 %v4476
    %v4556 = vunpack.c.h.b16 %v4476
    %v4557 = vunpack.c.l.b16 %v4477
    %v4558 = vunpack.c.h.b16 %v4477
    %v4559 = vunpack.c.l.b16 %v4478
    %v4560 = vunpack.c.h.b16 %v4478
    %v4561 = vunpack.c.l.b16 %v4479
    %v4562 = vunpack.c.h.b16 %v4479
    %v4563 = vunpack.c.l.b16 %v4480
    %v4564 = vunpack.c.h.b16 %v4480
    %v4565 = vunpack.c.l.b16 %v4481
    %v4566 = vunpack.c.h.b16 %v4481
    %v4567 = vunpack.c.l.b16 %v4482
    %v4568 = vunpack.c.h.b16 %v4482
    %v4569 = vunpack.c.l.b16 %v4483
    %v4570 = vunpack.c.h.b16 %v4483
    %v4571 = vunpack.c.l.b16 %v4484
    %v4572 = vunpack.c.h.b16 %v4484
    %v4573 = vunpack.c.l.b16 %v4485
    %v4574 = vunpack.c.h.b16 %v4485
    %v4575 = vunpack.c.l.b16 %v4486
    %v4576 = vunpack.c.h.b16 %v4486
    %v4577 = vunpack.c.l.b16 %v4487
    %v4578 = vunpack.c.h.b16 %v4487
    %v4579 = vunpack.c.l.b16 %v4488
    %v4580 = vunpack.c.h.b16 %v4488
    %v4581 = vunpack.c.l.b16 %v4489
    %v4582 = vunpack.c.h.b16 %v4489
    %v4583 = vunpack.c.l.b16 %v4490
    %v4584 = vunpack.c.h.b16 %v4490
    %v4585 = vunpack.c.l.b16 %v4491
    %v4586 = vunpack.c.h.b16 %v4491
    %v4587 = vunpack.c.l.b16 %v4492
    %v4588 = vunpack.c.h.b16 %v4492
    %v4589 = vunpack.c.l.b16 %v4493
    %v4590 = vunpack.c.h.b16 %v4493
    %v4591 = vunpack.c.l.b16 %v4494
    %v4592 = vunpack.c.h.b16 %v4494
    %v4593 = vunpack.c.l.b16 %v4495
    %v4594 = vunpack.c.h.b16 %v4495
    %v4595 = vpack.c.b16 %v4535, %v4531
    %v4596 = vpack.c.b16 %v4536, %v4532
    %v4597 = vpack.c.b16 %v4537, %v4533
    %v4598 = vpack.c.b16 %v4538, %v4534
    %v4599 = vpack.c.b16 %v4543, %v4539
    %v4600 = vpack.c.b16 %v4544, %v4540
    %v4601 = vpack.c.b16 %v4545, %v4541
    %v4602 = vpack.c.b16 %v4546, %v4542
    %v4603 = vpack.c.b16 %v4551, %v4547
    %v4604 = vpack.c.b16 %v4552, %v4548
    %v4605 = vpack.c.b16 %v4553, %v4549
    %v4606 = vpack.c.b16 %v4554, %v4550
    %v4607 = vpack.c.b16 %v4559, %v4555
    %v4608 = vpack.c.b16 %v4560, %v4556
    %v4609 = vpack.c.b16 %v4561, %v4557
    %v4610 = vpack.c.b16 %v4562, %v4558
    %v4611 = vpack.c.b16 %v4567, %v4563
    %v4612 = vpack.c.b16 %v4568, %v4564
    %v4613 = vpack.c.b16 %v4569, %v4565
    %v4614 = vpack.c.b16 %v4570, %v4566
    %v4615 = vpack.c.b16 %v4575, %v4571
    %v4616 = vpack.c.b16 %v4576, %v4572
    %v4617 = vpack.c.b16 %v4577, %v4573
    %v4618 = vpack.c.b16 %v4578, %v4574
    %v4619 = vpack.c.b16 %v4583, %v4579
    %v4620 = vpack.c.b16 %v4584, %v4580
    %v4621 = vpack.c.b16 %v4585, %v4581
    %v4622 = vpack.c.b16 %v4586, %v4582
    %v4623 = vpack.c.b16 %v4591, %v4587
    %v4624 = vpack.c.b16 %v4592, %v4588
    %v4625 = vpack.c.b16 %v4593, %v4589
    %v4626 = vpack.c.b16 %v4594, %v4590
    %4659 = vmatprep.subr.bf16.mxu0 %v4624
    %4660 = vmatpush1.bf16.msra.mxu0 %v4623
    %4661 = vmatprep.subr.bf16.mxu0 %v4620
    %4662 = vmatpush1.bf16.msra.mxu0 %v4619
    %4663 = vmatprep.subr.bf16.mxu0 %v4616
    %4664 = vmatpush1.bf16.msra.mxu0 %v4615
    %4665 = vmatprep.subr.bf16.mxu0 %v4612
    %4666 = vmatpush1.bf16.msra.mxu0 %v4611
    %4667 = vmatprep.subr.bf16.mxu0 %v4608
    %4668 = vmatpush1.bf16.msra.mxu0 %v4607
    %4669 = vmatprep.subr.bf16.mxu0 %v4604
    %4670 = vmatpush1.bf16.msra.mxu0 %v4603
    %4671 = vmatprep.subr.bf16.mxu0 %v4600
    %4672 = vmatpush1.bf16.msra.mxu0 %v4599
    %4673 = vmatprep.subr.bf16.mxu0 %v4596
    %4674 = vmatpush1.bf16.msra.mxu0 %v4595
    %4675 = vmatprep.subr.bf16.mxu0 0
    %4676 = vmatpush2.bf16.msra.mxu0 0
    %4677 = vmatprep.subr.bf16.mxu0 0
    %4678 = vmatpush2.bf16.msra.mxu0 0
    %4679 = vmatprep.subr.bf16.mxu0 0
    %4680 = vmatpush2.bf16.msra.mxu0 0
    %4681 = vmatprep.subr.bf16.mxu0 0
    %4682 = vmatpush2.bf16.msra.mxu0 0
    %4683 = vmatprep.subr.bf16.mxu0 0
    %4684 = vmatpush2.bf16.msra.mxu0 0
    %4685 = vmatprep.subr.bf16.mxu0 0
    %4686 = vmatpush2.bf16.msra.mxu0 0
    %4687 = vmatprep.subr.bf16.mxu0 0
    %4688 = vmatpush2.bf16.msra.mxu0 0
    %4689 = vmatprep.subr.bf16.mxu0 0
    %4690 = vmatpush2.bf16.msra.mxu0 0
    %4691 = vmatprep.mubr.bf16.mxu0 0
    %4692 = vmatmul.mubr.bf16.gmra.mxu0 %v4497
    %v4693 = vpop.f32.mrf.mxu0
    %v4694 = vadd.f32 0.0, %v4693
    %v4695 = vpop.f32.mrf.mxu0
    %v4696 = vadd.f32 0.0, %v4695
    %v4697 = vpop.f32.mrf.mxu0
    %v4698 = vpop.f32.mrf.mxu0
    %4699 = vdwg.mxu0
    %4700 = vmatprep.subr.bf16.mxu0 %v4626
    %4701 = vmatpush1.bf16.msra.mxu0 %v4625
    %4702 = vmatprep.subr.bf16.mxu0 %v4622
    %4703 = vmatpush1.bf16.msra.mxu0 %v4621
    %4704 = vmatprep.subr.bf16.mxu0 %v4618
    %4705 = vmatpush1.bf16.msra.mxu0 %v4617
    %4706 = vmatprep.subr.bf16.mxu0 %v4614
    %4707 = vmatpush1.bf16.msra.mxu0 %v4613
    %4708 = vmatprep.subr.bf16.mxu0 %v4610
    %4709 = vmatpush1.bf16.msra.mxu0 %v4609
    %4710 = vmatprep.subr.bf16.mxu0 %v4606
    %4711 = vmatpush1.bf16.msra.mxu0 %v4605
    %4712 = vmatprep.subr.bf16.mxu0 %v4602
    %4713 = vmatpush1.bf16.msra.mxu0 %v4601
    %4714 = vmatprep.subr.bf16.mxu0 %v4598
    %4715 = vmatpush1.bf16.msra.mxu0 %v4597
    %4716 = vmatprep.subr.bf16.mxu0 0
    %4717 = vmatpush2.bf16.msra.mxu0 0
    %4718 = vmatprep.subr.bf16.mxu0 0
    %4719 = vmatpush2.bf16.msra.mxu0 0
    %4720 = vmatprep.subr.bf16.mxu0 0
    %4721 = vmatpush2.bf16.msra.mxu0 0
    %4722 = vmatprep.subr.bf16.mxu0 0
    %4723 = vmatpush2.bf16.msra.mxu0 0
    %4724 = vmatprep.subr.bf16.mxu0 0
    %4725 = vmatpush2.bf16.msra.mxu0 0
    %4726 = vmatprep.subr.bf16.mxu0 0
    %4727 = vmatpush2.bf16.msra.mxu0 0
    %4728 = vmatprep.subr.bf16.mxu0 0
    %4729 = vmatpush2.bf16.msra.mxu0 0
    %4730 = vmatprep.subr.bf16.mxu0 0
    %4731 = vmatpush2.bf16.msra.mxu0 0
    %4732 = vmatprep.mubr.bf16.mxu0 0
    %4733 = vmatmul.mubr.bf16.gmra.mxu0 %v4497
    %v4734 = vpop.f32.mrf.mxu0
    %v4735 = vadd.f32 0.0, %v4734
    %v4736 = vpop.f32.mrf.mxu0
    %v4737 = vadd.f32 0.0, %v4736
    %v4738 = vpop.f32.mrf.mxu0
    %v4739 = vpop.f32.mrf.mxu0
    %4740 = vdwg.mxu0
    %v4745 = vrot.slane %v4694, 2
    %v4746 = vrot.slane %v4696, 2
    %v4747 = vrot.slane %v4735, 2
    %v4748 = vrot.slane %v4737, 2
    %v4753 = vadd.f32 %v4459, %v4745
    %v4754 = vadd.f32 %v4460, %v4746
    %v4755 = vadd.f32 %v4461, %v4747
    %v4756 = vadd.f32 %v4462, %v4748
    %v4757 = vxor.u32 %v4753, 2147483648
    %v4758 = vmul.f32 %v4757, 1.442695
    %v4759 = vpow.pop %v4758
    %v4760 = vadd.f32 %v4759, 1.0
    %v4761 = vrcp.pop %v4760
    %v4762 = vmul.f32 1.0, %v4761
    %v4763 = vxor.u32 %v4754, 2147483648
    %v4764 = vmul.f32 %v4763, 1.442695
    %v4765 = vpow.pop %v4764
    %v4766 = vadd.f32 %v4765, 1.0
    %v4767 = vrcp.pop %v4766
    %v4768 = vmul.f32 1.0, %v4767
    %v4769 = vtanh.pop %v4755
    %v4770 = vxor.u32 %v4756, 2147483648
    %v4771 = vmul.f32 %v4770, 1.442695
    %v4772 = vpow.pop %v4771
    %v4773 = vadd.f32 %v4772, 1.0
    %v4774 = vrcp.pop %v4773
    %v4775 = vmul.f32 1.0, %v4774
    %v4777 = vrot.slane %v4129, 6
    %v4779 = vmul.f32 %v4768, %v4777
    %v4780 = vmul.f32 %v4762, %v4769
    %v4781 = vadd.f32 %v4779, %v4780
    %v4782 = vtanh.pop %v4781
    %v4783 = vmul.f32 %v4775, %v4782
    %4784 = vst [vmem:[#allocation2] sm:$0xc0] %v4783
    %v4785 = vld [vmem:[#allocation4 + $0x20] sm:$0x3]
    %v4786 = vld [vmem:[#allocation4 + $0x28] sm:$0x3]
    %v4787 = vld [vmem:[#allocation4 + $0x30] sm:$0x3]
    %v4788 = vld [vmem:[#allocation4 + $0x38] sm:$0x3]
    %v4789 = vpack.c.bf16 %v4457, %v4457
    %v4790 = vld [vmem:[%s43] sm:$0xff]
    %v4791 = vld [vmem:[%s43 + $0x8] sm:$0xff]
    %v4792 = vld [vmem:[%s43 + $0x10] sm:$0xff]
    %v4793 = vld [vmem:[%s43 + $0x18] sm:$0xff]
    %v4794 = vld [vmem:[%s43 + $0x20] sm:$0xff]
    %v4795 = vld [vmem:[%s43 + $0x28] sm:$0xff]
    %v4796 = vld [vmem:[%s43 + $0x30] sm:$0xff]
    %v4797 = vld [vmem:[%s43 + $0x38] sm:$0xff]
    %v4798 = vld [vmem:[%s43 + $0x40] sm:$0xff]
    %v4799 = vld [vmem:[%s43 + $0x48] sm:$0xff]
    %v4800 = vld [vmem:[%s43 + $0x50] sm:$0xff]
    %v4801 = vld [vmem:[%s43 + $0x58] sm:$0xff]
    %v4802 = vld [vmem:[%s43 + $0x60] sm:$0xff]
    %v4803 = vld [vmem:[%s43 + $0x68] sm:$0xff]
    %v4804 = vld [vmem:[%s43 + $0x70] sm:$0xff]
    %v4805 = vld [vmem:[%s43 + $0x78] sm:$0xff]
    %v4806 = vld [vmem:[%s43 + $0x80] sm:$0xff]
    %v4807 = vld [vmem:[%s43 + $0x88] sm:$0xff]
    %v4808 = vld [vmem:[%s43 + $0x90] sm:$0xff]
    %v4809 = vld [vmem:[%s43 + $0x98] sm:$0xff]
    %v4810 = vld [vmem:[%s43 + $0xa0] sm:$0xff]
    %v4811 = vld [vmem:[%s43 + $0xa8] sm:$0xff]
    %v4812 = vld [vmem:[%s43 + $0xb0] sm:$0xff]
    %v4813 = vld [vmem:[%s43 + $0xb8] sm:$0xff]
    %v4814 = vld [vmem:[%s43 + $0xc0] sm:$0xff]
    %v4815 = vld [vmem:[%s43 + $0xc8] sm:$0xff]
    %v4816 = vld [vmem:[%s43 + $0xd0] sm:$0xff]
    %v4817 = vld [vmem:[%s43 + $0xd8] sm:$0xff]
    %v4818 = vld [vmem:[%s43 + $0xe0] sm:$0xff]
    %v4819 = vld [vmem:[%s43 + $0xe8] sm:$0xff]
    %v4820 = vld [vmem:[%s43 + $0xf0] sm:$0xff]
    %v4821 = vld [vmem:[%s43 + $0xf8] sm:$0xff]
    %v4823 = vrot.slane %v4789, 1
    %v4857 = vunpack.c.l.b16 %v4790
    %v4858 = vunpack.c.h.b16 %v4790
    %v4859 = vunpack.c.l.b16 %v4791
    %v4860 = vunpack.c.h.b16 %v4791
    %v4861 = vunpack.c.l.b16 %v4792
    %v4862 = vunpack.c.h.b16 %v4792
    %v4863 = vunpack.c.l.b16 %v4793
    %v4864 = vunpack.c.h.b16 %v4793
    %v4865 = vunpack.c.l.b16 %v4794
    %v4866 = vunpack.c.h.b16 %v4794
    %v4867 = vunpack.c.l.b16 %v4795
    %v4868 = vunpack.c.h.b16 %v4795
    %v4869 = vunpack.c.l.b16 %v4796
    %v4870 = vunpack.c.h.b16 %v4796
    %v4871 = vunpack.c.l.b16 %v4797
    %v4872 = vunpack.c.h.b16 %v4797
    %v4873 = vunpack.c.l.b16 %v4798
    %v4874 = vunpack.c.h.b16 %v4798
    %v4875 = vunpack.c.l.b16 %v4799
    %v4876 = vunpack.c.h.b16 %v4799
    %v4877 = vunpack.c.l.b16 %v4800
    %v4878 = vunpack.c.h.b16 %v4800
    %v4879 = vunpack.c.l.b16 %v4801
    %v4880 = vunpack.c.h.b16 %v4801
    %v4881 = vunpack.c.l.b16 %v4802
    %v4882 = vunpack.c.h.b16 %v4802
    %v4883 = vunpack.c.l.b16 %v4803
    %v4884 = vunpack.c.h.b16 %v4803
    %v4885 = vunpack.c.l.b16 %v4804
    %v4886 = vunpack.c.h.b16 %v4804
    %v4887 = vunpack.c.l.b16 %v4805
    %v4888 = vunpack.c.h.b16 %v4805
    %v4889 = vunpack.c.l.b16 %v4806
    %v4890 = vunpack.c.h.b16 %v4806
    %v4891 = vunpack.c.l.b16 %v4807
    %v4892 = vunpack.c.h.b16 %v4807
    %v4893 = vunpack.c.l.b16 %v4808
    %v4894 = vunpack.c.h.b16 %v4808
    %v4895 = vunpack.c.l.b16 %v4809
    %v4896 = vunpack.c.h.b16 %v4809
    %v4897 = vunpack.c.l.b16 %v4810
    %v4898 = vunpack.c.h.b16 %v4810
    %v4899 = vunpack.c.l.b16 %v4811
    %v4900 = vunpack.c.h.b16 %v4811
    %v4901 = vunpack.c.l.b16 %v4812
    %v4902 = vunpack.c.h.b16 %v4812
    %v4903 = vunpack.c.l.b16 %v4813
    %v4904 = vunpack.c.h.b16 %v4813
    %v4905 = vunpack.c.l.b16 %v4814
    %v4906 = vunpack.c.h.b16 %v4814
    %v4907 = vunpack.c.l.b16 %v4815
    %v4908 = vunpack.c.h.b16 %v4815
    %v4909 = vunpack.c.l.b16 %v4816
    %v4910 = vunpack.c.h.b16 %v4816
    %v4911 = vunpack.c.l.b16 %v4817
    %v4912 = vunpack.c.h.b16 %v4817
    %v4913 = vunpack.c.l.b16 %v4818
    %v4914 = vunpack.c.h.b16 %v4818
    %v4915 = vunpack.c.l.b16 %v4819
    %v4916 = vunpack.c.h.b16 %v4819
    %v4917 = vunpack.c.l.b16 %v4820
    %v4918 = vunpack.c.h.b16 %v4820
    %v4919 = vunpack.c.l.b16 %v4821
    %v4920 = vunpack.c.h.b16 %v4821
    %v4921 = vpack.c.b16 %v4861, %v4857
    %v4922 = vpack.c.b16 %v4862, %v4858
    %v4923 = vpack.c.b16 %v4863, %v4859
    %v4924 = vpack.c.b16 %v4864, %v4860
    %v4925 = vpack.c.b16 %v4869, %v4865
    %v4926 = vpack.c.b16 %v4870, %v4866
    %v4927 = vpack.c.b16 %v4871, %v4867
    %v4928 = vpack.c.b16 %v4872, %v4868
    %v4929 = vpack.c.b16 %v4877, %v4873
    %v4930 = vpack.c.b16 %v4878, %v4874
    %v4931 = vpack.c.b16 %v4879, %v4875
    %v4932 = vpack.c.b16 %v4880, %v4876
    %v4933 = vpack.c.b16 %v4885, %v4881
    %v4934 = vpack.c.b16 %v4886, %v4882
    %v4935 = vpack.c.b16 %v4887, %v4883
    %v4936 = vpack.c.b16 %v4888, %v4884
    %v4937 = vpack.c.b16 %v4893, %v4889
    %v4938 = vpack.c.b16 %v4894, %v4890
    %v4939 = vpack.c.b16 %v4895, %v4891
    %v4940 = vpack.c.b16 %v4896, %v4892
    %v4941 = vpack.c.b16 %v4901, %v4897
    %v4942 = vpack.c.b16 %v4902, %v4898
    %v4943 = vpack.c.b16 %v4903, %v4899
    %v4944 = vpack.c.b16 %v4904, %v4900
    %v4945 = vpack.c.b16 %v4909, %v4905
    %v4946 = vpack.c.b16 %v4910, %v4906
    %v4947 = vpack.c.b16 %v4911, %v4907
    %v4948 = vpack.c.b16 %v4912, %v4908
    %v4949 = vpack.c.b16 %v4917, %v4913
    %v4950 = vpack.c.b16 %v4918, %v4914
    %v4951 = vpack.c.b16 %v4919, %v4915
    %v4952 = vpack.c.b16 %v4920, %v4916
    %4985 = vmatprep.subr.bf16.mxu0 %v4950
    %4986 = vmatpush1.bf16.msra.mxu0 %v4949
    %4987 = vmatprep.subr.bf16.mxu0 %v4946
    %4988 = vmatpush1.bf16.msra.mxu0 %v4945
    %4989 = vmatprep.subr.bf16.mxu0 %v4942
    %4990 = vmatpush1.bf16.msra.mxu0 %v4941
    %4991 = vmatprep.subr.bf16.mxu0 %v4938
    %4992 = vmatpush1.bf16.msra.mxu0 %v4937
    %4993 = vmatprep.subr.bf16.mxu0 %v4934
    %4994 = vmatpush1.bf16.msra.mxu0 %v4933
    %4995 = vmatprep.subr.bf16.mxu0 %v4930
    %4996 = vmatpush1.bf16.msra.mxu0 %v4929
    %4997 = vmatprep.subr.bf16.mxu0 %v4926
    %4998 = vmatpush1.bf16.msra.mxu0 %v4925
    %4999 = vmatprep.subr.bf16.mxu0 %v4922
    %5000 = vmatpush1.bf16.msra.mxu0 %v4921
    %5001 = vmatprep.subr.bf16.mxu0 0
    %5002 = vmatpush2.bf16.msra.mxu0 0
    %5003 = vmatprep.subr.bf16.mxu0 0
    %5004 = vmatpush2.bf16.msra.mxu0 0
    %5005 = vmatprep.subr.bf16.mxu0 0
    %5006 = vmatpush2.bf16.msra.mxu0 0
    %5007 = vmatprep.subr.bf16.mxu0 0
    %5008 = vmatpush2.bf16.msra.mxu0 0
    %5009 = vmatprep.subr.bf16.mxu0 0
    %5010 = vmatpush2.bf16.msra.mxu0 0
    %5011 = vmatprep.subr.bf16.mxu0 0
    %5012 = vmatpush2.bf16.msra.mxu0 0
    %5013 = vmatprep.subr.bf16.mxu0 0
    %5014 = vmatpush2.bf16.msra.mxu0 0
    %5015 = vmatprep.subr.bf16.mxu0 0
    %5016 = vmatpush2.bf16.msra.mxu0 0
    %5017 = vmatprep.mubr.bf16.mxu0 0
    %5018 = vmatmul.mubr.bf16.gmra.mxu0 %v4823
    %v5019 = vpop.f32.mrf.mxu0
    %v5020 = vadd.f32 0.0, %v5019
    %v5021 = vpop.f32.mrf.mxu0
    %v5022 = vadd.f32 0.0, %v5021
    %v5023 = vpop.f32.mrf.mxu0
    %v5024 = vpop.f32.mrf.mxu0
    %5025 = vdwg.mxu0
    %5026 = vmatprep.subr.bf16.mxu0 %v4952
    %5027 = vmatpush1.bf16.msra.mxu0 %v4951
    %5028 = vmatprep.subr.bf16.mxu0 %v4948
    %5029 = vmatpush1.bf16.msra.mxu0 %v4947
    %5030 = vmatprep.subr.bf16.mxu0 %v4944
    %5031 = vmatpush1.bf16.msra.mxu0 %v4943
    %5032 = vmatprep.subr.bf16.mxu0 %v4940
    %5033 = vmatpush1.bf16.msra.mxu0 %v4939
    %5034 = vmatprep.subr.bf16.mxu0 %v4936
    %5035 = vmatpush1.bf16.msra.mxu0 %v4935
    %5036 = vmatprep.subr.bf16.mxu0 %v4932
    %5037 = vmatpush1.bf16.msra.mxu0 %v4931
    %5038 = vmatprep.subr.bf16.mxu0 %v4928
    %5039 = vmatpush1.bf16.msra.mxu0 %v4927
    %5040 = vmatprep.subr.bf16.mxu0 %v4924
    %5041 = vmatpush1.bf16.msra.mxu0 %v4923
    %5042 = vmatprep.subr.bf16.mxu0 0
    %5043 = vmatpush2.bf16.msra.mxu0 0
    %5044 = vmatprep.subr.bf16.mxu0 0
    %5045 = vmatpush2.bf16.msra.mxu0 0
    %5046 = vmatprep.subr.bf16.mxu0 0
    %5047 = vmatpush2.bf16.msra.mxu0 0
    %5048 = vmatprep.subr.bf16.mxu0 0
    %5049 = vmatpush2.bf16.msra.mxu0 0
    %5050 = vmatprep.subr.bf16.mxu0 0
    %5051 = vmatpush2.bf16.msra.mxu0 0
    %5052 = vmatprep.subr.bf16.mxu0 0
    %5053 = vmatpush2.bf16.msra.mxu0 0
    %5054 = vmatprep.subr.bf16.mxu0 0
    %5055 = vmatpush2.bf16.msra.mxu0 0
    %5056 = vmatprep.subr.bf16.mxu0 0
    %5057 = vmatpush2.bf16.msra.mxu0 0
    %5058 = vmatprep.mubr.bf16.mxu0 0
    %5059 = vmatmul.mubr.bf16.gmra.mxu0 %v4823
    %v5060 = vpop.f32.mrf.mxu0
    %v5061 = vadd.f32 0.0, %v5060
    %v5062 = vpop.f32.mrf.mxu0
    %v5063 = vadd.f32 0.0, %v5062
    %v5064 = vpop.f32.mrf.mxu0
    %v5065 = vpop.f32.mrf.mxu0
    %5066 = vdwg.mxu0
    %v5067 = vadd.f32 %v4785, %v5020
    %v5068 = vadd.f32 %v4786, %v5022
    %v5069 = vadd.f32 %v4787, %v5061
    %v5070 = vadd.f32 %v4788, %v5063
    %v5071 = vxor.u32 %v5067, 2147483648
    %v5072 = vmul.f32 %v5071, 1.442695
    %v5073 = vpow.pop %v5072
    %v5074 = vadd.f32 %v5073, 1.0
    %v5075 = vrcp.pop %v5074
    %v5076 = vmul.f32 1.0, %v5075
    %v5077 = vxor.u32 %v5068, 2147483648
    %v5078 = vmul.f32 %v5077, 1.442695
    %v5079 = vpow.pop %v5078
    %v5080 = vadd.f32 %v5079, 1.0
    %v5081 = vrcp.pop %v5080
    %v5082 = vmul.f32 1.0, %v5081
    %v5083 = vtanh.pop %v5069
    %v5084 = vxor.u32 %v5070, 2147483648
    %v5085 = vmul.f32 %v5084, 1.442695
    %v5086 = vpow.pop %v5085
    %v5087 = vadd.f32 %v5086, 1.0
    %v5088 = vrcp.pop %v5087
    %v5089 = vmul.f32 1.0, %v5088
    %v5091 = vrot.slane %v4455, 2
    %v5093 = vmul.f32 %v5082, %v5091
    %v5094 = vmul.f32 %v5076, %v5083
    %v5095 = vadd.f32 %v5093, %v5094
    %v5096 = vtanh.pop %v5095
    %v5097 = vmul.f32 %v5089, %v5096
    %5098 = vst [vmem:[#allocation2 + $0x18] sm:$0x3] %v5097
    %v5099 = vld [vmem:[#allocation3 + $0x20] sm:$0x3]
    %v5100 = vld [vmem:[#allocation3 + $0x28] sm:$0x3]
    %v5101 = vld [vmem:[#allocation3 + $0x30] sm:$0x3]
    %v5102 = vld [vmem:[#allocation3 + $0x38] sm:$0x3]
    %v5103 = vpack.c.bf16 %v4783, %v4783
    %v5104 = vld [vmem:[%s37] sm:$0xff]
    %v5105 = vld [vmem:[%s37 + $0x8] sm:$0xff]
    %v5106 = vld [vmem:[%s37 + $0x10] sm:$0xff]
    %v5107 = vld [vmem:[%s37 + $0x18] sm:$0xff]
    %v5108 = vld [vmem:[%s37 + $0x20] sm:$0xff]
    %v5109 = vld [vmem:[%s37 + $0x28] sm:$0xff]
    %v5110 = vld [vmem:[%s37 + $0x30] sm:$0xff]
    %v5111 = vld [vmem:[%s37 + $0x38] sm:$0xff]
    %v5112 = vld [vmem:[%s37 + $0x40] sm:$0xff]
    %v5113 = vld [vmem:[%s37 + $0x48] sm:$0xff]
    %v5114 = vld [vmem:[%s37 + $0x50] sm:$0xff]
    %v5115 = vld [vmem:[%s37 + $0x58] sm:$0xff]
    %v5116 = vld [vmem:[%s37 + $0x60] sm:$0xff]
    %v5117 = vld [vmem:[%s37 + $0x68] sm:$0xff]
    %v5118 = vld [vmem:[%s37 + $0x70] sm:$0xff]
    %v5119 = vld [vmem:[%s37 + $0x78] sm:$0xff]
    %v5120 = vld [vmem:[%s37 + $0x80] sm:$0xff]
    %v5121 = vld [vmem:[%s37 + $0x88] sm:$0xff]
    %v5122 = vld [vmem:[%s37 + $0x90] sm:$0xff]
    %v5123 = vld [vmem:[%s37 + $0x98] sm:$0xff]
    %v5124 = vld [vmem:[%s37 + $0xa0] sm:$0xff]
    %v5125 = vld [vmem:[%s37 + $0xa8] sm:$0xff]
    %v5126 = vld [vmem:[%s37 + $0xb0] sm:$0xff]
    %v5127 = vld [vmem:[%s37 + $0xb8] sm:$0xff]
    %v5128 = vld [vmem:[%s37 + $0xc0] sm:$0xff]
    %v5129 = vld [vmem:[%s37 + $0xc8] sm:$0xff]
    %v5130 = vld [vmem:[%s37 + $0xd0] sm:$0xff]
    %v5131 = vld [vmem:[%s37 + $0xd8] sm:$0xff]
    %v5132 = vld [vmem:[%s37 + $0xe0] sm:$0xff]
    %v5133 = vld [vmem:[%s37 + $0xe8] sm:$0xff]
    %v5134 = vld [vmem:[%s37 + $0xf0] sm:$0xff]
    %v5135 = vld [vmem:[%s37 + $0xf8] sm:$0xff]
    %v5137 = vrot.slane %v5103, 3
    %v5171 = vunpack.c.l.b16 %v5104
    %v5172 = vunpack.c.h.b16 %v5104
    %v5173 = vunpack.c.l.b16 %v5105
    %v5174 = vunpack.c.h.b16 %v5105
    %v5175 = vunpack.c.l.b16 %v5106
    %v5176 = vunpack.c.h.b16 %v5106
    %v5177 = vunpack.c.l.b16 %v5107
    %v5178 = vunpack.c.h.b16 %v5107
    %v5179 = vunpack.c.l.b16 %v5108
    %v5180 = vunpack.c.h.b16 %v5108
    %v5181 = vunpack.c.l.b16 %v5109
    %v5182 = vunpack.c.h.b16 %v5109
    %v5183 = vunpack.c.l.b16 %v5110
    %v5184 = vunpack.c.h.b16 %v5110
    %v5185 = vunpack.c.l.b16 %v5111
    %v5186 = vunpack.c.h.b16 %v5111
    %v5187 = vunpack.c.l.b16 %v5112
    %v5188 = vunpack.c.h.b16 %v5112
    %v5189 = vunpack.c.l.b16 %v5113
    %v5190 = vunpack.c.h.b16 %v5113
    %v5191 = vunpack.c.l.b16 %v5114
    %v5192 = vunpack.c.h.b16 %v5114
    %v5193 = vunpack.c.l.b16 %v5115
    %v5194 = vunpack.c.h.b16 %v5115
    %v5195 = vunpack.c.l.b16 %v5116
    %v5196 = vunpack.c.h.b16 %v5116
    %v5197 = vunpack.c.l.b16 %v5117
    %v5198 = vunpack.c.h.b16 %v5117
    %v5199 = vunpack.c.l.b16 %v5118
    %v5200 = vunpack.c.h.b16 %v5118
    %v5201 = vunpack.c.l.b16 %v5119
    %v5202 = vunpack.c.h.b16 %v5119
    %v5203 = vunpack.c.l.b16 %v5120
    %v5204 = vunpack.c.h.b16 %v5120
    %v5205 = vunpack.c.l.b16 %v5121
    %v5206 = vunpack.c.h.b16 %v5121
    %v5207 = vunpack.c.l.b16 %v5122
    %v5208 = vunpack.c.h.b16 %v5122
    %v5209 = vunpack.c.l.b16 %v5123
    %v5210 = vunpack.c.h.b16 %v5123
    %v5211 = vunpack.c.l.b16 %v5124
    %v5212 = vunpack.c.h.b16 %v5124
    %v5213 = vunpack.c.l.b16 %v5125
    %v5214 = vunpack.c.h.b16 %v5125
    %v5215 = vunpack.c.l.b16 %v5126
    %v5216 = vunpack.c.h.b16 %v5126
    %v5217 = vunpack.c.l.b16 %v5127
    %v5218 = vunpack.c.h.b16 %v5127
    %v5219 = vunpack.c.l.b16 %v5128
    %v5220 = vunpack.c.h.b16 %v5128
    %v5221 = vunpack.c.l.b16 %v5129
    %v5222 = vunpack.c.h.b16 %v5129
    %v5223 = vunpack.c.l.b16 %v5130
    %v5224 = vunpack.c.h.b16 %v5130
    %v5225 = vunpack.c.l.b16 %v5131
    %v5226 = vunpack.c.h.b16 %v5131
    %v5227 = vunpack.c.l.b16 %v5132
    %v5228 = vunpack.c.h.b16 %v5132
    %v5229 = vunpack.c.l.b16 %v5133
    %v5230 = vunpack.c.h.b16 %v5133
    %v5231 = vunpack.c.l.b16 %v5134
    %v5232 = vunpack.c.h.b16 %v5134
    %v5233 = vunpack.c.l.b16 %v5135
    %v5234 = vunpack.c.h.b16 %v5135
    %v5235 = vpack.c.b16 %v5175, %v5171
    %v5236 = vpack.c.b16 %v5176, %v5172
    %v5237 = vpack.c.b16 %v5177, %v5173
    %v5238 = vpack.c.b16 %v5178, %v5174
    %v5239 = vpack.c.b16 %v5183, %v5179
    %v5240 = vpack.c.b16 %v5184, %v5180
    %v5241 = vpack.c.b16 %v5185, %v5181
    %v5242 = vpack.c.b16 %v5186, %v5182
    %v5243 = vpack.c.b16 %v5191, %v5187
    %v5244 = vpack.c.b16 %v5192, %v5188
    %v5245 = vpack.c.b16 %v5193, %v5189
    %v5246 = vpack.c.b16 %v5194, %v5190
    %v5247 = vpack.c.b16 %v5199, %v5195
    %v5248 = vpack.c.b16 %v5200, %v5196
    %v5249 = vpack.c.b16 %v5201, %v5197
    %v5250 = vpack.c.b16 %v5202, %v5198
    %v5251 = vpack.c.b16 %v5207, %v5203
    %v5252 = vpack.c.b16 %v5208, %v5204
    %v5253 = vpack.c.b16 %v5209, %v5205
    %v5254 = vpack.c.b16 %v5210, %v5206
    %v5255 = vpack.c.b16 %v5215, %v5211
    %v5256 = vpack.c.b16 %v5216, %v5212
    %v5257 = vpack.c.b16 %v5217, %v5213
    %v5258 = vpack.c.b16 %v5218, %v5214
    %v5259 = vpack.c.b16 %v5223, %v5219
    %v5260 = vpack.c.b16 %v5224, %v5220
    %v5261 = vpack.c.b16 %v5225, %v5221
    %v5262 = vpack.c.b16 %v5226, %v5222
    %v5263 = vpack.c.b16 %v5231, %v5227
    %v5264 = vpack.c.b16 %v5232, %v5228
    %v5265 = vpack.c.b16 %v5233, %v5229
    %v5266 = vpack.c.b16 %v5234, %v5230
    %5299 = vmatprep.subr.bf16.mxu0 %v5264
    %5300 = vmatpush1.bf16.msra.mxu0 %v5263
    %5301 = vmatprep.subr.bf16.mxu0 %v5260
    %5302 = vmatpush1.bf16.msra.mxu0 %v5259
    %5303 = vmatprep.subr.bf16.mxu0 %v5256
    %5304 = vmatpush1.bf16.msra.mxu0 %v5255
    %5305 = vmatprep.subr.bf16.mxu0 %v5252
    %5306 = vmatpush1.bf16.msra.mxu0 %v5251
    %5307 = vmatprep.subr.bf16.mxu0 %v5248
    %5308 = vmatpush1.bf16.msra.mxu0 %v5247
    %5309 = vmatprep.subr.bf16.mxu0 %v5244
    %5310 = vmatpush1.bf16.msra.mxu0 %v5243
    %5311 = vmatprep.subr.bf16.mxu0 %v5240
    %5312 = vmatpush1.bf16.msra.mxu0 %v5239
    %5313 = vmatprep.subr.bf16.mxu0 %v5236
    %5314 = vmatpush1.bf16.msra.mxu0 %v5235
    %5315 = vmatprep.subr.bf16.mxu0 0
    %5316 = vmatpush2.bf16.msra.mxu0 0
    %5317 = vmatprep.subr.bf16.mxu0 0
    %5318 = vmatpush2.bf16.msra.mxu0 0
    %5319 = vmatprep.subr.bf16.mxu0 0
    %5320 = vmatpush2.bf16.msra.mxu0 0
    %5321 = vmatprep.subr.bf16.mxu0 0
    %5322 = vmatpush2.bf16.msra.mxu0 0
    %5323 = vmatprep.subr.bf16.mxu0 0
    %5324 = vmatpush2.bf16.msra.mxu0 0
    %5325 = vmatprep.subr.bf16.mxu0 0
    %5326 = vmatpush2.bf16.msra.mxu0 0
    %5327 = vmatprep.subr.bf16.mxu0 0
    %5328 = vmatpush2.bf16.msra.mxu0 0
    %5329 = vmatprep.subr.bf16.mxu0 0
    %5330 = vmatpush2.bf16.msra.mxu0 0
    %5331 = vmatprep.mubr.bf16.mxu0 0
    %5332 = vmatmul.mubr.bf16.gmra.mxu0 %v5137
    %v5333 = vpop.f32.mrf.mxu0
    %v5334 = vadd.f32 0.0, %v5333
    %v5335 = vpop.f32.mrf.mxu0
    %v5336 = vadd.f32 0.0, %v5335
    %v5337 = vpop.f32.mrf.mxu0
    %v5338 = vpop.f32.mrf.mxu0
    %5339 = vdwg.mxu0
    %5340 = vmatprep.subr.bf16.mxu0 %v5266
    %5341 = vmatpush1.bf16.msra.mxu0 %v5265
    %5342 = vmatprep.subr.bf16.mxu0 %v5262
    %5343 = vmatpush1.bf16.msra.mxu0 %v5261
    %5344 = vmatprep.subr.bf16.mxu0 %v5258
    %5345 = vmatpush1.bf16.msra.mxu0 %v5257
    %5346 = vmatprep.subr.bf16.mxu0 %v5254
    %5347 = vmatpush1.bf16.msra.mxu0 %v5253
    %5348 = vmatprep.subr.bf16.mxu0 %v5250
    %5349 = vmatpush1.bf16.msra.mxu0 %v5249
    %5350 = vmatprep.subr.bf16.mxu0 %v5246
    %5351 = vmatpush1.bf16.msra.mxu0 %v5245
    %5352 = vmatprep.subr.bf16.mxu0 %v5242
    %5353 = vmatpush1.bf16.msra.mxu0 %v5241
    %5354 = vmatprep.subr.bf16.mxu0 %v5238
    %5355 = vmatpush1.bf16.msra.mxu0 %v5237
    %5356 = vmatprep.subr.bf16.mxu0 0
    %5357 = vmatpush2.bf16.msra.mxu0 0
    %5358 = vmatprep.subr.bf16.mxu0 0
    %5359 = vmatpush2.bf16.msra.mxu0 0
    %5360 = vmatprep.subr.bf16.mxu0 0
    %5361 = vmatpush2.bf16.msra.mxu0 0
    %5362 = vmatprep.subr.bf16.mxu0 0
    %5363 = vmatpush2.bf16.msra.mxu0 0
    %5364 = vmatprep.subr.bf16.mxu0 0
    %5365 = vmatpush2.bf16.msra.mxu0 0
    %5366 = vmatprep.subr.bf16.mxu0 0
    %5367 = vmatpush2.bf16.msra.mxu0 0
    %5368 = vmatprep.subr.bf16.mxu0 0
    %5369 = vmatpush2.bf16.msra.mxu0 0
    %5370 = vmatprep.subr.bf16.mxu0 0
    %5371 = vmatpush2.bf16.msra.mxu0 0
    %5372 = vmatprep.mubr.bf16.mxu0 0
    %5373 = vmatmul.mubr.bf16.gmra.mxu0 %v5137
    %v5374 = vpop.f32.mrf.mxu0
    %v5375 = vadd.f32 0.0, %v5374
    %v5376 = vpop.f32.mrf.mxu0
    %v5377 = vadd.f32 0.0, %v5376
    %v5378 = vpop.f32.mrf.mxu0
    %v5379 = vpop.f32.mrf.mxu0
    %5380 = vdwg.mxu0
    %v5381 = vadd.f32 %v5099, %v5334
    %v5382 = vadd.f32 %v5100, %v5336
    %v5383 = vadd.f32 %v5101, %v5375
    %v5384 = vadd.f32 %v5102, %v5377
    %v5385 = vxor.u32 %v5381, 2147483648
    %v5386 = vmul.f32 %v5385, 1.442695
    %v5387 = vpow.pop %v5386
    %v5388 = vadd.f32 %v5387, 1.0
    %v5389 = vrcp.pop %v5388
    %v5390 = vmul.f32 1.0, %v5389
    %v5391 = vxor.u32 %v5382, 2147483648
    %v5392 = vmul.f32 %v5391, 1.442695
    %v5393 = vpow.pop %v5392
    %v5394 = vadd.f32 %v5393, 1.0
    %v5395 = vrcp.pop %v5394
    %v5396 = vmul.f32 1.0, %v5395
    %v5397 = vtanh.pop %v5383
    %v5398 = vxor.u32 %v5384, 2147483648
    %v5399 = vmul.f32 %v5398, 1.442695
    %v5400 = vpow.pop %v5399
    %v5401 = vadd.f32 %v5400, 1.0
    %v5402 = vrcp.pop %v5401
    %v5403 = vmul.f32 1.0, %v5402
    %v5405 = vrot.slane %v4781, 6
    %v5407 = vmul.f32 %v5396, %v5405
    %v5408 = vmul.f32 %v5390, %v5397
    %v5409 = vadd.f32 %v5407, %v5408
    %v5410 = vtanh.pop %v5409
    %v5411 = vmul.f32 %v5403, %v5410
    %5412 = vst [vmem:[#allocation2 + $0x10] sm:$0x3] %v5411
    %v5413 = vld [vmem:[#allocation4] sm:$0xc0]
    %v5414 = vld [vmem:[#allocation4 + $0x8] sm:$0xc0]
    %v5415 = vld [vmem:[#allocation4 + $0x10] sm:$0xc0]
    %v5416 = vld [vmem:[#allocation4 + $0x18] sm:$0xc0]
    %v5417 = vpack.c.bf16 %v5097, %v5097
    %v5418 = vld [vmem:[%s43] sm:$0xff]
    %v5419 = vld [vmem:[%s43 + $0x8] sm:$0xff]
    %v5420 = vld [vmem:[%s43 + $0x10] sm:$0xff]
    %v5421 = vld [vmem:[%s43 + $0x18] sm:$0xff]
    %v5422 = vld [vmem:[%s43 + $0x20] sm:$0xff]
    %v5423 = vld [vmem:[%s43 + $0x28] sm:$0xff]
    %v5424 = vld [vmem:[%s43 + $0x30] sm:$0xff]
    %v5425 = vld [vmem:[%s43 + $0x38] sm:$0xff]
    %v5426 = vld [vmem:[%s43 + $0x40] sm:$0xff]
    %v5427 = vld [vmem:[%s43 + $0x48] sm:$0xff]
    %v5428 = vld [vmem:[%s43 + $0x50] sm:$0xff]
    %v5429 = vld [vmem:[%s43 + $0x58] sm:$0xff]
    %v5430 = vld [vmem:[%s43 + $0x60] sm:$0xff]
    %v5431 = vld [vmem:[%s43 + $0x68] sm:$0xff]
    %v5432 = vld [vmem:[%s43 + $0x70] sm:$0xff]
    %v5433 = vld [vmem:[%s43 + $0x78] sm:$0xff]
    %v5434 = vld [vmem:[%s43 + $0x80] sm:$0xff]
    %v5435 = vld [vmem:[%s43 + $0x88] sm:$0xff]
    %v5436 = vld [vmem:[%s43 + $0x90] sm:$0xff]
    %v5437 = vld [vmem:[%s43 + $0x98] sm:$0xff]
    %v5438 = vld [vmem:[%s43 + $0xa0] sm:$0xff]
    %v5439 = vld [vmem:[%s43 + $0xa8] sm:$0xff]
    %v5440 = vld [vmem:[%s43 + $0xb0] sm:$0xff]
    %v5441 = vld [vmem:[%s43 + $0xb8] sm:$0xff]
    %v5442 = vld [vmem:[%s43 + $0xc0] sm:$0xff]
    %v5443 = vld [vmem:[%s43 + $0xc8] sm:$0xff]
    %v5444 = vld [vmem:[%s43 + $0xd0] sm:$0xff]
    %v5445 = vld [vmem:[%s43 + $0xd8] sm:$0xff]
    %v5446 = vld [vmem:[%s43 + $0xe0] sm:$0xff]
    %v5447 = vld [vmem:[%s43 + $0xe8] sm:$0xff]
    %v5448 = vld [vmem:[%s43 + $0xf0] sm:$0xff]
    %v5449 = vld [vmem:[%s43 + $0xf8] sm:$0xff]
    %v5482 = vunpack.c.l.b16 %v5418
    %v5483 = vunpack.c.h.b16 %v5418
    %v5484 = vunpack.c.l.b16 %v5419
    %v5485 = vunpack.c.h.b16 %v5419
    %v5486 = vunpack.c.l.b16 %v5420
    %v5487 = vunpack.c.h.b16 %v5420
    %v5488 = vunpack.c.l.b16 %v5421
    %v5489 = vunpack.c.h.b16 %v5421
    %v5490 = vunpack.c.l.b16 %v5422
    %v5491 = vunpack.c.h.b16 %v5422
    %v5492 = vunpack.c.l.b16 %v5423
    %v5493 = vunpack.c.h.b16 %v5423
    %v5494 = vunpack.c.l.b16 %v5424
    %v5495 = vunpack.c.h.b16 %v5424
    %v5496 = vunpack.c.l.b16 %v5425
    %v5497 = vunpack.c.h.b16 %v5425
    %v5498 = vunpack.c.l.b16 %v5426
    %v5499 = vunpack.c.h.b16 %v5426
    %v5500 = vunpack.c.l.b16 %v5427
    %v5501 = vunpack.c.h.b16 %v5427
    %v5502 = vunpack.c.l.b16 %v5428
    %v5503 = vunpack.c.h.b16 %v5428
    %v5504 = vunpack.c.l.b16 %v5429
    %v5505 = vunpack.c.h.b16 %v5429
    %v5506 = vunpack.c.l.b16 %v5430
    %v5507 = vunpack.c.h.b16 %v5430
    %v5508 = vunpack.c.l.b16 %v5431
    %v5509 = vunpack.c.h.b16 %v5431
    %v5510 = vunpack.c.l.b16 %v5432
    %v5511 = vunpack.c.h.b16 %v5432
    %v5512 = vunpack.c.l.b16 %v5433
    %v5513 = vunpack.c.h.b16 %v5433
    %v5514 = vunpack.c.l.b16 %v5434
    %v5515 = vunpack.c.h.b16 %v5434
    %v5516 = vunpack.c.l.b16 %v5435
    %v5517 = vunpack.c.h.b16 %v5435
    %v5518 = vunpack.c.l.b16 %v5436
    %v5519 = vunpack.c.h.b16 %v5436
    %v5520 = vunpack.c.l.b16 %v5437
    %v5521 = vunpack.c.h.b16 %v5437
    %v5522 = vunpack.c.l.b16 %v5438
    %v5523 = vunpack.c.h.b16 %v5438
    %v5524 = vunpack.c.l.b16 %v5439
    %v5525 = vunpack.c.h.b16 %v5439
    %v5526 = vunpack.c.l.b16 %v5440
    %v5527 = vunpack.c.h.b16 %v5440
    %v5528 = vunpack.c.l.b16 %v5441
    %v5529 = vunpack.c.h.b16 %v5441
    %v5530 = vunpack.c.l.b16 %v5442
    %v5531 = vunpack.c.h.b16 %v5442
    %v5532 = vunpack.c.l.b16 %v5443
    %v5533 = vunpack.c.h.b16 %v5443
    %v5534 = vunpack.c.l.b16 %v5444
    %v5535 = vunpack.c.h.b16 %v5444
    %v5536 = vunpack.c.l.b16 %v5445
    %v5537 = vunpack.c.h.b16 %v5445
    %v5538 = vunpack.c.l.b16 %v5446
    %v5539 = vunpack.c.h.b16 %v5446
    %v5540 = vunpack.c.l.b16 %v5447
    %v5541 = vunpack.c.h.b16 %v5447
    %v5542 = vunpack.c.l.b16 %v5448
    %v5543 = vunpack.c.h.b16 %v5448
    %v5544 = vunpack.c.l.b16 %v5449
    %v5545 = vunpack.c.h.b16 %v5449
    %v5546 = vpack.c.b16 %v5486, %v5482
    %v5547 = vpack.c.b16 %v5487, %v5483
    %v5548 = vpack.c.b16 %v5488, %v5484
    %v5549 = vpack.c.b16 %v5489, %v5485
    %v5550 = vpack.c.b16 %v5494, %v5490
    %v5551 = vpack.c.b16 %v5495, %v5491
    %v5552 = vpack.c.b16 %v5496, %v5492
    %v5553 = vpack.c.b16 %v5497, %v5493
    %v5554 = vpack.c.b16 %v5502, %v5498
    %v5555 = vpack.c.b16 %v5503, %v5499
    %v5556 = vpack.c.b16 %v5504, %v5500
    %v5557 = vpack.c.b16 %v5505, %v5501
    %v5558 = vpack.c.b16 %v5510, %v5506
    %v5559 = vpack.c.b16 %v5511, %v5507
    %v5560 = vpack.c.b16 %v5512, %v5508
    %v5561 = vpack.c.b16 %v5513, %v5509
    %v5562 = vpack.c.b16 %v5518, %v5514
    %v5563 = vpack.c.b16 %v5519, %v5515
    %v5564 = vpack.c.b16 %v5520, %v5516
    %v5565 = vpack.c.b16 %v5521, %v5517
    %v5566 = vpack.c.b16 %v5526, %v5522
    %v5567 = vpack.c.b16 %v5527, %v5523
    %v5568 = vpack.c.b16 %v5528, %v5524
    %v5569 = vpack.c.b16 %v5529, %v5525
    %v5570 = vpack.c.b16 %v5534, %v5530
    %v5571 = vpack.c.b16 %v5535, %v5531
    %v5572 = vpack.c.b16 %v5536, %v5532
    %v5573 = vpack.c.b16 %v5537, %v5533
    %v5574 = vpack.c.b16 %v5542, %v5538
    %v5575 = vpack.c.b16 %v5543, %v5539
    %v5576 = vpack.c.b16 %v5544, %v5540
    %v5577 = vpack.c.b16 %v5545, %v5541
    %5610 = vmatprep.subr.bf16.mxu0 %v5575
    %5611 = vmatpush1.bf16.msra.mxu0 %v5574
    %5612 = vmatprep.subr.bf16.mxu0 %v5571
    %5613 = vmatpush1.bf16.msra.mxu0 %v5570
    %5614 = vmatprep.subr.bf16.mxu0 %v5567
    %5615 = vmatpush1.bf16.msra.mxu0 %v5566
    %5616 = vmatprep.subr.bf16.mxu0 %v5563
    %5617 = vmatpush1.bf16.msra.mxu0 %v5562
    %5618 = vmatprep.subr.bf16.mxu0 %v5559
    %5619 = vmatpush1.bf16.msra.mxu0 %v5558
    %5620 = vmatprep.subr.bf16.mxu0 %v5555
    %5621 = vmatpush1.bf16.msra.mxu0 %v5554
    %5622 = vmatprep.subr.bf16.mxu0 %v5551
    %5623 = vmatpush1.bf16.msra.mxu0 %v5550
    %5624 = vmatprep.subr.bf16.mxu0 %v5547
    %5625 = vmatpush1.bf16.msra.mxu0 %v5546
    %5626 = vmatprep.subr.bf16.mxu0 0
    %5627 = vmatpush2.bf16.msra.mxu0 0
    %5628 = vmatprep.subr.bf16.mxu0 0
    %5629 = vmatpush2.bf16.msra.mxu0 0
    %5630 = vmatprep.subr.bf16.mxu0 0
    %5631 = vmatpush2.bf16.msra.mxu0 0
    %5632 = vmatprep.subr.bf16.mxu0 0
    %5633 = vmatpush2.bf16.msra.mxu0 0
    %5634 = vmatprep.subr.bf16.mxu0 0
    %5635 = vmatpush2.bf16.msra.mxu0 0
    %5636 = vmatprep.subr.bf16.mxu0 0
    %5637 = vmatpush2.bf16.msra.mxu0 0
    %5638 = vmatprep.subr.bf16.mxu0 0
    %5639 = vmatpush2.bf16.msra.mxu0 0
    %5640 = vmatprep.subr.bf16.mxu0 0
    %5641 = vmatpush2.bf16.msra.mxu0 0
    %5642 = vmatprep.mubr.bf16.mxu0 0
    %5643 = vmatmul.mubr.bf16.gmra.mxu0 %v5417
    %v5644 = vpop.f32.mrf.mxu0
    %v5645 = vadd.f32 0.0, %v5644
    %v5646 = vpop.f32.mrf.mxu0
    %v5647 = vadd.f32 0.0, %v5646
    %v5648 = vpop.f32.mrf.mxu0
    %v5649 = vpop.f32.mrf.mxu0
    %5650 = vdwg.mxu0
    %5651 = vmatprep.subr.bf16.mxu0 %v5577
    %5652 = vmatpush1.bf16.msra.mxu0 %v5576
    %5653 = vmatprep.subr.bf16.mxu0 %v5573
    %5654 = vmatpush1.bf16.msra.mxu0 %v5572
    %5655 = vmatprep.subr.bf16.mxu0 %v5569
    %5656 = vmatpush1.bf16.msra.mxu0 %v5568
    %5657 = vmatprep.subr.bf16.mxu0 %v5565
    %5658 = vmatpush1.bf16.msra.mxu0 %v5564
    %5659 = vmatprep.subr.bf16.mxu0 %v5561
    %5660 = vmatpush1.bf16.msra.mxu0 %v5560
    %5661 = vmatprep.subr.bf16.mxu0 %v5557
    %5662 = vmatpush1.bf16.msra.mxu0 %v5556
    %5663 = vmatprep.subr.bf16.mxu0 %v5553
    %5664 = vmatpush1.bf16.msra.mxu0 %v5552
    %5665 = vmatprep.subr.bf16.mxu0 %v5549
    %5666 = vmatpush1.bf16.msra.mxu0 %v5548
    %5667 = vmatprep.subr.bf16.mxu0 0
    %5668 = vmatpush2.bf16.msra.mxu0 0
    %5669 = vmatprep.subr.bf16.mxu0 0
    %5670 = vmatpush2.bf16.msra.mxu0 0
    %5671 = vmatprep.subr.bf16.mxu0 0
    %5672 = vmatpush2.bf16.msra.mxu0 0
    %5673 = vmatprep.subr.bf16.mxu0 0
    %5674 = vmatpush2.bf16.msra.mxu0 0
    %5675 = vmatprep.subr.bf16.mxu0 0
    %5676 = vmatpush2.bf16.msra.mxu0 0
    %5677 = vmatprep.subr.bf16.mxu0 0
    %5678 = vmatpush2.bf16.msra.mxu0 0
    %5679 = vmatprep.subr.bf16.mxu0 0
    %5680 = vmatpush2.bf16.msra.mxu0 0
    %5681 = vmatprep.subr.bf16.mxu0 0
    %5682 = vmatpush2.bf16.msra.mxu0 0
    %5683 = vmatprep.mubr.bf16.mxu0 0
    %5684 = vmatmul.mubr.bf16.gmra.mxu0 %v5417
    %v5685 = vpop.f32.mrf.mxu0
    %v5686 = vadd.f32 0.0, %v5685
    %v5687 = vpop.f32.mrf.mxu0
    %v5688 = vadd.f32 0.0, %v5687
    %v5689 = vpop.f32.mrf.mxu0
    %v5690 = vpop.f32.mrf.mxu0
    %5691 = vdwg.mxu0
    %v5696 = vrot.slane %v5645, 2
    %v5697 = vrot.slane %v5647, 2
    %v5698 = vrot.slane %v5686, 2
    %v5699 = vrot.slane %v5688, 2
    %v5704 = vadd.f32 %v5413, %v5696
    %v5705 = vadd.f32 %v5414, %v5697
    %v5706 = vadd.f32 %v5415, %v5698
    %v5707 = vadd.f32 %v5416, %v5699
    %v5708 = vxor.u32 %v5704, 2147483648
    %v5709 = vmul.f32 %v5708, 1.442695
    %v5710 = vpow.pop %v5709
    %v5711 = vadd.f32 %v5710, 1.0
    %v5712 = vrcp.pop %v5711
    %v5713 = vmul.f32 1.0, %v5712
    %v5714 = vxor.u32 %v5705, 2147483648
    %v5715 = vmul.f32 %v5714, 1.442695
    %v5716 = vpow.pop %v5715
    %v5717 = vadd.f32 %v5716, 1.0
    %v5718 = vrcp.pop %v5717
    %v5719 = vmul.f32 1.0, %v5718
    %v5720 = vtanh.pop %v5706
    %v5721 = vxor.u32 %v5707, 2147483648
    %v5722 = vmul.f32 %v5721, 1.442695
    %v5723 = vpow.pop %v5722
    %v5724 = vadd.f32 %v5723, 1.0
    %v5725 = vrcp.pop %v5724
    %v5726 = vmul.f32 1.0, %v5725
    %v5728 = vrot.slane %v5095, 2
    %v5730 = vmul.f32 %v5719, %v5728
    %v5731 = vmul.f32 %v5713, %v5720
    %v5732 = vadd.f32 %v5730, %v5731
    %v5733 = vtanh.pop %v5732
    %v5734 = vmul.f32 %v5726, %v5733
    %5735 = vst [vmem:[#allocation2 + $0x8] sm:$0xc0] %v5734
    %v5736 = vld [vmem:[#allocation3 + $0x20] sm:$0xc]
    %v5737 = vld [vmem:[#allocation3 + $0x28] sm:$0xc]
    %v5738 = vld [vmem:[#allocation3 + $0x30] sm:$0xc]
    %v5739 = vld [vmem:[#allocation3 + $0x38] sm:$0xc]
    %v5740 = vpack.c.bf16 %v5411, %v5411
    %v5741 = vld [vmem:[%s37] sm:$0xff]
    %v5742 = vld [vmem:[%s37 + $0x8] sm:$0xff]
    %v5743 = vld [vmem:[%s37 + $0x10] sm:$0xff]
    %v5744 = vld [vmem:[%s37 + $0x18] sm:$0xff]
    %v5745 = vld [vmem:[%s37 + $0x20] sm:$0xff]
    %v5746 = vld [vmem:[%s37 + $0x28] sm:$0xff]
    %v5747 = vld [vmem:[%s37 + $0x30] sm:$0xff]
    %v5748 = vld [vmem:[%s37 + $0x38] sm:$0xff]
    %v5749 = vld [vmem:[%s37 + $0x40] sm:$0xff]
    %v5750 = vld [vmem:[%s37 + $0x48] sm:$0xff]
    %v5751 = vld [vmem:[%s37 + $0x50] sm:$0xff]
    %v5752 = vld [vmem:[%s37 + $0x58] sm:$0xff]
    %v5753 = vld [vmem:[%s37 + $0x60] sm:$0xff]
    %v5754 = vld [vmem:[%s37 + $0x68] sm:$0xff]
    %v5755 = vld [vmem:[%s37 + $0x70] sm:$0xff]
    %v5756 = vld [vmem:[%s37 + $0x78] sm:$0xff]
    %v5757 = vld [vmem:[%s37 + $0x80] sm:$0xff]
    %v5758 = vld [vmem:[%s37 + $0x88] sm:$0xff]
    %v5759 = vld [vmem:[%s37 + $0x90] sm:$0xff]
    %v5760 = vld [vmem:[%s37 + $0x98] sm:$0xff]
    %v5761 = vld [vmem:[%s37 + $0xa0] sm:$0xff]
    %v5762 = vld [vmem:[%s37 + $0xa8] sm:$0xff]
    %v5763 = vld [vmem:[%s37 + $0xb0] sm:$0xff]
    %v5764 = vld [vmem:[%s37 + $0xb8] sm:$0xff]
    %v5765 = vld [vmem:[%s37 + $0xc0] sm:$0xff]
    %v5766 = vld [vmem:[%s37 + $0xc8] sm:$0xff]
    %v5767 = vld [vmem:[%s37 + $0xd0] sm:$0xff]
    %v5768 = vld [vmem:[%s37 + $0xd8] sm:$0xff]
    %v5769 = vld [vmem:[%s37 + $0xe0] sm:$0xff]
    %v5770 = vld [vmem:[%s37 + $0xe8] sm:$0xff]
    %v5771 = vld [vmem:[%s37 + $0xf0] sm:$0xff]
    %v5772 = vld [vmem:[%s37 + $0xf8] sm:$0xff]
    %v5805 = vunpack.c.l.b16 %v5741
    %v5806 = vunpack.c.h.b16 %v5741
    %v5807 = vunpack.c.l.b16 %v5742
    %v5808 = vunpack.c.h.b16 %v5742
    %v5809 = vunpack.c.l.b16 %v5743
    %v5810 = vunpack.c.h.b16 %v5743
    %v5811 = vunpack.c.l.b16 %v5744
    %v5812 = vunpack.c.h.b16 %v5744
    %v5813 = vunpack.c.l.b16 %v5745
    %v5814 = vunpack.c.h.b16 %v5745
    %v5815 = vunpack.c.l.b16 %v5746
    %v5816 = vunpack.c.h.b16 %v5746
    %v5817 = vunpack.c.l.b16 %v5747
    %v5818 = vunpack.c.h.b16 %v5747
    %v5819 = vunpack.c.l.b16 %v5748
    %v5820 = vunpack.c.h.b16 %v5748
    %v5821 = vunpack.c.l.b16 %v5749
    %v5822 = vunpack.c.h.b16 %v5749
    %v5823 = vunpack.c.l.b16 %v5750
    %v5824 = vunpack.c.h.b16 %v5750
    %v5825 = vunpack.c.l.b16 %v5751
    %v5826 = vunpack.c.h.b16 %v5751
    %v5827 = vunpack.c.l.b16 %v5752
    %v5828 = vunpack.c.h.b16 %v5752
    %v5829 = vunpack.c.l.b16 %v5753
    %v5830 = vunpack.c.h.b16 %v5753
    %v5831 = vunpack.c.l.b16 %v5754
    %v5832 = vunpack.c.h.b16 %v5754
    %v5833 = vunpack.c.l.b16 %v5755
    %v5834 = vunpack.c.h.b16 %v5755
    %v5835 = vunpack.c.l.b16 %v5756
    %v5836 = vunpack.c.h.b16 %v5756
    %v5837 = vunpack.c.l.b16 %v5757
    %v5838 = vunpack.c.h.b16 %v5757
    %v5839 = vunpack.c.l.b16 %v5758
    %v5840 = vunpack.c.h.b16 %v5758
    %v5841 = vunpack.c.l.b16 %v5759
    %v5842 = vunpack.c.h.b16 %v5759
    %v5843 = vunpack.c.l.b16 %v5760
    %v5844 = vunpack.c.h.b16 %v5760
    %v5845 = vunpack.c.l.b16 %v5761
    %v5846 = vunpack.c.h.b16 %v5761
    %v5847 = vunpack.c.l.b16 %v5762
    %v5848 = vunpack.c.h.b16 %v5762
    %v5849 = vunpack.c.l.b16 %v5763
    %v5850 = vunpack.c.h.b16 %v5763
    %v5851 = vunpack.c.l.b16 %v5764
    %v5852 = vunpack.c.h.b16 %v5764
    %v5853 = vunpack.c.l.b16 %v5765
    %v5854 = vunpack.c.h.b16 %v5765
    %v5855 = vunpack.c.l.b16 %v5766
    %v5856 = vunpack.c.h.b16 %v5766
    %v5857 = vunpack.c.l.b16 %v5767
    %v5858 = vunpack.c.h.b16 %v5767
    %v5859 = vunpack.c.l.b16 %v5768
    %v5860 = vunpack.c.h.b16 %v5768
    %v5861 = vunpack.c.l.b16 %v5769
    %v5862 = vunpack.c.h.b16 %v5769
    %v5863 = vunpack.c.l.b16 %v5770
    %v5864 = vunpack.c.h.b16 %v5770
    %v5865 = vunpack.c.l.b16 %v5771
    %v5866 = vunpack.c.h.b16 %v5771
    %v5867 = vunpack.c.l.b16 %v5772
    %v5868 = vunpack.c.h.b16 %v5772
    %v5869 = vpack.c.b16 %v5809, %v5805
    %v5870 = vpack.c.b16 %v5810, %v5806
    %v5871 = vpack.c.b16 %v5811, %v5807
    %v5872 = vpack.c.b16 %v5812, %v5808
    %v5873 = vpack.c.b16 %v5817, %v5813
    %v5874 = vpack.c.b16 %v5818, %v5814
    %v5875 = vpack.c.b16 %v5819, %v5815
    %v5876 = vpack.c.b16 %v5820, %v5816
    %v5877 = vpack.c.b16 %v5825, %v5821
    %v5878 = vpack.c.b16 %v5826, %v5822
    %v5879 = vpack.c.b16 %v5827, %v5823
    %v5880 = vpack.c.b16 %v5828, %v5824
    %v5881 = vpack.c.b16 %v5833, %v5829
    %v5882 = vpack.c.b16 %v5834, %v5830
    %v5883 = vpack.c.b16 %v5835, %v5831
    %v5884 = vpack.c.b16 %v5836, %v5832
    %v5885 = vpack.c.b16 %v5841, %v5837
    %v5886 = vpack.c.b16 %v5842, %v5838
    %v5887 = vpack.c.b16 %v5843, %v5839
    %v5888 = vpack.c.b16 %v5844, %v5840
    %v5889 = vpack.c.b16 %v5849, %v5845
    %v5890 = vpack.c.b16 %v5850, %v5846
    %v5891 = vpack.c.b16 %v5851, %v5847
    %v5892 = vpack.c.b16 %v5852, %v5848
    %v5893 = vpack.c.b16 %v5857, %v5853
    %v5894 = vpack.c.b16 %v5858, %v5854
    %v5895 = vpack.c.b16 %v5859, %v5855
    %v5896 = vpack.c.b16 %v5860, %v5856
    %v5897 = vpack.c.b16 %v5865, %v5861
    %v5898 = vpack.c.b16 %v5866, %v5862
    %v5899 = vpack.c.b16 %v5867, %v5863
    %v5900 = vpack.c.b16 %v5868, %v5864
    %5933 = vmatprep.subr.bf16.mxu0 %v5898
    %5934 = vmatpush1.bf16.msra.mxu0 %v5897
    %5935 = vmatprep.subr.bf16.mxu0 %v5894
    %5936 = vmatpush1.bf16.msra.mxu0 %v5893
    %5937 = vmatprep.subr.bf16.mxu0 %v5890
    %5938 = vmatpush1.bf16.msra.mxu0 %v5889
    %5939 = vmatprep.subr.bf16.mxu0 %v5886
    %5940 = vmatpush1.bf16.msra.mxu0 %v5885
    %5941 = vmatprep.subr.bf16.mxu0 %v5882
    %5942 = vmatpush1.bf16.msra.mxu0 %v5881
    %5943 = vmatprep.subr.bf16.mxu0 %v5878
    %5944 = vmatpush1.bf16.msra.mxu0 %v5877
    %5945 = vmatprep.subr.bf16.mxu0 %v5874
    %5946 = vmatpush1.bf16.msra.mxu0 %v5873
    %5947 = vmatprep.subr.bf16.mxu0 %v5870
    %5948 = vmatpush1.bf16.msra.mxu0 %v5869
    %5949 = vmatprep.subr.bf16.mxu0 0
    %5950 = vmatpush2.bf16.msra.mxu0 0
    %5951 = vmatprep.subr.bf16.mxu0 0
    %5952 = vmatpush2.bf16.msra.mxu0 0
    %5953 = vmatprep.subr.bf16.mxu0 0
    %5954 = vmatpush2.bf16.msra.mxu0 0
    %5955 = vmatprep.subr.bf16.mxu0 0
    %5956 = vmatpush2.bf16.msra.mxu0 0
    %5957 = vmatprep.subr.bf16.mxu0 0
    %5958 = vmatpush2.bf16.msra.mxu0 0
    %5959 = vmatprep.subr.bf16.mxu0 0
    %5960 = vmatpush2.bf16.msra.mxu0 0
    %5961 = vmatprep.subr.bf16.mxu0 0
    %5962 = vmatpush2.bf16.msra.mxu0 0
    %5963 = vmatprep.subr.bf16.mxu0 0
    %5964 = vmatpush2.bf16.msra.mxu0 0
    %5965 = vmatprep.mubr.bf16.mxu0 0
    %5966 = vmatmul.mubr.bf16.gmra.mxu0 %v5740
    %v5967 = vpop.f32.mrf.mxu0
    %v5968 = vadd.f32 0.0, %v5967
    %v5969 = vpop.f32.mrf.mxu0
    %v5970 = vadd.f32 0.0, %v5969
    %v5971 = vpop.f32.mrf.mxu0
    %v5972 = vpop.f32.mrf.mxu0
    %5973 = vdwg.mxu0
    %5974 = vmatprep.subr.bf16.mxu0 %v5900
    %5975 = vmatpush1.bf16.msra.mxu0 %v5899
    %5976 = vmatprep.subr.bf16.mxu0 %v5896
    %5977 = vmatpush1.bf16.msra.mxu0 %v5895
    %5978 = vmatprep.subr.bf16.mxu0 %v5892
    %5979 = vmatpush1.bf16.msra.mxu0 %v5891
    %5980 = vmatprep.subr.bf16.mxu0 %v5888
    %5981 = vmatpush1.bf16.msra.mxu0 %v5887
    %5982 = vmatprep.subr.bf16.mxu0 %v5884
    %5983 = vmatpush1.bf16.msra.mxu0 %v5883
    %5984 = vmatprep.subr.bf16.mxu0 %v5880
    %5985 = vmatpush1.bf16.msra.mxu0 %v5879
    %5986 = vmatprep.subr.bf16.mxu0 %v5876
    %5987 = vmatpush1.bf16.msra.mxu0 %v5875
    %5988 = vmatprep.subr.bf16.mxu0 %v5872
    %5989 = vmatpush1.bf16.msra.mxu0 %v5871
    %5990 = vmatprep.subr.bf16.mxu0 0
    %5991 = vmatpush2.bf16.msra.mxu0 0
    %5992 = vmatprep.subr.bf16.mxu0 0
    %5993 = vmatpush2.bf16.msra.mxu0 0
    %5994 = vmatprep.subr.bf16.mxu0 0
    %5995 = vmatpush2.bf16.msra.mxu0 0
    %5996 = vmatprep.subr.bf16.mxu0 0
    %5997 = vmatpush2.bf16.msra.mxu0 0
    %5998 = vmatprep.subr.bf16.mxu0 0
    %5999 = vmatpush2.bf16.msra.mxu0 0
    %6000 = vmatprep.subr.bf16.mxu0 0
    %6001 = vmatpush2.bf16.msra.mxu0 0
    %6002 = vmatprep.subr.bf16.mxu0 0
    %6003 = vmatpush2.bf16.msra.mxu0 0
    %6004 = vmatprep.subr.bf16.mxu0 0
    %6005 = vmatpush2.bf16.msra.mxu0 0
    %6006 = vmatprep.mubr.bf16.mxu0 0
    %6007 = vmatmul.mubr.bf16.gmra.mxu0 %v5740
    %v6008 = vpop.f32.mrf.mxu0
    %v6009 = vadd.f32 0.0, %v6008
    %v6010 = vpop.f32.mrf.mxu0
    %v6011 = vadd.f32 0.0, %v6010
    %v6012 = vpop.f32.mrf.mxu0
    %v6013 = vpop.f32.mrf.mxu0
    %6014 = vdwg.mxu0
    %v6019 = vrot.slane %v5968, 6
    %v6020 = vrot.slane %v5970, 6
    %v6021 = vrot.slane %v6009, 6
    %v6022 = vrot.slane %v6011, 6
    %v6027 = vadd.f32 %v5736, %v6019
    %v6028 = vadd.f32 %v5737, %v6020
    %v6029 = vadd.f32 %v5738, %v6021
    %v6030 = vadd.f32 %v5739, %v6022
    %v6031 = vxor.u32 %v6027, 2147483648
    %v6032 = vmul.f32 %v6031, 1.442695
    %v6033 = vpow.pop %v6032
    %v6034 = vadd.f32 %v6033, 1.0
    %v6035 = vrcp.pop %v6034
    %v6036 = vmul.f32 1.0, %v6035
    %v6037 = vxor.u32 %v6028, 2147483648
    %v6038 = vmul.f32 %v6037, 1.442695
    %v6039 = vpow.pop %v6038
    %v6040 = vadd.f32 %v6039, 1.0
    %v6041 = vrcp.pop %v6040
    %v6042 = vmul.f32 1.0, %v6041
    %v6043 = vtanh.pop %v6029
    %v6044 = vxor.u32 %v6030, 2147483648
    %v6045 = vmul.f32 %v6044, 1.442695
    %v6046 = vpow.pop %v6045
    %v6047 = vadd.f32 %v6046, 1.0
    %v6048 = vrcp.pop %v6047
    %v6049 = vmul.f32 1.0, %v6048
    %v6051 = vrot.slane %v5409, 6
    %v6053 = vmul.f32 %v6042, %v6051
    %v6054 = vmul.f32 %v6036, %v6043
    %v6055 = vadd.f32 %v6053, %v6054
    %v6056 = vtanh.pop %v6055
    %v6057 = vmul.f32 %v6049, %v6056
    %6058 = vst [vmem:[#allocation2 + $0x10] sm:$0xc] %v6057
    %v6059 = vld [vmem:[#allocation4] sm:$0x30]
    %v6060 = vld [vmem:[#allocation4 + $0x8] sm:$0x30]
    %v6061 = vld [vmem:[#allocation4 + $0x10] sm:$0x30]
    %v6062 = vld [vmem:[#allocation4 + $0x18] sm:$0x30]
    %v6063 = vpack.c.bf16 %v5734, %v5734
    %v6064 = vld [vmem:[%s43] sm:$0xff]
    %v6065 = vld [vmem:[%s43 + $0x8] sm:$0xff]
    %v6066 = vld [vmem:[%s43 + $0x10] sm:$0xff]
    %v6067 = vld [vmem:[%s43 + $0x18] sm:$0xff]
    %v6068 = vld [vmem:[%s43 + $0x20] sm:$0xff]
    %v6069 = vld [vmem:[%s43 + $0x28] sm:$0xff]
    %v6070 = vld [vmem:[%s43 + $0x30] sm:$0xff]
    %v6071 = vld [vmem:[%s43 + $0x38] sm:$0xff]
    %v6072 = vld [vmem:[%s43 + $0x40] sm:$0xff]
    %v6073 = vld [vmem:[%s43 + $0x48] sm:$0xff]
    %v6074 = vld [vmem:[%s43 + $0x50] sm:$0xff]
    %v6075 = vld [vmem:[%s43 + $0x58] sm:$0xff]
    %v6076 = vld [vmem:[%s43 + $0x60] sm:$0xff]
    %v6077 = vld [vmem:[%s43 + $0x68] sm:$0xff]
    %v6078 = vld [vmem:[%s43 + $0x70] sm:$0xff]
    %v6079 = vld [vmem:[%s43 + $0x78] sm:$0xff]
    %v6080 = vld [vmem:[%s43 + $0x80] sm:$0xff]
    %v6081 = vld [vmem:[%s43 + $0x88] sm:$0xff]
    %v6082 = vld [vmem:[%s43 + $0x90] sm:$0xff]
    %v6083 = vld [vmem:[%s43 + $0x98] sm:$0xff]
    %v6084 = vld [vmem:[%s43 + $0xa0] sm:$0xff]
    %v6085 = vld [vmem:[%s43 + $0xa8] sm:$0xff]
    %v6086 = vld [vmem:[%s43 + $0xb0] sm:$0xff]
    %v6087 = vld [vmem:[%s43 + $0xb8] sm:$0xff]
    %v6088 = vld [vmem:[%s43 + $0xc0] sm:$0xff]
    %v6089 = vld [vmem:[%s43 + $0xc8] sm:$0xff]
    %v6090 = vld [vmem:[%s43 + $0xd0] sm:$0xff]
    %v6091 = vld [vmem:[%s43 + $0xd8] sm:$0xff]
    %v6092 = vld [vmem:[%s43 + $0xe0] sm:$0xff]
    %v6093 = vld [vmem:[%s43 + $0xe8] sm:$0xff]
    %v6094 = vld [vmem:[%s43 + $0xf0] sm:$0xff]
    %v6095 = vld [vmem:[%s43 + $0xf8] sm:$0xff]
    %v6097 = vrot.slane %v6063, 3
    %v6131 = vunpack.c.l.b16 %v6064
    %v6132 = vunpack.c.h.b16 %v6064
    %v6133 = vunpack.c.l.b16 %v6065
    %v6134 = vunpack.c.h.b16 %v6065
    %v6135 = vunpack.c.l.b16 %v6066
    %v6136 = vunpack.c.h.b16 %v6066
    %v6137 = vunpack.c.l.b16 %v6067
    %v6138 = vunpack.c.h.b16 %v6067
    %v6139 = vunpack.c.l.b16 %v6068
    %v6140 = vunpack.c.h.b16 %v6068
    %v6141 = vunpack.c.l.b16 %v6069
    %v6142 = vunpack.c.h.b16 %v6069
    %v6143 = vunpack.c.l.b16 %v6070
    %v6144 = vunpack.c.h.b16 %v6070
    %v6145 = vunpack.c.l.b16 %v6071
    %v6146 = vunpack.c.h.b16 %v6071
    %v6147 = vunpack.c.l.b16 %v6072
    %v6148 = vunpack.c.h.b16 %v6072
    %v6149 = vunpack.c.l.b16 %v6073
    %v6150 = vunpack.c.h.b16 %v6073
    %v6151 = vunpack.c.l.b16 %v6074
    %v6152 = vunpack.c.h.b16 %v6074
    %v6153 = vunpack.c.l.b16 %v6075
    %v6154 = vunpack.c.h.b16 %v6075
    %v6155 = vunpack.c.l.b16 %v6076
    %v6156 = vunpack.c.h.b16 %v6076
    %v6157 = vunpack.c.l.b16 %v6077
    %v6158 = vunpack.c.h.b16 %v6077
    %v6159 = vunpack.c.l.b16 %v6078
    %v6160 = vunpack.c.h.b16 %v6078
    %v6161 = vunpack.c.l.b16 %v6079
    %v6162 = vunpack.c.h.b16 %v6079
    %v6163 = vunpack.c.l.b16 %v6080
    %v6164 = vunpack.c.h.b16 %v6080
    %v6165 = vunpack.c.l.b16 %v6081
    %v6166 = vunpack.c.h.b16 %v6081
    %v6167 = vunpack.c.l.b16 %v6082
    %v6168 = vunpack.c.h.b16 %v6082
    %v6169 = vunpack.c.l.b16 %v6083
    %v6170 = vunpack.c.h.b16 %v6083
    %v6171 = vunpack.c.l.b16 %v6084
    %v6172 = vunpack.c.h.b16 %v6084
    %v6173 = vunpack.c.l.b16 %v6085
    %v6174 = vunpack.c.h.b16 %v6085
    %v6175 = vunpack.c.l.b16 %v6086
    %v6176 = vunpack.c.h.b16 %v6086
    %v6177 = vunpack.c.l.b16 %v6087
    %v6178 = vunpack.c.h.b16 %v6087
    %v6179 = vunpack.c.l.b16 %v6088
    %v6180 = vunpack.c.h.b16 %v6088
    %v6181 = vunpack.c.l.b16 %v6089
    %v6182 = vunpack.c.h.b16 %v6089
    %v6183 = vunpack.c.l.b16 %v6090
    %v6184 = vunpack.c.h.b16 %v6090
    %v6185 = vunpack.c.l.b16 %v6091
    %v6186 = vunpack.c.h.b16 %v6091
    %v6187 = vunpack.c.l.b16 %v6092
    %v6188 = vunpack.c.h.b16 %v6092
    %v6189 = vunpack.c.l.b16 %v6093
    %v6190 = vunpack.c.h.b16 %v6093
    %v6191 = vunpack.c.l.b16 %v6094
    %v6192 = vunpack.c.h.b16 %v6094
    %v6193 = vunpack.c.l.b16 %v6095
    %v6194 = vunpack.c.h.b16 %v6095
    %v6195 = vpack.c.b16 %v6135, %v6131
    %v6196 = vpack.c.b16 %v6136, %v6132
    %v6197 = vpack.c.b16 %v6137, %v6133
    %v6198 = vpack.c.b16 %v6138, %v6134
    %v6199 = vpack.c.b16 %v6143, %v6139
    %v6200 = vpack.c.b16 %v6144, %v6140
    %v6201 = vpack.c.b16 %v6145, %v6141
    %v6202 = vpack.c.b16 %v6146, %v6142
    %v6203 = vpack.c.b16 %v6151, %v6147
    %v6204 = vpack.c.b16 %v6152, %v6148
    %v6205 = vpack.c.b16 %v6153, %v6149
    %v6206 = vpack.c.b16 %v6154, %v6150
    %v6207 = vpack.c.b16 %v6159, %v6155
    %v6208 = vpack.c.b16 %v6160, %v6156
    %v6209 = vpack.c.b16 %v6161, %v6157
    %v6210 = vpack.c.b16 %v6162, %v6158
    %v6211 = vpack.c.b16 %v6167, %v6163
    %v6212 = vpack.c.b16 %v6168, %v6164
    %v6213 = vpack.c.b16 %v6169, %v6165
    %v6214 = vpack.c.b16 %v6170, %v6166
    %v6215 = vpack.c.b16 %v6175, %v6171
    %v6216 = vpack.c.b16 %v6176, %v6172
    %v6217 = vpack.c.b16 %v6177, %v6173
    %v6218 = vpack.c.b16 %v6178, %v6174
    %v6219 = vpack.c.b16 %v6183, %v6179
    %v6220 = vpack.c.b16 %v6184, %v6180
    %v6221 = vpack.c.b16 %v6185, %v6181
    %v6222 = vpack.c.b16 %v6186, %v6182
    %v6223 = vpack.c.b16 %v6191, %v6187
    %v6224 = vpack.c.b16 %v6192, %v6188
    %v6225 = vpack.c.b16 %v6193, %v6189
    %v6226 = vpack.c.b16 %v6194, %v6190
    %6259 = vmatprep.subr.bf16.mxu0 %v6224
    %6260 = vmatpush1.bf16.msra.mxu0 %v6223
    %6261 = vmatprep.subr.bf16.mxu0 %v6220
    %6262 = vmatpush1.bf16.msra.mxu0 %v6219
    %6263 = vmatprep.subr.bf16.mxu0 %v6216
    %6264 = vmatpush1.bf16.msra.mxu0 %v6215
    %6265 = vmatprep.subr.bf16.mxu0 %v6212
    %6266 = vmatpush1.bf16.msra.mxu0 %v6211
    %6267 = vmatprep.subr.bf16.mxu0 %v6208
    %6268 = vmatpush1.bf16.msra.mxu0 %v6207
    %6269 = vmatprep.subr.bf16.mxu0 %v6204
    %6270 = vmatpush1.bf16.msra.mxu0 %v6203
    %6271 = vmatprep.subr.bf16.mxu0 %v6200
    %6272 = vmatpush1.bf16.msra.mxu0 %v6199
    %6273 = vmatprep.subr.bf16.mxu0 %v6196
    %6274 = vmatpush1.bf16.msra.mxu0 %v6195
    %6275 = vmatprep.subr.bf16.mxu0 0
    %6276 = vmatpush2.bf16.msra.mxu0 0
    %6277 = vmatprep.subr.bf16.mxu0 0
    %6278 = vmatpush2.bf16.msra.mxu0 0
    %6279 = vmatprep.subr.bf16.mxu0 0
    %6280 = vmatpush2.bf16.msra.mxu0 0
    %6281 = vmatprep.subr.bf16.mxu0 0
    %6282 = vmatpush2.bf16.msra.mxu0 0
    %6283 = vmatprep.subr.bf16.mxu0 0
    %6284 = vmatpush2.bf16.msra.mxu0 0
    %6285 = vmatprep.subr.bf16.mxu0 0
    %6286 = vmatpush2.bf16.msra.mxu0 0
    %6287 = vmatprep.subr.bf16.mxu0 0
    %6288 = vmatpush2.bf16.msra.mxu0 0
    %6289 = vmatprep.subr.bf16.mxu0 0
    %6290 = vmatpush2.bf16.msra.mxu0 0
    %6291 = vmatprep.mubr.bf16.mxu0 0
    %6292 = vmatmul.mubr.bf16.gmra.mxu0 %v6097
    %v6293 = vpop.f32.mrf.mxu0
    %v6294 = vadd.f32 0.0, %v6293
    %v6295 = vpop.f32.mrf.mxu0
    %v6296 = vadd.f32 0.0, %v6295
    %v6297 = vpop.f32.mrf.mxu0
    %v6298 = vpop.f32.mrf.mxu0
    %6299 = vdwg.mxu0
    %6300 = vmatprep.subr.bf16.mxu0 %v6226
    %6301 = vmatpush1.bf16.msra.mxu0 %v6225
    %6302 = vmatprep.subr.bf16.mxu0 %v6222
    %6303 = vmatpush1.bf16.msra.mxu0 %v6221
    %6304 = vmatprep.subr.bf16.mxu0 %v6218
    %6305 = vmatpush1.bf16.msra.mxu0 %v6217
    %6306 = vmatprep.subr.bf16.mxu0 %v6214
    %6307 = vmatpush1.bf16.msra.mxu0 %v6213
    %6308 = vmatprep.subr.bf16.mxu0 %v6210
    %6309 = vmatpush1.bf16.msra.mxu0 %v6209
    %6310 = vmatprep.subr.bf16.mxu0 %v6206
    %6311 = vmatpush1.bf16.msra.mxu0 %v6205
    %6312 = vmatprep.subr.bf16.mxu0 %v6202
    %6313 = vmatpush1.bf16.msra.mxu0 %v6201
    %6314 = vmatprep.subr.bf16.mxu0 %v6198
    %6315 = vmatpush1.bf16.msra.mxu0 %v6197
    %6316 = vmatprep.subr.bf16.mxu0 0
    %6317 = vmatpush2.bf16.msra.mxu0 0
    %6318 = vmatprep.subr.bf16.mxu0 0
    %6319 = vmatpush2.bf16.msra.mxu0 0
    %6320 = vmatprep.subr.bf16.mxu0 0
    %6321 = vmatpush2.bf16.msra.mxu0 0
    %6322 = vmatprep.subr.bf16.mxu0 0
    %6323 = vmatpush2.bf16.msra.mxu0 0
    %6324 = vmatprep.subr.bf16.mxu0 0
    %6325 = vmatpush2.bf16.msra.mxu0 0
    %6326 = vmatprep.subr.bf16.mxu0 0
    %6327 = vmatpush2.bf16.msra.mxu0 0
    %6328 = vmatprep.subr.bf16.mxu0 0
    %6329 = vmatpush2.bf16.msra.mxu0 0
    %6330 = vmatprep.subr.bf16.mxu0 0
    %6331 = vmatpush2.bf16.msra.mxu0 0
    %6332 = vmatprep.mubr.bf16.mxu0 0
    %6333 = vmatmul.mubr.bf16.gmra.mxu0 %v6097
    %v6334 = vpop.f32.mrf.mxu0
    %v6335 = vadd.f32 0.0, %v6334
    %v6336 = vpop.f32.mrf.mxu0
    %v6337 = vadd.f32 0.0, %v6336
    %v6338 = vpop.f32.mrf.mxu0
    %v6339 = vpop.f32.mrf.mxu0
    %6340 = vdwg.mxu0
    %v6345 = vrot.slane %v6294, 4
    %v6346 = vrot.slane %v6296, 4
    %v6347 = vrot.slane %v6335, 4
    %v6348 = vrot.slane %v6337, 4
    %v6353 = vadd.f32 %v6059, %v6345
    %v6354 = vadd.f32 %v6060, %v6346
    %v6355 = vadd.f32 %v6061, %v6347
    %v6356 = vadd.f32 %v6062, %v6348
    %v6357 = vxor.u32 %v6353, 2147483648
    %v6358 = vmul.f32 %v6357, 1.442695
    %v6359 = vpow.pop %v6358
    %v6360 = vadd.f32 %v6359, 1.0
    %v6361 = vrcp.pop %v6360
    %v6362 = vmul.f32 1.0, %v6361
    %v6363 = vxor.u32 %v6354, 2147483648
    %v6364 = vmul.f32 %v6363, 1.442695
    %v6365 = vpow.pop %v6364
    %v6366 = vadd.f32 %v6365, 1.0
    %v6367 = vrcp.pop %v6366
    %v6368 = vmul.f32 1.0, %v6367
    %v6369 = vtanh.pop %v6355
    %v6370 = vxor.u32 %v6356, 2147483648
    %v6371 = vmul.f32 %v6370, 1.442695
    %v6372 = vpow.pop %v6371
    %v6373 = vadd.f32 %v6372, 1.0
    %v6374 = vrcp.pop %v6373
    %v6375 = vmul.f32 1.0, %v6374
    %v6377 = vrot.slane %v5732, 2
    %v6379 = vmul.f32 %v6368, %v6377
    %v6380 = vmul.f32 %v6362, %v6369
    %v6381 = vadd.f32 %v6379, %v6380
    %v6382 = vtanh.pop %v6381
    %v6383 = vmul.f32 %v6375, %v6382
    %6384 = vst [vmem:[#allocation2 + $0x8] sm:$0x30] %v6383
    %v6385 = vld [vmem:[#allocation3 + $0x20] sm:$0x30]
    %v6386 = vld [vmem:[#allocation3 + $0x28] sm:$0x30]
    %v6387 = vld [vmem:[#allocation3 + $0x30] sm:$0x30]
    %v6388 = vld [vmem:[#allocation3 + $0x38] sm:$0x30]
    %v6389 = vpack.c.bf16 %v6057, %v6057
    %v6390 = vld [vmem:[%s37] sm:$0xff]
    %v6391 = vld [vmem:[%s37 + $0x8] sm:$0xff]
    %v6392 = vld [vmem:[%s37 + $0x10] sm:$0xff]
    %v6393 = vld [vmem:[%s37 + $0x18] sm:$0xff]
    %v6394 = vld [vmem:[%s37 + $0x20] sm:$0xff]
    %v6395 = vld [vmem:[%s37 + $0x28] sm:$0xff]
    %v6396 = vld [vmem:[%s37 + $0x30] sm:$0xff]
    %v6397 = vld [vmem:[%s37 + $0x38] sm:$0xff]
    %v6398 = vld [vmem:[%s37 + $0x40] sm:$0xff]
    %v6399 = vld [vmem:[%s37 + $0x48] sm:$0xff]
    %v6400 = vld [vmem:[%s37 + $0x50] sm:$0xff]
    %v6401 = vld [vmem:[%s37 + $0x58] sm:$0xff]
    %v6402 = vld [vmem:[%s37 + $0x60] sm:$0xff]
    %v6403 = vld [vmem:[%s37 + $0x68] sm:$0xff]
    %v6404 = vld [vmem:[%s37 + $0x70] sm:$0xff]
    %v6405 = vld [vmem:[%s37 + $0x78] sm:$0xff]
    %v6406 = vld [vmem:[%s37 + $0x80] sm:$0xff]
    %v6407 = vld [vmem:[%s37 + $0x88] sm:$0xff]
    %v6408 = vld [vmem:[%s37 + $0x90] sm:$0xff]
    %v6409 = vld [vmem:[%s37 + $0x98] sm:$0xff]
    %v6410 = vld [vmem:[%s37 + $0xa0] sm:$0xff]
    %v6411 = vld [vmem:[%s37 + $0xa8] sm:$0xff]
    %v6412 = vld [vmem:[%s37 + $0xb0] sm:$0xff]
    %v6413 = vld [vmem:[%s37 + $0xb8] sm:$0xff]
    %v6414 = vld [vmem:[%s37 + $0xc0] sm:$0xff]
    %v6415 = vld [vmem:[%s37 + $0xc8] sm:$0xff]
    %v6416 = vld [vmem:[%s37 + $0xd0] sm:$0xff]
    %v6417 = vld [vmem:[%s37 + $0xd8] sm:$0xff]
    %v6418 = vld [vmem:[%s37 + $0xe0] sm:$0xff]
    %v6419 = vld [vmem:[%s37 + $0xe8] sm:$0xff]
    %v6420 = vld [vmem:[%s37 + $0xf0] sm:$0xff]
    %v6421 = vld [vmem:[%s37 + $0xf8] sm:$0xff]
    %v6423 = vrot.slane %v6389, 1
    %v6457 = vunpack.c.l.b16 %v6390
    %v6458 = vunpack.c.h.b16 %v6390
    %v6459 = vunpack.c.l.b16 %v6391
    %v6460 = vunpack.c.h.b16 %v6391
    %v6461 = vunpack.c.l.b16 %v6392
    %v6462 = vunpack.c.h.b16 %v6392
    %v6463 = vunpack.c.l.b16 %v6393
    %v6464 = vunpack.c.h.b16 %v6393
    %v6465 = vunpack.c.l.b16 %v6394
    %v6466 = vunpack.c.h.b16 %v6394
    %v6467 = vunpack.c.l.b16 %v6395
    %v6468 = vunpack.c.h.b16 %v6395
    %v6469 = vunpack.c.l.b16 %v6396
    %v6470 = vunpack.c.h.b16 %v6396
    %v6471 = vunpack.c.l.b16 %v6397
    %v6472 = vunpack.c.h.b16 %v6397
    %v6473 = vunpack.c.l.b16 %v6398
    %v6474 = vunpack.c.h.b16 %v6398
    %v6475 = vunpack.c.l.b16 %v6399
    %v6476 = vunpack.c.h.b16 %v6399
    %v6477 = vunpack.c.l.b16 %v6400
    %v6478 = vunpack.c.h.b16 %v6400
    %v6479 = vunpack.c.l.b16 %v6401
    %v6480 = vunpack.c.h.b16 %v6401
    %v6481 = vunpack.c.l.b16 %v6402
    %v6482 = vunpack.c.h.b16 %v6402
    %v6483 = vunpack.c.l.b16 %v6403
    %v6484 = vunpack.c.h.b16 %v6403
    %v6485 = vunpack.c.l.b16 %v6404
    %v6486 = vunpack.c.h.b16 %v6404
    %v6487 = vunpack.c.l.b16 %v6405
    %v6488 = vunpack.c.h.b16 %v6405
    %v6489 = vunpack.c.l.b16 %v6406
    %v6490 = vunpack.c.h.b16 %v6406
    %v6491 = vunpack.c.l.b16 %v6407
    %v6492 = vunpack.c.h.b16 %v6407
    %v6493 = vunpack.c.l.b16 %v6408
    %v6494 = vunpack.c.h.b16 %v6408
    %v6495 = vunpack.c.l.b16 %v6409
    %v6496 = vunpack.c.h.b16 %v6409
    %v6497 = vunpack.c.l.b16 %v6410
    %v6498 = vunpack.c.h.b16 %v6410
    %v6499 = vunpack.c.l.b16 %v6411
    %v6500 = vunpack.c.h.b16 %v6411
    %v6501 = vunpack.c.l.b16 %v6412
    %v6502 = vunpack.c.h.b16 %v6412
    %v6503 = vunpack.c.l.b16 %v6413
    %v6504 = vunpack.c.h.b16 %v6413
    %v6505 = vunpack.c.l.b16 %v6414
    %v6506 = vunpack.c.h.b16 %v6414
    %v6507 = vunpack.c.l.b16 %v6415
    %v6508 = vunpack.c.h.b16 %v6415
    %v6509 = vunpack.c.l.b16 %v6416
    %v6510 = vunpack.c.h.b16 %v6416
    %v6511 = vunpack.c.l.b16 %v6417
    %v6512 = vunpack.c.h.b16 %v6417
    %v6513 = vunpack.c.l.b16 %v6418
    %v6514 = vunpack.c.h.b16 %v6418
    %v6515 = vunpack.c.l.b16 %v6419
    %v6516 = vunpack.c.h.b16 %v6419
    %v6517 = vunpack.c.l.b16 %v6420
    %v6518 = vunpack.c.h.b16 %v6420
    %v6519 = vunpack.c.l.b16 %v6421
    %v6520 = vunpack.c.h.b16 %v6421
    %v6521 = vpack.c.b16 %v6461, %v6457
    %v6522 = vpack.c.b16 %v6462, %v6458
    %v6523 = vpack.c.b16 %v6463, %v6459
    %v6524 = vpack.c.b16 %v6464, %v6460
    %v6525 = vpack.c.b16 %v6469, %v6465
    %v6526 = vpack.c.b16 %v6470, %v6466
    %v6527 = vpack.c.b16 %v6471, %v6467
    %v6528 = vpack.c.b16 %v6472, %v6468
    %v6529 = vpack.c.b16 %v6477, %v6473
    %v6530 = vpack.c.b16 %v6478, %v6474
    %v6531 = vpack.c.b16 %v6479, %v6475
    %v6532 = vpack.c.b16 %v6480, %v6476
    %v6533 = vpack.c.b16 %v6485, %v6481
    %v6534 = vpack.c.b16 %v6486, %v6482
    %v6535 = vpack.c.b16 %v6487, %v6483
    %v6536 = vpack.c.b16 %v6488, %v6484
    %v6537 = vpack.c.b16 %v6493, %v6489
    %v6538 = vpack.c.b16 %v6494, %v6490
    %v6539 = vpack.c.b16 %v6495, %v6491
    %v6540 = vpack.c.b16 %v6496, %v6492
    %v6541 = vpack.c.b16 %v6501, %v6497
    %v6542 = vpack.c.b16 %v6502, %v6498
    %v6543 = vpack.c.b16 %v6503, %v6499
    %v6544 = vpack.c.b16 %v6504, %v6500
    %v6545 = vpack.c.b16 %v6509, %v6505
    %v6546 = vpack.c.b16 %v6510, %v6506
    %v6547 = vpack.c.b16 %v6511, %v6507
    %v6548 = vpack.c.b16 %v6512, %v6508
    %v6549 = vpack.c.b16 %v6517, %v6513
    %v6550 = vpack.c.b16 %v6518, %v6514
    %v6551 = vpack.c.b16 %v6519, %v6515
    %v6552 = vpack.c.b16 %v6520, %v6516
    %6585 = vmatprep.subr.bf16.mxu0 %v6550
    %6586 = vmatpush1.bf16.msra.mxu0 %v6549
    %6587 = vmatprep.subr.bf16.mxu0 %v6546
    %6588 = vmatpush1.bf16.msra.mxu0 %v6545
    %6589 = vmatprep.subr.bf16.mxu0 %v6542
    %6590 = vmatpush1.bf16.msra.mxu0 %v6541
    %6591 = vmatprep.subr.bf16.mxu0 %v6538
    %6592 = vmatpush1.bf16.msra.mxu0 %v6537
    %6593 = vmatprep.subr.bf16.mxu0 %v6534
    %6594 = vmatpush1.bf16.msra.mxu0 %v6533
    %6595 = vmatprep.subr.bf16.mxu0 %v6530
    %6596 = vmatpush1.bf16.msra.mxu0 %v6529
    %6597 = vmatprep.subr.bf16.mxu0 %v6526
    %6598 = vmatpush1.bf16.msra.mxu0 %v6525
    %6599 = vmatprep.subr.bf16.mxu0 %v6522
    %6600 = vmatpush1.bf16.msra.mxu0 %v6521
    %6601 = vmatprep.subr.bf16.mxu0 0
    %6602 = vmatpush2.bf16.msra.mxu0 0
    %6603 = vmatprep.subr.bf16.mxu0 0
    %6604 = vmatpush2.bf16.msra.mxu0 0
    %6605 = vmatprep.subr.bf16.mxu0 0
    %6606 = vmatpush2.bf16.msra.mxu0 0
    %6607 = vmatprep.subr.bf16.mxu0 0
    %6608 = vmatpush2.bf16.msra.mxu0 0
    %6609 = vmatprep.subr.bf16.mxu0 0
    %6610 = vmatpush2.bf16.msra.mxu0 0
    %6611 = vmatprep.subr.bf16.mxu0 0
    %6612 = vmatpush2.bf16.msra.mxu0 0
    %6613 = vmatprep.subr.bf16.mxu0 0
    %6614 = vmatpush2.bf16.msra.mxu0 0
    %6615 = vmatprep.subr.bf16.mxu0 0
    %6616 = vmatpush2.bf16.msra.mxu0 0
    %6617 = vmatprep.mubr.bf16.mxu0 0
    %6618 = vmatmul.mubr.bf16.gmra.mxu0 %v6423
    %v6619 = vpop.f32.mrf.mxu0
    %v6620 = vadd.f32 0.0, %v6619
    %v6621 = vpop.f32.mrf.mxu0
    %v6622 = vadd.f32 0.0, %v6621
    %v6623 = vpop.f32.mrf.mxu0
    %v6624 = vpop.f32.mrf.mxu0
    %6625 = vdwg.mxu0
    %6626 = vmatprep.subr.bf16.mxu0 %v6552
    %6627 = vmatpush1.bf16.msra.mxu0 %v6551
    %6628 = vmatprep.subr.bf16.mxu0 %v6548
    %6629 = vmatpush1.bf16.msra.mxu0 %v6547
    %6630 = vmatprep.subr.bf16.mxu0 %v6544
    %6631 = vmatpush1.bf16.msra.mxu0 %v6543
    %6632 = vmatprep.subr.bf16.mxu0 %v6540
    %6633 = vmatpush1.bf16.msra.mxu0 %v6539
    %6634 = vmatprep.subr.bf16.mxu0 %v6536
    %6635 = vmatpush1.bf16.msra.mxu0 %v6535
    %6636 = vmatprep.subr.bf16.mxu0 %v6532
    %6637 = vmatpush1.bf16.msra.mxu0 %v6531
    %6638 = vmatprep.subr.bf16.mxu0 %v6528
    %6639 = vmatpush1.bf16.msra.mxu0 %v6527
    %6640 = vmatprep.subr.bf16.mxu0 %v6524
    %6641 = vmatpush1.bf16.msra.mxu0 %v6523
    %6642 = vmatprep.subr.bf16.mxu0 0
    %6643 = vmatpush2.bf16.msra.mxu0 0
    %6644 = vmatprep.subr.bf16.mxu0 0
    %6645 = vmatpush2.bf16.msra.mxu0 0
    %6646 = vmatprep.subr.bf16.mxu0 0
    %6647 = vmatpush2.bf16.msra.mxu0 0
    %6648 = vmatprep.subr.bf16.mxu0 0
    %6649 = vmatpush2.bf16.msra.mxu0 0
    %6650 = vmatprep.subr.bf16.mxu0 0
    %6651 = vmatpush2.bf16.msra.mxu0 0
    %6652 = vmatprep.subr.bf16.mxu0 0
    %6653 = vmatpush2.bf16.msra.mxu0 0
    %6654 = vmatprep.subr.bf16.mxu0 0
    %6655 = vmatpush2.bf16.msra.mxu0 0
    %6656 = vmatprep.subr.bf16.mxu0 0
    %6657 = vmatpush2.bf16.msra.mxu0 0
    %6658 = vmatprep.mubr.bf16.mxu0 0
    %6659 = vmatmul.mubr.bf16.gmra.mxu0 %v6423
    %v6660 = vpop.f32.mrf.mxu0
    %v6661 = vadd.f32 0.0, %v6660
    %v6662 = vpop.f32.mrf.mxu0
    %v6663 = vadd.f32 0.0, %v6662
    %v6664 = vpop.f32.mrf.mxu0
    %v6665 = vpop.f32.mrf.mxu0
    %6666 = vdwg.mxu0
    %v6671 = vrot.slane %v6620, 4
    %v6672 = vrot.slane %v6622, 4
    %v6673 = vrot.slane %v6661, 4
    %v6674 = vrot.slane %v6663, 4
    %v6679 = vadd.f32 %v6385, %v6671
    %v6680 = vadd.f32 %v6386, %v6672
    %v6681 = vadd.f32 %v6387, %v6673
    %v6682 = vadd.f32 %v6388, %v6674
    %v6683 = vxor.u32 %v6679, 2147483648
    %v6684 = vmul.f32 %v6683, 1.442695
    %v6685 = vpow.pop %v6684
    %v6686 = vadd.f32 %v6685, 1.0
    %v6687 = vrcp.pop %v6686
    %v6688 = vmul.f32 1.0, %v6687
    %v6689 = vxor.u32 %v6680, 2147483648
    %v6690 = vmul.f32 %v6689, 1.442695
    %v6691 = vpow.pop %v6690
    %v6692 = vadd.f32 %v6691, 1.0
    %v6693 = vrcp.pop %v6692
    %v6694 = vmul.f32 1.0, %v6693
    %v6695 = vtanh.pop %v6681
    %v6696 = vxor.u32 %v6682, 2147483648
    %v6697 = vmul.f32 %v6696, 1.442695
    %v6698 = vpow.pop %v6697
    %v6699 = vadd.f32 %v6698, 1.0
    %v6700 = vrcp.pop %v6699
    %v6701 = vmul.f32 1.0, %v6700
    %v6703 = vrot.slane %v6055, 6
    %v6705 = vmul.f32 %v6694, %v6703
    %v6706 = vmul.f32 %v6688, %v6695
    %v6707 = vadd.f32 %v6705, %v6706
    %v6708 = vtanh.pop %v6707
    %v6709 = vmul.f32 %v6701, %v6708
    %6710 = vst [vmem:[#allocation2 + $0x10] sm:$0x30] %v6709
    %v6711 = vld [vmem:[#allocation4] sm:$0xc]
    %v6712 = vld [vmem:[#allocation4 + $0x8] sm:$0xc]
    %v6713 = vld [vmem:[#allocation4 + $0x10] sm:$0xc]
    %v6714 = vld [vmem:[#allocation4 + $0x18] sm:$0xc]
    %v6715 = vpack.c.bf16 %v6383, %v6383
    %v6716 = vld [vmem:[%s43] sm:$0xff]
    %v6717 = vld [vmem:[%s43 + $0x8] sm:$0xff]
    %v6718 = vld [vmem:[%s43 + $0x10] sm:$0xff]
    %v6719 = vld [vmem:[%s43 + $0x18] sm:$0xff]
    %v6720 = vld [vmem:[%s43 + $0x20] sm:$0xff]
    %v6721 = vld [vmem:[%s43 + $0x28] sm:$0xff]
    %v6722 = vld [vmem:[%s43 + $0x30] sm:$0xff]
    %v6723 = vld [vmem:[%s43 + $0x38] sm:$0xff]
    %v6724 = vld [vmem:[%s43 + $0x40] sm:$0xff]
    %v6725 = vld [vmem:[%s43 + $0x48] sm:$0xff]
    %v6726 = vld [vmem:[%s43 + $0x50] sm:$0xff]
    %v6727 = vld [vmem:[%s43 + $0x58] sm:$0xff]
    %v6728 = vld [vmem:[%s43 + $0x60] sm:$0xff]
    %v6729 = vld [vmem:[%s43 + $0x68] sm:$0xff]
    %v6730 = vld [vmem:[%s43 + $0x70] sm:$0xff]
    %v6731 = vld [vmem:[%s43 + $0x78] sm:$0xff]
    %v6732 = vld [vmem:[%s43 + $0x80] sm:$0xff]
    %v6733 = vld [vmem:[%s43 + $0x88] sm:$0xff]
    %v6734 = vld [vmem:[%s43 + $0x90] sm:$0xff]
    %v6735 = vld [vmem:[%s43 + $0x98] sm:$0xff]
    %v6736 = vld [vmem:[%s43 + $0xa0] sm:$0xff]
    %v6737 = vld [vmem:[%s43 + $0xa8] sm:$0xff]
    %v6738 = vld [vmem:[%s43 + $0xb0] sm:$0xff]
    %v6739 = vld [vmem:[%s43 + $0xb8] sm:$0xff]
    %v6740 = vld [vmem:[%s43 + $0xc0] sm:$0xff]
    %v6741 = vld [vmem:[%s43 + $0xc8] sm:$0xff]
    %v6742 = vld [vmem:[%s43 + $0xd0] sm:$0xff]
    %v6743 = vld [vmem:[%s43 + $0xd8] sm:$0xff]
    %v6744 = vld [vmem:[%s43 + $0xe0] sm:$0xff]
    %v6745 = vld [vmem:[%s43 + $0xe8] sm:$0xff]
    %v6746 = vld [vmem:[%s43 + $0xf0] sm:$0xff]
    %v6747 = vld [vmem:[%s43 + $0xf8] sm:$0xff]
    %v6749 = vrot.slane %v6715, 2
    %v6783 = vunpack.c.l.b16 %v6716
    %v6784 = vunpack.c.h.b16 %v6716
    %v6785 = vunpack.c.l.b16 %v6717
    %v6786 = vunpack.c.h.b16 %v6717
    %v6787 = vunpack.c.l.b16 %v6718
    %v6788 = vunpack.c.h.b16 %v6718
    %v6789 = vunpack.c.l.b16 %v6719
    %v6790 = vunpack.c.h.b16 %v6719
    %v6791 = vunpack.c.l.b16 %v6720
    %v6792 = vunpack.c.h.b16 %v6720
    %v6793 = vunpack.c.l.b16 %v6721
    %v6794 = vunpack.c.h.b16 %v6721
    %v6795 = vunpack.c.l.b16 %v6722
    %v6796 = vunpack.c.h.b16 %v6722
    %v6797 = vunpack.c.l.b16 %v6723
    %v6798 = vunpack.c.h.b16 %v6723
    %v6799 = vunpack.c.l.b16 %v6724
    %v6800 = vunpack.c.h.b16 %v6724
    %v6801 = vunpack.c.l.b16 %v6725
    %v6802 = vunpack.c.h.b16 %v6725
    %v6803 = vunpack.c.l.b16 %v6726
    %v6804 = vunpack.c.h.b16 %v6726
    %v6805 = vunpack.c.l.b16 %v6727
    %v6806 = vunpack.c.h.b16 %v6727
    %v6807 = vunpack.c.l.b16 %v6728
    %v6808 = vunpack.c.h.b16 %v6728
    %v6809 = vunpack.c.l.b16 %v6729
    %v6810 = vunpack.c.h.b16 %v6729
    %v6811 = vunpack.c.l.b16 %v6730
    %v6812 = vunpack.c.h.b16 %v6730
    %v6813 = vunpack.c.l.b16 %v6731
    %v6814 = vunpack.c.h.b16 %v6731
    %v6815 = vunpack.c.l.b16 %v6732
    %v6816 = vunpack.c.h.b16 %v6732
    %v6817 = vunpack.c.l.b16 %v6733
    %v6818 = vunpack.c.h.b16 %v6733
    %v6819 = vunpack.c.l.b16 %v6734
    %v6820 = vunpack.c.h.b16 %v6734
    %v6821 = vunpack.c.l.b16 %v6735
    %v6822 = vunpack.c.h.b16 %v6735
    %v6823 = vunpack.c.l.b16 %v6736
    %v6824 = vunpack.c.h.b16 %v6736
    %v6825 = vunpack.c.l.b16 %v6737
    %v6826 = vunpack.c.h.b16 %v6737
    %v6827 = vunpack.c.l.b16 %v6738
    %v6828 = vunpack.c.h.b16 %v6738
    %v6829 = vunpack.c.l.b16 %v6739
    %v6830 = vunpack.c.h.b16 %v6739
    %v6831 = vunpack.c.l.b16 %v6740
    %v6832 = vunpack.c.h.b16 %v6740
    %v6833 = vunpack.c.l.b16 %v6741
    %v6834 = vunpack.c.h.b16 %v6741
    %v6835 = vunpack.c.l.b16 %v6742
    %v6836 = vunpack.c.h.b16 %v6742
    %v6837 = vunpack.c.l.b16 %v6743
    %v6838 = vunpack.c.h.b16 %v6743
    %v6839 = vunpack.c.l.b16 %v6744
    %v6840 = vunpack.c.h.b16 %v6744
    %v6841 = vunpack.c.l.b16 %v6745
    %v6842 = vunpack.c.h.b16 %v6745
    %v6843 = vunpack.c.l.b16 %v6746
    %v6844 = vunpack.c.h.b16 %v6746
    %v6845 = vunpack.c.l.b16 %v6747
    %v6846 = vunpack.c.h.b16 %v6747
    %v6847 = vpack.c.b16 %v6787, %v6783
    %v6848 = vpack.c.b16 %v6788, %v6784
    %v6849 = vpack.c.b16 %v6789, %v6785
    %v6850 = vpack.c.b16 %v6790, %v6786
    %v6851 = vpack.c.b16 %v6795, %v6791
    %v6852 = vpack.c.b16 %v6796, %v6792
    %v6853 = vpack.c.b16 %v6797, %v6793
    %v6854 = vpack.c.b16 %v6798, %v6794
    %v6855 = vpack.c.b16 %v6803, %v6799
    %v6856 = vpack.c.b16 %v6804, %v6800
    %v6857 = vpack.c.b16 %v6805, %v6801
    %v6858 = vpack.c.b16 %v6806, %v6802
    %v6859 = vpack.c.b16 %v6811, %v6807
    %v6860 = vpack.c.b16 %v6812, %v6808
    %v6861 = vpack.c.b16 %v6813, %v6809
    %v6862 = vpack.c.b16 %v6814, %v6810
    %v6863 = vpack.c.b16 %v6819, %v6815
    %v6864 = vpack.c.b16 %v6820, %v6816
    %v6865 = vpack.c.b16 %v6821, %v6817
    %v6866 = vpack.c.b16 %v6822, %v6818
    %v6867 = vpack.c.b16 %v6827, %v6823
    %v6868 = vpack.c.b16 %v6828, %v6824
    %v6869 = vpack.c.b16 %v6829, %v6825
    %v6870 = vpack.c.b16 %v6830, %v6826
    %v6871 = vpack.c.b16 %v6835, %v6831
    %v6872 = vpack.c.b16 %v6836, %v6832
    %v6873 = vpack.c.b16 %v6837, %v6833
    %v6874 = vpack.c.b16 %v6838, %v6834
    %v6875 = vpack.c.b16 %v6843, %v6839
    %v6876 = vpack.c.b16 %v6844, %v6840
    %v6877 = vpack.c.b16 %v6845, %v6841
    %v6878 = vpack.c.b16 %v6846, %v6842
    %6911 = vmatprep.subr.bf16.mxu0 %v6876
    %6912 = vmatpush1.bf16.msra.mxu0 %v6875
    %6913 = vmatprep.subr.bf16.mxu0 %v6872
    %6914 = vmatpush1.bf16.msra.mxu0 %v6871
    %6915 = vmatprep.subr.bf16.mxu0 %v6868
    %6916 = vmatpush1.bf16.msra.mxu0 %v6867
    %6917 = vmatprep.subr.bf16.mxu0 %v6864
    %6918 = vmatpush1.bf16.msra.mxu0 %v6863
    %6919 = vmatprep.subr.bf16.mxu0 %v6860
    %6920 = vmatpush1.bf16.msra.mxu0 %v6859
    %6921 = vmatprep.subr.bf16.mxu0 %v6856
    %6922 = vmatpush1.bf16.msra.mxu0 %v6855
    %6923 = vmatprep.subr.bf16.mxu0 %v6852
    %6924 = vmatpush1.bf16.msra.mxu0 %v6851
    %6925 = vmatprep.subr.bf16.mxu0 %v6848
    %6926 = vmatpush1.bf16.msra.mxu0 %v6847
    %6927 = vmatprep.subr.bf16.mxu0 0
    %6928 = vmatpush2.bf16.msra.mxu0 0
    %6929 = vmatprep.subr.bf16.mxu0 0
    %6930 = vmatpush2.bf16.msra.mxu0 0
    %6931 = vmatprep.subr.bf16.mxu0 0
    %6932 = vmatpush2.bf16.msra.mxu0 0
    %6933 = vmatprep.subr.bf16.mxu0 0
    %6934 = vmatpush2.bf16.msra.mxu0 0
    %6935 = vmatprep.subr.bf16.mxu0 0
    %6936 = vmatpush2.bf16.msra.mxu0 0
    %6937 = vmatprep.subr.bf16.mxu0 0
    %6938 = vmatpush2.bf16.msra.mxu0 0
    %6939 = vmatprep.subr.bf16.mxu0 0
    %6940 = vmatpush2.bf16.msra.mxu0 0
    %6941 = vmatprep.subr.bf16.mxu0 0
    %6942 = vmatpush2.bf16.msra.mxu0 0
    %6943 = vmatprep.mubr.bf16.mxu0 0
    %6944 = vmatmul.mubr.bf16.gmra.mxu0 %v6749
    %v6945 = vpop.f32.mrf.mxu0
    %v6946 = vadd.f32 0.0, %v6945
    %v6947 = vpop.f32.mrf.mxu0
    %v6948 = vadd.f32 0.0, %v6947
    %v6949 = vpop.f32.mrf.mxu0
    %v6950 = vpop.f32.mrf.mxu0
    %6951 = vdwg.mxu0
    %6952 = vmatprep.subr.bf16.mxu0 %v6878
    %6953 = vmatpush1.bf16.msra.mxu0 %v6877
    %6954 = vmatprep.subr.bf16.mxu0 %v6874
    %6955 = vmatpush1.bf16.msra.mxu0 %v6873
    %6956 = vmatprep.subr.bf16.mxu0 %v6870
    %6957 = vmatpush1.bf16.msra.mxu0 %v6869
    %6958 = vmatprep.subr.bf16.mxu0 %v6866
    %6959 = vmatpush1.bf16.msra.mxu0 %v6865
    %6960 = vmatprep.subr.bf16.mxu0 %v6862
    %6961 = vmatpush1.bf16.msra.mxu0 %v6861
    %6962 = vmatprep.subr.bf16.mxu0 %v6858
    %6963 = vmatpush1.bf16.msra.mxu0 %v6857
    %6964 = vmatprep.subr.bf16.mxu0 %v6854
    %6965 = vmatpush1.bf16.msra.mxu0 %v6853
    %6966 = vmatprep.subr.bf16.mxu0 %v6850
    %6967 = vmatpush1.bf16.msra.mxu0 %v6849
    %6968 = vmatprep.subr.bf16.mxu0 0
    %6969 = vmatpush2.bf16.msra.mxu0 0
    %6970 = vmatprep.subr.bf16.mxu0 0
    %6971 = vmatpush2.bf16.msra.mxu0 0
    %6972 = vmatprep.subr.bf16.mxu0 0
    %6973 = vmatpush2.bf16.msra.mxu0 0
    %6974 = vmatprep.subr.bf16.mxu0 0
    %6975 = vmatpush2.bf16.msra.mxu0 0
    %6976 = vmatprep.subr.bf16.mxu0 0
    %6977 = vmatpush2.bf16.msra.mxu0 0
    %6978 = vmatprep.subr.bf16.mxu0 0
    %6979 = vmatpush2.bf16.msra.mxu0 0
    %6980 = vmatprep.subr.bf16.mxu0 0
    %6981 = vmatpush2.bf16.msra.mxu0 0
    %6982 = vmatprep.subr.bf16.mxu0 0
    %6983 = vmatpush2.bf16.msra.mxu0 0
    %6984 = vmatprep.mubr.bf16.mxu0 0
    %6985 = vmatmul.mubr.bf16.gmra.mxu0 %v6749
    %v6986 = vpop.f32.mrf.mxu0
    %v6987 = vadd.f32 0.0, %v6986
    %v6988 = vpop.f32.mrf.mxu0
    %v6989 = vadd.f32 0.0, %v6988
    %v6990 = vpop.f32.mrf.mxu0
    %v6991 = vpop.f32.mrf.mxu0
    %6992 = vdwg.mxu0
    %v6997 = vrot.slane %v6946, 6
    %v6998 = vrot.slane %v6948, 6
    %v6999 = vrot.slane %v6987, 6
    %v7000 = vrot.slane %v6989, 6
    %v7005 = vadd.f32 %v6711, %v6997
    %v7006 = vadd.f32 %v6712, %v6998
    %v7007 = vadd.f32 %v6713, %v6999
    %v7008 = vadd.f32 %v6714, %v7000
    %v7009 = vxor.u32 %v7005, 2147483648
    %v7010 = vmul.f32 %v7009, 1.442695
    %v7011 = vpow.pop %v7010
    %v7012 = vadd.f32 %v7011, 1.0
    %v7013 = vrcp.pop %v7012
    %v7014 = vmul.f32 1.0, %v7013
    %v7015 = vxor.u32 %v7006, 2147483648
    %v7016 = vmul.f32 %v7015, 1.442695
    %v7017 = vpow.pop %v7016
    %v7018 = vadd.f32 %v7017, 1.0
    %v7019 = vrcp.pop %v7018
    %v7020 = vmul.f32 1.0, %v7019
    %v7021 = vtanh.pop %v7007
    %v7022 = vxor.u32 %v7008, 2147483648
    %v7023 = vmul.f32 %v7022, 1.442695
    %v7024 = vpow.pop %v7023
    %v7025 = vadd.f32 %v7024, 1.0
    %v7026 = vrcp.pop %v7025
    %v7027 = vmul.f32 1.0, %v7026
    %v7029 = vrot.slane %v6381, 2
    %v7031 = vmul.f32 %v7020, %v7029
    %v7032 = vmul.f32 %v7014, %v7021
    %v7033 = vadd.f32 %v7031, %v7032
    %v7034 = vtanh.pop %v7033
    %v7035 = vmul.f32 %v7027, %v7034
    %7036 = vst [vmem:[#allocation2 + $0x8] sm:$0xc] %v7035
    %v7037 = vld [vmem:[#allocation3 + $0x20] sm:$0xc0]
    %v7038 = vld [vmem:[#allocation3 + $0x28] sm:$0xc0]
    %v7039 = vld [vmem:[#allocation3 + $0x30] sm:$0xc0]
    %v7040 = vld [vmem:[#allocation3 + $0x38] sm:$0xc0]
    %v7041 = vpack.c.bf16 %v6709, %v6709
    %v7042 = vld [vmem:[%s37] sm:$0xff]
    %v7043 = vld [vmem:[%s37 + $0x8] sm:$0xff]
    %v7044 = vld [vmem:[%s37 + $0x10] sm:$0xff]
    %v7045 = vld [vmem:[%s37 + $0x18] sm:$0xff]
    %v7046 = vld [vmem:[%s37 + $0x20] sm:$0xff]
    %v7047 = vld [vmem:[%s37 + $0x28] sm:$0xff]
    %v7048 = vld [vmem:[%s37 + $0x30] sm:$0xff]
    %v7049 = vld [vmem:[%s37 + $0x38] sm:$0xff]
    %v7050 = vld [vmem:[%s37 + $0x40] sm:$0xff]
    %v7051 = vld [vmem:[%s37 + $0x48] sm:$0xff]
    %v7052 = vld [vmem:[%s37 + $0x50] sm:$0xff]
    %v7053 = vld [vmem:[%s37 + $0x58] sm:$0xff]
    %v7054 = vld [vmem:[%s37 + $0x60] sm:$0xff]
    %v7055 = vld [vmem:[%s37 + $0x68] sm:$0xff]
    %v7056 = vld [vmem:[%s37 + $0x70] sm:$0xff]
    %v7057 = vld [vmem:[%s37 + $0x78] sm:$0xff]
    %v7058 = vld [vmem:[%s37 + $0x80] sm:$0xff]
    %v7059 = vld [vmem:[%s37 + $0x88] sm:$0xff]
    %v7060 = vld [vmem:[%s37 + $0x90] sm:$0xff]
    %v7061 = vld [vmem:[%s37 + $0x98] sm:$0xff]
    %v7062 = vld [vmem:[%s37 + $0xa0] sm:$0xff]
    %v7063 = vld [vmem:[%s37 + $0xa8] sm:$0xff]
    %v7064 = vld [vmem:[%s37 + $0xb0] sm:$0xff]
    %v7065 = vld [vmem:[%s37 + $0xb8] sm:$0xff]
    %v7066 = vld [vmem:[%s37 + $0xc0] sm:$0xff]
    %v7067 = vld [vmem:[%s37 + $0xc8] sm:$0xff]
    %v7068 = vld [vmem:[%s37 + $0xd0] sm:$0xff]
    %v7069 = vld [vmem:[%s37 + $0xd8] sm:$0xff]
    %v7070 = vld [vmem:[%s37 + $0xe0] sm:$0xff]
    %v7071 = vld [vmem:[%s37 + $0xe8] sm:$0xff]
    %v7072 = vld [vmem:[%s37 + $0xf0] sm:$0xff]
    %v7073 = vld [vmem:[%s37 + $0xf8] sm:$0xff]
    %v7075 = vrot.slane %v7041, 2
    %v7109 = vunpack.c.l.b16 %v7042
    %v7110 = vunpack.c.h.b16 %v7042
    %v7111 = vunpack.c.l.b16 %v7043
    %v7112 = vunpack.c.h.b16 %v7043
    %v7113 = vunpack.c.l.b16 %v7044
    %v7114 = vunpack.c.h.b16 %v7044
    %v7115 = vunpack.c.l.b16 %v7045
    %v7116 = vunpack.c.h.b16 %v7045
    %v7117 = vunpack.c.l.b16 %v7046
    %v7118 = vunpack.c.h.b16 %v7046
    %v7119 = vunpack.c.l.b16 %v7047
    %v7120 = vunpack.c.h.b16 %v7047
    %v7121 = vunpack.c.l.b16 %v7048
    %v7122 = vunpack.c.h.b16 %v7048
    %v7123 = vunpack.c.l.b16 %v7049
    %v7124 = vunpack.c.h.b16 %v7049
    %v7125 = vunpack.c.l.b16 %v7050
    %v7126 = vunpack.c.h.b16 %v7050
    %v7127 = vunpack.c.l.b16 %v7051
    %v7128 = vunpack.c.h.b16 %v7051
    %v7129 = vunpack.c.l.b16 %v7052
    %v7130 = vunpack.c.h.b16 %v7052
    %v7131 = vunpack.c.l.b16 %v7053
    %v7132 = vunpack.c.h.b16 %v7053
    %v7133 = vunpack.c.l.b16 %v7054
    %v7134 = vunpack.c.h.b16 %v7054
    %v7135 = vunpack.c.l.b16 %v7055
    %v7136 = vunpack.c.h.b16 %v7055
    %v7137 = vunpack.c.l.b16 %v7056
    %v7138 = vunpack.c.h.b16 %v7056
    %v7139 = vunpack.c.l.b16 %v7057
    %v7140 = vunpack.c.h.b16 %v7057
    %v7141 = vunpack.c.l.b16 %v7058
    %v7142 = vunpack.c.h.b16 %v7058
    %v7143 = vunpack.c.l.b16 %v7059
    %v7144 = vunpack.c.h.b16 %v7059
    %v7145 = vunpack.c.l.b16 %v7060
    %v7146 = vunpack.c.h.b16 %v7060
    %v7147 = vunpack.c.l.b16 %v7061
    %v7148 = vunpack.c.h.b16 %v7061
    %v7149 = vunpack.c.l.b16 %v7062
    %v7150 = vunpack.c.h.b16 %v7062
    %v7151 = vunpack.c.l.b16 %v7063
    %v7152 = vunpack.c.h.b16 %v7063
    %v7153 = vunpack.c.l.b16 %v7064
    %v7154 = vunpack.c.h.b16 %v7064
    %v7155 = vunpack.c.l.b16 %v7065
    %v7156 = vunpack.c.h.b16 %v7065
    %v7157 = vunpack.c.l.b16 %v7066
    %v7158 = vunpack.c.h.b16 %v7066
    %v7159 = vunpack.c.l.b16 %v7067
    %v7160 = vunpack.c.h.b16 %v7067
    %v7161 = vunpack.c.l.b16 %v7068
    %v7162 = vunpack.c.h.b16 %v7068
    %v7163 = vunpack.c.l.b16 %v7069
    %v7164 = vunpack.c.h.b16 %v7069
    %v7165 = vunpack.c.l.b16 %v7070
    %v7166 = vunpack.c.h.b16 %v7070
    %v7167 = vunpack.c.l.b16 %v7071
    %v7168 = vunpack.c.h.b16 %v7071
    %v7169 = vunpack.c.l.b16 %v7072
    %v7170 = vunpack.c.h.b16 %v7072
    %v7171 = vunpack.c.l.b16 %v7073
    %v7172 = vunpack.c.h.b16 %v7073
    %v7173 = vpack.c.b16 %v7113, %v7109
    %v7174 = vpack.c.b16 %v7114, %v7110
    %v7175 = vpack.c.b16 %v7115, %v7111
    %v7176 = vpack.c.b16 %v7116, %v7112
    %v7177 = vpack.c.b16 %v7121, %v7117
    %v7178 = vpack.c.b16 %v7122, %v7118
    %v7179 = vpack.c.b16 %v7123, %v7119
    %v7180 = vpack.c.b16 %v7124, %v7120
    %v7181 = vpack.c.b16 %v7129, %v7125
    %v7182 = vpack.c.b16 %v7130, %v7126
    %v7183 = vpack.c.b16 %v7131, %v7127
    %v7184 = vpack.c.b16 %v7132, %v7128
    %v7185 = vpack.c.b16 %v7137, %v7133
    %v7186 = vpack.c.b16 %v7138, %v7134
    %v7187 = vpack.c.b16 %v7139, %v7135
    %v7188 = vpack.c.b16 %v7140, %v7136
    %v7189 = vpack.c.b16 %v7145, %v7141
    %v7190 = vpack.c.b16 %v7146, %v7142
    %v7191 = vpack.c.b16 %v7147, %v7143
    %v7192 = vpack.c.b16 %v7148, %v7144
    %v7193 = vpack.c.b16 %v7153, %v7149
    %v7194 = vpack.c.b16 %v7154, %v7150
    %v7195 = vpack.c.b16 %v7155, %v7151
    %v7196 = vpack.c.b16 %v7156, %v7152
    %v7197 = vpack.c.b16 %v7161, %v7157
    %v7198 = vpack.c.b16 %v7162, %v7158
    %v7199 = vpack.c.b16 %v7163, %v7159
    %v7200 = vpack.c.b16 %v7164, %v7160
    %v7201 = vpack.c.b16 %v7169, %v7165
    %v7202 = vpack.c.b16 %v7170, %v7166
    %v7203 = vpack.c.b16 %v7171, %v7167
    %v7204 = vpack.c.b16 %v7172, %v7168
    %7237 = vmatprep.subr.bf16.mxu0 %v7202
    %7238 = vmatpush1.bf16.msra.mxu0 %v7201
    %7239 = vmatprep.subr.bf16.mxu0 %v7198
    %7240 = vmatpush1.bf16.msra.mxu0 %v7197
    %7241 = vmatprep.subr.bf16.mxu0 %v7194
    %7242 = vmatpush1.bf16.msra.mxu0 %v7193
    %7243 = vmatprep.subr.bf16.mxu0 %v7190
    %7244 = vmatpush1.bf16.msra.mxu0 %v7189
    %7245 = vmatprep.subr.bf16.mxu0 %v7186
    %7246 = vmatpush1.bf16.msra.mxu0 %v7185
    %7247 = vmatprep.subr.bf16.mxu0 %v7182
    %7248 = vmatpush1.bf16.msra.mxu0 %v7181
    %7249 = vmatprep.subr.bf16.mxu0 %v7178
    %7250 = vmatpush1.bf16.msra.mxu0 %v7177
    %7251 = vmatprep.subr.bf16.mxu0 %v7174
    %7252 = vmatpush1.bf16.msra.mxu0 %v7173
    %7253 = vmatprep.subr.bf16.mxu0 0
    %7254 = vmatpush2.bf16.msra.mxu0 0
    %7255 = vmatprep.subr.bf16.mxu0 0
    %7256 = vmatpush2.bf16.msra.mxu0 0
    %7257 = vmatprep.subr.bf16.mxu0 0
    %7258 = vmatpush2.bf16.msra.mxu0 0
    %7259 = vmatprep.subr.bf16.mxu0 0
    %7260 = vmatpush2.bf16.msra.mxu0 0
    %7261 = vmatprep.subr.bf16.mxu0 0
    %7262 = vmatpush2.bf16.msra.mxu0 0
    %7263 = vmatprep.subr.bf16.mxu0 0
    %7264 = vmatpush2.bf16.msra.mxu0 0
    %7265 = vmatprep.subr.bf16.mxu0 0
    %7266 = vmatpush2.bf16.msra.mxu0 0
    %7267 = vmatprep.subr.bf16.mxu0 0
    %7268 = vmatpush2.bf16.msra.mxu0 0
    %7269 = vmatprep.mubr.bf16.mxu0 0
    %7270 = vmatmul.mubr.bf16.gmra.mxu0 %v7075
    %v7271 = vpop.f32.mrf.mxu0
    %v7272 = vadd.f32 0.0, %v7271
    %v7273 = vpop.f32.mrf.mxu0
    %v7274 = vadd.f32 0.0, %v7273
    %v7275 = vpop.f32.mrf.mxu0
    %v7276 = vpop.f32.mrf.mxu0
    %7277 = vdwg.mxu0
    %7278 = vmatprep.subr.bf16.mxu0 %v7204
    %7279 = vmatpush1.bf16.msra.mxu0 %v7203
    %7280 = vmatprep.subr.bf16.mxu0 %v7200
    %7281 = vmatpush1.bf16.msra.mxu0 %v7199
    %7282 = vmatprep.subr.bf16.mxu0 %v7196
    %7283 = vmatpush1.bf16.msra.mxu0 %v7195
    %7284 = vmatprep.subr.bf16.mxu0 %v7192
    %7285 = vmatpush1.bf16.msra.mxu0 %v7191
    %7286 = vmatprep.subr.bf16.mxu0 %v7188
    %7287 = vmatpush1.bf16.msra.mxu0 %v7187
    %7288 = vmatprep.subr.bf16.mxu0 %v7184
    %7289 = vmatpush1.bf16.msra.mxu0 %v7183
    %7290 = vmatprep.subr.bf16.mxu0 %v7180
    %7291 = vmatpush1.bf16.msra.mxu0 %v7179
    %7292 = vmatprep.subr.bf16.mxu0 %v7176
    %7293 = vmatpush1.bf16.msra.mxu0 %v7175
    %7294 = vmatprep.subr.bf16.mxu0 0
    %7295 = vmatpush2.bf16.msra.mxu0 0
    %7296 = vmatprep.subr.bf16.mxu0 0
    %7297 = vmatpush2.bf16.msra.mxu0 0
    %7298 = vmatprep.subr.bf16.mxu0 0
    %7299 = vmatpush2.bf16.msra.mxu0 0
    %7300 = vmatprep.subr.bf16.mxu0 0
    %7301 = vmatpush2.bf16.msra.mxu0 0
    %7302 = vmatprep.subr.bf16.mxu0 0
    %7303 = vmatpush2.bf16.msra.mxu0 0
    %7304 = vmatprep.subr.bf16.mxu0 0
    %7305 = vmatpush2.bf16.msra.mxu0 0
    %7306 = vmatprep.subr.bf16.mxu0 0
    %7307 = vmatpush2.bf16.msra.mxu0 0
    %7308 = vmatprep.subr.bf16.mxu0 0
    %7309 = vmatpush2.bf16.msra.mxu0 0
    %7310 = vmatprep.mubr.bf16.mxu0 0
    %7311 = vmatmul.mubr.bf16.gmra.mxu0 %v7075
    %v7312 = vpop.f32.mrf.mxu0
    %v7313 = vadd.f32 0.0, %v7312
    %v7314 = vpop.f32.mrf.mxu0
    %v7315 = vadd.f32 0.0, %v7314
    %v7316 = vpop.f32.mrf.mxu0
    %v7317 = vpop.f32.mrf.mxu0
    %7318 = vdwg.mxu0
    %v7323 = vrot.slane %v7272, 2
    %v7324 = vrot.slane %v7274, 2
    %v7325 = vrot.slane %v7313, 2
    %v7326 = vrot.slane %v7315, 2
    %v7331 = vadd.f32 %v7037, %v7323
    %v7332 = vadd.f32 %v7038, %v7324
    %v7333 = vadd.f32 %v7039, %v7325
    %v7334 = vadd.f32 %v7040, %v7326
    %v7335 = vxor.u32 %v7331, 2147483648
    %v7336 = vmul.f32 %v7335, 1.442695
    %v7337 = vpow.pop %v7336
    %v7338 = vadd.f32 %v7337, 1.0
    %v7339 = vrcp.pop %v7338
    %v7340 = vmul.f32 1.0, %v7339
    %v7341 = vxor.u32 %v7332, 2147483648
    %v7342 = vmul.f32 %v7341, 1.442695
    %v7343 = vpow.pop %v7342
    %v7344 = vadd.f32 %v7343, 1.0
    %v7345 = vrcp.pop %v7344
    %v7346 = vmul.f32 1.0, %v7345
    %v7347 = vtanh.pop %v7333
    %v7348 = vxor.u32 %v7334, 2147483648
    %v7349 = vmul.f32 %v7348, 1.442695
    %v7350 = vpow.pop %v7349
    %v7351 = vadd.f32 %v7350, 1.0
    %v7352 = vrcp.pop %v7351
    %v7353 = vmul.f32 1.0, %v7352
    %v7355 = vrot.slane %v6707, 6
    %v7357 = vmul.f32 %v7346, %v7355
    %v7358 = vmul.f32 %v7340, %v7347
    %v7359 = vadd.f32 %v7357, %v7358
    %v7360 = vtanh.pop %v7359
    %v7361 = vmul.f32 %v7353, %v7360
    %7362 = vst [vmem:[#allocation2 + $0x10] sm:$0xc0] %v7361
    %v7363 = vld [vmem:[#allocation4] sm:$0x3]
    %v7364 = vld [vmem:[#allocation4 + $0x8] sm:$0x3]
    %v7365 = vld [vmem:[#allocation4 + $0x10] sm:$0x3]
    %v7366 = vld [vmem:[#allocation4 + $0x18] sm:$0x3]
    %v7367 = vpack.c.bf16 %v7035, %v7035
    %v7368 = vld [vmem:[%s43] sm:$0xff]
    %v7369 = vld [vmem:[%s43 + $0x8] sm:$0xff]
    %v7370 = vld [vmem:[%s43 + $0x10] sm:$0xff]
    %v7371 = vld [vmem:[%s43 + $0x18] sm:$0xff]
    %v7372 = vld [vmem:[%s43 + $0x20] sm:$0xff]
    %v7373 = vld [vmem:[%s43 + $0x28] sm:$0xff]
    %v7374 = vld [vmem:[%s43 + $0x30] sm:$0xff]
    %v7375 = vld [vmem:[%s43 + $0x38] sm:$0xff]
    %v7376 = vld [vmem:[%s43 + $0x40] sm:$0xff]
    %v7377 = vld [vmem:[%s43 + $0x48] sm:$0xff]
    %v7378 = vld [vmem:[%s43 + $0x50] sm:$0xff]
    %v7379 = vld [vmem:[%s43 + $0x58] sm:$0xff]
    %v7380 = vld [vmem:[%s43 + $0x60] sm:$0xff]
    %v7381 = vld [vmem:[%s43 + $0x68] sm:$0xff]
    %v7382 = vld [vmem:[%s43 + $0x70] sm:$0xff]
    %v7383 = vld [vmem:[%s43 + $0x78] sm:$0xff]
    %v7384 = vld [vmem:[%s43 + $0x80] sm:$0xff]
    %v7385 = vld [vmem:[%s43 + $0x88] sm:$0xff]
    %v7386 = vld [vmem:[%s43 + $0x90] sm:$0xff]
    %v7387 = vld [vmem:[%s43 + $0x98] sm:$0xff]
    %v7388 = vld [vmem:[%s43 + $0xa0] sm:$0xff]
    %v7389 = vld [vmem:[%s43 + $0xa8] sm:$0xff]
    %v7390 = vld [vmem:[%s43 + $0xb0] sm:$0xff]
    %v7391 = vld [vmem:[%s43 + $0xb8] sm:$0xff]
    %v7392 = vld [vmem:[%s43 + $0xc0] sm:$0xff]
    %v7393 = vld [vmem:[%s43 + $0xc8] sm:$0xff]
    %v7394 = vld [vmem:[%s43 + $0xd0] sm:$0xff]
    %v7395 = vld [vmem:[%s43 + $0xd8] sm:$0xff]
    %v7396 = vld [vmem:[%s43 + $0xe0] sm:$0xff]
    %v7397 = vld [vmem:[%s43 + $0xe8] sm:$0xff]
    %v7398 = vld [vmem:[%s43 + $0xf0] sm:$0xff]
    %v7399 = vld [vmem:[%s43 + $0xf8] sm:$0xff]
    %v7401 = vrot.slane %v7367, 1
    %v7435 = vunpack.c.l.b16 %v7368
    %v7436 = vunpack.c.h.b16 %v7368
    %v7437 = vunpack.c.l.b16 %v7369
    %v7438 = vunpack.c.h.b16 %v7369
    %v7439 = vunpack.c.l.b16 %v7370
    %v7440 = vunpack.c.h.b16 %v7370
    %v7441 = vunpack.c.l.b16 %v7371
    %v7442 = vunpack.c.h.b16 %v7371
    %v7443 = vunpack.c.l.b16 %v7372
    %v7444 = vunpack.c.h.b16 %v7372
    %v7445 = vunpack.c.l.b16 %v7373
    %v7446 = vunpack.c.h.b16 %v7373
    %v7447 = vunpack.c.l.b16 %v7374
    %v7448 = vunpack.c.h.b16 %v7374
    %v7449 = vunpack.c.l.b16 %v7375
    %v7450 = vunpack.c.h.b16 %v7375
    %v7451 = vunpack.c.l.b16 %v7376
    %v7452 = vunpack.c.h.b16 %v7376
    %v7453 = vunpack.c.l.b16 %v7377
    %v7454 = vunpack.c.h.b16 %v7377
    %v7455 = vunpack.c.l.b16 %v7378
    %v7456 = vunpack.c.h.b16 %v7378
    %v7457 = vunpack.c.l.b16 %v7379
    %v7458 = vunpack.c.h.b16 %v7379
    %v7459 = vunpack.c.l.b16 %v7380
    %v7460 = vunpack.c.h.b16 %v7380
    %v7461 = vunpack.c.l.b16 %v7381
    %v7462 = vunpack.c.h.b16 %v7381
    %v7463 = vunpack.c.l.b16 %v7382
    %v7464 = vunpack.c.h.b16 %v7382
    %v7465 = vunpack.c.l.b16 %v7383
    %v7466 = vunpack.c.h.b16 %v7383
    %v7467 = vunpack.c.l.b16 %v7384
    %v7468 = vunpack.c.h.b16 %v7384
    %v7469 = vunpack.c.l.b16 %v7385
    %v7470 = vunpack.c.h.b16 %v7385
    %v7471 = vunpack.c.l.b16 %v7386
    %v7472 = vunpack.c.h.b16 %v7386
    %v7473 = vunpack.c.l.b16 %v7387
    %v7474 = vunpack.c.h.b16 %v7387
    %v7475 = vunpack.c.l.b16 %v7388
    %v7476 = vunpack.c.h.b16 %v7388
    %v7477 = vunpack.c.l.b16 %v7389
    %v7478 = vunpack.c.h.b16 %v7389
    %v7479 = vunpack.c.l.b16 %v7390
    %v7480 = vunpack.c.h.b16 %v7390
    %v7481 = vunpack.c.l.b16 %v7391
    %v7482 = vunpack.c.h.b16 %v7391
    %v7483 = vunpack.c.l.b16 %v7392
    %v7484 = vunpack.c.h.b16 %v7392
    %v7485 = vunpack.c.l.b16 %v7393
    %v7486 = vunpack.c.h.b16 %v7393
    %v7487 = vunpack.c.l.b16 %v7394
    %v7488 = vunpack.c.h.b16 %v7394
    %v7489 = vunpack.c.l.b16 %v7395
    %v7490 = vunpack.c.h.b16 %v7395
    %v7491 = vunpack.c.l.b16 %v7396
    %v7492 = vunpack.c.h.b16 %v7396
    %v7493 = vunpack.c.l.b16 %v7397
    %v7494 = vunpack.c.h.b16 %v7397
    %v7495 = vunpack.c.l.b16 %v7398
    %v7496 = vunpack.c.h.b16 %v7398
    %v7497 = vunpack.c.l.b16 %v7399
    %v7498 = vunpack.c.h.b16 %v7399
    %v7499 = vpack.c.b16 %v7439, %v7435
    %v7500 = vpack.c.b16 %v7440, %v7436
    %v7501 = vpack.c.b16 %v7441, %v7437
    %v7502 = vpack.c.b16 %v7442, %v7438
    %v7503 = vpack.c.b16 %v7447, %v7443
    %v7504 = vpack.c.b16 %v7448, %v7444
    %v7505 = vpack.c.b16 %v7449, %v7445
    %v7506 = vpack.c.b16 %v7450, %v7446
    %v7507 = vpack.c.b16 %v7455, %v7451
    %v7508 = vpack.c.b16 %v7456, %v7452
    %v7509 = vpack.c.b16 %v7457, %v7453
    %v7510 = vpack.c.b16 %v7458, %v7454
    %v7511 = vpack.c.b16 %v7463, %v7459
    %v7512 = vpack.c.b16 %v7464, %v7460
    %v7513 = vpack.c.b16 %v7465, %v7461
    %v7514 = vpack.c.b16 %v7466, %v7462
    %v7515 = vpack.c.b16 %v7471, %v7467
    %v7516 = vpack.c.b16 %v7472, %v7468
    %v7517 = vpack.c.b16 %v7473, %v7469
    %v7518 = vpack.c.b16 %v7474, %v7470
    %v7519 = vpack.c.b16 %v7479, %v7475
    %v7520 = vpack.c.b16 %v7480, %v7476
    %v7521 = vpack.c.b16 %v7481, %v7477
    %v7522 = vpack.c.b16 %v7482, %v7478
    %v7523 = vpack.c.b16 %v7487, %v7483
    %v7524 = vpack.c.b16 %v7488, %v7484
    %v7525 = vpack.c.b16 %v7489, %v7485
    %v7526 = vpack.c.b16 %v7490, %v7486
    %v7527 = vpack.c.b16 %v7495, %v7491
    %v7528 = vpack.c.b16 %v7496, %v7492
    %v7529 = vpack.c.b16 %v7497, %v7493
    %v7530 = vpack.c.b16 %v7498, %v7494
    %7563 = vmatprep.subr.bf16.mxu0 %v7528
    %7564 = vmatpush1.bf16.msra.mxu0 %v7527
    %7565 = vmatprep.subr.bf16.mxu0 %v7524
    %7566 = vmatpush1.bf16.msra.mxu0 %v7523
    %7567 = vmatprep.subr.bf16.mxu0 %v7520
    %7568 = vmatpush1.bf16.msra.mxu0 %v7519
    %7569 = vmatprep.subr.bf16.mxu0 %v7516
    %7570 = vmatpush1.bf16.msra.mxu0 %v7515
    %7571 = vmatprep.subr.bf16.mxu0 %v7512
    %7572 = vmatpush1.bf16.msra.mxu0 %v7511
    %7573 = vmatprep.subr.bf16.mxu0 %v7508
    %7574 = vmatpush1.bf16.msra.mxu0 %v7507
    %7575 = vmatprep.subr.bf16.mxu0 %v7504
    %7576 = vmatpush1.bf16.msra.mxu0 %v7503
    %7577 = vmatprep.subr.bf16.mxu0 %v7500
    %7578 = vmatpush1.bf16.msra.mxu0 %v7499
    %7579 = vmatprep.subr.bf16.mxu0 0
    %7580 = vmatpush2.bf16.msra.mxu0 0
    %7581 = vmatprep.subr.bf16.mxu0 0
    %7582 = vmatpush2.bf16.msra.mxu0 0
    %7583 = vmatprep.subr.bf16.mxu0 0
    %7584 = vmatpush2.bf16.msra.mxu0 0
    %7585 = vmatprep.subr.bf16.mxu0 0
    %7586 = vmatpush2.bf16.msra.mxu0 0
    %7587 = vmatprep.subr.bf16.mxu0 0
    %7588 = vmatpush2.bf16.msra.mxu0 0
    %7589 = vmatprep.subr.bf16.mxu0 0
    %7590 = vmatpush2.bf16.msra.mxu0 0
    %7591 = vmatprep.subr.bf16.mxu0 0
    %7592 = vmatpush2.bf16.msra.mxu0 0
    %7593 = vmatprep.subr.bf16.mxu0 0
    %7594 = vmatpush2.bf16.msra.mxu0 0
    %7595 = vmatprep.mubr.bf16.mxu0 0
    %7596 = vmatmul.mubr.bf16.gmra.mxu0 %v7401
    %v7597 = vpop.f32.mrf.mxu0
    %v7598 = vadd.f32 0.0, %v7597
    %v7599 = vpop.f32.mrf.mxu0
    %v7600 = vadd.f32 0.0, %v7599
    %v7601 = vpop.f32.mrf.mxu0
    %v7602 = vpop.f32.mrf.mxu0
    %7603 = vdwg.mxu0
    %7604 = vmatprep.subr.bf16.mxu0 %v7530
    %7605 = vmatpush1.bf16.msra.mxu0 %v7529
    %7606 = vmatprep.subr.bf16.mxu0 %v7526
    %7607 = vmatpush1.bf16.msra.mxu0 %v7525
    %7608 = vmatprep.subr.bf16.mxu0 %v7522
    %7609 = vmatpush1.bf16.msra.mxu0 %v7521
    %7610 = vmatprep.subr.bf16.mxu0 %v7518
    %7611 = vmatpush1.bf16.msra.mxu0 %v7517
    %7612 = vmatprep.subr.bf16.mxu0 %v7514
    %7613 = vmatpush1.bf16.msra.mxu0 %v7513
    %7614 = vmatprep.subr.bf16.mxu0 %v7510
    %7615 = vmatpush1.bf16.msra.mxu0 %v7509
    %7616 = vmatprep.subr.bf16.mxu0 %v7506
    %7617 = vmatpush1.bf16.msra.mxu0 %v7505
    %7618 = vmatprep.subr.bf16.mxu0 %v7502
    %7619 = vmatpush1.bf16.msra.mxu0 %v7501
    %7620 = vmatprep.subr.bf16.mxu0 0
    %7621 = vmatpush2.bf16.msra.mxu0 0
    %7622 = vmatprep.subr.bf16.mxu0 0
    %7623 = vmatpush2.bf16.msra.mxu0 0
    %7624 = vmatprep.subr.bf16.mxu0 0
    %7625 = vmatpush2.bf16.msra.mxu0 0
    %7626 = vmatprep.subr.bf16.mxu0 0
    %7627 = vmatpush2.bf16.msra.mxu0 0
    %7628 = vmatprep.subr.bf16.mxu0 0
    %7629 = vmatpush2.bf16.msra.mxu0 0
    %7630 = vmatprep.subr.bf16.mxu0 0
    %7631 = vmatpush2.bf16.msra.mxu0 0
    %7632 = vmatprep.subr.bf16.mxu0 0
    %7633 = vmatpush2.bf16.msra.mxu0 0
    %7634 = vmatprep.subr.bf16.mxu0 0
    %7635 = vmatpush2.bf16.msra.mxu0 0
    %7636 = vmatprep.mubr.bf16.mxu0 0
    %7637 = vmatmul.mubr.bf16.gmra.mxu0 %v7401
    %v7638 = vpop.f32.mrf.mxu0
    %v7639 = vadd.f32 0.0, %v7638
    %v7640 = vpop.f32.mrf.mxu0
    %v7641 = vadd.f32 0.0, %v7640
    %v7642 = vpop.f32.mrf.mxu0
    %v7643 = vpop.f32.mrf.mxu0
    %7644 = vdwg.mxu0
    %v7645 = vadd.f32 %v7363, %v7598
    %v7646 = vadd.f32 %v7364, %v7600
    %v7647 = vadd.f32 %v7365, %v7639
    %v7648 = vadd.f32 %v7366, %v7641
    %v7649 = vxor.u32 %v7645, 2147483648
    %v7650 = vmul.f32 %v7649, 1.442695
    %v7651 = vpow.pop %v7650
    %v7652 = vadd.f32 %v7651, 1.0
    %v7653 = vrcp.pop %v7652
    %v7654 = vmul.f32 1.0, %v7653
    %v7655 = vxor.u32 %v7646, 2147483648
    %v7656 = vmul.f32 %v7655, 1.442695
    %v7657 = vpow.pop %v7656
    %v7658 = vadd.f32 %v7657, 1.0
    %v7659 = vrcp.pop %v7658
    %v7660 = vmul.f32 1.0, %v7659
    %v7661 = vtanh.pop %v7647
    %v7662 = vxor.u32 %v7648, 2147483648
    %v7663 = vmul.f32 %v7662, 1.442695
    %v7664 = vpow.pop %v7663
    %v7665 = vadd.f32 %v7664, 1.0
    %v7666 = vrcp.pop %v7665
    %v7667 = vmul.f32 1.0, %v7666
    %v7669 = vrot.slane %v7033, 2
    %v7671 = vmul.f32 %v7660, %v7669
    %v7672 = vmul.f32 %v7654, %v7661
    %v7673 = vadd.f32 %v7671, %v7672
    %v7674 = vtanh.pop %v7673
    %v7675 = vmul.f32 %v7667, %v7674
    %7676 = vst [vmem:[#allocation2 + $0x8] sm:$0x3] %v7675
    %v7677 = vld [vmem:[#allocation2] sm:$0xff]
    %v7678 = vld [vmem:[#allocation2 + $0x8] sm:$0xff]
    %v7679 = vld [vmem:[#allocation2 + $0x10] sm:$0xff]
    %v7680 = vld [vmem:[#allocation2 + $0x18] sm:$0xff]
    %v7681 = vpack.c.bf16 %v7679, %v7677
    %v7682 = vpack.c.bf16 %v7680, %v7678
    %v7683 = vld [vmem:[%s47] sm:$0xf]
    %v7684 = vld [vmem:[%s47 + $0x4] sm:$0xf]
    %v7685 = vld [vmem:[%s47 + $0x8] sm:$0xf]
    %v7686 = vld [vmem:[%s47 + $0xc] sm:$0xf]
    %v7687 = vld [vmem:[%s47 + $0x10] sm:$0xf]
    %v7688 = vld [vmem:[%s47 + $0x14] sm:$0xf]
    %v7689 = vld [vmem:[%s47 + $0x18] sm:$0xf]
    %v7690 = vld [vmem:[%s47 + $0x1c] sm:$0xf]
    %v7691 = vld [vmem:[%s47 + $0x20] sm:$0xf]
    %v7692 = vld [vmem:[%s47 + $0x24] sm:$0xf]
    %v7693 = vld [vmem:[%s47 + $0x28] sm:$0xf]
    %v7694 = vld [vmem:[%s47 + $0x2c] sm:$0xf]
    %v7695 = vld [vmem:[%s47 + $0x30] sm:$0xf]
    %v7696 = vld [vmem:[%s47 + $0x34] sm:$0xf]
    %v7697 = vld [vmem:[%s47 + $0x38] sm:$0xf]
    %v7698 = vld [vmem:[%s47 + $0x3c] sm:$0xf]
    %v7699 = vld [vmem:[%s47 + $0x40] sm:$0xf]
    %v7700 = vld [vmem:[%s47 + $0x44] sm:$0xf]
    %v7701 = vld [vmem:[%s47 + $0x48] sm:$0xf]
    %v7702 = vld [vmem:[%s47 + $0x4c] sm:$0xf]
    %v7703 = vld [vmem:[%s47 + $0x50] sm:$0xf]
    %v7704 = vld [vmem:[%s47 + $0x54] sm:$0xf]
    %v7705 = vld [vmem:[%s47 + $0x58] sm:$0xf]
    %v7706 = vld [vmem:[%s47 + $0x5c] sm:$0xf]
    %v7707 = vld [vmem:[%s47 + $0x60] sm:$0xf]
    %v7708 = vld [vmem:[%s47 + $0x64] sm:$0xf]
    %v7709 = vld [vmem:[%s47 + $0x68] sm:$0xf]
    %v7710 = vld [vmem:[%s47 + $0x6c] sm:$0xf]
    %v7711 = vld [vmem:[%s47 + $0x70] sm:$0xf]
    %v7712 = vld [vmem:[%s47 + $0x74] sm:$0xf]
    %v7713 = vld [vmem:[%s47 + $0x78] sm:$0xf]
    %v7714 = vld [vmem:[%s47 + $0x7c] sm:$0xf]
    %v7715 = vld [vmem:[%s49] sm:$0x1]
    %v7717 = vlaneseq
    %v7718 = vshrl.u32 %v7717, 7
    %v7719 = vsub.s32 0, %v7718
    %v7720 = vrot.slane %v7715, %v7719
    %v7754 = vunpack.c.l.b16 %v7683
    %v7755 = vunpack.c.l.b16 %v7684
    %v7756 = vunpack.c.l.b16 %v7685
    %v7757 = vunpack.c.l.b16 %v7686
    %v7758 = vunpack.c.l.b16 %v7687
    %v7759 = vunpack.c.l.b16 %v7688
    %v7760 = vunpack.c.l.b16 %v7689
    %v7761 = vunpack.c.l.b16 %v7690
    %v7762 = vunpack.c.l.b16 %v7691
    %v7763 = vunpack.c.l.b16 %v7692
    %v7764 = vunpack.c.l.b16 %v7693
    %v7765 = vunpack.c.l.b16 %v7694
    %v7766 = vunpack.c.l.b16 %v7695
    %v7767 = vunpack.c.l.b16 %v7696
    %v7768 = vunpack.c.l.b16 %v7697
    %v7769 = vunpack.c.l.b16 %v7698
    %v7770 = vunpack.c.l.b16 %v7699
    %v7771 = vunpack.c.l.b16 %v7700
    %v7772 = vunpack.c.l.b16 %v7701
    %v7773 = vunpack.c.l.b16 %v7702
    %v7774 = vunpack.c.l.b16 %v7703
    %v7775 = vunpack.c.l.b16 %v7704
    %v7776 = vunpack.c.l.b16 %v7705
    %v7777 = vunpack.c.l.b16 %v7706
    %v7778 = vunpack.c.l.b16 %v7707
    %v7779 = vunpack.c.l.b16 %v7708
    %v7780 = vunpack.c.l.b16 %v7709
    %v7781 = vunpack.c.l.b16 %v7710
    %v7782 = vunpack.c.l.b16 %v7711
    %v7783 = vunpack.c.l.b16 %v7712
    %v7784 = vunpack.c.l.b16 %v7713
    %v7785 = vunpack.c.l.b16 %v7714
    %v7786 = vpack.c.b16 %v7755, %v7754
    %v7787 = vpack.c.b16 %v7757, %v7756
    %v7788 = vpack.c.b16 %v7759, %v7758
    %v7789 = vpack.c.b16 %v7761, %v7760
    %v7790 = vpack.c.b16 %v7763, %v7762
    %v7791 = vpack.c.b16 %v7765, %v7764
    %v7792 = vpack.c.b16 %v7767, %v7766
    %v7793 = vpack.c.b16 %v7769, %v7768
    %v7794 = vpack.c.b16 %v7771, %v7770
    %v7795 = vpack.c.b16 %v7773, %v7772
    %v7796 = vpack.c.b16 %v7775, %v7774
    %v7797 = vpack.c.b16 %v7777, %v7776
    %v7798 = vpack.c.b16 %v7779, %v7778
    %v7799 = vpack.c.b16 %v7781, %v7780
    %v7800 = vpack.c.b16 %v7783, %v7782
    %v7801 = vpack.c.b16 %v7785, %v7784
    %7818 = vmatprep.subr.bf16.mxu0 0
    %7819 = vmatpush1.bf16.msra.mxu0 %v7793
    %7820 = vmatprep.subr.bf16.mxu0 0
    %7821 = vmatpush1.bf16.msra.mxu0 %v7792
    %7822 = vmatprep.subr.bf16.mxu0 0
    %7823 = vmatpush1.bf16.msra.mxu0 %v7791
    %7824 = vmatprep.subr.bf16.mxu0 0
    %7825 = vmatpush1.bf16.msra.mxu0 %v7790
    %7826 = vmatprep.subr.bf16.mxu0 0
    %7827 = vmatpush1.bf16.msra.mxu0 %v7789
    %7828 = vmatprep.subr.bf16.mxu0 0
    %7829 = vmatpush1.bf16.msra.mxu0 %v7788
    %7830 = vmatprep.subr.bf16.mxu0 0
    %7831 = vmatpush1.bf16.msra.mxu0 %v7787
    %7832 = vmatprep.subr.bf16.mxu0 0
    %7833 = vmatpush1.bf16.msra.mxu0 %v7786
    %7834 = vmatprep.subr.bf16.mxu0 0
    %7835 = vmatpush2.bf16.msra.mxu0 %v7801
    %7836 = vmatprep.subr.bf16.mxu0 0
    %7837 = vmatpush2.bf16.msra.mxu0 %v7800
    %7838 = vmatprep.subr.bf16.mxu0 0
    %7839 = vmatpush2.bf16.msra.mxu0 %v7799
    %7840 = vmatprep.subr.bf16.mxu0 0
    %7841 = vmatpush2.bf16.msra.mxu0 %v7798
    %7842 = vmatprep.subr.bf16.mxu0 0
    %7843 = vmatpush2.bf16.msra.mxu0 %v7797
    %7844 = vmatprep.subr.bf16.mxu0 0
    %7845 = vmatpush2.bf16.msra.mxu0 %v7796
    %7846 = vmatprep.subr.bf16.mxu0 0
    %7847 = vmatpush2.bf16.msra.mxu0 %v7795
    %7848 = vmatprep.subr.bf16.mxu0 0
    %7849 = vmatpush2.bf16.msra.mxu0 %v7794
    %7850 = vmatprep.mubr.bf16.mxu0 %v7682
    %7851 = vmatmul.mubr.bf16.gmra.mxu0 %v7681
    %v7852 = vpop.f32.mrf.mxu0
    %v7853 = vadd.f32 %v7720, %v7852
    %v7854 = vpop.f32.mrf.mxu0
    %v7855 = vpop.f32.mrf.mxu0
    %v7856 = vadd.f32 %v7720, %v7855
    %v7857 = vpop.f32.mrf.mxu0
    %7858 = vdwg.mxu0
    %vm7859 = vcmask 72704
    %7860 = vst.msk [vmem:[%s59] sm:$0xff] %vm7859, %v7853
    %7861 = vst.msk [vmem:[%s59 + $0x8] sm:$0xff] %vm7859, %v7856
    %v7862 = vlaneseq
    %v7863 = vand.u32 %v7862, 127
    %v7864 = vlaneseq
    %v7865 = vshrl.u32 %v7864, 7
    %v7866 = vadd.s32 %v7865, 8
    %v7867 = vld [vmem:[#allocation25] sm:$0xff]
    %v7868 = vld [vmem:[#allocation25 + $0x8] sm:$0x1]
    %v7869 = vld [vmem:[#allocation27] sm:$0x1]
    %v7870 = vadd.f32 %v7869, %v7853
    %7871 = vxpose.xlu0.b32.start [1/16] %v7870, 128
    %7872 = vxpose.xlu0.b32.cont [2/16] 0.0, 128
    %7873 = vxpose.xlu0.b32.cont [3/16] 0.0, 128
    %7874 = vxpose.xlu0.b32.cont [4/16] 0.0, 128
    %7875 = vxpose.xlu0.b32.cont [5/16] 0.0, 128
    %7876 = vxpose.xlu0.b32.cont [6/16] 0.0, 128
    %7877 = vxpose.xlu0.b32.cont [7/16] 0.0, 128
    %7878 = vxpose.xlu0.b32.cont [8/16] 0.0, 128
    %7879 = vxpose.xlu0.b32.cont [9/16] 0.0, 128
    %7880 = vxpose.xlu0.b32.cont [10/16] 0.0, 128
    %7881 = vxpose.xlu0.b32.cont [11/16] 0.0, 128
    %7882 = vxpose.xlu0.b32.cont [12/16] 0.0, 128
    %7883 = vxpose.xlu0.b32.cont [13/16] 0.0, 128
    %7884 = vxpose.xlu0.b32.cont [14/16] 0.0, 128
    %7885 = vxpose.xlu0.b32.cont [15/16] 0.0, 128
    %7886 = vxpose.xlu0.b32.end [16/16] 0.0, 128
    %v7887 = vpop.trf.xlu0
    %v7888 = vpop.trf.xlu0
    %v7889 = vpop.trf.xlu0
    %v7890 = vpop.trf.xlu0
    %v7891 = vpop.trf.xlu0
    %v7892 = vpop.trf.xlu0
    %v7893 = vpop.trf.xlu0
    %v7894 = vpop.trf.xlu0
    %v7895 = vpop.trf.xlu0
    %v7896 = vpop.trf.xlu0
    %v7897 = vpop.trf.xlu0
    %v7898 = vpop.trf.xlu0
    %v7899 = vpop.trf.xlu0
    %v7900 = vpop.trf.xlu0
    %v7901 = vpop.trf.xlu0
    %v7902 = vpop.trf.xlu0
    %7904 = vset.pattern.permute.xlu0 0
    %7905 = vperm.xlu0 %7904, %v7887
    %v7906 = vpop.permute.xlu0 %7905
    %7909 = vset.pattern.permute.xlu0 0
    %7910 = vperm.xlu0 %7909, %v7888
    %v7911 = vpop.permute.xlu0 %7910
    %v7913 = vadd.f32 %v7906, %v7867
    %v7914 = vadd.f32 %v7911, %v7868
    %v7915 = vlaneseq
    %v7916 = vshrl.u32 %v7915, 7
    %v7917 = vsub.s32 2, %v7916
    %v7918 = vrot.slane %v7853, %v7917
    %v7919 = vadd.f32 %v7913, %v7918
    %v7920 = vadd.f32 %v7914, %v7918
    %v7921 = vsel %vm7859, %v7919, -inf
    %vm7922 = vcmask 65536
    %v7923 = vsel %vm7922, %v7920, -inf
    %v7924 = vmax.f32 %v7921, %v7923
    %v7925 = vrot.slane %v7924, 4
    %v7926 = vmax.f32 %v7924, %v7925
    %v7927 = vrot.slane %v7926, 2
    %v7928 = vmax.f32 %v7926, %v7927
    %v7929 = vrot.slane %v7928, 1
    %v7930 = vmax.f32 %v7928, %v7929
    %vm7931 = vcmp.eq.f32.partialorder %v7919, %v7930
    %vm7932 = vcmp.eq.f32.partialorder %v7920, %v7930
    %v7933 = vsel %vm7931, %v7865, 9
    %v7934 = vsel %vm7932, %v7866, 9
    %v7935 = vsel %vm7859, %v7933, 2147483647
    %v7936 = vsel %vm7922, %v7934, 2147483647
    %vm7937 = vcmp.lt.s32.totalorder %v7935, %v7936
    %v7938 = vsel %vm7937, %v7935, %v7936
    %v7939 = vrot.slane %v7938, 4
    %vm7940 = vcmp.lt.s32.totalorder %v7938, %v7939
    %v7941 = vsel %vm7940, %v7938, %v7939
    %v7942 = vrot.slane %v7941, 2
    %vm7943 = vcmp.lt.s32.totalorder %v7941, %v7942
    %v7944 = vsel %vm7943, %v7941, %v7942
    %v7945 = vrot.slane %v7944, 1
    %vm7946 = vcmp.lt.s32.totalorder %v7944, %v7945
    %v7947 = vsel %vm7946, %v7944, %v7945
    %s7948 = sld [smem:[#allocation5 + $0x1]]
    %p7949 = scmp.gt.s32.totalorder %s7948, 0
    %s7950 = scalar_select %p7949, 1, 0
    %v7951 = vstv %s7950
    %vm7952 = vcmp.eq.s32.totalorder %v7951, 1
    %v7953 = vsel %vm7952, %v7930, %v7870
    %7954 = vxpose.xlu0.b32.start [1/16] %v7953, 128
    %7955 = vxpose.xlu0.b32.cont [2/16] 0.0, 128
    %7956 = vxpose.xlu0.b32.cont [3/16] 0.0, 128
    %7957 = vxpose.xlu0.b32.cont [4/16] 0.0, 128
    %7958 = vxpose.xlu0.b32.cont [5/16] 0.0, 128
    %7959 = vxpose.xlu0.b32.cont [6/16] 0.0, 128
    %7960 = vxpose.xlu0.b32.cont [7/16] 0.0, 128
    %7961 = vxpose.xlu0.b32.cont [8/16] 0.0, 128
    %7962 = vxpose.xlu0.b32.cont [9/16] 0.0, 128
    %7963 = vxpose.xlu0.b32.cont [10/16] 0.0, 128
    %7964 = vxpose.xlu0.b32.cont [11/16] 0.0, 128
    %7965 = vxpose.xlu0.b32.cont [12/16] 0.0, 128
    %7966 = vxpose.xlu0.b32.cont [13/16] 0.0, 128
    %7967 = vxpose.xlu0.b32.cont [14/16] 0.0, 128
    %7968 = vxpose.xlu0.b32.cont [15/16] 0.0, 128
    %7969 = vxpose.xlu0.b32.end [16/16] 0.0, 128
    %v7970 = vpop.trf.xlu0
    %v7971 = vpop.trf.xlu0
    %v7972 = vpop.trf.xlu0
    %v7973 = vpop.trf.xlu0
    %v7974 = vpop.trf.xlu0
    %v7975 = vpop.trf.xlu0
    %v7976 = vpop.trf.xlu0
    %v7977 = vpop.trf.xlu0
    %v7978 = vpop.trf.xlu0
    %v7979 = vpop.trf.xlu0
    %v7980 = vpop.trf.xlu0
    %v7981 = vpop.trf.xlu0
    %v7982 = vpop.trf.xlu0
    %v7983 = vpop.trf.xlu0
    %v7984 = vpop.trf.xlu0
    %v7985 = vpop.trf.xlu0
    %7987 = vset.pattern.permute.xlu0 0
    %7988 = vperm.xlu0 %7987, %v7970
    %v7989 = vpop.permute.xlu0 %7988
    %7992 = vset.pattern.permute.xlu0 0
    %7993 = vperm.xlu0 %7992, %v7971
    %v7994 = vpop.permute.xlu0 %7993
    %v7996 = vadd.f32 %v7989, %v7867
    %v7997 = vadd.f32 %v7994, %v7868
    %v7998 = vlaneseq
    %v7999 = vshrl.u32 %v7998, 7
    %v8000 = vsub.s32 4, %v7999
    %v8001 = vrot.slane %v7853, %v8000
    %v8002 = vadd.f32 %v7996, %v8001
    %v8003 = vadd.f32 %v7997, %v8001
    %v8004 = vsel %vm7859, %v8002, -inf
    %v8005 = vsel %vm7922, %v8003, -inf
    %v8006 = vmax.f32 %v8004, %v8005
    %v8007 = vrot.slane %v8006, 4
    %v8008 = vmax.f32 %v8006, %v8007
    %v8009 = vrot.slane %v8008, 2
    %v8010 = vmax.f32 %v8008, %v8009
    %v8011 = vrot.slane %v8010, 1
    %v8012 = vmax.f32 %v8010, %v8011
    %vm8013 = vcmp.eq.f32.partialorder %v8002, %v8012
    %vm8014 = vcmp.eq.f32.partialorder %v8003, %v8012
    %v8015 = vsel %vm8013, %v7865, 9
    %v8016 = vsel %vm8014, %v7866, 9
    %v8017 = vsel %vm7859, %v8015, 2147483647
    %v8018 = vsel %vm7922, %v8016, 2147483647
    %vm8019 = vcmp.lt.s32.totalorder %v8017, %v8018
    %v8020 = vsel %vm8019, %v8017, %v8018
    %v8021 = vrot.slane %v8020, 4
    %vm8022 = vcmp.lt.s32.totalorder %v8020, %v8021
    %v8023 = vsel %vm8022, %v8020, %v8021
    %v8024 = vrot.slane %v8023, 2
    %vm8025 = vcmp.lt.s32.totalorder %v8023, %v8024
    %v8026 = vsel %vm8025, %v8023, %v8024
    %v8027 = vrot.slane %v8026, 1
    %vm8028 = vcmp.lt.s32.totalorder %v8026, %v8027
    %v8029 = vsel %vm8028, %v8026, %v8027
    %s8030 = sld [smem:[#allocation5 + $0x2]]
    %p8031 = scmp.gt.s32.totalorder %s8030, 0
    %s8032 = scalar_select %p8031, 1, 0
    %v8033 = vstv %s8032
    %vm8034 = vcmp.eq.s32.totalorder %v8033, 1
    %v8035 = vsel %vm8034, %v8012, %v7953
    %8036 = vxpose.xlu0.b32.start [1/16] %v8035, 128
    %8037 = vxpose.xlu0.b32.cont [2/16] 0.0, 128
    %8038 = vxpose.xlu0.b32.cont [3/16] 0.0, 128
    %8039 = vxpose.xlu0.b32.cont [4/16] 0.0, 128
    %8040 = vxpose.xlu0.b32.cont [5/16] 0.0, 128
    %8041 = vxpose.xlu0.b32.cont [6/16] 0.0, 128
    %8042 = vxpose.xlu0.b32.cont [7/16] 0.0, 128
    %8043 = vxpose.xlu0.b32.cont [8/16] 0.0, 128
    %8044 = vxpose.xlu0.b32.cont [9/16] 0.0, 128
    %8045 = vxpose.xlu0.b32.cont [10/16] 0.0, 128
    %8046 = vxpose.xlu0.b32.cont [11/16] 0.0, 128
    %8047 = vxpose.xlu0.b32.cont [12/16] 0.0, 128
    %8048 = vxpose.xlu0.b32.cont [13/16] 0.0, 128
    %8049 = vxpose.xlu0.b32.cont [14/16] 0.0, 128
    %8050 = vxpose.xlu0.b32.cont [15/16] 0.0, 128
    %8051 = vxpose.xlu0.b32.end [16/16] 0.0, 128
    %v8052 = vpop.trf.xlu0
    %v8053 = vpop.trf.xlu0
    %v8054 = vpop.trf.xlu0
    %v8055 = vpop.trf.xlu0
    %v8056 = vpop.trf.xlu0
    %v8057 = vpop.trf.xlu0
    %v8058 = vpop.trf.xlu0
    %v8059 = vpop.trf.xlu0
    %v8060 = vpop.trf.xlu0
    %v8061 = vpop.trf.xlu0
    %v8062 = vpop.trf.xlu0
    %v8063 = vpop.trf.xlu0
    %v8064 = vpop.trf.xlu0
    %v8065 = vpop.trf.xlu0
    %v8066 = vpop.trf.xlu0
    %v8067 = vpop.trf.xlu0
    %8069 = vset.pattern.permute.xlu0 0
    %8070 = vperm.xlu0 %8069, %v8052
    %v8071 = vpop.permute.xlu0 %8070
    %8074 = vset.pattern.permute.xlu0 0
    %8075 = vperm.xlu0 %8074, %v8053
    %v8076 = vpop.permute.xlu0 %8075
    %v8078 = vadd.f32 %v8071, %v7867
    %v8079 = vadd.f32 %v8076, %v7868
    %v8080 = vlaneseq
    %v8081 = vshrl.u32 %v8080, 7
    %v8082 = vsub.s32 6, %v8081
    %v8083 = vrot.slane %v7853, %v8082
    %v8084 = vadd.f32 %v8078, %v8083
    %v8085 = vadd.f32 %v8079, %v8083
    %v8086 = vsel %vm7859, %v8084, -inf
    %v8087 = vsel %vm7922, %v8085, -inf
    %v8088 = vmax.f32 %v8086, %v8087
    %v8089 = vrot.slane %v8088, 4
    %v8090 = vmax.f32 %v8088, %v8089
    %v8091 = vrot.slane %v8090, 2
    %v8092 = vmax.f32 %v8090, %v8091
    %v8093 = vrot.slane %v8092, 1
    %v8094 = vmax.f32 %v8092, %v8093
    %vm8095 = vcmp.eq.f32.partialorder %v8084, %v8094
    %vm8096 = vcmp.eq.f32.partialorder %v8085, %v8094
    %v8097 = vsel %vm8095, %v7865, 9
    %v8098 = vsel %vm8096, %v7866, 9
    %v8099 = vsel %vm7859, %v8097, 2147483647
    %v8100 = vsel %vm7922, %v8098, 2147483647
    %vm8101 = vcmp.lt.s32.totalorder %v8099, %v8100
    %v8102 = vsel %vm8101, %v8099, %v8100
    %v8103 = vrot.slane %v8102, 4
    %vm8104 = vcmp.lt.s32.totalorder %v8102, %v8103
    %v8105 = vsel %vm8104, %v8102, %v8103
    %v8106 = vrot.slane %v8105, 2
    %vm8107 = vcmp.lt.s32.totalorder %v8105, %v8106
    %v8108 = vsel %vm8107, %v8105, %v8106
    %v8109 = vrot.slane %v8108, 1
    %vm8110 = vcmp.lt.s32.totalorder %v8108, %v8109
    %v8111 = vsel %vm8110, %v8108, %v8109
    %s8112 = sld [smem:[#allocation5 + $0x3]]
    %p8113 = scmp.gt.s32.totalorder %s8112, 0
    %s8114 = scalar_select %p8113, 1, 0
    %v8115 = vstv %s8114
    %vm8116 = vcmp.eq.s32.totalorder %v8115, 1
    %v8117 = vsel %vm8116, %v8094, %v8035
    %8118 = vxpose.xlu0.b32.start [1/16] %v8117, 128
    %8119 = vxpose.xlu0.b32.cont [2/16] 0.0, 128
    %8120 = vxpose.xlu0.b32.cont [3/16] 0.0, 128
    %8121 = vxpose.xlu0.b32.cont [4/16] 0.0, 128
    %8122 = vxpose.xlu0.b32.cont [5/16] 0.0, 128
    %8123 = vxpose.xlu0.b32.cont [6/16] 0.0, 128
    %8124 = vxpose.xlu0.b32.cont [7/16] 0.0, 128
    %8125 = vxpose.xlu0.b32.cont [8/16] 0.0, 128
    %8126 = vxpose.xlu0.b32.cont [9/16] 0.0, 128
    %8127 = vxpose.xlu0.b32.cont [10/16] 0.0, 128
    %8128 = vxpose.xlu0.b32.cont [11/16] 0.0, 128
    %8129 = vxpose.xlu0.b32.cont [12/16] 0.0, 128
    %8130 = vxpose.xlu0.b32.cont [13/16] 0.0, 128
    %8131 = vxpose.xlu0.b32.cont [14/16] 0.0, 128
    %8132 = vxpose.xlu0.b32.cont [15/16] 0.0, 128
    %8133 = vxpose.xlu0.b32.end [16/16] 0.0, 128
    %v8134 = vpop.trf.xlu0
    %v8135 = vpop.trf.xlu0
    %v8136 = vpop.trf.xlu0
    %v8137 = vpop.trf.xlu0
    %v8138 = vpop.trf.xlu0
    %v8139 = vpop.trf.xlu0
    %v8140 = vpop.trf.xlu0
    %v8141 = vpop.trf.xlu0
    %v8142 = vpop.trf.xlu0
    %v8143 = vpop.trf.xlu0
    %v8144 = vpop.trf.xlu0
    %v8145 = vpop.trf.xlu0
    %v8146 = vpop.trf.xlu0
    %v8147 = vpop.trf.xlu0
    %v8148 = vpop.trf.xlu0
    %v8149 = vpop.trf.xlu0
    %8151 = vset.pattern.permute.xlu0 0
    %8152 = vperm.xlu0 %8151, %v8134
    %v8153 = vpop.permute.xlu0 %8152
    %8156 = vset.pattern.permute.xlu0 0
    %8157 = vperm.xlu0 %8156, %v8135
    %v8158 = vpop.permute.xlu0 %8157
    %v8160 = vadd.f32 %v8153, %v7867
    %v8161 = vadd.f32 %v8158, %v7868
    %v8162 = vlaneseq
    %v8163 = vshrl.u32 %v8162, 7
    %v8164 = vsub.s32 0, %v8163
    %v8165 = vrot.slane %v7856, %v8164
    %v8166 = vadd.f32 %v8160, %v8165
    %v8167 = vadd.f32 %v8161, %v8165
    %v8168 = vsel %vm7859, %v8166, -inf
    %v8169 = vsel %vm7922, %v8167, -inf
    %v8170 = vmax.f32 %v8168, %v8169
    %v8171 = vrot.slane %v8170, 4
    %v8172 = vmax.f32 %v8170, %v8171
    %v8173 = vrot.slane %v8172, 2
    %v8174 = vmax.f32 %v8172, %v8173
    %v8175 = vrot.slane %v8174, 1
    %v8176 = vmax.f32 %v8174, %v8175
    %vm8177 = vcmp.eq.f32.partialorder %v8166, %v8176
    %vm8178 = vcmp.eq.f32.partialorder %v8167, %v8176
    %v8179 = vsel %vm8177, %v7865, 9
    %v8180 = vsel %vm8178, %v7866, 9
    %v8181 = vsel %vm7859, %v8179, 2147483647
    %v8182 = vsel %vm7922, %v8180, 2147483647
    %vm8183 = vcmp.lt.s32.totalorder %v8181, %v8182
    %v8184 = vsel %vm8183, %v8181, %v8182
    %v8185 = vrot.slane %v8184, 4
    %vm8186 = vcmp.lt.s32.totalorder %v8184, %v8185
    %v8187 = vsel %vm8186, %v8184, %v8185
    %v8188 = vrot.slane %v8187, 2
    %vm8189 = vcmp.lt.s32.totalorder %v8187, %v8188
    %v8190 = vsel %vm8189, %v8187, %v8188
    %v8191 = vrot.slane %v8190, 1
    %vm8192 = vcmp.lt.s32.totalorder %v8190, %v8191
    %v8193 = vsel %vm8192, %v8190, %v8191
    %s8194 = sld [smem:[#allocation5 + $0x4]]
    %p8195 = scmp.gt.s32.totalorder %s8194, 0
    %s8196 = scalar_select %p8195, 1, 0
    %v8197 = vstv %s8196
    %vm8198 = vcmp.eq.s32.totalorder %v8197, 1
    %v8199 = vsel %vm8198, %v8176, %v8117
    %8200 = vxpose.xlu0.b32.start [1/16] %v8199, 128
    %8201 = vxpose.xlu0.b32.cont [2/16] 0.0, 128
    %8202 = vxpose.xlu0.b32.cont [3/16] 0.0, 128
    %8203 = vxpose.xlu0.b32.cont [4/16] 0.0, 128
    %8204 = vxpose.xlu0.b32.cont [5/16] 0.0, 128
    %8205 = vxpose.xlu0.b32.cont [6/16] 0.0, 128
    %8206 = vxpose.xlu0.b32.cont [7/16] 0.0, 128
    %8207 = vxpose.xlu0.b32.cont [8/16] 0.0, 128
    %8208 = vxpose.xlu0.b32.cont [9/16] 0.0, 128
    %8209 = vxpose.xlu0.b32.cont [10/16] 0.0, 128
    %8210 = vxpose.xlu0.b32.cont [11/16] 0.0, 128
    %8211 = vxpose.xlu0.b32.cont [12/16] 0.0, 128
    %8212 = vxpose.xlu0.b32.cont [13/16] 0.0, 128
    %8213 = vxpose.xlu0.b32.cont [14/16] 0.0, 128
    %8214 = vxpose.xlu0.b32.cont [15/16] 0.0, 128
    %8215 = vxpose.xlu0.b32.end [16/16] 0.0, 128
    %v8216 = vpop.trf.xlu0
    %v8217 = vpop.trf.xlu0
    %v8218 = vpop.trf.xlu0
    %v8219 = vpop.trf.xlu0
    %v8220 = vpop.trf.xlu0
    %v8221 = vpop.trf.xlu0
    %v8222 = vpop.trf.xlu0
    %v8223 = vpop.trf.xlu0
    %v8224 = vpop.trf.xlu0
    %v8225 = vpop.trf.xlu0
    %v8226 = vpop.trf.xlu0
    %v8227 = vpop.trf.xlu0
    %v8228 = vpop.trf.xlu0
    %v8229 = vpop.trf.xlu0
    %v8230 = vpop.trf.xlu0
    %v8231 = vpop.trf.xlu0
    %8233 = vset.pattern.permute.xlu0 0
    %8234 = vperm.xlu0 %8233, %v8216
    %v8235 = vpop.permute.xlu0 %8234
    %8238 = vset.pattern.permute.xlu0 0
    %8239 = vperm.xlu0 %8238, %v8217
    %v8240 = vpop.permute.xlu0 %8239
    %v8242 = vadd.f32 %v8235, %v7867
    %v8243 = vadd.f32 %v8240, %v7868
    %v8244 = vlaneseq
    %v8245 = vshrl.u32 %v8244, 7
    %v8246 = vsub.s32 2, %v8245
    %v8247 = vrot.slane %v7856, %v8246
    %v8248 = vadd.f32 %v8242, %v8247
    %v8249 = vadd.f32 %v8243, %v8247
    %v8250 = vsel %vm7859, %v8248, -inf
    %v8251 = vsel %vm7922, %v8249, -inf
    %v8252 = vmax.f32 %v8250, %v8251
    %v8253 = vrot.slane %v8252, 4
    %v8254 = vmax.f32 %v8252, %v8253
    %v8255 = vrot.slane %v8254, 2
    %v8256 = vmax.f32 %v8254, %v8255
    %v8257 = vrot.slane %v8256, 1
    %v8258 = vmax.f32 %v8256, %v8257
    %vm8259 = vcmp.eq.f32.partialorder %v8248, %v8258
    %vm8260 = vcmp.eq.f32.partialorder %v8249, %v8258
    %v8261 = vsel %vm8259, %v7865, 9
    %v8262 = vsel %vm8260, %v7866, 9
    %v8263 = vsel %vm7859, %v8261, 2147483647
    %v8264 = vsel %vm7922, %v8262, 2147483647
    %vm8265 = vcmp.lt.s32.totalorder %v8263, %v8264
    %v8266 = vsel %vm8265, %v8263, %v8264
    %v8267 = vrot.slane %v8266, 4
    %vm8268 = vcmp.lt.s32.totalorder %v8266, %v8267
    %v8269 = vsel %vm8268, %v8266, %v8267
    %v8270 = vrot.slane %v8269, 2
    %vm8271 = vcmp.lt.s32.totalorder %v8269, %v8270
    %v8272 = vsel %vm8271, %v8269, %v8270
    %v8273 = vrot.slane %v8272, 1
    %vm8274 = vcmp.lt.s32.totalorder %v8272, %v8273
    %v8275 = vsel %vm8274, %v8272, %v8273
    %s8276 = sld [smem:[#allocation5 + $0x5]]
    %p8277 = scmp.gt.s32.totalorder %s8276, 0
    %s8278 = scalar_select %p8277, 1, 0
    %v8279 = vstv %s8278
    %vm8280 = vcmp.eq.s32.totalorder %v8279, 1
    %v8281 = vsel %vm8280, %v8258, %v8199
    %8282 = vxpose.xlu0.b32.start [1/16] %v8281, 128
    %8283 = vxpose.xlu0.b32.cont [2/16] 0.0, 128
    %8284 = vxpose.xlu0.b32.cont [3/16] 0.0, 128
    %8285 = vxpose.xlu0.b32.cont [4/16] 0.0, 128
    %8286 = vxpose.xlu0.b32.cont [5/16] 0.0, 128
    %8287 = vxpose.xlu0.b32.cont [6/16] 0.0, 128
    %8288 = vxpose.xlu0.b32.cont [7/16] 0.0, 128
    %8289 = vxpose.xlu0.b32.cont [8/16] 0.0, 128
    %8290 = vxpose.xlu0.b32.cont [9/16] 0.0, 128
    %8291 = vxpose.xlu0.b32.cont [10/16] 0.0, 128
    %8292 = vxpose.xlu0.b32.cont [11/16] 0.0, 128
    %8293 = vxpose.xlu0.b32.cont [12/16] 0.0, 128
    %8294 = vxpose.xlu0.b32.cont [13/16] 0.0, 128
    %8295 = vxpose.xlu0.b32.cont [14/16] 0.0, 128
    %8296 = vxpose.xlu0.b32.cont [15/16] 0.0, 128
    %8297 = vxpose.xlu0.b32.end [16/16] 0.0, 128
    %v8298 = vpop.trf.xlu0
    %v8299 = vpop.trf.xlu0
    %v8300 = vpop.trf.xlu0
    %v8301 = vpop.trf.xlu0
    %v8302 = vpop.trf.xlu0
    %v8303 = vpop.trf.xlu0
    %v8304 = vpop.trf.xlu0
    %v8305 = vpop.trf.xlu0
    %v8306 = vpop.trf.xlu0
    %v8307 = vpop.trf.xlu0
    %v8308 = vpop.trf.xlu0
    %v8309 = vpop.trf.xlu0
    %v8310 = vpop.trf.xlu0
    %v8311 = vpop.trf.xlu0
    %v8312 = vpop.trf.xlu0
    %v8313 = vpop.trf.xlu0
    %8315 = vset.pattern.permute.xlu0 0
    %8316 = vperm.xlu0 %8315, %v8298
    %v8317 = vpop.permute.xlu0 %8316
    %8320 = vset.pattern.permute.xlu0 0
    %8321 = vperm.xlu0 %8320, %v8299
    %v8322 = vpop.permute.xlu0 %8321
    %v8324 = vadd.f32 %v8317, %v7867
    %v8325 = vadd.f32 %v8322, %v7868
    %v8326 = vlaneseq
    %v8327 = vshrl.u32 %v8326, 7
    %v8328 = vsub.s32 4, %v8327
    %v8329 = vrot.slane %v7856, %v8328
    %v8330 = vadd.f32 %v8324, %v8329
    %v8331 = vadd.f32 %v8325, %v8329
    %v8332 = vsel %vm7859, %v8330, -inf
    %v8333 = vsel %vm7922, %v8331, -inf
    %v8334 = vmax.f32 %v8332, %v8333
    %v8335 = vrot.slane %v8334, 4
    %v8336 = vmax.f32 %v8334, %v8335
    %v8337 = vrot.slane %v8336, 2
    %v8338 = vmax.f32 %v8336, %v8337
    %v8339 = vrot.slane %v8338, 1
    %v8340 = vmax.f32 %v8338, %v8339
    %vm8341 = vcmp.eq.f32.partialorder %v8330, %v8340
    %vm8342 = vcmp.eq.f32.partialorder %v8331, %v8340
    %v8343 = vsel %vm8341, %v7865, 9
    %v8344 = vsel %vm8342, %v7866, 9
    %v8345 = vsel %vm7859, %v8343, 2147483647
    %v8346 = vsel %vm7922, %v8344, 2147483647
    %vm8347 = vcmp.lt.s32.totalorder %v8345, %v8346
    %v8348 = vsel %vm8347, %v8345, %v8346
    %v8349 = vrot.slane %v8348, 4
    %vm8350 = vcmp.lt.s32.totalorder %v8348, %v8349
    %v8351 = vsel %vm8350, %v8348, %v8349
    %v8352 = vrot.slane %v8351, 2
    %vm8353 = vcmp.lt.s32.totalorder %v8351, %v8352
    %v8354 = vsel %vm8353, %v8351, %v8352
    %v8355 = vrot.slane %v8354, 1
    %vm8356 = vcmp.lt.s32.totalorder %v8354, %v8355
    %v8357 = vsel %vm8356, %v8354, %v8355
    %s8358 = sld [smem:[#allocation5 + $0x6]]
    %p8359 = scmp.gt.s32.totalorder %s8358, 0
    %s8360 = scalar_select %p8359, 1, 0
    %v8361 = vstv %s8360
    %vm8362 = vcmp.eq.s32.totalorder %v8361, 1
    %v8363 = vsel %vm8362, %v8340, %v8281
    %8364 = vxpose.xlu0.b32.start [1/16] %v8363, 128
    %8365 = vxpose.xlu0.b32.cont [2/16] 0.0, 128
    %8366 = vxpose.xlu0.b32.cont [3/16] 0.0, 128
    %8367 = vxpose.xlu0.b32.cont [4/16] 0.0, 128
    %8368 = vxpose.xlu0.b32.cont [5/16] 0.0, 128
    %8369 = vxpose.xlu0.b32.cont [6/16] 0.0, 128
    %8370 = vxpose.xlu0.b32.cont [7/16] 0.0, 128
    %8371 = vxpose.xlu0.b32.cont [8/16] 0.0, 128
    %8372 = vxpose.xlu0.b32.cont [9/16] 0.0, 128
    %8373 = vxpose.xlu0.b32.cont [10/16] 0.0, 128
    %8374 = vxpose.xlu0.b32.cont [11/16] 0.0, 128
    %8375 = vxpose.xlu0.b32.cont [12/16] 0.0, 128
    %8376 = vxpose.xlu0.b32.cont [13/16] 0.0, 128
    %8377 = vxpose.xlu0.b32.cont [14/16] 0.0, 128
    %8378 = vxpose.xlu0.b32.cont [15/16] 0.0, 128
    %8379 = vxpose.xlu0.b32.end [16/16] 0.0, 128
    %v8380 = vpop.trf.xlu0
    %v8381 = vpop.trf.xlu0
    %v8382 = vpop.trf.xlu0
    %v8383 = vpop.trf.xlu0
    %v8384 = vpop.trf.xlu0
    %v8385 = vpop.trf.xlu0
    %v8386 = vpop.trf.xlu0
    %v8387 = vpop.trf.xlu0
    %v8388 = vpop.trf.xlu0
    %v8389 = vpop.trf.xlu0
    %v8390 = vpop.trf.xlu0
    %v8391 = vpop.trf.xlu0
    %v8392 = vpop.trf.xlu0
    %v8393 = vpop.trf.xlu0
    %v8394 = vpop.trf.xlu0
    %v8395 = vpop.trf.xlu0
    %8397 = vset.pattern.permute.xlu0 0
    %8398 = vperm.xlu0 %8397, %v8380
    %v8399 = vpop.permute.xlu0 %8398
    %8402 = vset.pattern.permute.xlu0 0
    %8403 = vperm.xlu0 %8402, %v8381
    %v8404 = vpop.permute.xlu0 %8403
    %v8406 = vadd.f32 %v8399, %v7867
    %v8407 = vadd.f32 %v8404, %v7868
    %v8408 = vlaneseq
    %v8409 = vshrl.u32 %v8408, 7
    %v8410 = vsub.s32 6, %v8409
    %v8411 = vrot.slane %v7856, %v8410
    %v8412 = vadd.f32 %v8406, %v8411
    %v8413 = vadd.f32 %v8407, %v8411
    %v8414 = vsel %vm7859, %v8412, -inf
    %v8415 = vsel %vm7922, %v8413, -inf
    %v8416 = vmax.f32 %v8414, %v8415
    %v8417 = vrot.slane %v8416, 4
    %v8418 = vmax.f32 %v8416, %v8417
    %v8419 = vrot.slane %v8418, 2
    %v8420 = vmax.f32 %v8418, %v8419
    %v8421 = vrot.slane %v8420, 1
    %v8422 = vmax.f32 %v8420, %v8421
    %vm8423 = vcmp.eq.f32.partialorder %v8412, %v8422
    %vm8424 = vcmp.eq.f32.partialorder %v8413, %v8422
    %v8425 = vsel %vm8423, %v7865, 9
    %v8426 = vsel %vm8424, %v7866, 9
    %v8427 = vsel %vm7859, %v8425, 2147483647
    %v8428 = vsel %vm7922, %v8426, 2147483647
    %vm8429 = vcmp.lt.s32.totalorder %v8427, %v8428
    %v8430 = vsel %vm8429, %v8427, %v8428
    %v8431 = vrot.slane %v8430, 4
    %vm8432 = vcmp.lt.s32.totalorder %v8430, %v8431
    %v8433 = vsel %vm8432, %v8430, %v8431
    %v8434 = vrot.slane %v8433, 2
    %vm8435 = vcmp.lt.s32.totalorder %v8433, %v8434
    %v8436 = vsel %vm8435, %v8433, %v8434
    %v8437 = vrot.slane %v8436, 1
    %vm8438 = vcmp.lt.s32.totalorder %v8436, %v8437
    %v8439 = vsel %vm8438, %v8436, %v8437
    %s8440 = sld [smem:[#allocation5 + $0x7]]
    %p8441 = scmp.gt.s32.totalorder %s8440, 0
    %s8442 = scalar_select %p8441, 1, 0
    %v8443 = vstv %s8442
    %vm8444 = vcmp.eq.s32.totalorder %v8443, 1
    %v8445 = vsel %vm8444, %v8422, %v8363
    %v8446 = vld [vmem:[#allocation28] sm:$0x1]
    %v8447 = vadd.f32 %v8445, %v8446
    %v8448 = vsel %vm7922, %v8447, -inf
    %8449 = vmax.xlane.f32.xlu0 %v8448
    %v8450 = vpop.xlane.xlu0 %8449
    %v8451 = vrot.slane %v8450, 4
    %v8452 = vmax.f32 %v8450, %v8451
    %v8453 = vrot.slane %v8452, 2
    %v8454 = vmax.f32 %v8452, %v8453
    %v8455 = vrot.slane %v8454, 1
    %v8456 = vmax.f32 %v8454, %v8455
    %s8457 = vtos %v8456
    %v8458 = vstv %s8457
    %vm8459 = vcmp.eq.f32.partialorder %v8447, %v8458
    %v8460 = vsel %vm8459, %v7863, 9
    %v8461 = vsel %vm7922, %v8460, 2147483647
    %v8462 = vand.u32 %v8461, 65535
    %v8463 = vshra.s32 %v8461, 16
    %v8464 = vcvt.s32.f32 %v8462
    %v8465 = vcvt.s32.f32 %v8463
    %8466 = vmin.xlane.f32.xlu0 %v8465
    %v8467 = vpop.xlane.xlu0 %8466
    %vm8468 = vcmp.eq.f32.partialorder %v8465, %v8467
    %v8469 = vsel %vm8468, %v8464, inf
    %8470 = vmin.xlane.f32.xlu0 %v8469
    %v8471 = vpop.xlane.xlu0 %8470
    %v8472 = vcvt.f32.s32 %v8471
    %v8473 = vcvt.f32.s32 %v8467
    %v8474 = vshll.u32 %v8473, 16
    %v8475 = vadd.s32 %v8474, %v8472
    %v8476 = vrot.slane %v8475, 4
    %vm8477 = vcmp.lt.s32.totalorder %v8475, %v8476
    %v8478 = vsel %vm8477, %v8475, %v8476
    %v8479 = vrot.slane %v8478, 2
    %vm8480 = vcmp.lt.s32.totalorder %v8478, %v8479
    %v8481 = vsel %vm8480, %v8478, %v8479
    %v8482 = vrot.slane %v8481, 1
    %vm8483 = vcmp.lt.s32.totalorder %v8481, %v8482
    %v8484 = vsel %vm8483, %v8481, %v8482
    %s8485 = vtos %v8484
    %s8486 = scalar_select %p8441, %s8485, 0
    %s8487 = scalar_lea.smem [#allocation30], 7
    %8488 = sst [smem:[%s8487]] %s8486
    %v8489 = vstv %s8485
    %vm8490 = vcmp.eq.s32.totalorder %v7863, %v8489
    %v8491 = vsel %vm8490, %v8439, 0
    %v8492 = vsel %vm7859, %v8491, 0
    %v8493 = vand.u32 %v8492, 65535
    %v8494 = vshrl.u32 %v8492, 16
    %v8495 = vcvt.s32.f32 %v8493
    %v8496 = vcvt.s32.f32 %v8494
    %8497 = vadd.xlane.f32.xlu0 %v8495
    %v8498 = vpop.xlane.xlu0 %8497
    %8499 = vadd.xlane.f32.xlu0 %v8496
    %v8500 = vpop.xlane.xlu0 %8499
    %v8501 = vcvt.f32.s32 %v8498
    %v8502 = vcvt.f32.s32 %v8500
    %v8503 = vshll.u32 %v8502, 16
    %v8504 = vadd.s32 %v8503, %v8501
    %s8505 = vtos %v8504
    %s8506 = scalar_select %p8441, %s8505, %s8485
    %s8507 = sld [smem:[#allocation5 + $0x6]]
    %p8508 = scmp.gt.s32.totalorder %s8507, 0
    %s8509 = scalar_select %p8508, %s8506, 0
    %s8510 = scalar_lea.smem [#allocation30], 6
    %8511 = sst [smem:[%s8510]] %s8509
    %v8512 = vstv %s8506
    %vm8513 = vcmp.eq.s32.totalorder %v7863, %v8512
    %v8514 = vsel %vm8513, %v8357, 0
    %v8515 = vsel %vm7859, %v8514, 0
    %v8516 = vand.u32 %v8515, 65535
    %v8517 = vshrl.u32 %v8515, 16
    %v8518 = vcvt.s32.f32 %v8516
    %v8519 = vcvt.s32.f32 %v8517
    %8520 = vadd.xlane.f32.xlu0 %v8518
    %v8521 = vpop.xlane.xlu0 %8520
    %8522 = vadd.xlane.f32.xlu0 %v8519
    %v8523 = vpop.xlane.xlu0 %8522
    %v8524 = vcvt.f32.s32 %v8521
    %v8525 = vcvt.f32.s32 %v8523
    %v8526 = vshll.u32 %v8525, 16
    %v8527 = vadd.s32 %v8526, %v8524
    %s8528 = vtos %v8527
    %s8529 = scalar_select %p8508, %s8528, %s8506
    %s8530 = sld [smem:[#allocation5 + $0x5]]
    %p8531 = scmp.gt.s32.totalorder %s8530, 0
    %s8532 = scalar_select %p8531, %s8529, 0
    %s8533 = scalar_lea.smem [#allocation30], 5
    %8534 = sst [smem:[%s8533]] %s8532
    %v8535 = vstv %s8529
    %vm8536 = vcmp.eq.s32.totalorder %v7863, %v8535
    %v8537 = vsel %vm8536, %v8275, 0
    %v8538 = vsel %vm7859, %v8537, 0
    %v8539 = vand.u32 %v8538, 65535
    %v8540 = vshrl.u32 %v8538, 16
    %v8541 = vcvt.s32.f32 %v8539
    %v8542 = vcvt.s32.f32 %v8540
    %8543 = vadd.xlane.f32.xlu0 %v8541
    %v8544 = vpop.xlane.xlu0 %8543
    %8545 = vadd.xlane.f32.xlu0 %v8542
    %v8546 = vpop.xlane.xlu0 %8545
    %v8547 = vcvt.f32.s32 %v8544
    %v8548 = vcvt.f32.s32 %v8546
    %v8549 = vshll.u32 %v8548, 16
    %v8550 = vadd.s32 %v8549, %v8547
    %s8551 = vtos %v8550
    %s8552 = scalar_select %p8531, %s8551, %s8529
    %s8553 = sld [smem:[#allocation5 + $0x4]]
    %p8554 = scmp.gt.s32.totalorder %s8553, 0
    %s8555 = scalar_select %p8554, %s8552, 0
    %s8556 = scalar_lea.smem [#allocation30], 4
    %8557 = sst [smem:[%s8556]] %s8555
    %v8558 = vstv %s8552
    %vm8559 = vcmp.eq.s32.totalorder %v7863, %v8558
    %v8560 = vsel %vm8559, %v8193, 0
    %v8561 = vsel %vm7859, %v8560, 0
    %v8562 = vand.u32 %v8561, 65535
    %v8563 = vshrl.u32 %v8561, 16
    %v8564 = vcvt.s32.f32 %v8562
    %v8565 = vcvt.s32.f32 %v8563
    %8566 = vadd.xlane.f32.xlu0 %v8564
    %v8567 = vpop.xlane.xlu0 %8566
    %8568 = vadd.xlane.f32.xlu0 %v8565
    %v8569 = vpop.xlane.xlu0 %8568
    %v8570 = vcvt.f32.s32 %v8567
    %v8571 = vcvt.f32.s32 %v8569
    %v8572 = vshll.u32 %v8571, 16
    %v8573 = vadd.s32 %v8572, %v8570
    %s8574 = vtos %v8573
    %s8575 = scalar_select %p8554, %s8574, %s8552
    %s8576 = sld [smem:[#allocation5 + $0x3]]
    %p8577 = scmp.gt.s32.totalorder %s8576, 0
    %s8578 = scalar_select %p8577, %s8575, 0
    %s8579 = scalar_lea.smem [#allocation30], 3
    %8580 = sst [smem:[%s8579]] %s8578
    %v8581 = vstv %s8575
    %vm8582 = vcmp.eq.s32.totalorder %v7863, %v8581
    %v8583 = vsel %vm8582, %v8111, 0
    %v8584 = vsel %vm7859, %v8583, 0
    %v8585 = vand.u32 %v8584, 65535
    %v8586 = vshrl.u32 %v8584, 16
    %v8587 = vcvt.s32.f32 %v8585
    %v8588 = vcvt.s32.f32 %v8586
    %8589 = vadd.xlane.f32.xlu0 %v8587
    %v8590 = vpop.xlane.xlu0 %8589
    %8591 = vadd.xlane.f32.xlu0 %v8588
    %v8592 = vpop.xlane.xlu0 %8591
    %v8593 = vcvt.f32.s32 %v8590
    %v8594 = vcvt.f32.s32 %v8592
    %v8595 = vshll.u32 %v8594, 16
    %v8596 = vadd.s32 %v8595, %v8593
    %s8597 = vtos %v8596
    %s8598 = scalar_select %p8577, %s8597, %s8575
    %s8599 = sld [smem:[#allocation5 + $0x2]]
    %p8600 = scmp.gt.s32.totalorder %s8599, 0
    %s8601 = scalar_select %p8600, %s8598, 0
    %s8602 = scalar_lea.smem [#allocation30], 2
    %8603 = sst [smem:[%s8602]] %s8601
    %v8604 = vstv %s8598
    %vm8605 = vcmp.eq.s32.totalorder %v7863, %v8604
    %v8606 = vsel %vm8605, %v8029, 0
    %v8607 = vsel %vm7859, %v8606, 0
    %v8608 = vand.u32 %v8607, 65535
    %v8609 = vshrl.u32 %v8607, 16
    %v8610 = vcvt.s32.f32 %v8608
    %v8611 = vcvt.s32.f32 %v8609
    %8612 = vadd.xlane.f32.xlu0 %v8610
    %v8613 = vpop.xlane.xlu0 %8612
    %8614 = vadd.xlane.f32.xlu0 %v8611
    %v8615 = vpop.xlane.xlu0 %8614
    %v8616 = vcvt.f32.s32 %v8613
    %v8617 = vcvt.f32.s32 %v8615
    %v8618 = vshll.u32 %v8617, 16
    %v8619 = vadd.s32 %v8618, %v8616
    %s8620 = vtos %v8619
    %s8621 = scalar_select %p8600, %s8620, %s8598
    %s8622 = sld [smem:[#allocation5 + $0x1]]
    %p8623 = scmp.gt.s32.totalorder %s8622, 0
    %s8624 = scalar_select %p8623, %s8621, 0
    %s8625 = scalar_lea.smem [#allocation30], 1
    %8626 = sst [smem:[%s8625]] %s8624
    %v8627 = vstv %s8621
    %vm8628 = vcmp.eq.s32.totalorder %v7863, %v8627
    %v8629 = vsel %vm8628, %v7947, 0
    %v8630 = vsel %vm7859, %v8629, 0
    %v8631 = vand.u32 %v8630, 65535
    %v8632 = vshrl.u32 %v8630, 16
    %v8633 = vcvt.s32.f32 %v8631
    %v8634 = vcvt.s32.f32 %v8632
    %8635 = vadd.xlane.f32.xlu0 %v8633
    %v8636 = vpop.xlane.xlu0 %8635
    %8637 = vadd.xlane.f32.xlu0 %v8634
    %v8638 = vpop.xlane.xlu0 %8637
    %v8639 = vcvt.f32.s32 %v8636
    %v8640 = vcvt.f32.s32 %v8638
    %v8641 = vshll.u32 %v8640, 16
    %v8642 = vadd.s32 %v8641, %v8639
    %s8643 = vtos %v8642
    %s8644 = scalar_select %p8623, %s8643, %s8621
    %s8645 = scalar_lea.smem [#allocation30], 0
    %8646 = sst [smem:[%s8645]] %s8644
    %v8647 = vld [vmem:[#allocation27] sm:$0x1]
    %v8650 = vunpack.c.l.s4 1966171168
    %v8651 = vunpack.c.0.s8 %v8650
    %v8652 = vlaneseq
    %v8653 = vshrl.u32 %v8652, 7
    %v8654 = vsub.s32 %v8651, %v8653
    %v8655 = vrot.slane %v7853, %v8654
    %v8656 = vcombine.high %v8655, %v8655
    %v8658 = vunpack.c.l.s4 1966171168
    %v8659 = vunpack.c.0.s8 %v8658
    %v8660 = vlaneseq
    %v8661 = vshrl.u32 %v8660, 7
    %v8662 = vsub.s32 %v8659, %v8661
    %v8663 = vrot.slane %v8656, %v8662
    %v8665 = vadd.f32 %v8647, %v8663
    %8666 = vxpose.xlu0.b32.start [1/16] %v8665, 128
    %8667 = vxpose.xlu0.b32.cont [2/16] 0.0, 128
    %8668 = vxpose.xlu0.b32.cont [3/16] 0.0, 128
    %8669 = vxpose.xlu0.b32.cont [4/16] 0.0, 128
    %8670 = vxpose.xlu0.b32.cont [5/16] 0.0, 128
    %8671 = vxpose.xlu0.b32.cont [6/16] 0.0, 128
    %8672 = vxpose.xlu0.b32.cont [7/16] 0.0, 128
    %8673 = vxpose.xlu0.b32.cont [8/16] 0.0, 128
    %8674 = vxpose.xlu0.b32.cont [9/16] 0.0, 128
    %8675 = vxpose.xlu0.b32.cont [10/16] 0.0, 128
    %8676 = vxpose.xlu0.b32.cont [11/16] 0.0, 128
    %8677 = vxpose.xlu0.b32.cont [12/16] 0.0, 128
    %8678 = vxpose.xlu0.b32.cont [13/16] 0.0, 128
    %8679 = vxpose.xlu0.b32.cont [14/16] 0.0, 128
    %8680 = vxpose.xlu0.b32.cont [15/16] 0.0, 128
    %8681 = vxpose.xlu0.b32.end [16/16] 0.0, 128
    %v8682 = vpop.trf.xlu0
    %v8683 = vpop.trf.xlu0
    %v8684 = vpop.trf.xlu0
    %v8685 = vpop.trf.xlu0
    %v8686 = vpop.trf.xlu0
    %v8687 = vpop.trf.xlu0
    %v8688 = vpop.trf.xlu0
    %v8689 = vpop.trf.xlu0
    %v8690 = vpop.trf.xlu0
    %v8691 = vpop.trf.xlu0
    %v8692 = vpop.trf.xlu0
    %v8693 = vpop.trf.xlu0
    %v8694 = vpop.trf.xlu0
    %v8695 = vpop.trf.xlu0
    %v8696 = vpop.trf.xlu0
    %v8697 = vpop.trf.xlu0
    %8699 = vset.pattern.permute.xlu0 0
    %8700 = vperm.xlu0 %8699, %v8682
    %v8701 = vpop.permute.xlu0 %8700
    %8704 = vset.pattern.permute.xlu0 0
    %8705 = vperm.xlu0 %8704, %v8683
    %v8706 = vpop.permute.xlu0 %8705
    %v8708 = vadd.f32 %v8701, %v7867
    %v8709 = vadd.f32 %v8706, %v7868
    %v8710 = vlaneseq
    %v8711 = vshrl.u32 %v8710, 7
    %v8712 = vsub.s32 3, %v8711
    %v8713 = vrot.slane %v7853, %v8712
    %v8714 = vadd.f32 %v8708, %v8713
    %v8715 = vadd.f32 %v8709, %v8713
    %v8716 = vsel %vm7859, %v8714, -inf
    %v8717 = vsel %vm7922, %v8715, -inf
    %v8718 = vmax.f32 %v8716, %v8717
    %v8719 = vrot.slane %v8718, 4
    %v8720 = vmax.f32 %v8718, %v8719
    %v8721 = vrot.slane %v8720, 2
    %v8722 = vmax.f32 %v8720, %v8721
    %v8723 = vrot.slane %v8722, 1
    %v8724 = vmax.f32 %v8722, %v8723
    %vm8725 = vcmp.eq.f32.partialorder %v8714, %v8724
    %vm8726 = vcmp.eq.f32.partialorder %v8715, %v8724
    %v8727 = vsel %vm8725, %v7865, 9
    %v8728 = vsel %vm8726, %v7866, 9
    %v8729 = vsel %vm7859, %v8727, 2147483647
    %v8730 = vsel %vm7922, %v8728, 2147483647
    %vm8731 = vcmp.lt.s32.totalorder %v8729, %v8730
    %v8732 = vsel %vm8731, %v8729, %v8730
    %v8733 = vrot.slane %v8732, 4
    %vm8734 = vcmp.lt.s32.totalorder %v8732, %v8733
    %v8735 = vsel %vm8734, %v8732, %v8733
    %v8736 = vrot.slane %v8735, 2
    %vm8737 = vcmp.lt.s32.totalorder %v8735, %v8736
    %v8738 = vsel %vm8737, %v8735, %v8736
    %v8739 = vrot.slane %v8738, 1
    %vm8740 = vcmp.lt.s32.totalorder %v8738, %v8739
    %v8741 = vsel %vm8740, %v8738, %v8739
    %s8742 = sld [smem:[#allocation5 + $0x81]]
    %p8743 = scmp.gt.s32.totalorder %s8742, 0
    %s8744 = scalar_select %p8743, 1, 0
    %v8745 = vstv %s8744
    %vm8746 = vcmp.eq.s32.totalorder %v8745, 1
    %v8747 = vsel %vm8746, %v8724, %v8665
    %8748 = vxpose.xlu0.b32.start [1/16] %v8747, 128
    %8749 = vxpose.xlu0.b32.cont [2/16] 0.0, 128
    %8750 = vxpose.xlu0.b32.cont [3/16] 0.0, 128
    %8751 = vxpose.xlu0.b32.cont [4/16] 0.0, 128
    %8752 = vxpose.xlu0.b32.cont [5/16] 0.0, 128
    %8753 = vxpose.xlu0.b32.cont [6/16] 0.0, 128
    %8754 = vxpose.xlu0.b32.cont [7/16] 0.0, 128
    %8755 = vxpose.xlu0.b32.cont [8/16] 0.0, 128
    %8756 = vxpose.xlu0.b32.cont [9/16] 0.0, 128
    %8757 = vxpose.xlu0.b32.cont [10/16] 0.0, 128
    %8758 = vxpose.xlu0.b32.cont [11/16] 0.0, 128
    %8759 = vxpose.xlu0.b32.cont [12/16] 0.0, 128
    %8760 = vxpose.xlu0.b32.cont [13/16] 0.0, 128
    %8761 = vxpose.xlu0.b32.cont [14/16] 0.0, 128
    %8762 = vxpose.xlu0.b32.cont [15/16] 0.0, 128
    %8763 = vxpose.xlu0.b32.end [16/16] 0.0, 128
    %v8764 = vpop.trf.xlu0
    %v8765 = vpop.trf.xlu0
    %v8766 = vpop.trf.xlu0
    %v8767 = vpop.trf.xlu0
    %v8768 = vpop.trf.xlu0
    %v8769 = vpop.trf.xlu0
    %v8770 = vpop.trf.xlu0
    %v8771 = vpop.trf.xlu0
    %v8772 = vpop.trf.xlu0
    %v8773 = vpop.trf.xlu0
    %v8774 = vpop.trf.xlu0
    %v8775 = vpop.trf.xlu0
    %v8776 = vpop.trf.xlu0
    %v8777 = vpop.trf.xlu0
    %v8778 = vpop.trf.xlu0
    %v8779 = vpop.trf.xlu0
    %8781 = vset.pattern.permute.xlu0 0
    %8782 = vperm.xlu0 %8781, %v8764
    %v8783 = vpop.permute.xlu0 %8782
    %8786 = vset.pattern.permute.xlu0 0
    %8787 = vperm.xlu0 %8786, %v8765
    %v8788 = vpop.permute.xlu0 %8787
    %v8790 = vadd.f32 %v8783, %v7867
    %v8791 = vadd.f32 %v8788, %v7868
    %v8792 = vlaneseq
    %v8793 = vshrl.u32 %v8792, 7
    %v8794 = vsub.s32 5, %v8793
    %v8795 = vrot.slane %v7853, %v8794
    %v8796 = vadd.f32 %v8790, %v8795
    %v8797 = vadd.f32 %v8791, %v8795
    %v8798 = vsel %vm7859, %v8796, -inf
    %v8799 = vsel %vm7922, %v8797, -inf
    %v8800 = vmax.f32 %v8798, %v8799
    %v8801 = vrot.slane %v8800, 4
    %v8802 = vmax.f32 %v8800, %v8801
    %v8803 = vrot.slane %v8802, 2
    %v8804 = vmax.f32 %v8802, %v8803
    %v8805 = vrot.slane %v8804, 1
    %v8806 = vmax.f32 %v8804, %v8805
    %vm8807 = vcmp.eq.f32.partialorder %v8796, %v8806
    %vm8808 = vcmp.eq.f32.partialorder %v8797, %v8806
    %v8809 = vsel %vm8807, %v7865, 9
    %v8810 = vsel %vm8808, %v7866, 9
    %v8811 = vsel %vm7859, %v8809, 2147483647
    %v8812 = vsel %vm7922, %v8810, 2147483647
    %vm8813 = vcmp.lt.s32.totalorder %v8811, %v8812
    %v8814 = vsel %vm8813, %v8811, %v8812
    %v8815 = vrot.slane %v8814, 4
    %vm8816 = vcmp.lt.s32.totalorder %v8814, %v8815
    %v8817 = vsel %vm8816, %v8814, %v8815
    %v8818 = vrot.slane %v8817, 2
    %vm8819 = vcmp.lt.s32.totalorder %v8817, %v8818
    %v8820 = vsel %vm8819, %v8817, %v8818
    %v8821 = vrot.slane %v8820, 1
    %vm8822 = vcmp.lt.s32.totalorder %v8820, %v8821
    %v8823 = vsel %vm8822, %v8820, %v8821
    %s8824 = sld [smem:[#allocation5 + $0x82]]
    %p8825 = scmp.gt.s32.totalorder %s8824, 0
    %s8826 = scalar_select %p8825, 1, 0
    %v8827 = vstv %s8826
    %vm8828 = vcmp.eq.s32.totalorder %v8827, 1
    %v8829 = vsel %vm8828, %v8806, %v8747
    %8830 = vxpose.xlu0.b32.start [1/16] %v8829, 128
    %8831 = vxpose.xlu0.b32.cont [2/16] 0.0, 128
    %8832 = vxpose.xlu0.b32.cont [3/16] 0.0, 128
    %8833 = vxpose.xlu0.b32.cont [4/16] 0.0, 128
    %8834 = vxpose.xlu0.b32.cont [5/16] 0.0, 128
    %8835 = vxpose.xlu0.b32.cont [6/16] 0.0, 128
    %8836 = vxpose.xlu0.b32.cont [7/16] 0.0, 128
    %8837 = vxpose.xlu0.b32.cont [8/16] 0.0, 128
    %8838 = vxpose.xlu0.b32.cont [9/16] 0.0, 128
    %8839 = vxpose.xlu0.b32.cont [10/16] 0.0, 128
    %8840 = vxpose.xlu0.b32.cont [11/16] 0.0, 128
    %8841 = vxpose.xlu0.b32.cont [12/16] 0.0, 128
    %8842 = vxpose.xlu0.b32.cont [13/16] 0.0, 128
    %8843 = vxpose.xlu0.b32.cont [14/16] 0.0, 128
    %8844 = vxpose.xlu0.b32.cont [15/16] 0.0, 128
    %8845 = vxpose.xlu0.b32.end [16/16] 0.0, 128
    %v8846 = vpop.trf.xlu0
    %v8847 = vpop.trf.xlu0
    %v8848 = vpop.trf.xlu0
    %v8849 = vpop.trf.xlu0
    %v8850 = vpop.trf.xlu0
    %v8851 = vpop.trf.xlu0
    %v8852 = vpop.trf.xlu0
    %v8853 = vpop.trf.xlu0
    %v8854 = vpop.trf.xlu0
    %v8855 = vpop.trf.xlu0
    %v8856 = vpop.trf.xlu0
    %v8857 = vpop.trf.xlu0
    %v8858 = vpop.trf.xlu0
    %v8859 = vpop.trf.xlu0
    %v8860 = vpop.trf.xlu0
    %v8861 = vpop.trf.xlu0
    %8863 = vset.pattern.permute.xlu0 0
    %8864 = vperm.xlu0 %8863, %v8846
    %v8865 = vpop.permute.xlu0 %8864
    %8868 = vset.pattern.permute.xlu0 0
    %8869 = vperm.xlu0 %8868, %v8847
    %v8870 = vpop.permute.xlu0 %8869
    %v8872 = vadd.f32 %v8865, %v7867
    %v8873 = vadd.f32 %v8870, %v7868
    %v8874 = vlaneseq
    %v8875 = vshrl.u32 %v8874, 7
    %v8876 = vsub.s32 7, %v8875
    %v8877 = vrot.slane %v7853, %v8876
    %v8878 = vadd.f32 %v8872, %v8877
    %v8879 = vadd.f32 %v8873, %v8877
    %v8880 = vsel %vm7859, %v8878, -inf
    %v8881 = vsel %vm7922, %v8879, -inf
    %v8882 = vmax.f32 %v8880, %v8881
    %v8883 = vrot.slane %v8882, 4
    %v8884 = vmax.f32 %v8882, %v8883
    %v8885 = vrot.slane %v8884, 2
    %v8886 = vmax.f32 %v8884, %v8885
    %v8887 = vrot.slane %v8886, 1
    %v8888 = vmax.f32 %v8886, %v8887
    %vm8889 = vcmp.eq.f32.partialorder %v8878, %v8888
    %vm8890 = vcmp.eq.f32.partialorder %v8879, %v8888
    %v8891 = vsel %vm8889, %v7865, 9
    %v8892 = vsel %vm8890, %v7866, 9
    %v8893 = vsel %vm7859, %v8891, 2147483647
    %v8894 = vsel %vm7922, %v8892, 2147483647
    %vm8895 = vcmp.lt.s32.totalorder %v8893, %v8894
    %v8896 = vsel %vm8895, %v8893, %v8894
    %v8897 = vrot.slane %v8896, 4
    %vm8898 = vcmp.lt.s32.totalorder %v8896, %v8897
    %v8899 = vsel %vm8898, %v8896, %v8897
    %v8900 = vrot.slane %v8899, 2
    %vm8901 = vcmp.lt.s32.totalorder %v8899, %v8900
    %v8902 = vsel %vm8901, %v8899, %v8900
    %v8903 = vrot.slane %v8902, 1
    %vm8904 = vcmp.lt.s32.totalorder %v8902, %v8903
    %v8905 = vsel %vm8904, %v8902, %v8903
    %s8906 = sld [smem:[#allocation5 + $0x83]]
    %p8907 = scmp.gt.s32.totalorder %s8906, 0
    %s8908 = scalar_select %p8907, 1, 0
    %v8909 = vstv %s8908
    %vm8910 = vcmp.eq.s32.totalorder %v8909, 1
    %v8911 = vsel %vm8910, %v8888, %v8829
    %8912 = vxpose.xlu0.b32.start [1/16] %v8911, 128
    %8913 = vxpose.xlu0.b32.cont [2/16] 0.0, 128
    %8914 = vxpose.xlu0.b32.cont [3/16] 0.0, 128
    %8915 = vxpose.xlu0.b32.cont [4/16] 0.0, 128
    %8916 = vxpose.xlu0.b32.cont [5/16] 0.0, 128
    %8917 = vxpose.xlu0.b32.cont [6/16] 0.0, 128
    %8918 = vxpose.xlu0.b32.cont [7/16] 0.0, 128
    %8919 = vxpose.xlu0.b32.cont [8/16] 0.0, 128
    %8920 = vxpose.xlu0.b32.cont [9/16] 0.0, 128
    %8921 = vxpose.xlu0.b32.cont [10/16] 0.0, 128
    %8922 = vxpose.xlu0.b32.cont [11/16] 0.0, 128
    %8923 = vxpose.xlu0.b32.cont [12/16] 0.0, 128
    %8924 = vxpose.xlu0.b32.cont [13/16] 0.0, 128
    %8925 = vxpose.xlu0.b32.cont [14/16] 0.0, 128
    %8926 = vxpose.xlu0.b32.cont [15/16] 0.0, 128
    %8927 = vxpose.xlu0.b32.end [16/16] 0.0, 128
    %v8928 = vpop.trf.xlu0
    %v8929 = vpop.trf.xlu0
    %v8930 = vpop.trf.xlu0
    %v8931 = vpop.trf.xlu0
    %v8932 = vpop.trf.xlu0
    %v8933 = vpop.trf.xlu0
    %v8934 = vpop.trf.xlu0
    %v8935 = vpop.trf.xlu0
    %v8936 = vpop.trf.xlu0
    %v8937 = vpop.trf.xlu0
    %v8938 = vpop.trf.xlu0
    %v8939 = vpop.trf.xlu0
    %v8940 = vpop.trf.xlu0
    %v8941 = vpop.trf.xlu0
    %v8942 = vpop.trf.xlu0
    %v8943 = vpop.trf.xlu0
    %8945 = vset.pattern.permute.xlu0 0
    %8946 = vperm.xlu0 %8945, %v8928
    %v8947 = vpop.permute.xlu0 %8946
    %8950 = vset.pattern.permute.xlu0 0
    %8951 = vperm.xlu0 %8950, %v8929
    %v8952 = vpop.permute.xlu0 %8951
    %v8954 = vadd.f32 %v8947, %v7867
    %v8955 = vadd.f32 %v8952, %v7868
    %v8956 = vlaneseq
    %v8957 = vshrl.u32 %v8956, 7
    %v8958 = vsub.s32 1, %v8957
    %v8959 = vrot.slane %v7856, %v8958
    %v8960 = vadd.f32 %v8954, %v8959
    %v8961 = vadd.f32 %v8955, %v8959
    %v8962 = vsel %vm7859, %v8960, -inf
    %v8963 = vsel %vm7922, %v8961, -inf
    %v8964 = vmax.f32 %v8962, %v8963
    %v8965 = vrot.slane %v8964, 4
    %v8966 = vmax.f32 %v8964, %v8965
    %v8967 = vrot.slane %v8966, 2
    %v8968 = vmax.f32 %v8966, %v8967
    %v8969 = vrot.slane %v8968, 1
    %v8970 = vmax.f32 %v8968, %v8969
    %vm8971 = vcmp.eq.f32.partialorder %v8960, %v8970
    %vm8972 = vcmp.eq.f32.partialorder %v8961, %v8970
    %v8973 = vsel %vm8971, %v7865, 9
    %v8974 = vsel %vm8972, %v7866, 9
    %v8975 = vsel %vm7859, %v8973, 2147483647
    %v8976 = vsel %vm7922, %v8974, 2147483647
    %vm8977 = vcmp.lt.s32.totalorder %v8975, %v8976
    %v8978 = vsel %vm8977, %v8975, %v8976
    %v8979 = vrot.slane %v8978, 4
    %vm8980 = vcmp.lt.s32.totalorder %v8978, %v8979
    %v8981 = vsel %vm8980, %v8978, %v8979
    %v8982 = vrot.slane %v8981, 2
    %vm8983 = vcmp.lt.s32.totalorder %v8981, %v8982
    %v8984 = vsel %vm8983, %v8981, %v8982
    %v8985 = vrot.slane %v8984, 1
    %vm8986 = vcmp.lt.s32.totalorder %v8984, %v8985
    %v8987 = vsel %vm8986, %v8984, %v8985
    %s8988 = sld [smem:[#allocation5 + $0x84]]
    %p8989 = scmp.gt.s32.totalorder %s8988, 0
    %s8990 = scalar_select %p8989, 1, 0
    %v8991 = vstv %s8990
    %vm8992 = vcmp.eq.s32.totalorder %v8991, 1
    %v8993 = vsel %vm8992, %v8970, %v8911
    %8994 = vxpose.xlu0.b32.start [1/16] %v8993, 128
    %8995 = vxpose.xlu0.b32.cont [2/16] 0.0, 128
    %8996 = vxpose.xlu0.b32.cont [3/16] 0.0, 128
    %8997 = vxpose.xlu0.b32.cont [4/16] 0.0, 128
    %8998 = vxpose.xlu0.b32.cont [5/16] 0.0, 128
    %8999 = vxpose.xlu0.b32.cont [6/16] 0.0, 128
    %9000 = vxpose.xlu0.b32.cont [7/16] 0.0, 128
    %9001 = vxpose.xlu0.b32.cont [8/16] 0.0, 128
    %9002 = vxpose.xlu0.b32.cont [9/16] 0.0, 128
    %9003 = vxpose.xlu0.b32.cont [10/16] 0.0, 128
    %9004 = vxpose.xlu0.b32.cont [11/16] 0.0, 128
    %9005 = vxpose.xlu0.b32.cont [12/16] 0.0, 128
    %9006 = vxpose.xlu0.b32.cont [13/16] 0.0, 128
    %9007 = vxpose.xlu0.b32.cont [14/16] 0.0, 128
    %9008 = vxpose.xlu0.b32.cont [15/16] 0.0, 128
    %9009 = vxpose.xlu0.b32.end [16/16] 0.0, 128
    %v9010 = vpop.trf.xlu0
    %v9011 = vpop.trf.xlu0
    %v9012 = vpop.trf.xlu0
    %v9013 = vpop.trf.xlu0
    %v9014 = vpop.trf.xlu0
    %v9015 = vpop.trf.xlu0
    %v9016 = vpop.trf.xlu0
    %v9017 = vpop.trf.xlu0
    %v9018 = vpop.trf.xlu0
    %v9019 = vpop.trf.xlu0
    %v9020 = vpop.trf.xlu0
    %v9021 = vpop.trf.xlu0
    %v9022 = vpop.trf.xlu0
    %v9023 = vpop.trf.xlu0
    %v9024 = vpop.trf.xlu0
    %v9025 = vpop.trf.xlu0
    %9027 = vset.pattern.permute.xlu0 0
    %9028 = vperm.xlu0 %9027, %v9010
    %v9029 = vpop.permute.xlu0 %9028
    %9032 = vset.pattern.permute.xlu0 0
    %9033 = vperm.xlu0 %9032, %v9011
    %v9034 = vpop.permute.xlu0 %9033
    %v9036 = vadd.f32 %v9029, %v7867
    %v9037 = vadd.f32 %v9034, %v7868
    %v9038 = vlaneseq
    %v9039 = vshrl.u32 %v9038, 7
    %v9040 = vsub.s32 3, %v9039
    %v9041 = vrot.slane %v7856, %v9040
    %v9042 = vadd.f32 %v9036, %v9041
    %v9043 = vadd.f32 %v9037, %v9041
    %v9044 = vsel %vm7859, %v9042, -inf
    %v9045 = vsel %vm7922, %v9043, -inf
    %v9046 = vmax.f32 %v9044, %v9045
    %v9047 = vrot.slane %v9046, 4
    %v9048 = vmax.f32 %v9046, %v9047
    %v9049 = vrot.slane %v9048, 2
    %v9050 = vmax.f32 %v9048, %v9049
    %v9051 = vrot.slane %v9050, 1
    %v9052 = vmax.f32 %v9050, %v9051
    %vm9053 = vcmp.eq.f32.partialorder %v9042, %v9052
    %vm9054 = vcmp.eq.f32.partialorder %v9043, %v9052
    %v9055 = vsel %vm9053, %v7865, 9
    %v9056 = vsel %vm9054, %v7866, 9
    %v9057 = vsel %vm7859, %v9055, 2147483647
    %v9058 = vsel %vm7922, %v9056, 2147483647
    %vm9059 = vcmp.lt.s32.totalorder %v9057, %v9058
    %v9060 = vsel %vm9059, %v9057, %v9058
    %v9061 = vrot.slane %v9060, 4
    %vm9062 = vcmp.lt.s32.totalorder %v9060, %v9061
    %v9063 = vsel %vm9062, %v9060, %v9061
    %v9064 = vrot.slane %v9063, 2
    %vm9065 = vcmp.lt.s32.totalorder %v9063, %v9064
    %v9066 = vsel %vm9065, %v9063, %v9064
    %v9067 = vrot.slane %v9066, 1
    %vm9068 = vcmp.lt.s32.totalorder %v9066, %v9067
    %v9069 = vsel %vm9068, %v9066, %v9067
    %s9070 = sld [smem:[#allocation5 + $0x85]]
    %p9071 = scmp.gt.s32.totalorder %s9070, 0
    %s9072 = scalar_select %p9071, 1, 0
    %v9073 = vstv %s9072
    %vm9074 = vcmp.eq.s32.totalorder %v9073, 1
    %v9075 = vsel %vm9074, %v9052, %v8993
    %9076 = vxpose.xlu0.b32.start [1/16] %v9075, 128
    %9077 = vxpose.xlu0.b32.cont [2/16] 0.0, 128
    %9078 = vxpose.xlu0.b32.cont [3/16] 0.0, 128
    %9079 = vxpose.xlu0.b32.cont [4/16] 0.0, 128
    %9080 = vxpose.xlu0.b32.cont [5/16] 0.0, 128
    %9081 = vxpose.xlu0.b32.cont [6/16] 0.0, 128
    %9082 = vxpose.xlu0.b32.cont [7/16] 0.0, 128
    %9083 = vxpose.xlu0.b32.cont [8/16] 0.0, 128
    %9084 = vxpose.xlu0.b32.cont [9/16] 0.0, 128
    %9085 = vxpose.xlu0.b32.cont [10/16] 0.0, 128
    %9086 = vxpose.xlu0.b32.cont [11/16] 0.0, 128
    %9087 = vxpose.xlu0.b32.cont [12/16] 0.0, 128
    %9088 = vxpose.xlu0.b32.cont [13/16] 0.0, 128
    %9089 = vxpose.xlu0.b32.cont [14/16] 0.0, 128
    %9090 = vxpose.xlu0.b32.cont [15/16] 0.0, 128
    %9091 = vxpose.xlu0.b32.end [16/16] 0.0, 128
    %v9092 = vpop.trf.xlu0
    %v9093 = vpop.trf.xlu0
    %v9094 = vpop.trf.xlu0
    %v9095 = vpop.trf.xlu0
    %v9096 = vpop.trf.xlu0
    %v9097 = vpop.trf.xlu0
    %v9098 = vpop.trf.xlu0
    %v9099 = vpop.trf.xlu0
    %v9100 = vpop.trf.xlu0
    %v9101 = vpop.trf.xlu0
    %v9102 = vpop.trf.xlu0
    %v9103 = vpop.trf.xlu0
    %v9104 = vpop.trf.xlu0
    %v9105 = vpop.trf.xlu0
    %v9106 = vpop.trf.xlu0
    %v9107 = vpop.trf.xlu0
    %9109 = vset.pattern.permute.xlu0 0
    %9110 = vperm.xlu0 %9109, %v9092
    %v9111 = vpop.permute.xlu0 %9110
    %9114 = vset.pattern.permute.xlu0 0
    %9115 = vperm.xlu0 %9114, %v9093
    %v9116 = vpop.permute.xlu0 %9115
    %v9118 = vadd.f32 %v9111, %v7867
    %v9119 = vadd.f32 %v9116, %v7868
    %v9120 = vlaneseq
    %v9121 = vshrl.u32 %v9120, 7
    %v9122 = vsub.s32 5, %v9121
    %v9123 = vrot.slane %v7856, %v9122
    %v9124 = vadd.f32 %v9118, %v9123
    %v9125 = vadd.f32 %v9119, %v9123
    %v9126 = vsel %vm7859, %v9124, -inf
    %v9127 = vsel %vm7922, %v9125, -inf
    %v9128 = vmax.f32 %v9126, %v9127
    %v9129 = vrot.slane %v9128, 4
    %v9130 = vmax.f32 %v9128, %v9129
    %v9131 = vrot.slane %v9130, 2
    %v9132 = vmax.f32 %v9130, %v9131
    %v9133 = vrot.slane %v9132, 1
    %v9134 = vmax.f32 %v9132, %v9133
    %vm9135 = vcmp.eq.f32.partialorder %v9124, %v9134
    %vm9136 = vcmp.eq.f32.partialorder %v9125, %v9134
    %v9137 = vsel %vm9135, %v7865, 9
    %v9138 = vsel %vm9136, %v7866, 9
    %v9139 = vsel %vm7859, %v9137, 2147483647
    %v9140 = vsel %vm7922, %v9138, 2147483647
    %vm9141 = vcmp.lt.s32.totalorder %v9139, %v9140
    %v9142 = vsel %vm9141, %v9139, %v9140
    %v9143 = vrot.slane %v9142, 4
    %vm9144 = vcmp.lt.s32.totalorder %v9142, %v9143
    %v9145 = vsel %vm9144, %v9142, %v9143
    %v9146 = vrot.slane %v9145, 2
    %vm9147 = vcmp.lt.s32.totalorder %v9145, %v9146
    %v9148 = vsel %vm9147, %v9145, %v9146
    %v9149 = vrot.slane %v9148, 1
    %vm9150 = vcmp.lt.s32.totalorder %v9148, %v9149
    %v9151 = vsel %vm9150, %v9148, %v9149
    %s9152 = sld [smem:[#allocation5 + $0x86]]
    %p9153 = scmp.gt.s32.totalorder %s9152, 0
    %s9154 = scalar_select %p9153, 1, 0
    %v9155 = vstv %s9154
    %vm9156 = vcmp.eq.s32.totalorder %v9155, 1
    %v9157 = vsel %vm9156, %v9134, %v9075
    %9158 = vxpose.xlu0.b32.start [1/16] %v9157, 128
    %9159 = vxpose.xlu0.b32.cont [2/16] 0.0, 128
    %9160 = vxpose.xlu0.b32.cont [3/16] 0.0, 128
    %9161 = vxpose.xlu0.b32.cont [4/16] 0.0, 128
    %9162 = vxpose.xlu0.b32.cont [5/16] 0.0, 128
    %9163 = vxpose.xlu0.b32.cont [6/16] 0.0, 128
    %9164 = vxpose.xlu0.b32.cont [7/16] 0.0, 128
    %9165 = vxpose.xlu0.b32.cont [8/16] 0.0, 128
    %9166 = vxpose.xlu0.b32.cont [9/16] 0.0, 128
    %9167 = vxpose.xlu0.b32.cont [10/16] 0.0, 128
    %9168 = vxpose.xlu0.b32.cont [11/16] 0.0, 128
    %9169 = vxpose.xlu0.b32.cont [12/16] 0.0, 128
    %9170 = vxpose.xlu0.b32.cont [13/16] 0.0, 128
    %9171 = vxpose.xlu0.b32.cont [14/16] 0.0, 128
    %9172 = vxpose.xlu0.b32.cont [15/16] 0.0, 128
    %9173 = vxpose.xlu0.b32.end [16/16] 0.0, 128
    %v9174 = vpop.trf.xlu0
    %v9175 = vpop.trf.xlu0
    %v9176 = vpop.trf.xlu0
    %v9177 = vpop.trf.xlu0
    %v9178 = vpop.trf.xlu0
    %v9179 = vpop.trf.xlu0
    %v9180 = vpop.trf.xlu0
    %v9181 = vpop.trf.xlu0
    %v9182 = vpop.trf.xlu0
    %v9183 = vpop.trf.xlu0
    %v9184 = vpop.trf.xlu0
    %v9185 = vpop.trf.xlu0
    %v9186 = vpop.trf.xlu0
    %v9187 = vpop.trf.xlu0
    %v9188 = vpop.trf.xlu0
    %v9189 = vpop.trf.xlu0
    %9191 = vset.pattern.permute.xlu0 0
    %9192 = vperm.xlu0 %9191, %v9174
    %v9193 = vpop.permute.xlu0 %9192
    %9196 = vset.pattern.permute.xlu0 0
    %9197 = vperm.xlu0 %9196, %v9175
    %v9198 = vpop.permute.xlu0 %9197
    %v9200 = vadd.f32 %v9193, %v7867
    %v9201 = vadd.f32 %v9198, %v7868
    %v9202 = vlaneseq
    %v9203 = vshrl.u32 %v9202, 7
    %v9204 = vsub.s32 7, %v9203
    %v9205 = vrot.slane %v7856, %v9204
    %v9206 = vadd.f32 %v9200, %v9205
    %v9207 = vadd.f32 %v9201, %v9205
    %v9208 = vsel %vm7859, %v9206, -inf
    %v9209 = vsel %vm7922, %v9207, -inf
    %v9210 = vmax.f32 %v9208, %v9209
    %v9211 = vrot.slane %v9210, 4
    %v9212 = vmax.f32 %v9210, %v9211
    %v9213 = vrot.slane %v9212, 2
    %v9214 = vmax.f32 %v9212, %v9213
    %v9215 = vrot.slane %v9214, 1
    %v9216 = vmax.f32 %v9214, %v9215
    %vm9217 = vcmp.eq.f32.partialorder %v9206, %v9216
    %vm9218 = vcmp.eq.f32.partialorder %v9207, %v9216
    %v9219 = vsel %vm9217, %v7865, 9
    %v9220 = vsel %vm9218, %v7866, 9
    %v9221 = vsel %vm7859, %v9219, 2147483647
    %v9222 = vsel %vm7922, %v9220, 2147483647
    %vm9223 = vcmp.lt.s32.totalorder %v9221, %v9222
    %v9224 = vsel %vm9223, %v9221, %v9222
    %v9225 = vrot.slane %v9224, 4
    %vm9226 = vcmp.lt.s32.totalorder %v9224, %v9225
    %v9227 = vsel %vm9226, %v9224, %v9225
    %v9228 = vrot.slane %v9227, 2
    %vm9229 = vcmp.lt.s32.totalorder %v9227, %v9228
    %v9230 = vsel %vm9229, %v9227, %v9228
    %v9231 = vrot.slane %v9230, 1
    %vm9232 = vcmp.lt.s32.totalorder %v9230, %v9231
    %v9233 = vsel %vm9232, %v9230, %v9231
    %s9234 = sld [smem:[#allocation5 + $0x87]]
    %p9235 = scmp.gt.s32.totalorder %s9234, 0
    %s9236 = scalar_select %p9235, 1, 0
    %v9237 = vstv %s9236
    %vm9238 = vcmp.eq.s32.totalorder %v9237, 1
    %v9239 = vsel %vm9238, %v9216, %v9157
    %v9240 = vld [vmem:[#allocation28] sm:$0x1]
    %v9241 = vadd.f32 %v9239, %v9240
    %v9242 = vsel %vm7922, %v9241, -inf
    %9243 = vmax.xlane.f32.xlu0 %v9242
    %v9244 = vpop.xlane.xlu0 %9243
    %v9245 = vrot.slane %v9244, 4
    %v9246 = vmax.f32 %v9244, %v9245
    %v9247 = vrot.slane %v9246, 2
    %v9248 = vmax.f32 %v9246, %v9247
    %v9249 = vrot.slane %v9248, 1
    %v9250 = vmax.f32 %v9248, %v9249
    %s9251 = vtos %v9250
    %v9252 = vstv %s9251
    %vm9253 = vcmp.eq.f32.partialorder %v9241, %v9252
    %v9254 = vsel %vm9253, %v7863, 9
    %v9255 = vsel %vm7922, %v9254, 2147483647
    %v9256 = vand.u32 %v9255, 65535
    %v9257 = vshra.s32 %v9255, 16
    %v9258 = vcvt.s32.f32 %v9256
    %v9259 = vcvt.s32.f32 %v9257
    %9260 = vmin.xlane.f32.xlu0 %v9259
    %v9261 = vpop.xlane.xlu0 %9260
    %vm9262 = vcmp.eq.f32.partialorder %v9259, %v9261
    %v9263 = vsel %vm9262, %v9258, inf
    %9264 = vmin.xlane.f32.xlu0 %v9263
    %v9265 = vpop.xlane.xlu0 %9264
    %v9266 = vcvt.f32.s32 %v9265
    %v9267 = vcvt.f32.s32 %v9261
    %v9268 = vshll.u32 %v9267, 16
    %v9269 = vadd.s32 %v9268, %v9266
    %v9270 = vrot.slane %v9269, 4
    %vm9271 = vcmp.lt.s32.totalorder %v9269, %v9270
    %v9272 = vsel %vm9271, %v9269, %v9270
    %v9273 = vrot.slane %v9272, 2
    %vm9274 = vcmp.lt.s32.totalorder %v9272, %v9273
    %v9275 = vsel %vm9274, %v9272, %v9273
    %v9276 = vrot.slane %v9275, 1
    %vm9277 = vcmp.lt.s32.totalorder %v9275, %v9276
    %v9278 = vsel %vm9277, %v9275, %v9276
    %s9279 = vtos %v9278
    %s9280 = scalar_select %p9235, %s9279, 0
    %s9281 = scalar_lea.smem [#allocation30], 135
    %9282 = sst [smem:[%s9281]] %s9280
    %v9283 = vstv %s9279
    %vm9284 = vcmp.eq.s32.totalorder %v7863, %v9283
    %v9285 = vsel %vm9284, %v9233, 0
    %v9286 = vsel %vm7859, %v9285, 0
    %v9287 = vand.u32 %v9286, 65535
    %v9288 = vshrl.u32 %v9286, 16
    %v9289 = vcvt.s32.f32 %v9287
    %v9290 = vcvt.s32.f32 %v9288
    %9291 = vadd.xlane.f32.xlu0 %v9289
    %v9292 = vpop.xlane.xlu0 %9291
    %9293 = vadd.xlane.f32.xlu0 %v9290
    %v9294 = vpop.xlane.xlu0 %9293
    %v9295 = vcvt.f32.s32 %v9292
    %v9296 = vcvt.f32.s32 %v9294
    %v9297 = vshll.u32 %v9296, 16
    %v9298 = vadd.s32 %v9297, %v9295
    %s9299 = vtos %v9298
    %s9300 = scalar_select %p9235, %s9299, %s9279
    %s9301 = sld [smem:[#allocation5 + $0x86]]
    %p9302 = scmp.gt.s32.totalorder %s9301, 0
    %s9303 = scalar_select %p9302, %s9300, 0
    %s9304 = scalar_lea.smem [#allocation30], 134
    %9305 = sst [smem:[%s9304]] %s9303
    %v9306 = vstv %s9300
    %vm9307 = vcmp.eq.s32.totalorder %v7863, %v9306
    %v9308 = vsel %vm9307, %v9151, 0
    %v9309 = vsel %vm7859, %v9308, 0
    %v9310 = vand.u32 %v9309, 65535
    %v9311 = vshrl.u32 %v9309, 16
    %v9312 = vcvt.s32.f32 %v9310
    %v9313 = vcvt.s32.f32 %v9311
    %9314 = vadd.xlane.f32.xlu0 %v9312
    %v9315 = vpop.xlane.xlu0 %9314
    %9316 = vadd.xlane.f32.xlu0 %v9313
    %v9317 = vpop.xlane.xlu0 %9316
    %v9318 = vcvt.f32.s32 %v9315
    %v9319 = vcvt.f32.s32 %v9317
    %v9320 = vshll.u32 %v9319, 16
    %v9321 = vadd.s32 %v9320, %v9318
    %s9322 = vtos %v9321
    %s9323 = scalar_select %p9302, %s9322, %s9300
    %s9324 = sld [smem:[#allocation5 + $0x85]]
    %p9325 = scmp.gt.s32.totalorder %s9324, 0
    %s9326 = scalar_select %p9325, %s9323, 0
    %s9327 = scalar_lea.smem [#allocation30], 133
    %9328 = sst [smem:[%s9327]] %s9326
    %v9329 = vstv %s9323
    %vm9330 = vcmp.eq.s32.totalorder %v7863, %v9329
    %v9331 = vsel %vm9330, %v9069, 0
    %v9332 = vsel %vm7859, %v9331, 0
    %v9333 = vand.u32 %v9332, 65535
    %v9334 = vshrl.u32 %v9332, 16
    %v9335 = vcvt.s32.f32 %v9333
    %v9336 = vcvt.s32.f32 %v9334
    %9337 = vadd.xlane.f32.xlu0 %v9335
    %v9338 = vpop.xlane.xlu0 %9337
    %9339 = vadd.xlane.f32.xlu0 %v9336
    %v9340 = vpop.xlane.xlu0 %9339
    %v9341 = vcvt.f32.s32 %v9338
    %v9342 = vcvt.f32.s32 %v9340
    %v9343 = vshll.u32 %v9342, 16
    %v9344 = vadd.s32 %v9343, %v9341
    %s9345 = vtos %v9344
    %s9346 = scalar_select %p9325, %s9345, %s9323
    %s9347 = sld [smem:[#allocation5 + $0x84]]
    %p9348 = scmp.gt.s32.totalorder %s9347, 0
    %s9349 = scalar_select %p9348, %s9346, 0
    %s9350 = scalar_lea.smem [#allocation30], 132
    %9351 = sst [smem:[%s9350]] %s9349
    %v9352 = vstv %s9346
    %vm9353 = vcmp.eq.s32.totalorder %v7863, %v9352
    %v9354 = vsel %vm9353, %v8987, 0
    %v9355 = vsel %vm7859, %v9354, 0
    %v9356 = vand.u32 %v9355, 65535
    %v9357 = vshrl.u32 %v9355, 16
    %v9358 = vcvt.s32.f32 %v9356
    %v9359 = vcvt.s32.f32 %v9357
    %9360 = vadd.xlane.f32.xlu0 %v9358
    %v9361 = vpop.xlane.xlu0 %9360
    %9362 = vadd.xlane.f32.xlu0 %v9359
    %v9363 = vpop.xlane.xlu0 %9362
    %v9364 = vcvt.f32.s32 %v9361
    %v9365 = vcvt.f32.s32 %v9363
    %v9366 = vshll.u32 %v9365, 16
    %v9367 = vadd.s32 %v9366, %v9364
    %s9368 = vtos %v9367
    %s9369 = scalar_select %p9348, %s9368, %s9346
    %s9370 = sld [smem:[#allocation5 + $0x83]]
    %p9371 = scmp.gt.s32.totalorder %s9370, 0
    %s9372 = scalar_select %p9371, %s9369, 0
    %s9373 = scalar_lea.smem [#allocation30], 131
    %9374 = sst [smem:[%s9373]] %s9372
    %v9375 = vstv %s9369
    %vm9376 = vcmp.eq.s32.totalorder %v7863, %v9375
    %v9377 = vsel %vm9376, %v8905, 0
    %v9378 = vsel %vm7859, %v9377, 0
    %v9379 = vand.u32 %v9378, 65535
    %v9380 = vshrl.u32 %v9378, 16
    %v9381 = vcvt.s32.f32 %v9379
    %v9382 = vcvt.s32.f32 %v9380
    %9383 = vadd.xlane.f32.xlu0 %v9381
    %v9384 = vpop.xlane.xlu0 %9383
    %9385 = vadd.xlane.f32.xlu0 %v9382
    %v9386 = vpop.xlane.xlu0 %9385
    %v9387 = vcvt.f32.s32 %v9384
    %v9388 = vcvt.f32.s32 %v9386
    %v9389 = vshll.u32 %v9388, 16
    %v9390 = vadd.s32 %v9389, %v9387
    %s9391 = vtos %v9390
    %s9392 = scalar_select %p9371, %s9391, %s9369
    %s9393 = sld [smem:[#allocation5 + $0x82]]
    %p9394 = scmp.gt.s32.totalorder %s9393, 0
    %s9395 = scalar_select %p9394, %s9392, 0
    %s9396 = scalar_lea.smem [#allocation30], 130
    %9397 = sst [smem:[%s9396]] %s9395
    %v9398 = vstv %s9392
    %vm9399 = vcmp.eq.s32.totalorder %v7863, %v9398
    %v9400 = vsel %vm9399, %v8823, 0
    %v9401 = vsel %vm7859, %v9400, 0
    %v9402 = vand.u32 %v9401, 65535
    %v9403 = vshrl.u32 %v9401, 16
    %v9404 = vcvt.s32.f32 %v9402
    %v9405 = vcvt.s32.f32 %v9403
    %9406 = vadd.xlane.f32.xlu0 %v9404
    %v9407 = vpop.xlane.xlu0 %9406
    %9408 = vadd.xlane.f32.xlu0 %v9405
    %v9409 = vpop.xlane.xlu0 %9408
    %v9410 = vcvt.f32.s32 %v9407
    %v9411 = vcvt.f32.s32 %v9409
    %v9412 = vshll.u32 %v9411, 16
    %v9413 = vadd.s32 %v9412, %v9410
    %s9414 = vtos %v9413
    %s9415 = scalar_select %p9394, %s9414, %s9392
    %s9416 = sld [smem:[#allocation5 + $0x81]]
    %p9417 = scmp.gt.s32.totalorder %s9416, 0
    %s9418 = scalar_select %p9417, %s9415, 0
    %s9419 = scalar_lea.smem [#allocation30], 129
    %9420 = sst [smem:[%s9419]] %s9418
    %v9421 = vstv %s9415
    %vm9422 = vcmp.eq.s32.totalorder %v7863, %v9421
    %v9423 = vsel %vm9422, %v8741, 0
    %v9424 = vsel %vm7859, %v9423, 0
    %v9425 = vand.u32 %v9424, 65535
    %v9426 = vshrl.u32 %v9424, 16
    %v9427 = vcvt.s32.f32 %v9425
    %v9428 = vcvt.s32.f32 %v9426
    %9429 = vadd.xlane.f32.xlu0 %v9427
    %v9430 = vpop.xlane.xlu0 %9429
    %9431 = vadd.xlane.f32.xlu0 %v9428
    %v9432 = vpop.xlane.xlu0 %9431
    %v9433 = vcvt.f32.s32 %v9430
    %v9434 = vcvt.f32.s32 %v9432
    %v9435 = vshll.u32 %v9434, 16
    %v9436 = vadd.s32 %v9435, %v9433
    %s9437 = vtos %v9436
    %s9438 = scalar_select %p9417, %s9437, %s9415
    %s9439 = scalar_lea.smem [#allocation30], 128
    %9440 = sst [smem:[%s9439]] %s9438
    // Predicated region
    $region174: #{forward.1} parent=1 // pred_check
      _
    $region175: #{forward.1} parent=1 // pred_check_branch
      %9442 = sbr.rel (0) target = $region177
    $region176: #{forward.1} parent=1 // pred_region
      %s9444 = ssub.s32 32, 32
      %9445 = vsyncadd [#allocation7], %s9444
      %9448 = dma.smem_to_hbm [#allocation30], 32, %s57, [#allocation7]
    $region177: #{forward.1} parent=1 // pred_fallthru
      _
    // Predicated region
    $region178: #{forward.1} parent=1 // pred_check
      _
    $region179: #{forward.1} parent=1 // pred_check_branch
      %9450 = sbr.rel (0) target = $region181
    $region180: #{forward.1} parent=1 // pred_region
      _
    $region181: #{forward.1} parent=1 // pred_fallthru
      _
    // Predicated region
    $region182: #{forward.1} parent=1 // pred_check
      _
    $region183: #{forward.1} parent=1 // pred_check_branch
      %9452 = sbr.rel (0) target = $region185
    $region184: #{forward.1} parent=1 // pred_region
      %9453 = dma.done [#allocation7], 32
    $region185: #{forward.1} parent=1 // pred_fallthru
      _
    // Predicated region
    $region186: #{forward.1} parent=1 // pred_check
      _
    $region187: #{forward.1} parent=1 // pred_check_branch
      %9455 = sbr.rel (0) target = $region189
    $region188: #{forward.1} parent=1 // pred_region
      _
    $region189: #{forward.1} parent=1 // pred_fallthru
      _
    %9456 = sfence
    %9457 = vsyncpa [#allocation6], 1
    %9458 = vsyncpa [#allocation11], 1
    %9459 = vsyncpa [#allocation14], 1
    %9460 = vsyncpa [#allocation17], 1
    %9461 = vsyncpa [#allocation20], 1
    %9462 = vsyncpa [#allocation23], 1
    %9463 = vsyncpa [#allocation26], 1
    %9464 = vsyncpa [#allocation29], 1
    %9465 = vsyncpa [#allocation7], 1
    %9466 = vsyncpa [#allocation8], 1

</llo_original>
